<compile_context>
chip_gen: v6e
topology: v6e:2x2x1
jax: 0.10.0
libtpu: 0.0.40
codegen_flags: <defaults>
</compile_context>

<pallas_src>
import functools

import numpy as np
import jax
import jax.numpy as jnp
from jax import lax
from jax.experimental import pallas as pl
from jax.experimental.pallas import tpu as pltpu


# ----------------------------------------------------------------------------- helpers
def _softplus(v):
    # numerically stable softplus (same formula in kernel and reference)
    return jnp.maximum(v, 0.0) + jnp.log(1.0 + jnp.exp(-jnp.abs(v)))


def _softmax_ref(v):
    m = jnp.max(v, axis=-1, keepdims=True)
    e = jnp.exp(v - m)
    return e / jnp.sum(e, axis=-1, keepdims=True)


# ----------------------------------------------------------------------------- fused kernel
def fused_encoder_kernel(
        asr_ref, h0_ref, gn_ref, eps_ref,
        wenc_ref, benc_ref,
        wih_ref, bih_ref, whh_ref, bhh_ref,
        wpack_hbm,                                   # (WROWS, 512) bf16, stays in HBM (pl.ANY)
        wl_ref, wmv_ref,
        b1_ref, b2_ref, bl_ref, bz1_ref, bz2_ref, bmv_ref,
        gru_out_ref, head_out_ref,
        gx_s, wpk, dma_sem,
        *, T, Bp, HP, C, L, CPAD, inv_temp):
    f32 = jnp.float32
    bf16 = jnp.bfloat16
    N = T * Bp
    GP = 128                                  # per-gate lane-padded width
    INTER = wl_ref.shape[0]                   # 512

    # ---- 0. kick off the head-weight DMA so it overlaps the serial GRU recurrence ----
    wcopy = pltpu.make_async_copy(wpack_hbm, wpk, dma_sem)
    wcopy.start()

    # ---- 1. feature encoders + input-to-hidden gates for ALL timesteps (two GEMMs) ----
    feat = jnp.maximum(
        jnp.dot(asr_ref[...], wenc_ref[...], preferred_element_type=f32) + benc_ref[...], 0.0)
    gx_s[...] = jnp.dot(feat, wih_ref[...], preferred_element_type=f32) + bih_ref[...]

    # hoist the hidden-bias broadcast once (JAX doesn't CSE broadcast_in_dim)
    bhh = jnp.broadcast_to(bhh_ref[...], (Bp, 3 * GP))

    # ---- 2. serial GRU recurrence: ONE lane-padded MXU push per step, vreg-aligned slices ----
    def gru_step(t, h):
        row = pl.multiple_of(t * Bp, Bp)
        gx = gx_s[pl.ds(row, Bp), :]                                       # (Bp, 384)
        gh = jnp.dot(h, whh_ref[...], preferred_element_type=f32) + bhh    # (Bp, 384)
        r = jax.nn.sigmoid(gx[:, 0:GP] + gh[:, 0:GP])
        zg = jax.nn.sigmoid(gx[:, GP:2 * GP] + gh[:, GP:2 * GP])
        ng = jnp.tanh(gx[:, 2 * GP:3 * GP] + r * gh[:, 2 * GP:3 * GP])
        h_new = (1.0 - zg) * ng + zg * h                                   # (Bp, 128)
        gru_out_ref[pl.ds(row, Bp), :] = h_new
        return h_new

    lax.fori_loop(0, T, gru_step, h0_ref[...], unroll=True)

    # ---- 3. wait for head weights, run the inference head in bf16 (f32 accumulate) ----
    wcopy.wait()

    r0 = 0
    w1p = wpk[r0:r0 + HP, :];       r0 += HP
    w2 = wpk[r0:r0 + INTER, :];     r0 += INTER
    wz1xp = wpk[r0:r0 + HP, :];     r0 += HP
    wz1yp = wpk[r0:r0 + CPAD, :];   r0 += CPAD
    wz2 = wpk[r0:r0 + INTER, :]

    def softmax(v):
        m = jnp.max(v, axis=-1, keepdims=True)
        e = jnp.exp(v - m)
        return e * pl.reciprocal(jnp.sum(e, axis=-1, keepdims=True), approx=True)

    x = gru_out_ref[...]                                                   # (N, 128) f32
    xb = x.astype(bf16)

    # qyx MLP + GumbelSoftmax(logits, prob, y)
    h1 = jnp.maximum(jnp.dot(xb, w1p, preferred_element_type=f32) + b1_ref[...], 0.0)
    h2 = jnp.maximum(jnp.dot(h1.astype(bf16), w2, preferred_element_type=f32) + b2_ref[...], 0.0)
    logits = jnp.dot(h2.astype(bf16), wl_ref[...], preferred_element_type=f32) + bl_ref[...]
    prob = softmax(logits)
    y = softmax((logits + gn_ref[...]) * inv_temp)                         # gumbel-softmax (hard=0)

    # qzyx MLP + Gaussian head.  concat(x, y) @ W == x @ Wx + y @ Wy
    if CPAD > C:
        ypad = jnp.concatenate([y, jnp.zeros((N, CPAD - C), f32)], axis=-1)
    else:
        ypad = y
    g1 = jnp.maximum(
        jnp.dot(xb, wz1xp, preferred_element_type=f32)
        + jnp.dot(ypad.astype(bf16), wz1yp, preferred_element_type=f32)
        + bz1_ref[...], 0.0)
    g2 = jnp.maximum(jnp.dot(g1.astype(bf16), wz2, preferred_element_type=f32) + bz2_ref[...], 0.0)
    mv = jnp.dot(g2.astype(bf16), wmv_ref[...], preferred_element_type=f32) + bmv_ref[...]
    mu = mv[:, 0:L]
    var = _softplus(mv[:, L:2 * L])
    z = mu + eps_ref[...] * jnp.sqrt(var + 1e-10)

    # ---- 4. single unmasked lane-dense store of all head outputs ----
    pad = head_out_ref.shape[1] - (3 * C + 3 * L)
    parts = [logits, prob, y, mu, var, z]
    if pad > 0:
        parts.append(jnp.zeros((N, pad), f32))
    head_out_ref[...] = jnp.concatenate(parts, axis=-1)


# ----------------------------------------------------------------------------- wrapper
def run_fused(params, actions, states, rewards, h0, gnoise, eps, temperature):
    f32 = jnp.float32
    bf16 = jnp.bfloat16
    T, B, A = actions.shape
    S = states.shape[2]
    R = rewards.shape[2]
    H = params["whh"].shape[0]
    C = params["wl"].shape[1]
    L = params["wmu"].shape[1]
    AE = params["wa"].shape[1]
    SE = params["ws"].shape[1]
    RE = params["wr"].shape[1]
    INTER = params["w1"].shape[1]

    Din = A + S + R
    De = AE + SE + RE
    DP = 128          # padded raw-input / encoder-output lane width
    HP = 128          # padded hidden lane width (H=64 -> one full vreg)
    GP = 128          # per-gate lane block inside the packed 3*128 gate matrices
    CPAD = 16         # class dim padded to a bf16 sublane multiple for the y @ wz1y GEMM
    Bp = max(8, -(-B // 8) * 8)
    N = T * Bp
    PW = -(-(3 * C + 3 * L) // 128) * 128
    assert H <= HP and De <= DP and Din <= DP and C <= CPAD

    # --- (T,B,*) tensors: pad batch to Bp, zero-pad lanes, flatten to (N, .) ---
    asr = jnp.concatenate([actions, states, rewards], axis=-1)                      # (T,B,Din)
    asr_p = jnp.zeros((T, Bp, DP), f32).at[:, :B, :Din].set(asr).reshape(N, DP)
    h0_p = jnp.zeros((Bp, HP), f32).at[:B, :H].set(h0[0])
    gn = jnp.zeros((T, Bp, C), f32).at[:, :B, :].set(gnoise.reshape(T, B, C)).reshape(N, C)
    ep = jnp.zeros((T, Bp, L), f32).at[:, :B, :].set(eps.reshape(T, B, L)).reshape(N, L)

    # --- merged block-diagonal feature-encoder weight, padded to 128 lanes ---
    wenc = jnp.zeros((DP, DP), f32)
    wenc = wenc.at[0:A, 0:AE].set(params["wa"])
    wenc = wenc.at[A:A + S, AE:AE + SE].set(params["ws"])
    wenc = wenc.at[A + S:Din, AE + SE:De].set(params["wr"])
    benc = jnp.zeros((1, DP), f32).at[:, :De].set(
        jnp.concatenate([params["ba"], params["bs"], params["br"]], axis=-1))

    # --- GRU weights: one gate-lane-padded (., 3*128) matrix per side ---
    def gate_pack(w, rows, rpad):
        out = jnp.zeros((rpad, 3 * GP), f32)
        out = out.at[:rows, 0:H].set(w[:, 0:H])
        out = out.at[:rows, GP:GP + H].set(w[:, H:2 * H])
        out = out.at[:rows, 2 * GP:2 * GP + H].set(w[:, 2 * H:3 * H])
        return out

    wih = jnp.concatenate([params["wih_a"], params["wih_s"], params["wih_r"]], axis=0)  # (De,3H)
    wih_p = gate_pack(wih, De, DP)
    whh_p = gate_pack(params["whh"], H, HP)
    bih_p = gate_pack(params["bih"], 1, 1)
    bhh_p = gate_pack(params["bhh"], 1, 1)

    # --- bf16 head weights: all (., 512) matrices row-stacked into one HBM slab (manual DMA) ---
    w1p = jnp.zeros((HP, INTER), f32).at[:H].set(params["w1"])
    wz1xp = jnp.zeros((HP, INTER), f32).at[:H].set(params["wz1x"])
    wz1yp = jnp.zeros((CPAD, INTER), f32).at[:C].set(params["wz1y"])
    wpack = jnp.concatenate([w1p, params["w2"], wz1xp, wz1yp, params["wz2"]],
                            axis=0).astype(bf16)                                   # (1296, 512)
    WROWS = wpack.shape[0]

    wl = params["wl"].astype(bf16)                                                 # (512, C)
    wmv = jnp.concatenate([params["wmu"], params["wvar"]], axis=-1).astype(bf16)   # (512, 2L)
    bmv = jnp.concatenate([params["bmu"], params["bvar"]], axis=-1)                # (1, 2L)

    inputs = [asr_p, h0_p, gn, ep, wenc, benc,
              wih_p, bih_p, whh_p, bhh_p,
              wpack,
              wl, wmv,
              params["b1"], params["b2"], params["bl"],
              params["bz1"], params["bz2"], bmv]

    def fixed(shape):
        n = len(shape)
        return pl.BlockSpec(shape, lambda i, n=n: (0,) * n)

    in_specs = ([fixed(v.shape) for v in inputs[:10]]
                + [pl.BlockSpec(memory_space=pl.ANY)]          # wpack stays in HBM
                + [fixed(v.shape) for v in inputs[11:]])

    out_shapes = (jax.ShapeDtypeStruct((N, HP), f32),
                  jax.ShapeDtypeStruct((N, PW), f32))
    out_specs = [fixed((N, HP)), fixed((N, PW))]

    kernel = functools.partial(fused_encoder_kernel, T=T, Bp=Bp, HP=HP, C=C, L=L,
                               CPAD=CPAD, inv_temp=float(1.0 / temperature))

    gru_out, packed = pl.pallas_call(
        kernel,
        out_shape=out_shapes,
        grid=(1,),
        in_specs=in_specs,
        out_specs=out_specs,
        scratch_shapes=[pltpu.VMEM((N, 3 * GP), f32),          # gx scratch (all timesteps)
                        pltpu.VMEM((WROWS, INTER), bf16),      # single-buffered head weights
                        pltpu.SemaphoreType.DMA(())],
        compiler_params=pltpu.CompilerParams(dimension_semantics=("arbitrary",)),
    )(*inputs)

    # un-pad + split the packed slab back into the six head outputs
    output = gru_out.reshape(T, Bp, HP)[:, :B, :H]
    packed = packed.reshape(T, Bp, PW)[:, :B, :]
    logits = packed[..., 0:C]
    prob = packed[..., C:2 * C]
    y = packed[..., 2 * C:3 * C]
    o = 3 * C
    mu = packed[..., o:o + L]
    var = packed[..., o + L:o + 2 * L]
    z = packed[..., o + 2 * L:o + 3 * L]
    return output, logits, prob, y, mu, var, z


# ----------------------------------------------------------------------------- full forward
def rnn_encoder_mixture_forward(params, actions, states, rewards, hidden_state,
                                key, temperature=1.0):
    """Mirrors RNNEncoder_mixture.forward with return_prior=False, detach_every=None,
    y_intercept=None, empty layers_before_gru / layers_after_gru."""
    T, B, _ = actions.shape
    C = params["wl"].shape[1]
    L = params["wmu"].shape[1]

    # deterministic noise (replaces torch.rand / torch.randn_like)
    kg, ke = jax.random.split(key)
    u = jax.random.uniform(kg, (T * B, C), jnp.float32)
    gnoise = -jnp.log(-jnp.log(u + 1e-20) + 1e-20)
    eps = jax.random.normal(ke, (T * B, L), jnp.float32)

    output, logits, prob, y, mu, var, z = run_fused(
        params, actions, states, rewards, hidden_state, gnoise, eps, temperature)

    if T == 1:
        y, z, mu, var, logits, prob = y[0], z[0], mu[0], var[0], logits[0], prob[0]

    return (z, mu, jnp.log(var + 1e-20), output, y, z, mu, var, logits, prob)


# ----------------------------------------------------------------------------- reference (pure JAX)
def reference_forward(params, actions, states, rewards, hidden_state, key, temperature=1.0):
    T, B, _ = actions.shape
    H = params["whh"].shape[0]
    C = params["wl"].shape[1]
    L = params["wmu"].shape[1]

    ha = jax.nn.relu(actions @ params["wa"] + params["ba"])
    hs = jax.nn.relu(states @ params["ws"] + params["bs"])
    hr = jax.nn.relu(rewards @ params["wr"] + params["br"])
    h_in = jnp.concatenate([ha, hs, hr], axis=-1)
    wih = jnp.concatenate([params["wih_a"], params["wih_s"], params["wih_r"]], axis=0)

    def step(h, x_t):
        gx = x_t @ wih + params["bih"]
        gh = h @ params["whh"] + params["bhh"]
        r = jax.nn.sigmoid(gx[:, :H] + gh[:, :H])
        zg = jax.nn.sigmoid(gx[:, H:2 * H] + gh[:, H:2 * H])
        ng = jnp.tanh(gx[:, 2 * H:] + r * gh[:, 2 * H:])
        h_new = (1.0 - zg) * ng + zg * h
        return h_new, h_new

    _, output = jax.lax.scan(step, hidden_state[0], h_in)
    x = output.reshape(T * B, H)

    kg, ke = jax.random.split(key)
    u = jax.random.uniform(kg, (T * B, C), jnp.float32)
    gnoise = -jnp.log(-jnp.log(u + 1e-20) + 1e-20)
    eps = jax.random.normal(ke, (T * B, L), jnp.float32)

    h1 = jax.nn.relu(x @ params["w1"] + params["b1"])
    h2 = jax.nn.relu(h1 @ params["w2"] + params["b2"])
    logits = h2 @ params["wl"] + params["bl"]
    prob = _softmax_ref(logits)
    y = _softmax_ref((logits + gnoise) / temperature)

    g1 = jax.nn.relu(x @ params["wz1x"] + y @ params["wz1y"] + params["bz1"])
    g2 = jax.nn.relu(g1 @ params["wz2"] + params["bz2"])
    mu = g2 @ params["wmu"] + params["bmu"]
    var = _softplus(g2 @ params["wvar"] + params["bvar"])
    z = mu + eps * jnp.sqrt(var + 1e-10)
    return output, logits, prob, y, mu, var, z


# ----------------------------------------------------------------------------- param init
def make_params(key, action_dim, state_dim, reward_size,
                action_embed, state_embed, reward_embed,
                hidden, class_dim, latent_dim, inter=512):
    def lin(k, fi, fo, zero_bias=False):
        k1, k2 = jax.random.split(k)
        bound = 1.0 / np.sqrt(fi)
        w = jax.random.uniform(k1, (fi, fo), jnp.float32, -bound, bound)
        b = (jnp.zeros((1, fo), jnp.float32) if zero_bias
             else jax.random.uniform(k2, (1, fo), jnp.float32, -bound, bound))
        return w, b

    keys = jax.random.split(key, 16)
    p = {}
    p["wa"], p["ba"] = lin(keys[0], action_dim, action_embed)
    p["ws"], p["bs"] = lin(keys[1], state_dim, state_embed)
    p["wr"], p["br"] = lin(keys[2], reward_size, reward_embed)
    # GRU weights (PyTorch: orthogonal weights, zero biases -> any deterministic init, zero bias)
    scale = 0.1
    p["wih_a"] = scale * jax.random.normal(keys[3], (action_embed, 3 * hidden), jnp.float32)
    p["wih_s"] = scale * jax.random.normal(keys[4], (state_embed, 3 * hidden), jnp.float32)
    p["wih_r"] = scale * jax.random.normal(keys[5], (reward_embed, 3 * hidden), jnp.float32)
    p["whh"] = scale * jax.random.normal(keys[6], (hidden, 3 * hidden), jnp.float32)
    p["bih"] = jnp.zeros((1, 3 * hidden), jnp.float32)
    p["bhh"] = jnp.zeros((1, 3 * hidden), jnp.float32)
    # inference_qyx : Linear(H,512) ReLU Linear(512,512) ReLU GumbelSoftmax(512, C)
    p["w1"], p["b1"] = lin(keys[7], hidden, inter)
    p["w2"], p["b2"] = lin(keys[8], inter, inter)
    p["wl"], p["bl"] = lin(keys[9], inter, class_dim)
    # inference_qzyx : Linear(H+C,512) ReLU Linear(512,512) ReLU Gaussian(512, L)
    wz1, p["bz1"] = lin(keys[10], hidden + class_dim, inter)
    p["wz1x"], p["wz1y"] = wz1[:hidden], wz1[hidden:]
    p["wz2"], p["bz2"] = lin(keys[11], inter, inter)
    p["wmu"], p["bmu"] = lin(keys[12], inter, latent_dim)
    p["wvar"], p["bvar"] = lin(keys[13], inter, latent_dim)
    return p


# ----------------------------------------------------------------------------- main
if __name__ == "__main__":
    # module defaults: hidden_size=64, class_dim=10, latent_dim=32,
    # action_dim=2, action_embed_dim=10, state_dim=2, state_embed_dim=10,
    # reward_size=1, reward_embed_size=5, inner MLP width 512.
    T, B = 8, 4
    ACT, ST, RW = 2, 2, 1
    A_EMB, S_EMB, R_EMB = 10, 10, 5
    HID, CDIM, LDIM = 64, 10, 32
    TEMPERATURE = 1.0

    root = jax.random.PRNGKey(0)
    kp, ka, ks, kr, kh, knoise = jax.random.split(root, 6)

    params = make_params(kp, ACT, ST, RW, A_EMB, S_EMB, R_EMB, HID, CDIM, LDIM)

    actions = jax.random.normal(ka, (T, B, ACT), jnp.float32)
    states = jax.random.normal(ks, (T, B, ST), jnp.float32)
    rewards = jax.random.normal(kr, (T, B, RW), jnp.float32)
    hidden_state = 0.1 * jax.random.normal(kh, (1, B, HID), jnp.float32)

    outs = rnn_encoder_mixture_forward(params, actions, states, rewards, hidden_state,
                                       knoise, temperature=TEMPERATURE)
    outs = jax.block_until_ready(outs)
    (z, mu, logvar, output, y, z2, mu2, var, logits, prob) = outs

    # correctness check against a pure-JAX f32 reference with the same noise.
    # GRU path is f32 in-kernel -> tight check; head uses bf16 weights (f32 accumulate),
    # so head outputs get a bf16-appropriate tolerance.
    ref_output, ref_logits, ref_prob, ref_y, ref_mu, ref_var, ref_z = reference_forward(
        params, actions, states, rewards, hidden_state, knoise, temperature=TEMPERATURE)

    np.testing.assert_allclose(np.asarray(output), np.asarray(ref_output), rtol=5e-3, atol=5e-3)
    tol = dict(rtol=2.5e-2, atol=2.5e-2)
    np.testing.assert_allclose(np.asarray(logits), np.asarray(ref_logits).reshape(T, B, -1), **tol)
    np.testing.assert_allclose(np.asarray(prob), np.asarray(ref_prob).reshape(T, B, -1), **tol)
    np.testing.assert_allclose(np.asarray(y), np.asarray(ref_y).reshape(T, B, -1), **tol)
    np.testing.assert_allclose(np.asarray(mu), np.asarray(ref_mu).reshape(T, B, -1), **tol)
    np.testing.assert_allclose(np.asarray(var), np.asarray(ref_var).reshape(T, B, -1), **tol)
    np.testing.assert_allclose(np.asarray(z), np.asarray(ref_z).reshape(T, B, -1), **tol)

    print("KERNEL_OK")
</pallas_src>

<mosaic_0001>
module attributes {stable_mosaic.version = 11 : i64} {
  func.func @fused_encoder_kernel(%arg0: i32, %arg1: memref<64x128xf32, #tpu.memory_space<vmem>>, %arg2: memref<8x128xf32, #tpu.memory_space<vmem>>, %arg3: memref<64x10xf32, #tpu.memory_space<vmem>>, %arg4: memref<64x32xf32, #tpu.memory_space<vmem>>, %arg5: memref<128x128xf32, #tpu.memory_space<vmem>>, %arg6: memref<1x128xf32, #tpu.memory_space<vmem>>, %arg7: memref<128x384xf32, #tpu.memory_space<vmem>>, %arg8: memref<1x384xf32, #tpu.memory_space<vmem>>, %arg9: memref<128x384xf32, #tpu.memory_space<vmem>>, %arg10: memref<1x384xf32, #tpu.memory_space<vmem>>, %arg11: memref<1296x512xbf16, #tpu.memory_space<any>>, %arg12: memref<512x10xbf16, #tpu.memory_space<vmem>>, %arg13: memref<512x64xbf16, #tpu.memory_space<vmem>>, %arg14: memref<1x512xf32, #tpu.memory_space<vmem>>, %arg15: memref<1x512xf32, #tpu.memory_space<vmem>>, %arg16: memref<1x10xf32, #tpu.memory_space<vmem>>, %arg17: memref<1x512xf32, #tpu.memory_space<vmem>>, %arg18: memref<1x512xf32, #tpu.memory_space<vmem>>, %arg19: memref<1x64xf32, #tpu.memory_space<vmem>>, %arg20: memref<64x128xf32, #tpu.memory_space<vmem>>, %arg21: memref<64x128xf32, #tpu.memory_space<vmem>>, %arg22: memref<64x384xf32, #tpu.memory_space<vmem>>, %arg23: memref<1296x512xbf16, #tpu.memory_space<vmem>>, %arg24: memref<!tpu.dma_semaphore, #tpu.memory_space<semaphore_mem>>) attributes {dimension_semantics = [#tpu.dimension_semantics<arbitrary>], iteration_bounds = array<i64: 1>, scalar_prefetch = 0 : i64, scratch_operands = 3 : i64, tpu.core_type = #tpu.core_type<tc>, window_params = [{pipeline_mode = #tpu.pipeline_mode<synchronous>, transform_indices = @transform_0, window_bounds = array<i64: 64, 128>}, {pipeline_mode = #tpu.pipeline_mode<synchronous>, transform_indices = @transform_1, window_bounds = array<i64: 8, 128>}, {pipeline_mode = #tpu.pipeline_mode<synchronous>, transform_indices = @transform_2, window_bounds = array<i64: 64, 10>}, {pipeline_mode = #tpu.pipeline_mode<synchronous>, transform_indices = @transform_3, window_bounds = array<i64: 64, 32>}, {pipeline_mode = #tpu.pipeline_mode<synchronous>, transform_indices = @transform_4, window_bounds = array<i64: 128, 128>}, {pipeline_mode = #tpu.pipeline_mode<synchronous>, transform_indices = @transform_5, window_bounds = array<i64: 1, 128>}, {pipeline_mode = #tpu.pipeline_mode<synchronous>, transform_indices = @transform_6, window_bounds = array<i64: 128, 384>}, {pipeline_mode = #tpu.pipeline_mode<synchronous>, transform_indices = @transform_7, window_bounds = array<i64: 1, 384>}, {pipeline_mode = #tpu.pipeline_mode<synchronous>, transform_indices = @transform_8, window_bounds = array<i64: 128, 384>}, {pipeline_mode = #tpu.pipeline_mode<synchronous>, transform_indices = @transform_9, window_bounds = array<i64: 1, 384>}, {}, {pipeline_mode = #tpu.pipeline_mode<synchronous>, transform_indices = @transform_11, window_bounds = array<i64: 512, 10>}, {pipeline_mode = #tpu.pipeline_mode<synchronous>, transform_indices = @transform_12, window_bounds = array<i64: 512, 64>}, {pipeline_mode = #tpu.pipeline_mode<synchronous>, transform_indices = @transform_13, window_bounds = array<i64: 1, 512>}, {pipeline_mode = #tpu.pipeline_mode<synchronous>, transform_indices = @transform_14, window_bounds = array<i64: 1, 512>}, {pipeline_mode = #tpu.pipeline_mode<synchronous>, transform_indices = @transform_15, window_bounds = array<i64: 1, 10>}, {pipeline_mode = #tpu.pipeline_mode<synchronous>, transform_indices = @transform_16, window_bounds = array<i64: 1, 512>}, {pipeline_mode = #tpu.pipeline_mode<synchronous>, transform_indices = @transform_17, window_bounds = array<i64: 1, 512>}, {pipeline_mode = #tpu.pipeline_mode<synchronous>, transform_indices = @transform_18, window_bounds = array<i64: 1, 64>}, {pipeline_mode = #tpu.pipeline_mode<synchronous>, transform_indices = @transform_19, window_bounds = array<i64: 64, 128>}, {pipeline_mode = #tpu.pipeline_mode<synchronous>, transform_indices = @transform_20, window_bounds = array<i64: 64, 128>}]} {
    tpu.enqueue_dma source(%arg11 : memref<1296x512xbf16, #tpu.memory_space<any>>) target(%arg23 : memref<1296x512xbf16, #tpu.memory_space<vmem>>) target_semaphore(%arg24 : memref<!tpu.dma_semaphore, #tpu.memory_space<semaphore_mem>>)
    %c0 = arith.constant 0 : index
    %c0_0 = arith.constant 0 : index
    %0 = vector.load %arg1[%c0, %c0_0] : memref<64x128xf32, #tpu.memory_space<vmem>>, vector<64x128xf32>
    %c0_1 = arith.constant 0 : index
    %c0_2 = arith.constant 0 : index
    %1 = vector.load %arg5[%c0_1, %c0_2] : memref<128x128xf32, #tpu.memory_space<vmem>>, vector<128x128xf32>
    %cst = arith.constant dense<0.000000e+00> : vector<64x128xf32>
    %2 = tpu.matmul %0, %1, %cst {dimension_numbers = #tpu.dot_dimension_numbers<[1], [0], [0], [1], [0, 0, 1, 1], [], []>} : vector<64x128xf32>, vector<128x128xf32>, vector<64x128xf32> -> vector<64x128xf32>
    %c0_3 = arith.constant 0 : index
    %c0_4 = arith.constant 0 : index
    %3 = vector.load %arg6[%c0_3, %c0_4] : memref<1x128xf32, #tpu.memory_space<vmem>>, vector<1x128xf32>
    %4 = vector.broadcast %3 : vector<1x128xf32> to vector<64x128xf32>
    %5 = arith.addf %2, %4 : vector<64x128xf32>
    %cst_5 = arith.constant 0.000000e+00 : f32
    %6 = vector.broadcast %cst_5 : f32 to vector<64x128xf32>
    %7 = arith.maximumf %5, %6 : vector<64x128xf32>
    %c0_6 = arith.constant 0 : index
    %c0_7 = arith.constant 0 : index
    %8 = vector.load %arg7[%c0_6, %c0_7] : memref<128x384xf32, #tpu.memory_space<vmem>>, vector<128x384xf32>
    %cst_8 = arith.constant dense<0.000000e+00> : vector<64x384xf32>
    %9 = tpu.matmul %7, %8, %cst_8 {dimension_numbers = #tpu.dot_dimension_numbers<[1], [0], [0], [1], [0, 0, 1, 1], [], []>} : vector<64x128xf32>, vector<128x384xf32>, vector<64x384xf32> -> vector<64x384xf32>
    %c0_9 = arith.constant 0 : index
    %c0_10 = arith.constant 0 : index
    %10 = vector.load %arg8[%c0_9, %c0_10] : memref<1x384xf32, #tpu.memory_space<vmem>>, vector<1x384xf32>
    %11 = vector.broadcast %10 : vector<1x384xf32> to vector<64x384xf32>
    %12 = arith.addf %9, %11 : vector<64x384xf32>
    %c0_11 = arith.constant 0 : index
    %c0_12 = arith.constant 0 : index
    %13 = vector.load %arg22[%c0_11, %c0_12] : memref<64x384xf32, #tpu.memory_space<vmem>>, vector<64x384xf32>
    tpu.vector_store %arg22[%c0_11, %c0_12], %12 {strides = array<i32>} : memref<64x384xf32, #tpu.memory_space<vmem>>, vector<64x384xf32>,
    %c0_13 = arith.constant 0 : index
    %c0_14 = arith.constant 0 : index
    %14 = vector.load %arg10[%c0_13, %c0_14] : memref<1x384xf32, #tpu.memory_space<vmem>>, vector<1x384xf32>
    %15 = vector.shape_cast %14 : vector<1x384xf32> to vector<1x384xf32>
    %16 = vector.broadcast %15 : vector<1x384xf32> to vector<8x384xf32>
    %c0_15 = arith.constant 0 : index
    %c0_16 = arith.constant 0 : index
    %17 = vector.load %arg2[%c0_15, %c0_16] : memref<8x128xf32, #tpu.memory_space<vmem>>, vector<8x128xf32>
    %c0_i32 = arith.constant 0 : i32
    %c8_i32 = arith.constant 8 : i32
    %18 = arith.muli %c0_i32, %c8_i32 : i32
    %19 = tpu.assume_multiple %18, 8 : i32
    %20 = arith.index_cast %19 : i32 to index
    %c0_17 = arith.constant 0 : index
    %21 = vector.load %arg22[%20, %c0_17] : memref<64x384xf32, #tpu.memory_space<vmem>>, vector<8x384xf32>
    %c0_18 = arith.constant 0 : index
    %c0_19 = arith.constant 0 : index
    %22 = vector.load %arg9[%c0_18, %c0_19] : memref<128x384xf32, #tpu.memory_space<vmem>>, vector<128x384xf32>
    %cst_20 = arith.constant dense<0.000000e+00> : vector<8x384xf32>
    %23 = tpu.matmul %17, %22, %cst_20 {dimension_numbers = #tpu.dot_dimension_numbers<[1], [0], [0], [1], [0, 0, 1, 1], [], []>} : vector<8x128xf32>, vector<128x384xf32>, vector<8x384xf32> -> vector<8x384xf32>
    %24 = arith.addf %23, %16 : vector<8x384xf32>
    %25 = vector.extract_strided_slice %21 {offsets = [0, 0], sizes = [8, 128], strides = [1, 1]} : vector<8x384xf32> to vector<8x128xf32>
    %26 = vector.extract_strided_slice %24 {offsets = [0, 0], sizes = [8, 128], strides = [1, 1]} : vector<8x384xf32> to vector<8x128xf32>
    %27 = arith.addf %25, %26 : vector<8x128xf32>
    %28 = arith.negf %27 : vector<8x128xf32>
    %29 = math.exp %28 : vector<8x128xf32>
    %cst_21 = arith.constant 1.000000e+00 : f32
    %30 = vector.broadcast %cst_21 : f32 to vector<8x128xf32>
    %31 = arith.addf %30, %29 : vector<8x128xf32>
    %32 = arith.divf %30, %31 : vector<8x128xf32>
    %33 = vector.extract_strided_slice %21 {offsets = [0, 128], sizes = [8, 128], strides = [1, 1]} : vector<8x384xf32> to vector<8x128xf32>
    %34 = vector.extract_strided_slice %24 {offsets = [0, 128], sizes = [8, 128], strides = [1, 1]} : vector<8x384xf32> to vector<8x128xf32>
    %35 = arith.addf %33, %34 : vector<8x128xf32>
    %36 = arith.negf %35 : vector<8x128xf32>
    %37 = math.exp %36 : vector<8x128xf32>
    %cst_22 = arith.constant 1.000000e+00 : f32
    %38 = vector.broadcast %cst_22 : f32 to vector<8x128xf32>
    %39 = arith.addf %38, %37 : vector<8x128xf32>
    %40 = arith.divf %38, %39 : vector<8x128xf32>
    %41 = vector.extract_strided_slice %21 {offsets = [0, 256], sizes = [8, 128], strides = [1, 1]} : vector<8x384xf32> to vector<8x128xf32>
    %42 = vector.extract_strided_slice %24 {offsets = [0, 256], sizes = [8, 128], strides = [1, 1]} : vector<8x384xf32> to vector<8x128xf32>
    %43 = arith.mulf %32, %42 : vector<8x128xf32>
    %44 = arith.addf %41, %43 : vector<8x128xf32>
    %45 = math.tanh %44 : vector<8x128xf32>
    %cst_23 = arith.constant 1.000000e+00 : f32
    %46 = vector.broadcast %cst_23 : f32 to vector<8x128xf32>
    %47 = arith.subf %46, %40 : vector<8x128xf32>
    %48 = arith.mulf %47, %45 : vector<8x128xf32>
    %49 = arith.mulf %40, %17 : vector<8x128xf32>
    %50 = arith.addf %48, %49 : vector<8x128xf32>
    %51 = arith.index_cast %19 : i32 to index
    %c0_24 = arith.constant 0 : index
    %52 = vector.load %arg20[%51, %c0_24] : memref<64x128xf32, #tpu.memory_space<vmem>>, vector<8x128xf32>
    tpu.vector_store %arg20[%51, %c0_24], %50 {strides = array<i32>} : memref<64x128xf32, #tpu.memory_space<vmem>>, vector<8x128xf32>,
    %c1_i32 = arith.constant 1 : i32
    %c8_i32_25 = arith.constant 8 : i32
    %53 = arith.muli %c1_i32, %c8_i32_25 : i32
    %54 = tpu.assume_multiple %53, 8 : i32
    %55 = arith.index_cast %54 : i32 to index
    %c0_26 = arith.constant 0 : index
    %56 = vector.load %arg22[%55, %c0_26] : memref<64x384xf32, #tpu.memory_space<vmem>>, vector<8x384xf32>
    %c0_27 = arith.constant 0 : index
    %c0_28 = arith.constant 0 : index
    %57 = vector.load %arg9[%c0_27, %c0_28] : memref<128x384xf32, #tpu.memory_space<vmem>>, vector<128x384xf32>
    %cst_29 = arith.constant dense<0.000000e+00> : vector<8x384xf32>
    %58 = tpu.matmul %50, %57, %cst_29 {dimension_numbers = #tpu.dot_dimension_numbers<[1], [0], [0], [1], [0, 0, 1, 1], [], []>} : vector<8x128xf32>, vector<128x384xf32>, vector<8x384xf32> -> vector<8x384xf32>
    %59 = arith.addf %58, %16 : vector<8x384xf32>
    %60 = vector.extract_strided_slice %56 {offsets = [0, 0], sizes = [8, 128], strides = [1, 1]} : vector<8x384xf32> to vector<8x128xf32>
    %61 = vector.extract_strided_slice %59 {offsets = [0, 0], sizes = [8, 128], strides = [1, 1]} : vector<8x384xf32> to vector<8x128xf32>
    %62 = arith.addf %60, %61 : vector<8x128xf32>
    %63 = arith.negf %62 : vector<8x128xf32>
    %64 = math.exp %63 : vector<8x128xf32>
    %cst_30 = arith.constant 1.000000e+00 : f32
    %65 = vector.broadcast %cst_30 : f32 to vector<8x128xf32>
    %66 = arith.addf %65, %64 : vector<8x128xf32>
    %67 = arith.divf %65, %66 : vector<8x128xf32>
    %68 = vector.extract_strided_slice %56 {offsets = [0, 128], sizes = [8, 128], strides = [1, 1]} : vector<8x384xf32> to vector<8x128xf32>
    %69 = vector.extract_strided_slice %59 {offsets = [0, 128], sizes = [8, 128], strides = [1, 1]} : vector<8x384xf32> to vector<8x128xf32>
    %70 = arith.addf %68, %69 : vector<8x128xf32>
    %71 = arith.negf %70 : vector<8x128xf32>
    %72 = math.exp %71 : vector<8x128xf32>
    %cst_31 = arith.constant 1.000000e+00 : f32
    %73 = vector.broadcast %cst_31 : f32 to vector<8x128xf32>
    %74 = arith.addf %73, %72 : vector<8x128xf32>
    %75 = arith.divf %73, %74 : vector<8x128xf32>
    %76 = vector.extract_strided_slice %56 {offsets = [0, 256], sizes = [8, 128], strides = [1, 1]} : vector<8x384xf32> to vector<8x128xf32>
    %77 = vector.extract_strided_slice %59 {offsets = [0, 256], sizes = [8, 128], strides = [1, 1]} : vector<8x384xf32> to vector<8x128xf32>
    %78 = arith.mulf %67, %77 : vector<8x128xf32>
    %79 = arith.addf %76, %78 : vector<8x128xf32>
    %80 = math.tanh %79 : vector<8x128xf32>
    %cst_32 = arith.constant 1.000000e+00 : f32
    %81 = vector.broadcast %cst_32 : f32 to vector<8x128xf32>
    %82 = arith.subf %81, %75 : vector<8x128xf32>
    %83 = arith.mulf %82, %80 : vector<8x128xf32>
    %84 = arith.mulf %75, %50 : vector<8x128xf32>
    %85 = arith.addf %83, %84 : vector<8x128xf32>
    %86 = arith.index_cast %54 : i32 to index
    %c0_33 = arith.constant 0 : index
    %87 = vector.load %arg20[%86, %c0_33] : memref<64x128xf32, #tpu.memory_space<vmem>>, vector<8x128xf32>
    tpu.vector_store %arg20[%86, %c0_33], %85 {strides = array<i32>} : memref<64x128xf32, #tpu.memory_space<vmem>>, vector<8x128xf32>,
    %c2_i32 = arith.constant 2 : i32
    %c8_i32_34 = arith.constant 8 : i32
    %88 = arith.muli %c2_i32, %c8_i32_34 : i32
    %89 = tpu.assume_multiple %88, 8 : i32
    %90 = arith.index_cast %89 : i32 to index
    %c0_35 = arith.constant 0 : index
    %91 = vector.load %arg22[%90, %c0_35] : memref<64x384xf32, #tpu.memory_space<vmem>>, vector<8x384xf32>
    %c0_36 = arith.constant 0 : index
    %c0_37 = arith.constant 0 : index
    %92 = vector.load %arg9[%c0_36, %c0_37] : memref<128x384xf32, #tpu.memory_space<vmem>>, vector<128x384xf32>
    %cst_38 = arith.constant dense<0.000000e+00> : vector<8x384xf32>
    %93 = tpu.matmul %85, %92, %cst_38 {dimension_numbers = #tpu.dot_dimension_numbers<[1], [0], [0], [1], [0, 0, 1, 1], [], []>} : vector<8x128xf32>, vector<128x384xf32>, vector<8x384xf32> -> vector<8x384xf32>
    %94 = arith.addf %93, %16 : vector<8x384xf32>
    %95 = vector.extract_strided_slice %91 {offsets = [0, 0], sizes = [8, 128], strides = [1, 1]} : vector<8x384xf32> to vector<8x128xf32>
    %96 = vector.extract_strided_slice %94 {offsets = [0, 0], sizes = [8, 128], strides = [1, 1]} : vector<8x384xf32> to vector<8x128xf32>
    %97 = arith.addf %95, %96 : vector<8x128xf32>
    %98 = arith.negf %97 : vector<8x128xf32>
    %99 = math.exp %98 : vector<8x128xf32>
    %cst_39 = arith.constant 1.000000e+00 : f32
    %100 = vector.broadcast %cst_39 : f32 to vector<8x128xf32>
    %101 = arith.addf %100, %99 : vector<8x128xf32>
    %102 = arith.divf %100, %101 : vector<8x128xf32>
    %103 = vector.extract_strided_slice %91 {offsets = [0, 128], sizes = [8, 128], strides = [1, 1]} : vector<8x384xf32> to vector<8x128xf32>
    %104 = vector.extract_strided_slice %94 {offsets = [0, 128], sizes = [8, 128], strides = [1, 1]} : vector<8x384xf32> to vector<8x128xf32>
    %105 = arith.addf %103, %104 : vector<8x128xf32>
    %106 = arith.negf %105 : vector<8x128xf32>
    %107 = math.exp %106 : vector<8x128xf32>
    %cst_40 = arith.constant 1.000000e+00 : f32
    %108 = vector.broadcast %cst_40 : f32 to vector<8x128xf32>
    %109 = arith.addf %108, %107 : vector<8x128xf32>
    %110 = arith.divf %108, %109 : vector<8x128xf32>
    %111 = vector.extract_strided_slice %91 {offsets = [0, 256], sizes = [8, 128], strides = [1, 1]} : vector<8x384xf32> to vector<8x128xf32>
    %112 = vector.extract_strided_slice %94 {offsets = [0, 256], sizes = [8, 128], strides = [1, 1]} : vector<8x384xf32> to vector<8x128xf32>
    %113 = arith.mulf %102, %112 : vector<8x128xf32>
    %114 = arith.addf %111, %113 : vector<8x128xf32>
    %115 = math.tanh %114 : vector<8x128xf32>
    %cst_41 = arith.constant 1.000000e+00 : f32
    %116 = vector.broadcast %cst_41 : f32 to vector<8x128xf32>
    %117 = arith.subf %116, %110 : vector<8x128xf32>
    %118 = arith.mulf %117, %115 : vector<8x128xf32>
    %119 = arith.mulf %110, %85 : vector<8x128xf32>
    %120 = arith.addf %118, %119 : vector<8x128xf32>
    %121 = arith.index_cast %89 : i32 to index
    %c0_42 = arith.constant 0 : index
    %122 = vector.load %arg20[%121, %c0_42] : memref<64x128xf32, #tpu.memory_space<vmem>>, vector<8x128xf32>
    tpu.vector_store %arg20[%121, %c0_42], %120 {strides = array<i32>} : memref<64x128xf32, #tpu.memory_space<vmem>>, vector<8x128xf32>,
    %c3_i32 = arith.constant 3 : i32
    %c8_i32_43 = arith.constant 8 : i32
    %123 = arith.muli %c3_i32, %c8_i32_43 : i32
    %124 = tpu.assume_multiple %123, 8 : i32
    %125 = arith.index_cast %124 : i32 to index
    %c0_44 = arith.constant 0 : index
    %126 = vector.load %arg22[%125, %c0_44] : memref<64x384xf32, #tpu.memory_space<vmem>>, vector<8x384xf32>
    %c0_45 = arith.constant 0 : index
    %c0_46 = arith.constant 0 : index
    %127 = vector.load %arg9[%c0_45, %c0_46] : memref<128x384xf32, #tpu.memory_space<vmem>>, vector<128x384xf32>
    %cst_47 = arith.constant dense<0.000000e+00> : vector<8x384xf32>
    %128 = tpu.matmul %120, %127, %cst_47 {dimension_numbers = #tpu.dot_dimension_numbers<[1], [0], [0], [1], [0, 0, 1, 1], [], []>} : vector<8x128xf32>, vector<128x384xf32>, vector<8x384xf32> -> vector<8x384xf32>
    %129 = arith.addf %128, %16 : vector<8x384xf32>
    %130 = vector.extract_strided_slice %126 {offsets = [0, 0], sizes = [8, 128], strides = [1, 1]} : vector<8x384xf32> to vector<8x128xf32>
    %131 = vector.extract_strided_slice %129 {offsets = [0, 0], sizes = [8, 128], strides = [1, 1]} : vector<8x384xf32> to vector<8x128xf32>
    %132 = arith.addf %130, %131 : vector<8x128xf32>
    %133 = arith.negf %132 : vector<8x128xf32>
    %134 = math.exp %133 : vector<8x128xf32>
    %cst_48 = arith.constant 1.000000e+00 : f32
    %135 = vector.broadcast %cst_48 : f32 to vector<8x128xf32>
    %136 = arith.addf %135, %134 : vector<8x128xf32>
    %137 = arith.divf %135, %136 : vector<8x128xf32>
    %138 = vector.extract_strided_slice %126 {offsets = [0, 128], sizes = [8, 128], strides = [1, 1]} : vector<8x384xf32> to vector<8x128xf32>
    %139 = vector.extract_strided_slice %129 {offsets = [0, 128], sizes = [8, 128], strides = [1, 1]} : vector<8x384xf32> to vector<8x128xf32>
    %140 = arith.addf %138, %139 : vector<8x128xf32>
    %141 = arith.negf %140 : vector<8x128xf32>
    %142 = math.exp %141 : vector<8x128xf32>
    %cst_49 = arith.constant 1.000000e+00 : f32
    %143 = vector.broadcast %cst_49 : f32 to vector<8x128xf32>
    %144 = arith.addf %143, %142 : vector<8x128xf32>
    %145 = arith.divf %143, %144 : vector<8x128xf32>
    %146 = vector.extract_strided_slice %126 {offsets = [0, 256], sizes = [8, 128], strides = [1, 1]} : vector<8x384xf32> to vector<8x128xf32>
    %147 = vector.extract_strided_slice %129 {offsets = [0, 256], sizes = [8, 128], strides = [1, 1]} : vector<8x384xf32> to vector<8x128xf32>
    %148 = arith.mulf %137, %147 : vector<8x128xf32>
    %149 = arith.addf %146, %148 : vector<8x128xf32>
    %150 = math.tanh %149 : vector<8x128xf32>
    %cst_50 = arith.constant 1.000000e+00 : f32
    %151 = vector.broadcast %cst_50 : f32 to vector<8x128xf32>
    %152 = arith.subf %151, %145 : vector<8x128xf32>
    %153 = arith.mulf %152, %150 : vector<8x128xf32>
    %154 = arith.mulf %145, %120 : vector<8x128xf32>
    %155 = arith.addf %153, %154 : vector<8x128xf32>
    %156 = arith.index_cast %124 : i32 to index
    %c0_51 = arith.constant 0 : index
    %157 = vector.load %arg20[%156, %c0_51] : memref<64x128xf32, #tpu.memory_space<vmem>>, vector<8x128xf32>
    tpu.vector_store %arg20[%156, %c0_51], %155 {strides = array<i32>} : memref<64x128xf32, #tpu.memory_space<vmem>>, vector<8x128xf32>,
    %c4_i32 = arith.constant 4 : i32
    %c8_i32_52 = arith.constant 8 : i32
    %158 = arith.muli %c4_i32, %c8_i32_52 : i32
    %159 = tpu.assume_multiple %158, 8 : i32
    %160 = arith.index_cast %159 : i32 to index
    %c0_53 = arith.constant 0 : index
    %161 = vector.load %arg22[%160, %c0_53] : memref<64x384xf32, #tpu.memory_space<vmem>>, vector<8x384xf32>
    %c0_54 = arith.constant 0 : index
    %c0_55 = arith.constant 0 : index
    %162 = vector.load %arg9[%c0_54, %c0_55] : memref<128x384xf32, #tpu.memory_space<vmem>>, vector<128x384xf32>
    %cst_56 = arith.constant dense<0.000000e+00> : vector<8x384xf32>
    %163 = tpu.matmul %155, %162, %cst_56 {dimension_numbers = #tpu.dot_dimension_numbers<[1], [0], [0], [1], [0, 0, 1, 1], [], []>} : vector<8x128xf32>, vector<128x384xf32>, vector<8x384xf32> -> vector<8x384xf32>
    %164 = arith.addf %163, %16 : vector<8x384xf32>
    %165 = vector.extract_strided_slice %161 {offsets = [0, 0], sizes = [8, 128], strides = [1, 1]} : vector<8x384xf32> to vector<8x128xf32>
    %166 = vector.extract_strided_slice %164 {offsets = [0, 0], sizes = [8, 128], strides = [1, 1]} : vector<8x384xf32> to vector<8x128xf32>
    %167 = arith.addf %165, %166 : vector<8x128xf32>
    %168 = arith.negf %167 : vector<8x128xf32>
    %169 = math.exp %168 : vector<8x128xf32>
    %cst_57 = arith.constant 1.000000e+00 : f32
    %170 = vector.broadcast %cst_57 : f32 to vector<8x128xf32>
    %171 = arith.addf %170, %169 : vector<8x128xf32>
    %172 = arith.divf %170, %171 : vector<8x128xf32>
    %173 = vector.extract_strided_slice %161 {offsets = [0, 128], sizes = [8, 128], strides = [1, 1]} : vector<8x384xf32> to vector<8x128xf32>
    %174 = vector.extract_strided_slice %164 {offsets = [0, 128], sizes = [8, 128], strides = [1, 1]} : vector<8x384xf32> to vector<8x128xf32>
    %175 = arith.addf %173, %174 : vector<8x128xf32>
    %176 = arith.negf %175 : vector<8x128xf32>
    %177 = math.exp %176 : vector<8x128xf32>
    %cst_58 = arith.constant 1.000000e+00 : f32
    %178 = vector.broadcast %cst_58 : f32 to vector<8x128xf32>
    %179 = arith.addf %178, %177 : vector<8x128xf32>
    %180 = arith.divf %178, %179 : vector<8x128xf32>
    %181 = vector.extract_strided_slice %161 {offsets = [0, 256], sizes = [8, 128], strides = [1, 1]} : vector<8x384xf32> to vector<8x128xf32>
    %182 = vector.extract_strided_slice %164 {offsets = [0, 256], sizes = [8, 128], strides = [1, 1]} : vector<8x384xf32> to vector<8x128xf32>
    %183 = arith.mulf %172, %182 : vector<8x128xf32>
    %184 = arith.addf %181, %183 : vector<8x128xf32>
    %185 = math.tanh %184 : vector<8x128xf32>
    %cst_59 = arith.constant 1.000000e+00 : f32
    %186 = vector.broadcast %cst_59 : f32 to vector<8x128xf32>
    %187 = arith.subf %186, %180 : vector<8x128xf32>
    %188 = arith.mulf %187, %185 : vector<8x128xf32>
    %189 = arith.mulf %180, %155 : vector<8x128xf32>
    %190 = arith.addf %188, %189 : vector<8x128xf32>
    %191 = arith.index_cast %159 : i32 to index
    %c0_60 = arith.constant 0 : index
    %192 = vector.load %arg20[%191, %c0_60] : memref<64x128xf32, #tpu.memory_space<vmem>>, vector<8x128xf32>
    tpu.vector_store %arg20[%191, %c0_60], %190 {strides = array<i32>} : memref<64x128xf32, #tpu.memory_space<vmem>>, vector<8x128xf32>,
    %c5_i32 = arith.constant 5 : i32
    %c8_i32_61 = arith.constant 8 : i32
    %193 = arith.muli %c5_i32, %c8_i32_61 : i32
    %194 = tpu.assume_multiple %193, 8 : i32
    %195 = arith.index_cast %194 : i32 to index
    %c0_62 = arith.constant 0 : index
    %196 = vector.load %arg22[%195, %c0_62] : memref<64x384xf32, #tpu.memory_space<vmem>>, vector<8x384xf32>
    %c0_63 = arith.constant 0 : index
    %c0_64 = arith.constant 0 : index
    %197 = vector.load %arg9[%c0_63, %c0_64] : memref<128x384xf32, #tpu.memory_space<vmem>>, vector<128x384xf32>
    %cst_65 = arith.constant dense<0.000000e+00> : vector<8x384xf32>
    %198 = tpu.matmul %190, %197, %cst_65 {dimension_numbers = #tpu.dot_dimension_numbers<[1], [0], [0], [1], [0, 0, 1, 1], [], []>} : vector<8x128xf32>, vector<128x384xf32>, vector<8x384xf32> -> vector<8x384xf32>
    %199 = arith.addf %198, %16 : vector<8x384xf32>
    %200 = vector.extract_strided_slice %196 {offsets = [0, 0], sizes = [8, 128], strides = [1, 1]} : vector<8x384xf32> to vector<8x128xf32>
    %201 = vector.extract_strided_slice %199 {offsets = [0, 0], sizes = [8, 128], strides = [1, 1]} : vector<8x384xf32> to vector<8x128xf32>
    %202 = arith.addf %200, %201 : vector<8x128xf32>
    %203 = arith.negf %202 : vector<8x128xf32>
    %204 = math.exp %203 : vector<8x128xf32>
    %cst_66 = arith.constant 1.000000e+00 : f32
    %205 = vector.broadcast %cst_66 : f32 to vector<8x128xf32>
    %206 = arith.addf %205, %204 : vector<8x128xf32>
    %207 = arith.divf %205, %206 : vector<8x128xf32>
    %208 = vector.extract_strided_slice %196 {offsets = [0, 128], sizes = [8, 128], strides = [1, 1]} : vector<8x384xf32> to vector<8x128xf32>
    %209 = vector.extract_strided_slice %199 {offsets = [0, 128], sizes = [8, 128], strides = [1, 1]} : vector<8x384xf32> to vector<8x128xf32>
    %210 = arith.addf %208, %209 : vector<8x128xf32>
    %211 = arith.negf %210 : vector<8x128xf32>
    %212 = math.exp %211 : vector<8x128xf32>
    %cst_67 = arith.constant 1.000000e+00 : f32
    %213 = vector.broadcast %cst_67 : f32 to vector<8x128xf32>
    %214 = arith.addf %213, %212 : vector<8x128xf32>
    %215 = arith.divf %213, %214 : vector<8x128xf32>
    %216 = vector.extract_strided_slice %196 {offsets = [0, 256], sizes = [8, 128], strides = [1, 1]} : vector<8x384xf32> to vector<8x128xf32>
    %217 = vector.extract_strided_slice %199 {offsets = [0, 256], sizes = [8, 128], strides = [1, 1]} : vector<8x384xf32> to vector<8x128xf32>
    %218 = arith.mulf %207, %217 : vector<8x128xf32>
    %219 = arith.addf %216, %218 : vector<8x128xf32>
    %220 = math.tanh %219 : vector<8x128xf32>
    %cst_68 = arith.constant 1.000000e+00 : f32
    %221 = vector.broadcast %cst_68 : f32 to vector<8x128xf32>
    %222 = arith.subf %221, %215 : vector<8x128xf32>
    %223 = arith.mulf %222, %220 : vector<8x128xf32>
    %224 = arith.mulf %215, %190 : vector<8x128xf32>
    %225 = arith.addf %223, %224 : vector<8x128xf32>
    %226 = arith.index_cast %194 : i32 to index
    %c0_69 = arith.constant 0 : index
    %227 = vector.load %arg20[%226, %c0_69] : memref<64x128xf32, #tpu.memory_space<vmem>>, vector<8x128xf32>
    tpu.vector_store %arg20[%226, %c0_69], %225 {strides = array<i32>} : memref<64x128xf32, #tpu.memory_space<vmem>>, vector<8x128xf32>,
    %c6_i32 = arith.constant 6 : i32
    %c8_i32_70 = arith.constant 8 : i32
    %228 = arith.muli %c6_i32, %c8_i32_70 : i32
    %229 = tpu.assume_multiple %228, 8 : i32
    %230 = arith.index_cast %229 : i32 to index
    %c0_71 = arith.constant 0 : index
    %231 = vector.load %arg22[%230, %c0_71] : memref<64x384xf32, #tpu.memory_space<vmem>>, vector<8x384xf32>
    %c0_72 = arith.constant 0 : index
    %c0_73 = arith.constant 0 : index
    %232 = vector.load %arg9[%c0_72, %c0_73] : memref<128x384xf32, #tpu.memory_space<vmem>>, vector<128x384xf32>
    %cst_74 = arith.constant dense<0.000000e+00> : vector<8x384xf32>
    %233 = tpu.matmul %225, %232, %cst_74 {dimension_numbers = #tpu.dot_dimension_numbers<[1], [0], [0], [1], [0, 0, 1, 1], [], []>} : vector<8x128xf32>, vector<128x384xf32>, vector<8x384xf32> -> vector<8x384xf32>
    %234 = arith.addf %233, %16 : vector<8x384xf32>
    %235 = vector.extract_strided_slice %231 {offsets = [0, 0], sizes = [8, 128], strides = [1, 1]} : vector<8x384xf32> to vector<8x128xf32>
    %236 = vector.extract_strided_slice %234 {offsets = [0, 0], sizes = [8, 128], strides = [1, 1]} : vector<8x384xf32> to vector<8x128xf32>
    %237 = arith.addf %235, %236 : vector<8x128xf32>
    %238 = arith.negf %237 : vector<8x128xf32>
    %239 = math.exp %238 : vector<8x128xf32>
    %cst_75 = arith.constant 1.000000e+00 : f32
    %240 = vector.broadcast %cst_75 : f32 to vector<8x128xf32>
    %241 = arith.addf %240, %239 : vector<8x128xf32>
    %242 = arith.divf %240, %241 : vector<8x128xf32>
    %243 = vector.extract_strided_slice %231 {offsets = [0, 128], sizes = [8, 128], strides = [1, 1]} : vector<8x384xf32> to vector<8x128xf32>
    %244 = vector.extract_strided_slice %234 {offsets = [0, 128], sizes = [8, 128], strides = [1, 1]} : vector<8x384xf32> to vector<8x128xf32>
    %245 = arith.addf %243, %244 : vector<8x128xf32>
    %246 = arith.negf %245 : vector<8x128xf32>
    %247 = math.exp %246 : vector<8x128xf32>
    %cst_76 = arith.constant 1.000000e+00 : f32
    %248 = vector.broadcast %cst_76 : f32 to vector<8x128xf32>
    %249 = arith.addf %248, %247 : vector<8x128xf32>
    %250 = arith.divf %248, %249 : vector<8x128xf32>
    %251 = vector.extract_strided_slice %231 {offsets = [0, 256], sizes = [8, 128], strides = [1, 1]} : vector<8x384xf32> to vector<8x128xf32>
    %252 = vector.extract_strided_slice %234 {offsets = [0, 256], sizes = [8, 128], strides = [1, 1]} : vector<8x384xf32> to vector<8x128xf32>
    %253 = arith.mulf %242, %252 : vector<8x128xf32>
    %254 = arith.addf %251, %253 : vector<8x128xf32>
    %255 = math.tanh %254 : vector<8x128xf32>
    %cst_77 = arith.constant 1.000000e+00 : f32
    %256 = vector.broadcast %cst_77 : f32 to vector<8x128xf32>
    %257 = arith.subf %256, %250 : vector<8x128xf32>
    %258 = arith.mulf %257, %255 : vector<8x128xf32>
    %259 = arith.mulf %250, %225 : vector<8x128xf32>
    %260 = arith.addf %258, %259 : vector<8x128xf32>
    %261 = arith.index_cast %229 : i32 to index
    %c0_78 = arith.constant 0 : index
    %262 = vector.load %arg20[%261, %c0_78] : memref<64x128xf32, #tpu.memory_space<vmem>>, vector<8x128xf32>
    tpu.vector_store %arg20[%261, %c0_78], %260 {strides = array<i32>} : memref<64x128xf32, #tpu.memory_space<vmem>>, vector<8x128xf32>,
    %c7_i32 = arith.constant 7 : i32
    %c8_i32_79 = arith.constant 8 : i32
    %263 = arith.muli %c7_i32, %c8_i32_79 : i32
    %264 = tpu.assume_multiple %263, 8 : i32
    %265 = arith.index_cast %264 : i32 to index
    %c0_80 = arith.constant 0 : index
    %266 = vector.load %arg22[%265, %c0_80] : memref<64x384xf32, #tpu.memory_space<vmem>>, vector<8x384xf32>
    %c0_81 = arith.constant 0 : index
    %c0_82 = arith.constant 0 : index
    %267 = vector.load %arg9[%c0_81, %c0_82] : memref<128x384xf32, #tpu.memory_space<vmem>>, vector<128x384xf32>
    %cst_83 = arith.constant dense<0.000000e+00> : vector<8x384xf32>
    %268 = tpu.matmul %260, %267, %cst_83 {dimension_numbers = #tpu.dot_dimension_numbers<[1], [0], [0], [1], [0, 0, 1, 1], [], []>} : vector<8x128xf32>, vector<128x384xf32>, vector<8x384xf32> -> vector<8x384xf32>
    %269 = arith.addf %268, %16 : vector<8x384xf32>
    %270 = vector.extract_strided_slice %266 {offsets = [0, 0], sizes = [8, 128], strides = [1, 1]} : vector<8x384xf32> to vector<8x128xf32>
    %271 = vector.extract_strided_slice %269 {offsets = [0, 0], sizes = [8, 128], strides = [1, 1]} : vector<8x384xf32> to vector<8x128xf32>
    %272 = arith.addf %270, %271 : vector<8x128xf32>
    %273 = arith.negf %272 : vector<8x128xf32>
    %274 = math.exp %273 : vector<8x128xf32>
    %cst_84 = arith.constant 1.000000e+00 : f32
    %275 = vector.broadcast %cst_84 : f32 to vector<8x128xf32>
    %276 = arith.addf %275, %274 : vector<8x128xf32>
    %277 = arith.divf %275, %276 : vector<8x128xf32>
    %278 = vector.extract_strided_slice %266 {offsets = [0, 128], sizes = [8, 128], strides = [1, 1]} : vector<8x384xf32> to vector<8x128xf32>
    %279 = vector.extract_strided_slice %269 {offsets = [0, 128], sizes = [8, 128], strides = [1, 1]} : vector<8x384xf32> to vector<8x128xf32>
    %280 = arith.addf %278, %279 : vector<8x128xf32>
    %281 = arith.negf %280 : vector<8x128xf32>
    %282 = math.exp %281 : vector<8x128xf32>
    %cst_85 = arith.constant 1.000000e+00 : f32
    %283 = vector.broadcast %cst_85 : f32 to vector<8x128xf32>
    %284 = arith.addf %283, %282 : vector<8x128xf32>
    %285 = arith.divf %283, %284 : vector<8x128xf32>
    %286 = vector.extract_strided_slice %266 {offsets = [0, 256], sizes = [8, 128], strides = [1, 1]} : vector<8x384xf32> to vector<8x128xf32>
    %287 = vector.extract_strided_slice %269 {offsets = [0, 256], sizes = [8, 128], strides = [1, 1]} : vector<8x384xf32> to vector<8x128xf32>
    %288 = arith.mulf %277, %287 : vector<8x128xf32>
    %289 = arith.addf %286, %288 : vector<8x128xf32>
    %290 = math.tanh %289 : vector<8x128xf32>
    %cst_86 = arith.constant 1.000000e+00 : f32
    %291 = vector.broadcast %cst_86 : f32 to vector<8x128xf32>
    %292 = arith.subf %291, %285 : vector<8x128xf32>
    %293 = arith.mulf %292, %290 : vector<8x128xf32>
    %294 = arith.mulf %285, %260 : vector<8x128xf32>
    %295 = arith.addf %293, %294 : vector<8x128xf32>
    %296 = arith.index_cast %264 : i32 to index
    %c0_87 = arith.constant 0 : index
    %297 = vector.load %arg20[%296, %c0_87] : memref<64x128xf32, #tpu.memory_space<vmem>>, vector<8x128xf32>
    tpu.vector_store %arg20[%296, %c0_87], %295 {strides = array<i32>} : memref<64x128xf32, #tpu.memory_space<vmem>>, vector<8x128xf32>,
    %c8_i32_88 = arith.constant 8 : i32
    tpu.wait_dma2 semaphore(%arg24 : memref<!tpu.dma_semaphore, #tpu.memory_space<semaphore_mem>>) src(%arg11 : memref<1296x512xbf16, #tpu.memory_space<any>>) dst(%arg23 : memref<1296x512xbf16, #tpu.memory_space<vmem>>)
    %c0_89 = arith.constant 0 : index
    %c0_90 = arith.constant 0 : index
    %298 = vector.load %arg23[%c0_89, %c0_90] : memref<1296x512xbf16, #tpu.memory_space<vmem>>, vector<128x512xbf16>
    %c128 = arith.constant 128 : index
    %c0_91 = arith.constant 0 : index
    %299 = vector.load %arg23[%c128, %c0_91] : memref<1296x512xbf16, #tpu.memory_space<vmem>>, vector<512x512xbf16>
    %c640 = arith.constant 640 : index
    %c0_92 = arith.constant 0 : index
    %300 = vector.load %arg23[%c640, %c0_92] : memref<1296x512xbf16, #tpu.memory_space<vmem>>, vector<128x512xbf16>
    %c768 = arith.constant 768 : index
    %c0_93 = arith.constant 0 : index
    %301 = vector.load %arg23[%c768, %c0_93] : memref<1296x512xbf16, #tpu.memory_space<vmem>>, vector<16x512xbf16>
    %c784 = arith.constant 784 : index
    %c0_94 = arith.constant 0 : index
    %302 = vector.load %arg23[%c784, %c0_94] : memref<1296x512xbf16, #tpu.memory_space<vmem>>, vector<512x512xbf16>
    %c0_95 = arith.constant 0 : index
    %c0_96 = arith.constant 0 : index
    %303 = vector.load %arg20[%c0_95, %c0_96] : memref<64x128xf32, #tpu.memory_space<vmem>>, vector<64x128xf32>
    %304 = arith.truncf %303 : vector<64x128xf32> to vector<64x128xbf16>
    %cst_97 = arith.constant dense<0.000000e+00> : vector<64x512xf32>
    %305 = tpu.matmul %304, %298, %cst_97 {dimension_numbers = #tpu.dot_dimension_numbers<[1], [0], [0], [1], [0, 0, 1, 1], [], []>} : vector<64x128xbf16>, vector<128x512xbf16>, vector<64x512xf32> -> vector<64x512xf32>
    %c0_98 = arith.constant 0 : index
    %c0_99 = arith.constant 0 : index
    %306 = vector.load %arg14[%c0_98, %c0_99] : memref<1x512xf32, #tpu.memory_space<vmem>>, vector<1x512xf32>
    %307 = vector.broadcast %306 : vector<1x512xf32> to vector<64x512xf32>
    %308 = arith.addf %305, %307 : vector<64x512xf32>
    %cst_100 = arith.constant 0.000000e+00 : f32
    %309 = vector.broadcast %cst_100 : f32 to vector<64x512xf32>
    %310 = arith.maximumf %308, %309 : vector<64x512xf32>
    %311 = arith.truncf %310 : vector<64x512xf32> to vector<64x512xbf16>
    %cst_101 = arith.constant dense<0.000000e+00> : vector<64x512xf32>
    %312 = tpu.matmul %311, %299, %cst_101 {dimension_numbers = #tpu.dot_dimension_numbers<[1], [0], [0], [1], [0, 0, 1, 1], [], []>} : vector<64x512xbf16>, vector<512x512xbf16>, vector<64x512xf32> -> vector<64x512xf32>
    %c0_102 = arith.constant 0 : index
    %c0_103 = arith.constant 0 : index
    %313 = vector.load %arg15[%c0_102, %c0_103] : memref<1x512xf32, #tpu.memory_space<vmem>>, vector<1x512xf32>
    %314 = vector.broadcast %313 : vector<1x512xf32> to vector<64x512xf32>
    %315 = arith.addf %312, %314 : vector<64x512xf32>
    %cst_104 = arith.constant 0.000000e+00 : f32
    %316 = vector.broadcast %cst_104 : f32 to vector<64x512xf32>
    %317 = arith.maximumf %315, %316 : vector<64x512xf32>
    %318 = arith.truncf %317 : vector<64x512xf32> to vector<64x512xbf16>
    %c0_105 = arith.constant 0 : index
    %c0_106 = arith.constant 0 : index
    %319 = vector.load %arg12[%c0_105, %c0_106] : memref<512x10xbf16, #tpu.memory_space<vmem>>, vector<512x10xbf16>
    %cst_107 = arith.constant dense<0.000000e+00> : vector<64x10xf32>
    %320 = tpu.matmul %318, %319, %cst_107 {dimension_numbers = #tpu.dot_dimension_numbers<[1], [0], [0], [1], [0, 0, 1, 1], [], []>} : vector<64x512xbf16>, vector<512x10xbf16>, vector<64x10xf32> -> vector<64x10xf32>
    %c0_108 = arith.constant 0 : index
    %c0_109 = arith.constant 0 : index
    %321 = vector.load %arg16[%c0_108, %c0_109] : memref<1x10xf32, #tpu.memory_space<vmem>>, vector<1x10xf32>
    %322 = vector.broadcast %321 : vector<1x10xf32> to vector<64x10xf32>
    %323 = arith.addf %320, %322 : vector<64x10xf32>
    %cst_110 = arith.constant dense<0xFF800000> : vector<64xf32>
    %324 = vector.multi_reduction <maximumf>, %323, %cst_110 [1] : vector<64x10xf32> to vector<64xf32>
    %325 = vector.shape_cast %324 : vector<64xf32> to vector<64x1xf32>
    %326 = vector.broadcast %325 : vector<64x1xf32> to vector<64x10xf32>
    %327 = arith.subf %323, %326 : vector<64x10xf32>
    %328 = math.exp %327 : vector<64x10xf32>
    %cst_111 = arith.constant dense<0.000000e+00> : vector<64xf32>
    %329 = vector.multi_reduction <add>, %328, %cst_111 [1] : vector<64x10xf32> to vector<64xf32>
    %330 = vector.shape_cast %329 : vector<64xf32> to vector<64x1xf32>
    %331 = tpu.reciprocal %330 {approx = true} : vector<64x1xf32> -> vector<64x1xf32>
    %332 = vector.broadcast %331 : vector<64x1xf32> to vector<64x10xf32>
    %333 = arith.mulf %328, %332 : vector<64x10xf32>
    %c0_112 = arith.constant 0 : index
    %c0_113 = arith.constant 0 : index
    %334 = vector.load %arg3[%c0_112, %c0_113] : memref<64x10xf32, #tpu.memory_space<vmem>>, vector<64x10xf32>
    %335 = arith.addf %323, %334 : vector<64x10xf32>
    %cst_114 = arith.constant 1.000000e+00 : f32
    %336 = vector.broadcast %cst_114 : f32 to vector<64x10xf32>
    %337 = arith.mulf %335, %336 : vector<64x10xf32>
    %cst_115 = arith.constant dense<0xFF800000> : vector<64xf32>
    %338 = vector.multi_reduction <maximumf>, %337, %cst_115 [1] : vector<64x10xf32> to vector<64xf32>
    %339 = vector.shape_cast %338 : vector<64xf32> to vector<64x1xf32>
    %340 = vector.broadcast %339 : vector<64x1xf32> to vector<64x10xf32>
    %341 = arith.subf %337, %340 : vector<64x10xf32>
    %342 = math.exp %341 : vector<64x10xf32>
    %cst_116 = arith.constant dense<0.000000e+00> : vector<64xf32>
    %343 = vector.multi_reduction <add>, %342, %cst_116 [1] : vector<64x10xf32> to vector<64xf32>
    %344 = vector.shape_cast %343 : vector<64xf32> to vector<64x1xf32>
    %345 = tpu.reciprocal %344 {approx = true} : vector<64x1xf32> -> vector<64x1xf32>
    %346 = vector.broadcast %345 : vector<64x1xf32> to vector<64x10xf32>
    %347 = arith.mulf %342, %346 : vector<64x10xf32>
    %cst_117 = arith.constant 0.000000e+00 : f32
    %348 = vector.broadcast %cst_117 : f32 to vector<64x6xf32>
    %349 = tpu.concatenate %347, %348 in 1 : vector<64x10xf32>, vector<64x6xf32> -> vector<64x16xf32>
    %cst_118 = arith.constant dense<0.000000e+00> : vector<64x512xf32>
    %350 = tpu.matmul %304, %300, %cst_118 {dimension_numbers = #tpu.dot_dimension_numbers<[1], [0], [0], [1], [0, 0, 1, 1], [], []>} : vector<64x128xbf16>, vector<128x512xbf16>, vector<64x512xf32> -> vector<64x512xf32>
    %351 = arith.truncf %349 : vector<64x16xf32> to vector<64x16xbf16>
    %cst_119 = arith.constant dense<0.000000e+00> : vector<64x512xf32>
    %352 = tpu.matmul %351, %301, %cst_119 {dimension_numbers = #tpu.dot_dimension_numbers<[1], [0], [0], [1], [0, 0, 1, 1], [], []>} : vector<64x16xbf16>, vector<16x512xbf16>, vector<64x512xf32> -> vector<64x512xf32>
    %353 = arith.addf %350, %352 : vector<64x512xf32>
    %c0_120 = arith.constant 0 : index
    %c0_121 = arith.constant 0 : index
    %354 = vector.load %arg17[%c0_120, %c0_121] : memref<1x512xf32, #tpu.memory_space<vmem>>, vector<1x512xf32>
    %355 = vector.broadcast %354 : vector<1x512xf32> to vector<64x512xf32>
    %356 = arith.addf %353, %355 : vector<64x512xf32>
    %cst_122 = arith.constant 0.000000e+00 : f32
    %357 = vector.broadcast %cst_122 : f32 to vector<64x512xf32>
    %358 = arith.maximumf %356, %357 : vector<64x512xf32>
    %359 = arith.truncf %358 : vector<64x512xf32> to vector<64x512xbf16>
    %cst_123 = arith.constant dense<0.000000e+00> : vector<64x512xf32>
    %360 = tpu.matmul %359, %302, %cst_123 {dimension_numbers = #tpu.dot_dimension_numbers<[1], [0], [0], [1], [0, 0, 1, 1], [], []>} : vector<64x512xbf16>, vector<512x512xbf16>, vector<64x512xf32> -> vector<64x512xf32>
    %c0_124 = arith.constant 0 : index
    %c0_125 = arith.constant 0 : index
    %361 = vector.load %arg18[%c0_124, %c0_125] : memref<1x512xf32, #tpu.memory_space<vmem>>, vector<1x512xf32>
    %362 = vector.broadcast %361 : vector<1x512xf32> to vector<64x512xf32>
    %363 = arith.addf %360, %362 : vector<64x512xf32>
    %cst_126 = arith.constant 0.000000e+00 : f32
    %364 = vector.broadcast %cst_126 : f32 to vector<64x512xf32>
    %365 = arith.maximumf %363, %364 : vector<64x512xf32>
    %366 = arith.truncf %365 : vector<64x512xf32> to vector<64x512xbf16>
    %c0_127 = arith.constant 0 : index
    %c0_128 = arith.constant 0 : index
    %367 = vector.load %arg13[%c0_127, %c0_128] : memref<512x64xbf16, #tpu.memory_space<vmem>>, vector<512x64xbf16>
    %cst_129 = arith.constant dense<0.000000e+00> : vector<64x64xf32>
    %368 = tpu.matmul %366, %367, %cst_129 {dimension_numbers = #tpu.dot_dimension_numbers<[1], [0], [0], [1], [0, 0, 1, 1], [], []>} : vector<64x512xbf16>, vector<512x64xbf16>, vector<64x64xf32> -> vector<64x64xf32>
    %c0_130 = arith.constant 0 : index
    %c0_131 = arith.constant 0 : index
    %369 = vector.load %arg19[%c0_130, %c0_131] : memref<1x64xf32, #tpu.memory_space<vmem>>, vector<1x64xf32>
    %370 = vector.broadcast %369 : vector<1x64xf32> to vector<64x64xf32>
    %371 = arith.addf %368, %370 : vector<64x64xf32>
    %372 = vector.extract_strided_slice %371 {offsets = [0, 0], sizes = [64, 32], strides = [1, 1]} : vector<64x64xf32> to vector<64x32xf32>
    %373 = vector.extract_strided_slice %371 {offsets = [0, 32], sizes = [64, 32], strides = [1, 1]} : vector<64x64xf32> to vector<64x32xf32>
    %cst_132 = arith.constant 0.000000e+00 : f32
    %374 = vector.broadcast %cst_132 : f32 to vector<64x32xf32>
    %375 = arith.maximumf %373, %374 : vector<64x32xf32>
    %376 = math.absf %373 : vector<64x32xf32>
    %cst_133 = arith.constant 0.000000e+00 : f32
    %377 = vector.broadcast %cst_133 : f32 to vector<64x32xf32>
    %378 = arith.subf %377, %376 : vector<64x32xf32>
    %379 = math.exp %378 : vector<64x32xf32>
    %cst_134 = arith.constant 1.000000e+00 : f32
    %380 = vector.broadcast %cst_134 : f32 to vector<64x32xf32>
    %381 = arith.addf %380, %379 : vector<64x32xf32>
    %382 = math.log %381 : vector<64x32xf32>
    %383 = arith.addf %375, %382 : vector<64x32xf32>
    %c0_135 = arith.constant 0 : index
    %c0_136 = arith.constant 0 : index
    %384 = vector.load %arg4[%c0_135, %c0_136] : memref<64x32xf32, #tpu.memory_space<vmem>>, vector<64x32xf32>
    %cst_137 = arith.constant 1.000000e-10 : f32
    %385 = vector.broadcast %cst_137 : f32 to vector<64x32xf32>
    %386 = arith.addf %383, %385 : vector<64x32xf32>
    %387 = math.sqrt %386 : vector<64x32xf32>
    %388 = arith.mulf %384, %387 : vector<64x32xf32>
    %389 = arith.addf %372, %388 : vector<64x32xf32>
    %cst_138 = arith.constant 0.000000e+00 : f32
    %390 = vector.broadcast %cst_138 : f32 to vector<64x2xf32>
    %391 = tpu.concatenate %323, %333, %347, %372, %383, %389, %390 in 1 : vector<64x10xf32>, vector<64x10xf32>, vector<64x10xf32>, vector<64x32xf32>, vector<64x32xf32>, vector<64x32xf32>, vector<64x2xf32> -> vector<64x128xf32>
    %c0_139 = arith.constant 0 : index
    %c0_140 = arith.constant 0 : index
    %392 = vector.load %arg21[%c0_139, %c0_140] : memref<64x128xf32, #tpu.memory_space<vmem>>, vector<64x128xf32>
    tpu.vector_store %arg21[%c0_139, %c0_140], %391 {strides = array<i32>} : memref<64x128xf32, #tpu.memory_space<vmem>>, vector<64x128xf32>,
    return
  }
  func.func @transform_0(%arg0: i32) -> (i32, i32) {
    %c0_i32 = arith.constant 0 : i32
    %c0_i32_0 = arith.constant 0 : i32
    %c0_i32_1 = arith.constant 0 : i32
    return %c0_i32, %c0_i32_0 : i32, i32
  }
  func.func @transform_1(%arg0: i32) -> (i32, i32) {
    %c0_i32 = arith.constant 0 : i32
    %c0_i32_0 = arith.constant 0 : i32
    %c0_i32_1 = arith.constant 0 : i32
    return %c0_i32, %c0_i32_0 : i32, i32
  }
  func.func @transform_2(%arg0: i32) -> (i32, i32) {
    %c0_i32 = arith.constant 0 : i32
    %c0_i32_0 = arith.constant 0 : i32
    %c0_i32_1 = arith.constant 0 : i32
    return %c0_i32, %c0_i32_0 : i32, i32
  }
  func.func @transform_3(%arg0: i32) -> (i32, i32) {
    %c0_i32 = arith.constant 0 : i32
    %c0_i32_0 = arith.constant 0 : i32
    %c0_i32_1 = arith.constant 0 : i32
    return %c0_i32, %c0_i32_0 : i32, i32
  }
  func.func @transform_4(%arg0: i32) -> (i32, i32) {
    %c0_i32 = arith.constant 0 : i32
    %c0_i32_0 = arith.constant 0 : i32
    %c0_i32_1 = arith.constant 0 : i32
    return %c0_i32, %c0_i32_0 : i32, i32
  }
  func.func @transform_5(%arg0: i32) -> (i32, i32) {
    %c0_i32 = arith.constant 0 : i32
    %c0_i32_0 = arith.constant 0 : i32
    %c0_i32_1 = arith.constant 0 : i32
    return %c0_i32, %c0_i32_0 : i32, i32
  }
  func.func @transform_6(%arg0: i32) -> (i32, i32) {
    %c0_i32 = arith.constant 0 : i32
    %c0_i32_0 = arith.constant 0 : i32
    %c0_i32_1 = arith.constant 0 : i32
    return %c0_i32, %c0_i32_0 : i32, i32
  }
  func.func @transform_7(%arg0: i32) -> (i32, i32) {
    %c0_i32 = arith.constant 0 : i32
    %c0_i32_0 = arith.constant 0 : i32
    %c0_i32_1 = arith.constant 0 : i32
    return %c0_i32, %c0_i32_0 : i32, i32
  }
  func.func @transform_8(%arg0: i32) -> (i32, i32) {
    %c0_i32 = arith.constant 0 : i32
    %c0_i32_0 = arith.constant 0 : i32
    %c0_i32_1 = arith.constant 0 : i32
    return %c0_i32, %c0_i32_0 : i32, i32
  }
  func.func @transform_9(%arg0: i32) -> (i32, i32) {
    %c0_i32 = arith.constant 0 : i32
    %c0_i32_0 = arith.constant 0 : i32
    %c0_i32_1 = arith.constant 0 : i32
    return %c0_i32, %c0_i32_0 : i32, i32
  }
  func.func @transform_11(%arg0: i32) -> (i32, i32) {
    %c0_i32 = arith.constant 0 : i32
    %c0_i32_0 = arith.constant 0 : i32
    %c0_i32_1 = arith.constant 0 : i32
    return %c0_i32, %c0_i32_0 : i32, i32
  }
  func.func @transform_12(%arg0: i32) -> (i32, i32) {
    %c0_i32 = arith.constant 0 : i32
    %c0_i32_0 = arith.constant 0 : i32
    %c0_i32_1 = arith.constant 0 : i32
    return %c0_i32, %c0_i32_0 : i32, i32
  }
  func.func @transform_13(%arg0: i32) -> (i32, i32) {
    %c0_i32 = arith.constant 0 : i32
    %c0_i32_0 = arith.constant 0 : i32
    %c0_i32_1 = arith.constant 0 : i32
    return %c0_i32, %c0_i32_0 : i32, i32
  }
  func.func @transform_14(%arg0: i32) -> (i32, i32) {
    %c0_i32 = arith.constant 0 : i32
    %c0_i32_0 = arith.constant 0 : i32
    %c0_i32_1 = arith.constant 0 : i32
    return %c0_i32, %c0_i32_0 : i32, i32
  }
  func.func @transform_15(%arg0: i32) -> (i32, i32) {
    %c0_i32 = arith.constant 0 : i32
    %c0_i32_0 = arith.constant 0 : i32
    %c0_i32_1 = arith.constant 0 : i32
    return %c0_i32, %c0_i32_0 : i32, i32
  }
  func.func @transform_16(%arg0: i32) -> (i32, i32) {
    %c0_i32 = arith.constant 0 : i32
    %c0_i32_0 = arith.constant 0 : i32
    %c0_i32_1 = arith.constant 0 : i32
    return %c0_i32, %c0_i32_0 : i32, i32
  }
  func.func @transform_17(%arg0: i32) -> (i32, i32) {
    %c0_i32 = arith.constant 0 : i32
    %c0_i32_0 = arith.constant 0 : i32
    %c0_i32_1 = arith.constant 0 : i32
    return %c0_i32, %c0_i32_0 : i32, i32
  }
  func.func @transform_18(%arg0: i32) -> (i32, i32) {
    %c0_i32 = arith.constant 0 : i32
    %c0_i32_0 = arith.constant 0 : i32
    %c0_i32_1 = arith.constant 0 : i32
    return %c0_i32, %c0_i32_0 : i32, i32
  }
  func.func @transform_19(%arg0: i32) -> (i32, i32) {
    %c0_i32 = arith.constant 0 : i32
    %c0_i32_0 = arith.constant 0 : i32
    %c0_i32_1 = arith.constant 0 : i32
    return %c0_i32, %c0_i32_0 : i32, i32
  }
  func.func @transform_20(%arg0: i32) -> (i32, i32) {
    %c0_i32 = arith.constant 0 : i32
    %c0_i32_0 = arith.constant 0 : i32
    %c0_i32_1 = arith.constant 0 : i32
    return %c0_i32, %c0_i32_0 : i32, i32
  }
}

</mosaic_0001>

<llo_original>
// kernel: tpu_custom_call.1
$region0: #{tpu_custom_call.1}
  #allocation0 [shape = 'u32[]', space=smem, size = 0x4, offset = 0x4, fixed_abs, tag = 'smem constant byte address 0x4 - core index']
  #allocation1 [shape = 'u32[144,128]{1,0:T(1,128)}', space=vmem, size = 0x12000, scoped, tag = 'internal scratch']
  #allocation2 [shape = 'f32[64,384]{1,0:T(8,128)}', space=vmem, size = 0x18000, scoped, tag = 'scratch operand']
  #allocation3 [shape = 'bf16[1296,512]{1,0:T(8,128)(2,1)}', space=vmem, size = 0x144000, scoped, tag = 'scratch operand']
  #allocation4 [shape = 's32[1]{0}', space=sflag, size = 0x4, scoped, tag = 'scratch operand']
  #allocation31 [shape = 's32[]', space=sflag, size = 0x4, offset = 0, fixed_abs, tag = 'sflag constant byte address 0x0 - dummy sync flag']
  #allocation32 [shape = 's32[]', space=sflag, size = 0x4, offset = 0, fixed_abs, tag = 'sflag constant byte address 0x0 - dummy sync flag']
  #allocation33 [shape = 'u32[]', space=smem, size = 0x4, offset = 0x44, fixed_abs, tag = 'smem constant byte address 0x44 - assertion arg 0']
  #allocation34 [shape = 'u32[]', space=smem, size = 0x4, offset = 0x48, fixed_abs, tag = 'smem constant byte address 0x48 - assertion arg 1']
  %s0 = inlined_call_operand.hbm [shape: f32[64,128], index: 0, kind: input, shape index: {}]
  %s1 = inlined_call_operand.hbm [shape: f32[8,128], index: 1, kind: input, shape index: {}]
  %s2 = inlined_call_operand.vmem [shape: f32[64,10], index: 2, kind: input, shape index: {}]
  %s3 = inlined_call_operand.vmem [shape: f32[64,32], index: 3, kind: input, shape index: {}]
  %s4 = inlined_call_operand.hbm [shape: f32[128,128], index: 4, kind: input, shape index: {}]
  %s5 = inlined_call_operand.hbm [shape: f32[1,128], index: 5, kind: input, shape index: {}]
  %s6 = inlined_call_operand.hbm [shape: f32[128,384], index: 6, kind: input, shape index: {}]
  %s7 = inlined_call_operand.hbm [shape: f32[1,384], index: 7, kind: input, shape index: {}]
  %s8 = inlined_call_operand.hbm [shape: f32[128,384], index: 8, kind: input, shape index: {}]
  %s9 = inlined_call_operand.hbm [shape: f32[1,384], index: 9, kind: input, shape index: {}]
  %s10 = inlined_call_operand.hbm [shape: bf16[1296,512], index: 10, kind: input, shape index: {}]
  %s11 = inlined_call_operand.vmem [shape: bf16[512,10], index: 11, kind: input, shape index: {}]
  %s12 = inlined_call_operand.vmem [shape: bf16[512,64], index: 12, kind: input, shape index: {}]
  %s13 = inlined_call_operand.hbm [shape: f32[1,512], index: 13, kind: input, shape index: {}]
  %s14 = inlined_call_operand.hbm [shape: f32[1,512], index: 14, kind: input, shape index: {}]
  %s15 = inlined_call_operand.hbm [shape: f32[1,10], index: 15, kind: input, shape index: {}]
  %s16 = inlined_call_operand.hbm [shape: f32[1,512], index: 16, kind: input, shape index: {}]
  %s17 = inlined_call_operand.hbm [shape: f32[1,512], index: 17, kind: input, shape index: {}]
  %s18 = inlined_call_operand.hbm [shape: f32[1,64], index: 18, kind: input, shape index: {}]
  %s19 = inlined_call_operand.hbm [shape: f32[64,128], index: 19, kind: output, shape index: {0}]
  %s20 = inlined_call_operand.hbm [shape: f32[64,128], index: 20, kind: output, shape index: {1}]
  %21 = xla_tuple %s19, %s20
  %s22 = sld [smem:[#allocation0]]
  $region150: #{tpu_custom_call.1} parent=0
    _
  %s24 = ssub.s32 1, %s22
  %s25 = scalar_select 0, %s24, %s22
  $region1: #{tpu_custom_call.1} parent=0
    #allocation5 [shape = 'u8[32768]{0}', space=vmem, size = 0x8000, scoped, tag = 'input window, operand 0, single buffered']
    #allocation6 [shape = 's32[1]{0}', space=sflag, size = 0x4, scoped, tag = 'scoped memory for tpu_custom_call.1']
    #allocation7 [shape = 's32[1]{0}', space=sflag, size = 0x4, scoped, tag = 'scoped memory for tpu_custom_call.1']
    #allocation8 [shape = 'u8[4096]{0}', space=vmem, size = 0x1000, scoped, tag = 'input window, operand 1, single buffered']
    #allocation9 [shape = 's32[1]{0}', space=sflag, size = 0x4, scoped, tag = 'scoped memory for tpu_custom_call.1']
    #allocation10 [shape = 'u8[65536]{0}', space=vmem, size = 0x10000, scoped, tag = 'input window, operand 4, single buffered']
    #allocation11 [shape = 'u8[512]{0}', space=vmem, size = 0x400, scoped, tag = 'input window, operand 5, single buffered']
    #allocation12 [shape = 's32[1]{0}', space=sflag, size = 0x4, scoped, tag = 'scoped memory for tpu_custom_call.1']
    #allocation13 [shape = 'u8[196608]{0}', space=vmem, size = 0x30000, scoped, tag = 'input window, operand 6, single buffered']
    #allocation14 [shape = 'u8[1536]{0}', space=vmem, size = 0x800, scoped, tag = 'input window, operand 7, single buffered']
    #allocation15 [shape = 's32[1]{0}', space=sflag, size = 0x4, scoped, tag = 'scoped memory for tpu_custom_call.1']
    #allocation16 [shape = 'u8[196608]{0}', space=vmem, size = 0x30000, scoped, tag = 'input window, operand 8, single buffered']
    #allocation17 [shape = 'u8[1536]{0}', space=vmem, size = 0x800, scoped, tag = 'input window, operand 9, single buffered']
    #allocation18 [shape = 's32[1]{0}', space=sflag, size = 0x4, scoped, tag = 'scoped memory for tpu_custom_call.1']
    #allocation19 [shape = 'u8[2048]{0}', space=vmem, size = 0x800, scoped, tag = 'input window, operand 13, single buffered']
    #allocation20 [shape = 'u8[2048]{0}', space=vmem, size = 0x800, scoped, tag = 'input window, operand 14, single buffered']
    #allocation21 [shape = 's32[1]{0}', space=sflag, size = 0x4, scoped, tag = 'scoped memory for tpu_custom_call.1']
    #allocation22 [shape = 'u8[512]{0}', space=vmem, size = 0x400, scoped, tag = 'input window, operand 15, single buffered']
    #allocation23 [shape = 'u8[2048]{0}', space=vmem, size = 0x800, scoped, tag = 'input window, operand 16, single buffered']
    #allocation24 [shape = 's32[1]{0}', space=sflag, size = 0x4, scoped, tag = 'scoped memory for tpu_custom_call.1']
    #allocation25 [shape = 'u8[2048]{0}', space=vmem, size = 0x800, scoped, tag = 'input window, operand 17, single buffered']
    #allocation26 [shape = 'u8[512]{0}', space=vmem, size = 0x400, scoped, tag = 'input window, operand 18, single buffered']
    #allocation27 [shape = 's32[1]{0}', space=sflag, size = 0x4, scoped, tag = 'scoped memory for tpu_custom_call.1']
    #allocation28 [shape = 'u8[32768]{0}', space=vmem, size = 0x8000, scoped, tag = 'output window, operand 0, single buffered']
    #allocation29 [shape = 'u8[32768]{0}', space=vmem, size = 0x8000, scoped, tag = 'output window, operand 1, single buffered']
    #allocation30 [shape = 's32[1]{0}', space=sflag, size = 0x4, scoped, tag = 'scoped memory for tpu_custom_call.1']
    %26 = vsyncpa [#allocation6], 0
    %27 = vsyncpa [#allocation9], 0
    %28 = vsyncpa [#allocation12], 0
    %29 = vsyncpa [#allocation15], 0
    %30 = vsyncpa [#allocation18], 0
    %31 = vsyncpa [#allocation21], 0
    %32 = vsyncpa [#allocation24], 0
    %33 = vsyncpa [#allocation27], 0
    %34 = vsyncpa [#allocation7], 0
    %35 = vsyncpa [#allocation30], 0
    // Predicated region
    $region2: #{tpu_custom_call.1} parent=1 // pred_check
      _
    $region3: #{tpu_custom_call.1} parent=1 // pred_check_branch
      %37 = sbr.rel (0) target = $region5
    $region4: #{tpu_custom_call.1} parent=1 // pred_region
      %s39 = ssub.s32 1024, 1024
      %40 = vsyncadd [#allocation6], %s39
      %s41 = sshll.u32 [#allocation5], 4
      %s42 = int_to_ptr.vmem [resolvable:$true] %s41
      %47 = dma.hbm_to_vmem [thread:$0]  %s0, 1024, %s42, [#allocation6], 128, 128, 8
    $region5: #{tpu_custom_call.1} parent=1 // pred_fallthru
      _
    // Predicated region
    $region6: #{tpu_custom_call.1} parent=1 // pred_check
      _
    $region7: #{tpu_custom_call.1} parent=1 // pred_check_branch
      %49 = sbr.rel (0) target = $region9
    $region8: #{tpu_custom_call.1} parent=1 // pred_region
      %s51 = ssub.s32 128, 128
      %52 = vsyncadd [#allocation9], %s51
      %s54 = sshll.u32 [#allocation8], 4
      %s55 = int_to_ptr.vmem [resolvable:$true] %s54
      %57 = dma.hbm_to_vmem [thread:$0]  %s1, 128, %s55, [#allocation9]
    $region9: #{tpu_custom_call.1} parent=1 // pred_fallthru
      _
    // Predicated region
    $region10: #{tpu_custom_call.1} parent=1 // pred_check
      _
    $region11: #{tpu_custom_call.1} parent=1 // pred_check_branch
      %59 = sbr.rel (0) target = $region13
    $region12: #{tpu_custom_call.1} parent=1 // pred_region
      _
    $region13: #{tpu_custom_call.1} parent=1 // pred_fallthru
      _
    // Predicated region
    $region14: #{tpu_custom_call.1} parent=1 // pred_check
      _
    $region15: #{tpu_custom_call.1} parent=1 // pred_check_branch
      %61 = sbr.rel (0) target = $region17
    $region16: #{tpu_custom_call.1} parent=1 // pred_region
      _
    $region17: #{tpu_custom_call.1} parent=1 // pred_fallthru
      _
    // Predicated region
    $region18: #{tpu_custom_call.1} parent=1 // pred_check
      _
    $region19: #{tpu_custom_call.1} parent=1 // pred_check_branch
      %63 = sbr.rel (0) target = $region21
    $region20: #{tpu_custom_call.1} parent=1 // pred_region
      %s65 = ssub.s32 2048, 2048
      %66 = vsyncadd [#allocation9], %s65
      %s67 = sshll.u32 [#allocation10], 4
      %s68 = int_to_ptr.vmem [resolvable:$true] %s67
      %73 = dma.hbm_to_vmem [thread:$0]  %s4, 2048, %s68, [#allocation9], 128, 128, 8
    $region21: #{tpu_custom_call.1} parent=1 // pred_fallthru
      _
    // Predicated region
    $region22: #{tpu_custom_call.1} parent=1 // pred_check
      _
    $region23: #{tpu_custom_call.1} parent=1 // pred_check_branch
      %75 = sbr.rel (0) target = $region25
    $region24: #{tpu_custom_call.1} parent=1 // pred_region
      %s77 = ssub.s32 16, 16
      %78 = vsyncadd [#allocation12], %s77
      %s80 = sshll.u32 [#allocation11], 4
      %s81 = int_to_ptr.vmem [resolvable:$true] %s80
      %83 = dma.hbm_to_vmem [thread:$0]  %s5, 16, %s81, [#allocation12]
    $region25: #{tpu_custom_call.1} parent=1 // pred_fallthru
      _
    // Predicated region
    $region26: #{tpu_custom_call.1} parent=1 // pred_check
      _
    $region27: #{tpu_custom_call.1} parent=1 // pred_check_branch
      %85 = sbr.rel (0) target = $region29
    $region28: #{tpu_custom_call.1} parent=1 // pred_region
      %s87 = ssub.s32 6144, 6144
      %88 = vsyncadd [#allocation12], %s87
      %s89 = sshll.u32 [#allocation13], 4
      %s90 = int_to_ptr.vmem [resolvable:$true] %s89
      %95 = dma.hbm_to_vmem [thread:$0]  %s6, 6144, %s90, [#allocation12], 384, 384, 24
    $region29: #{tpu_custom_call.1} parent=1 // pred_fallthru
      _
    // Predicated region
    $region30: #{tpu_custom_call.1} parent=1 // pred_check
      _
    $region31: #{tpu_custom_call.1} parent=1 // pred_check_branch
      %97 = sbr.rel (0) target = $region33
    $region32: #{tpu_custom_call.1} parent=1 // pred_region
      %s99 = ssub.s32 48, 48
      %100 = vsyncadd [#allocation15], %s99
      %s102 = sshll.u32 [#allocation14], 4
      %s103 = int_to_ptr.vmem [resolvable:$true] %s102
      %105 = dma.hbm_to_vmem [thread:$0]  %s7, 48, %s103, [#allocation15]
    $region33: #{tpu_custom_call.1} parent=1 // pred_fallthru
      _
    // Predicated region
    $region34: #{tpu_custom_call.1} parent=1 // pred_check
      _
    $region35: #{tpu_custom_call.1} parent=1 // pred_check_branch
      %107 = sbr.rel (0) target = $region37
    $region36: #{tpu_custom_call.1} parent=1 // pred_region
      %s109 = ssub.s32 6144, 6144
      %110 = vsyncadd [#allocation15], %s109
      %s111 = sshll.u32 [#allocation16], 4
      %s112 = int_to_ptr.vmem [resolvable:$true] %s111
      %117 = dma.hbm_to_vmem [thread:$0]  %s8, 6144, %s112, [#allocation15], 384, 384, 24
    $region37: #{tpu_custom_call.1} parent=1 // pred_fallthru
      _
    // Predicated region
    $region38: #{tpu_custom_call.1} parent=1 // pred_check
      _
    $region39: #{tpu_custom_call.1} parent=1 // pred_check_branch
      %119 = sbr.rel (0) target = $region41
    $region40: #{tpu_custom_call.1} parent=1 // pred_region
      %s121 = ssub.s32 48, 48
      %122 = vsyncadd [#allocation18], %s121
      %s124 = sshll.u32 [#allocation17], 4
      %s125 = int_to_ptr.vmem [resolvable:$true] %s124
      %127 = dma.hbm_to_vmem [thread:$0]  %s9, 48, %s125, [#allocation18]
    $region41: #{tpu_custom_call.1} parent=1 // pred_fallthru
      _
    // Predicated region
    $region42: #{tpu_custom_call.1} parent=1 // pred_check
      _
    $region43: #{tpu_custom_call.1} parent=1 // pred_check_branch
      %129 = sbr.rel (0) target = $region45
    $region44: #{tpu_custom_call.1} parent=1 // pred_region
      _
    $region45: #{tpu_custom_call.1} parent=1 // pred_fallthru
      _
    // Predicated region
    $region46: #{tpu_custom_call.1} parent=1 // pred_check
      _
    $region47: #{tpu_custom_call.1} parent=1 // pred_check_branch
      %131 = sbr.rel (0) target = $region49
    $region48: #{tpu_custom_call.1} parent=1 // pred_region
      _
    $region49: #{tpu_custom_call.1} parent=1 // pred_fallthru
      _
    // Predicated region
    $region50: #{tpu_custom_call.1} parent=1 // pred_check
      _
    $region51: #{tpu_custom_call.1} parent=1 // pred_check_branch
      %133 = sbr.rel (0) target = $region53
    $region52: #{tpu_custom_call.1} parent=1 // pred_region
      %s135 = ssub.s32 64, 64
      %136 = vsyncadd [#allocation18], %s135
      %s138 = sshll.u32 [#allocation19], 4
      %s139 = int_to_ptr.vmem [resolvable:$true] %s138
      %141 = dma.hbm_to_vmem [thread:$0]  %s13, 64, %s139, [#allocation18]
    $region53: #{tpu_custom_call.1} parent=1 // pred_fallthru
      _
    // Predicated region
    $region54: #{tpu_custom_call.1} parent=1 // pred_check
      _
    $region55: #{tpu_custom_call.1} parent=1 // pred_check_branch
      %143 = sbr.rel (0) target = $region57
    $region56: #{tpu_custom_call.1} parent=1 // pred_region
      %s145 = ssub.s32 64, 64
      %146 = vsyncadd [#allocation21], %s145
      %s148 = sshll.u32 [#allocation20], 4
      %s149 = int_to_ptr.vmem [resolvable:$true] %s148
      %151 = dma.hbm_to_vmem [thread:$0]  %s14, 64, %s149, [#allocation21]
    $region57: #{tpu_custom_call.1} parent=1 // pred_fallthru
      _
    // Predicated region
    $region58: #{tpu_custom_call.1} parent=1 // pred_check
      _
    $region59: #{tpu_custom_call.1} parent=1 // pred_check_branch
      %153 = sbr.rel (0) target = $region61
    $region60: #{tpu_custom_call.1} parent=1 // pred_region
      %s155 = ssub.s32 16, 16
      %156 = vsyncadd [#allocation21], %s155
      %s158 = sshll.u32 [#allocation22], 4
      %s159 = int_to_ptr.vmem [resolvable:$true] %s158
      %161 = dma.hbm_to_vmem [thread:$0]  %s15, 16, %s159, [#allocation21]
    $region61: #{tpu_custom_call.1} parent=1 // pred_fallthru
      _
    // Predicated region
    $region62: #{tpu_custom_call.1} parent=1 // pred_check
      _
    $region63: #{tpu_custom_call.1} parent=1 // pred_check_branch
      %163 = sbr.rel (0) target = $region65
    $region64: #{tpu_custom_call.1} parent=1 // pred_region
      %s165 = ssub.s32 64, 64
      %166 = vsyncadd [#allocation24], %s165
      %s168 = sshll.u32 [#allocation23], 4
      %s169 = int_to_ptr.vmem [resolvable:$true] %s168
      %171 = dma.hbm_to_vmem [thread:$0]  %s16, 64, %s169, [#allocation24]
    $region65: #{tpu_custom_call.1} parent=1 // pred_fallthru
      _
    // Predicated region
    $region66: #{tpu_custom_call.1} parent=1 // pred_check
      _
    $region67: #{tpu_custom_call.1} parent=1 // pred_check_branch
      %173 = sbr.rel (0) target = $region69
    $region68: #{tpu_custom_call.1} parent=1 // pred_region
      %s175 = ssub.s32 64, 64
      %176 = vsyncadd [#allocation24], %s175
      %s178 = sshll.u32 [#allocation25], 4
      %s179 = int_to_ptr.vmem [resolvable:$true] %s178
      %181 = dma.hbm_to_vmem [thread:$0]  %s17, 64, %s179, [#allocation24]
    $region69: #{tpu_custom_call.1} parent=1 // pred_fallthru
      _
    // Predicated region
    $region70: #{tpu_custom_call.1} parent=1 // pred_check
      _
    $region71: #{tpu_custom_call.1} parent=1 // pred_check_branch
      %183 = sbr.rel (0) target = $region73
    $region72: #{tpu_custom_call.1} parent=1 // pred_region
      %s185 = ssub.s32 16, 16
      %186 = vsyncadd [#allocation27], %s185
      %s188 = sshll.u32 [#allocation26], 4
      %s189 = int_to_ptr.vmem [resolvable:$true] %s188
      %191 = dma.hbm_to_vmem [thread:$0]  %s18, 16, %s189, [#allocation27]
    $region73: #{tpu_custom_call.1} parent=1 // pred_fallthru
      _
    // Predicated region
    $region74: #{tpu_custom_call.1} parent=1 // pred_check
      _
    $region75: #{tpu_custom_call.1} parent=1 // pred_check_branch
      %193 = sbr.rel (0) target = $region77
    $region76: #{tpu_custom_call.1} parent=1 // pred_region
      %194 = dma.done [#allocation6], 1024
    $region77: #{tpu_custom_call.1} parent=1 // pred_fallthru
      _
    // Predicated region
    $region78: #{tpu_custom_call.1} parent=1 // pred_check
      _
    $region79: #{tpu_custom_call.1} parent=1 // pred_check_branch
      %196 = sbr.rel (0) target = $region81
    $region80: #{tpu_custom_call.1} parent=1 // pred_region
      %197 = dma.done [#allocation9], 128
    $region81: #{tpu_custom_call.1} parent=1 // pred_fallthru
      _
    // Predicated region
    $region82: #{tpu_custom_call.1} parent=1 // pred_check
      _
    $region83: #{tpu_custom_call.1} parent=1 // pred_check_branch
      %199 = sbr.rel (0) target = $region85
    $region84: #{tpu_custom_call.1} parent=1 // pred_region
      %200 = dma.done [#allocation9], 2048
    $region85: #{tpu_custom_call.1} parent=1 // pred_fallthru
      _
    // Predicated region
    $region86: #{tpu_custom_call.1} parent=1 // pred_check
      _
    $region87: #{tpu_custom_call.1} parent=1 // pred_check_branch
      %202 = sbr.rel (0) target = $region89
    $region88: #{tpu_custom_call.1} parent=1 // pred_region
      %203 = dma.done [#allocation12], 16
    $region89: #{tpu_custom_call.1} parent=1 // pred_fallthru
      _
    // Predicated region
    $region90: #{tpu_custom_call.1} parent=1 // pred_check
      _
    $region91: #{tpu_custom_call.1} parent=1 // pred_check_branch
      %205 = sbr.rel (0) target = $region93
    $region92: #{tpu_custom_call.1} parent=1 // pred_region
      %206 = dma.done [#allocation12], 6144
    $region93: #{tpu_custom_call.1} parent=1 // pred_fallthru
      _
    // Predicated region
    $region94: #{tpu_custom_call.1} parent=1 // pred_check
      _
    $region95: #{tpu_custom_call.1} parent=1 // pred_check_branch
      %208 = sbr.rel (0) target = $region97
    $region96: #{tpu_custom_call.1} parent=1 // pred_region
      %209 = dma.done [#allocation15], 48
    $region97: #{tpu_custom_call.1} parent=1 // pred_fallthru
      _
    // Predicated region
    $region98: #{tpu_custom_call.1} parent=1 // pred_check
      _
    $region99: #{tpu_custom_call.1} parent=1 // pred_check_branch
      %211 = sbr.rel (0) target = $region101
    $region100: #{tpu_custom_call.1} parent=1 // pred_region
      %212 = dma.done [#allocation15], 6144
    $region101: #{tpu_custom_call.1} parent=1 // pred_fallthru
      _
    // Predicated region
    $region102: #{tpu_custom_call.1} parent=1 // pred_check
      _
    $region103: #{tpu_custom_call.1} parent=1 // pred_check_branch
      %214 = sbr.rel (0) target = $region105
    $region104: #{tpu_custom_call.1} parent=1 // pred_region
      %215 = dma.done [#allocation18], 48
    $region105: #{tpu_custom_call.1} parent=1 // pred_fallthru
      _
    // Predicated region
    $region106: #{tpu_custom_call.1} parent=1 // pred_check
      _
    $region107: #{tpu_custom_call.1} parent=1 // pred_check_branch
      %217 = sbr.rel (0) target = $region109
    $region108: #{tpu_custom_call.1} parent=1 // pred_region
      %218 = dma.done [#allocation18], 64
    $region109: #{tpu_custom_call.1} parent=1 // pred_fallthru
      _
    // Predicated region
    $region110: #{tpu_custom_call.1} parent=1 // pred_check
      _
    $region111: #{tpu_custom_call.1} parent=1 // pred_check_branch
      %220 = sbr.rel (0) target = $region113
    $region112: #{tpu_custom_call.1} parent=1 // pred_region
      %221 = dma.done [#allocation21], 64
    $region113: #{tpu_custom_call.1} parent=1 // pred_fallthru
      _
    // Predicated region
    $region114: #{tpu_custom_call.1} parent=1 // pred_check
      _
    $region115: #{tpu_custom_call.1} parent=1 // pred_check_branch
      %223 = sbr.rel (0) target = $region117
    $region116: #{tpu_custom_call.1} parent=1 // pred_region
      %224 = dma.done [#allocation21], 16
    $region117: #{tpu_custom_call.1} parent=1 // pred_fallthru
      _
    // Predicated region
    $region118: #{tpu_custom_call.1} parent=1 // pred_check
      _
    $region119: #{tpu_custom_call.1} parent=1 // pred_check_branch
      %226 = sbr.rel (0) target = $region121
    $region120: #{tpu_custom_call.1} parent=1 // pred_region
      %227 = dma.done [#allocation24], 64
    $region121: #{tpu_custom_call.1} parent=1 // pred_fallthru
      _
    // Predicated region
    $region122: #{tpu_custom_call.1} parent=1 // pred_check
      _
    $region123: #{tpu_custom_call.1} parent=1 // pred_check_branch
      %229 = sbr.rel (0) target = $region125
    $region124: #{tpu_custom_call.1} parent=1 // pred_region
      %230 = dma.done [#allocation24], 64
    $region125: #{tpu_custom_call.1} parent=1 // pred_fallthru
      _
    // Predicated region
    $region126: #{tpu_custom_call.1} parent=1 // pred_check
      _
    $region127: #{tpu_custom_call.1} parent=1 // pred_check_branch
      %232 = sbr.rel (0) target = $region129
    $region128: #{tpu_custom_call.1} parent=1 // pred_region
      %233 = dma.done [#allocation27], 16
    $region129: #{tpu_custom_call.1} parent=1 // pred_fallthru
      _
    // Predicated region
    $region130: #{tpu_custom_call.1} parent=1 // pred_check
      _
    $region131: #{tpu_custom_call.1} parent=1 // pred_check_branch
      %236 = sbr.rel target = $region133
    $region132: #{tpu_custom_call.1} parent=1 // pred_region
      %237 = sst [smem:[#allocation33]] [#allocation32]
      %238 = sst [smem:[#allocation34]] [#allocation31]
    $region133: #{tpu_custom_call.1} parent=1 // pred_fallthru
      _
    %240 = shalt.err (0)
    %s242 = sshll.u32 [#allocation3], 4
    %s243 = int_to_ptr.vmem [resolvable:$true] %s242
    %245 = dma.hbm_to_vmem [thread:$0]  %s10, 41472, %s243, [#allocation4]
    %v246 = vld [vmem:[#allocation5] sm:$0xff]
    %v247 = vld [vmem:[#allocation5 + $0x8] sm:$0xff]
    %v248 = vld [vmem:[#allocation5 + $0x10] sm:$0xff]
    %v249 = vld [vmem:[#allocation5 + $0x18] sm:$0xff]
    %v250 = vld [vmem:[#allocation5 + $0x20] sm:$0xff]
    %v251 = vld [vmem:[#allocation5 + $0x28] sm:$0xff]
    %v252 = vld [vmem:[#allocation5 + $0x30] sm:$0xff]
    %v253 = vld [vmem:[#allocation5 + $0x38] sm:$0xff]
    %v254 = vld [vmem:[#allocation10] sm:$0xff]
    %v255 = vld [vmem:[#allocation10 + $0x8] sm:$0xff]
    %v256 = vld [vmem:[#allocation10 + $0x10] sm:$0xff]
    %v257 = vld [vmem:[#allocation10 + $0x18] sm:$0xff]
    %v258 = vld [vmem:[#allocation10 + $0x20] sm:$0xff]
    %v259 = vld [vmem:[#allocation10 + $0x28] sm:$0xff]
    %v260 = vld [vmem:[#allocation10 + $0x30] sm:$0xff]
    %v261 = vld [vmem:[#allocation10 + $0x38] sm:$0xff]
    %v262 = vld [vmem:[#allocation10 + $0x40] sm:$0xff]
    %v263 = vld [vmem:[#allocation10 + $0x48] sm:$0xff]
    %v264 = vld [vmem:[#allocation10 + $0x50] sm:$0xff]
    %v265 = vld [vmem:[#allocation10 + $0x58] sm:$0xff]
    %v266 = vld [vmem:[#allocation10 + $0x60] sm:$0xff]
    %v267 = vld [vmem:[#allocation10 + $0x68] sm:$0xff]
    %v268 = vld [vmem:[#allocation10 + $0x70] sm:$0xff]
    %v269 = vld [vmem:[#allocation10 + $0x78] sm:$0xff]
    %v270 = vld [vmem:[#allocation11] sm:$0x1]
    %v272 = vlaneseq
    %v273 = vshrl.u32 %v272, 7
    %v274 = vsub.s32 0, %v273
    %v275 = vrot.slane %v270, %v274
    %277 = vmatprep.subr.mxu0 0.0
    %278 = vmatpush1.msra.mxu0 %v269
    %279 = vmatprep.subr.mxu0 0.0
    %280 = vmatpush1.msra.mxu0 %v268
    %281 = vmatprep.subr.mxu0 0.0
    %282 = vmatpush1.msra.mxu0 %v267
    %283 = vmatprep.subr.mxu0 0.0
    %284 = vmatpush1.msra.mxu0 %v266
    %285 = vmatprep.subr.mxu0 0.0
    %286 = vmatpush1.msra.mxu0 %v265
    %287 = vmatprep.subr.mxu0 0.0
    %288 = vmatpush1.msra.mxu0 %v264
    %289 = vmatprep.subr.mxu0 0.0
    %290 = vmatpush1.msra.mxu0 %v263
    %291 = vmatprep.subr.mxu0 0.0
    %292 = vmatpush1.msra.mxu0 %v262
    %293 = vmatprep.subr.mxu0 0.0
    %294 = vmatpush1.msra.mxu0 %v261
    %295 = vmatprep.subr.mxu0 0.0
    %296 = vmatpush1.msra.mxu0 %v260
    %297 = vmatprep.subr.mxu0 0.0
    %298 = vmatpush1.msra.mxu0 %v259
    %299 = vmatprep.subr.mxu0 0.0
    %300 = vmatpush1.msra.mxu0 %v258
    %301 = vmatprep.subr.mxu0 0.0
    %302 = vmatpush1.msra.mxu0 %v257
    %303 = vmatprep.subr.mxu0 0.0
    %304 = vmatpush1.msra.mxu0 %v256
    %305 = vmatprep.subr.mxu0 0.0
    %306 = vmatpush1.msra.mxu0 %v255
    %307 = vmatprep.subr.mxu0 0.0
    %308 = vmatpush1.msra.mxu0 %v254
    %309 = vmatprep.subr.mxu0 0.0
    %310 = vmatpush2.msra.mxu0 0.0
    %311 = vmatprep.subr.mxu0 0.0
    %312 = vmatpush2.msra.mxu0 0.0
    %313 = vmatprep.subr.mxu0 0.0
    %314 = vmatpush2.msra.mxu0 0.0
    %315 = vmatprep.subr.mxu0 0.0
    %316 = vmatpush2.msra.mxu0 0.0
    %317 = vmatprep.subr.mxu0 0.0
    %318 = vmatpush2.msra.mxu0 0.0
    %319 = vmatprep.subr.mxu0 0.0
    %320 = vmatpush2.msra.mxu0 0.0
    %321 = vmatprep.subr.mxu0 0.0
    %322 = vmatpush2.msra.mxu0 0.0
    %323 = vmatprep.subr.mxu0 0.0
    %324 = vmatpush2.msra.mxu0 0.0
    %325 = vmatprep.subr.mxu0 0.0
    %326 = vmatpush2.msra.mxu0 0.0
    %327 = vmatprep.subr.mxu0 0.0
    %328 = vmatpush2.msra.mxu0 0.0
    %329 = vmatprep.subr.mxu0 0.0
    %330 = vmatpush2.msra.mxu0 0.0
    %331 = vmatprep.subr.mxu0 0.0
    %332 = vmatpush2.msra.mxu0 0.0
    %333 = vmatprep.subr.mxu0 0.0
    %334 = vmatpush2.msra.mxu0 0.0
    %335 = vmatprep.subr.mxu0 0.0
    %336 = vmatpush2.msra.mxu0 0.0
    %337 = vmatprep.subr.mxu0 0.0
    %338 = vmatpush2.msra.mxu0 0.0
    %339 = vmatprep.subr.mxu0 0.0
    %340 = vmatpush2.msra.mxu0 0.0
    %341 = vmatprep.mubr.f32.mxu0 0.0
    %342 = vmatmul.mubr.f32.gmra.mxu0 %v246
    %v343 = vpop.f32.mrf.mxu0
    %v344 = vadd.f32 %v275, %v343
    %v345 = vpop.f32.mrf.mxu0
    %346 = vmatprep.mubr.f32.mxu0 0.0
    %347 = vmatmul.mubr.f32.gmra.mxu0 %v247
    %v348 = vpop.f32.mrf.mxu0
    %v349 = vadd.f32 %v275, %v348
    %v350 = vpop.f32.mrf.mxu0
    %351 = vmatprep.mubr.f32.mxu0 0.0
    %352 = vmatmul.mubr.f32.gmra.mxu0 %v248
    %v353 = vpop.f32.mrf.mxu0
    %v354 = vadd.f32 %v275, %v353
    %v355 = vpop.f32.mrf.mxu0
    %356 = vmatprep.mubr.f32.mxu0 0.0
    %357 = vmatmul.mubr.f32.gmra.mxu0 %v249
    %v358 = vpop.f32.mrf.mxu0
    %v359 = vadd.f32 %v275, %v358
    %v360 = vpop.f32.mrf.mxu0
    %361 = vmatprep.mubr.f32.mxu0 0.0
    %362 = vmatmul.mubr.f32.gmra.mxu0 %v250
    %v363 = vpop.f32.mrf.mxu0
    %v364 = vadd.f32 %v275, %v363
    %v365 = vpop.f32.mrf.mxu0
    %366 = vmatprep.mubr.f32.mxu0 0.0
    %367 = vmatmul.mubr.f32.gmra.mxu0 %v251
    %v368 = vpop.f32.mrf.mxu0
    %v369 = vadd.f32 %v275, %v368
    %v370 = vpop.f32.mrf.mxu0
    %371 = vmatprep.mubr.f32.mxu0 0.0
    %372 = vmatmul.mubr.f32.gmra.mxu0 %v252
    %v373 = vpop.f32.mrf.mxu0
    %v374 = vadd.f32 %v275, %v373
    %v375 = vpop.f32.mrf.mxu0
    %376 = vmatprep.mubr.f32.mxu0 0.0
    %377 = vmatmul.mubr.f32.gmra.mxu0 %v253
    %v378 = vpop.f32.mrf.mxu0
    %v379 = vadd.f32 %v275, %v378
    %v380 = vpop.f32.mrf.mxu0
    %381 = vdwg.mxu0
    %v382 = vmax.f32 %v344, 0.0
    %v383 = vmax.f32 %v349, 0.0
    %v384 = vmax.f32 %v354, 0.0
    %v385 = vmax.f32 %v359, 0.0
    %v386 = vmax.f32 %v364, 0.0
    %v387 = vmax.f32 %v369, 0.0
    %v388 = vmax.f32 %v374, 0.0
    %v389 = vmax.f32 %v379, 0.0
    %v390 = vld [vmem:[#allocation13] sm:$0xff]
    %v391 = vld [vmem:[#allocation13 + $0x8] sm:$0xff]
    %v392 = vld [vmem:[#allocation13 + $0x10] sm:$0xff]
    %v393 = vld [vmem:[#allocation13 + $0x18] sm:$0xff]
    %v394 = vld [vmem:[#allocation13 + $0x20] sm:$0xff]
    %v395 = vld [vmem:[#allocation13 + $0x28] sm:$0xff]
    %v396 = vld [vmem:[#allocation13 + $0x30] sm:$0xff]
    %v397 = vld [vmem:[#allocation13 + $0x38] sm:$0xff]
    %v398 = vld [vmem:[#allocation13 + $0x40] sm:$0xff]
    %v399 = vld [vmem:[#allocation13 + $0x48] sm:$0xff]
    %v400 = vld [vmem:[#allocation13 + $0x50] sm:$0xff]
    %v401 = vld [vmem:[#allocation13 + $0x58] sm:$0xff]
    %v402 = vld [vmem:[#allocation13 + $0x60] sm:$0xff]
    %v403 = vld [vmem:[#allocation13 + $0x68] sm:$0xff]
    %v404 = vld [vmem:[#allocation13 + $0x70] sm:$0xff]
    %v405 = vld [vmem:[#allocation13 + $0x78] sm:$0xff]
    %v406 = vld [vmem:[#allocation13 + $0x80] sm:$0xff]
    %v407 = vld [vmem:[#allocation13 + $0x88] sm:$0xff]
    %v408 = vld [vmem:[#allocation13 + $0x90] sm:$0xff]
    %v409 = vld [vmem:[#allocation13 + $0x98] sm:$0xff]
    %v410 = vld [vmem:[#allocation13 + $0xa0] sm:$0xff]
    %v411 = vld [vmem:[#allocation13 + $0xa8] sm:$0xff]
    %v412 = vld [vmem:[#allocation13 + $0xb0] sm:$0xff]
    %v413 = vld [vmem:[#allocation13 + $0xb8] sm:$0xff]
    %v414 = vld [vmem:[#allocation13 + $0xc0] sm:$0xff]
    %v415 = vld [vmem:[#allocation13 + $0xc8] sm:$0xff]
    %v416 = vld [vmem:[#allocation13 + $0xd0] sm:$0xff]
    %v417 = vld [vmem:[#allocation13 + $0xd8] sm:$0xff]
    %v418 = vld [vmem:[#allocation13 + $0xe0] sm:$0xff]
    %v419 = vld [vmem:[#allocation13 + $0xe8] sm:$0xff]
    %v420 = vld [vmem:[#allocation13 + $0xf0] sm:$0xff]
    %v421 = vld [vmem:[#allocation13 + $0xf8] sm:$0xff]
    %v422 = vld [vmem:[#allocation13 + $0x100] sm:$0xff]
    %v423 = vld [vmem:[#allocation13 + $0x108] sm:$0xff]
    %v424 = vld [vmem:[#allocation13 + $0x110] sm:$0xff]
    %v425 = vld [vmem:[#allocation13 + $0x118] sm:$0xff]
    %v426 = vld [vmem:[#allocation13 + $0x120] sm:$0xff]
    %v427 = vld [vmem:[#allocation13 + $0x128] sm:$0xff]
    %v428 = vld [vmem:[#allocation13 + $0x130] sm:$0xff]
    %v429 = vld [vmem:[#allocation13 + $0x138] sm:$0xff]
    %v430 = vld [vmem:[#allocation13 + $0x140] sm:$0xff]
    %v431 = vld [vmem:[#allocation13 + $0x148] sm:$0xff]
    %v432 = vld [vmem:[#allocation13 + $0x150] sm:$0xff]
    %v433 = vld [vmem:[#allocation13 + $0x158] sm:$0xff]
    %v434 = vld [vmem:[#allocation13 + $0x160] sm:$0xff]
    %v435 = vld [vmem:[#allocation13 + $0x168] sm:$0xff]
    %v436 = vld [vmem:[#allocation13 + $0x170] sm:$0xff]
    %v437 = vld [vmem:[#allocation13 + $0x178] sm:$0xff]
    %v438 = vld [vmem:[#allocation14] sm:$0x7]
    %v440 = vlaneseq
    %v441 = vshrl.u32 %v440, 7
    %v442 = vsub.s32 0, %v441
    %v443 = vrot.slane %v438, %v442
    %v444 = vlaneseq
    %v445 = vshrl.u32 %v444, 7
    %v446 = vsub.s32 1, %v445
    %v447 = vrot.slane %v438, %v446
    %v448 = vlaneseq
    %v449 = vshrl.u32 %v448, 7
    %v450 = vsub.s32 2, %v449
    %v451 = vrot.slane %v438, %v450
    %455 = vmatprep.subr.mxu0 %v436
    %456 = vmatpush1.msra.mxu0 %v435
    %457 = vmatprep.subr.mxu0 %v433
    %458 = vmatpush1.msra.mxu0 %v432
    %459 = vmatprep.subr.mxu0 %v430
    %460 = vmatpush1.msra.mxu0 %v429
    %461 = vmatprep.subr.mxu0 %v427
    %462 = vmatpush1.msra.mxu0 %v426
    %463 = vmatprep.subr.mxu0 %v424
    %464 = vmatpush1.msra.mxu0 %v423
    %465 = vmatprep.subr.mxu0 %v421
    %466 = vmatpush1.msra.mxu0 %v420
    %467 = vmatprep.subr.mxu0 %v418
    %468 = vmatpush1.msra.mxu0 %v417
    %469 = vmatprep.subr.mxu0 %v415
    %470 = vmatpush1.msra.mxu0 %v414
    %471 = vmatprep.subr.mxu0 %v412
    %472 = vmatpush1.msra.mxu0 %v411
    %473 = vmatprep.subr.mxu0 %v409
    %474 = vmatpush1.msra.mxu0 %v408
    %475 = vmatprep.subr.mxu0 %v406
    %476 = vmatpush1.msra.mxu0 %v405
    %477 = vmatprep.subr.mxu0 %v403
    %478 = vmatpush1.msra.mxu0 %v402
    %479 = vmatprep.subr.mxu0 %v400
    %480 = vmatpush1.msra.mxu0 %v399
    %481 = vmatprep.subr.mxu0 %v397
    %482 = vmatpush1.msra.mxu0 %v396
    %483 = vmatprep.subr.mxu0 %v394
    %484 = vmatpush1.msra.mxu0 %v393
    %485 = vmatprep.subr.mxu0 %v391
    %486 = vmatpush1.msra.mxu0 %v390
    %487 = vmatprep.subr.mxu0 0.0
    %488 = vmatpush2.msra.mxu0 0.0
    %489 = vmatprep.subr.mxu0 0.0
    %490 = vmatpush2.msra.mxu0 0.0
    %491 = vmatprep.subr.mxu0 0.0
    %492 = vmatpush2.msra.mxu0 0.0
    %493 = vmatprep.subr.mxu0 0.0
    %494 = vmatpush2.msra.mxu0 0.0
    %495 = vmatprep.subr.mxu0 0.0
    %496 = vmatpush2.msra.mxu0 0.0
    %497 = vmatprep.subr.mxu0 0.0
    %498 = vmatpush2.msra.mxu0 0.0
    %499 = vmatprep.subr.mxu0 0.0
    %500 = vmatpush2.msra.mxu0 0.0
    %501 = vmatprep.subr.mxu0 0.0
    %502 = vmatpush2.msra.mxu0 0.0
    %503 = vmatprep.subr.mxu0 0.0
    %504 = vmatpush2.msra.mxu0 0.0
    %505 = vmatprep.subr.mxu0 0.0
    %506 = vmatpush2.msra.mxu0 0.0
    %507 = vmatprep.subr.mxu0 0.0
    %508 = vmatpush2.msra.mxu0 0.0
    %509 = vmatprep.subr.mxu0 0.0
    %510 = vmatpush2.msra.mxu0 0.0
    %511 = vmatprep.subr.mxu0 0.0
    %512 = vmatpush2.msra.mxu0 0.0
    %513 = vmatprep.subr.mxu0 0.0
    %514 = vmatpush2.msra.mxu0 0.0
    %515 = vmatprep.subr.mxu0 0.0
    %516 = vmatpush2.msra.mxu0 0.0
    %517 = vmatprep.subr.mxu0 0.0
    %518 = vmatpush2.msra.mxu0 0.0
    %519 = vmatprep.mubr.f32.mxu0 0.0
    %520 = vmatmul.mubr.f32.gmra.mxu0 %v382
    %v521 = vpop.f32.mrf.mxu0
    %v522 = vadd.f32 %v443, %v521
    %v523 = vpop.f32.mrf.mxu0
    %v524 = vadd.f32 %v447, %v523
    %525 = vmatprep.mubr.f32.mxu0 0.0
    %526 = vmatmul.mubr.f32.gmra.mxu0 %v383
    %v527 = vpop.f32.mrf.mxu0
    %v528 = vadd.f32 %v443, %v527
    %v529 = vpop.f32.mrf.mxu0
    %v530 = vadd.f32 %v447, %v529
    %531 = vmatprep.mubr.f32.mxu0 0.0
    %532 = vmatmul.mubr.f32.gmra.mxu0 %v384
    %v533 = vpop.f32.mrf.mxu0
    %v534 = vadd.f32 %v443, %v533
    %v535 = vpop.f32.mrf.mxu0
    %v536 = vadd.f32 %v447, %v535
    %537 = vmatprep.mubr.f32.mxu0 0.0
    %538 = vmatmul.mubr.f32.gmra.mxu0 %v385
    %v539 = vpop.f32.mrf.mxu0
    %v540 = vadd.f32 %v443, %v539
    %v541 = vpop.f32.mrf.mxu0
    %v542 = vadd.f32 %v447, %v541
    %543 = vmatprep.mubr.f32.mxu0 0.0
    %544 = vmatmul.mubr.f32.gmra.mxu0 %v386
    %v545 = vpop.f32.mrf.mxu0
    %v546 = vadd.f32 %v443, %v545
    %v547 = vpop.f32.mrf.mxu0
    %v548 = vadd.f32 %v447, %v547
    %549 = vmatprep.mubr.f32.mxu0 0.0
    %550 = vmatmul.mubr.f32.gmra.mxu0 %v387
    %v551 = vpop.f32.mrf.mxu0
    %v552 = vadd.f32 %v443, %v551
    %v553 = vpop.f32.mrf.mxu0
    %v554 = vadd.f32 %v447, %v553
    %555 = vmatprep.mubr.f32.mxu0 0.0
    %556 = vmatmul.mubr.f32.gmra.mxu0 %v388
    %v557 = vpop.f32.mrf.mxu0
    %v558 = vadd.f32 %v443, %v557
    %v559 = vpop.f32.mrf.mxu0
    %v560 = vadd.f32 %v447, %v559
    %561 = vmatprep.mubr.f32.mxu0 0.0
    %562 = vmatmul.mubr.f32.gmra.mxu0 %v389
    %v563 = vpop.f32.mrf.mxu0
    %v564 = vadd.f32 %v443, %v563
    %v565 = vpop.f32.mrf.mxu0
    %v566 = vadd.f32 %v447, %v565
    %567 = vdwg.mxu0
    %568 = vmatprep.subr.mxu0 0.0
    %569 = vmatpush1.msra.mxu0 %v437
    %570 = vmatprep.subr.mxu0 0.0
    %571 = vmatpush1.msra.mxu0 %v434
    %572 = vmatprep.subr.mxu0 0.0
    %573 = vmatpush1.msra.mxu0 %v431
    %574 = vmatprep.subr.mxu0 0.0
    %575 = vmatpush1.msra.mxu0 %v428
    %576 = vmatprep.subr.mxu0 0.0
    %577 = vmatpush1.msra.mxu0 %v425
    %578 = vmatprep.subr.mxu0 0.0
    %579 = vmatpush1.msra.mxu0 %v422
    %580 = vmatprep.subr.mxu0 0.0
    %581 = vmatpush1.msra.mxu0 %v419
    %582 = vmatprep.subr.mxu0 0.0
    %583 = vmatpush1.msra.mxu0 %v416
    %584 = vmatprep.subr.mxu0 0.0
    %585 = vmatpush1.msra.mxu0 %v413
    %586 = vmatprep.subr.mxu0 0.0
    %587 = vmatpush1.msra.mxu0 %v410
    %588 = vmatprep.subr.mxu0 0.0
    %589 = vmatpush1.msra.mxu0 %v407
    %590 = vmatprep.subr.mxu0 0.0
    %591 = vmatpush1.msra.mxu0 %v404
    %592 = vmatprep.subr.mxu0 0.0
    %593 = vmatpush1.msra.mxu0 %v401
    %594 = vmatprep.subr.mxu0 0.0
    %595 = vmatpush1.msra.mxu0 %v398
    %596 = vmatprep.subr.mxu0 0.0
    %597 = vmatpush1.msra.mxu0 %v395
    %598 = vmatprep.subr.mxu0 0.0
    %599 = vmatpush1.msra.mxu0 %v392
    %600 = vmatprep.subr.mxu0 0.0
    %601 = vmatpush2.msra.mxu0 0.0
    %602 = vmatprep.subr.mxu0 0.0
    %603 = vmatpush2.msra.mxu0 0.0
    %604 = vmatprep.subr.mxu0 0.0
    %605 = vmatpush2.msra.mxu0 0.0
    %606 = vmatprep.subr.mxu0 0.0
    %607 = vmatpush2.msra.mxu0 0.0
    %608 = vmatprep.subr.mxu0 0.0
    %609 = vmatpush2.msra.mxu0 0.0
    %610 = vmatprep.subr.mxu0 0.0
    %611 = vmatpush2.msra.mxu0 0.0
    %612 = vmatprep.subr.mxu0 0.0
    %613 = vmatpush2.msra.mxu0 0.0
    %614 = vmatprep.subr.mxu0 0.0
    %615 = vmatpush2.msra.mxu0 0.0
    %616 = vmatprep.subr.mxu0 0.0
    %617 = vmatpush2.msra.mxu0 0.0
    %618 = vmatprep.subr.mxu0 0.0
    %619 = vmatpush2.msra.mxu0 0.0
    %620 = vmatprep.subr.mxu0 0.0
    %621 = vmatpush2.msra.mxu0 0.0
    %622 = vmatprep.subr.mxu0 0.0
    %623 = vmatpush2.msra.mxu0 0.0
    %624 = vmatprep.subr.mxu0 0.0
    %625 = vmatpush2.msra.mxu0 0.0
    %626 = vmatprep.subr.mxu0 0.0
    %627 = vmatpush2.msra.mxu0 0.0
    %628 = vmatprep.subr.mxu0 0.0
    %629 = vmatpush2.msra.mxu0 0.0
    %630 = vmatprep.subr.mxu0 0.0
    %631 = vmatpush2.msra.mxu0 0.0
    %632 = vmatprep.mubr.f32.mxu0 0.0
    %633 = vmatmul.mubr.f32.gmra.mxu0 %v382
    %v634 = vpop.f32.mrf.mxu0
    %v635 = vadd.f32 %v451, %v634
    %v636 = vpop.f32.mrf.mxu0
    %637 = vmatprep.mubr.f32.mxu0 0.0
    %638 = vmatmul.mubr.f32.gmra.mxu0 %v383
    %v639 = vpop.f32.mrf.mxu0
    %v640 = vadd.f32 %v451, %v639
    %v641 = vpop.f32.mrf.mxu0
    %642 = vmatprep.mubr.f32.mxu0 0.0
    %643 = vmatmul.mubr.f32.gmra.mxu0 %v384
    %v644 = vpop.f32.mrf.mxu0
    %v645 = vadd.f32 %v451, %v644
    %v646 = vpop.f32.mrf.mxu0
    %647 = vmatprep.mubr.f32.mxu0 0.0
    %648 = vmatmul.mubr.f32.gmra.mxu0 %v385
    %v649 = vpop.f32.mrf.mxu0
    %v650 = vadd.f32 %v451, %v649
    %v651 = vpop.f32.mrf.mxu0
    %652 = vmatprep.mubr.f32.mxu0 0.0
    %653 = vmatmul.mubr.f32.gmra.mxu0 %v386
    %v654 = vpop.f32.mrf.mxu0
    %v655 = vadd.f32 %v451, %v654
    %v656 = vpop.f32.mrf.mxu0
    %657 = vmatprep.mubr.f32.mxu0 0.0
    %658 = vmatmul.mubr.f32.gmra.mxu0 %v387
    %v659 = vpop.f32.mrf.mxu0
    %v660 = vadd.f32 %v451, %v659
    %v661 = vpop.f32.mrf.mxu0
    %662 = vmatprep.mubr.f32.mxu0 0.0
    %663 = vmatmul.mubr.f32.gmra.mxu0 %v388
    %v664 = vpop.f32.mrf.mxu0
    %v665 = vadd.f32 %v451, %v664
    %v666 = vpop.f32.mrf.mxu0
    %667 = vmatprep.mubr.f32.mxu0 0.0
    %668 = vmatmul.mubr.f32.gmra.mxu0 %v389
    %v669 = vpop.f32.mrf.mxu0
    %v670 = vadd.f32 %v451, %v669
    %v671 = vpop.f32.mrf.mxu0
    %672 = vdwg.mxu0
    %673 = vst [vmem:[#allocation2] sm:$0xff] %v522
    %674 = vst [vmem:[#allocation2 + $0x8] sm:$0xff] %v524
    %675 = vst [vmem:[#allocation2 + $0x10] sm:$0xff] %v635
    %676 = vst [vmem:[#allocation2 + $0x18] sm:$0xff] %v528
    %677 = vst [vmem:[#allocation2 + $0x20] sm:$0xff] %v530
    %678 = vst [vmem:[#allocation2 + $0x28] sm:$0xff] %v640
    %679 = vst [vmem:[#allocation2 + $0x30] sm:$0xff] %v534
    %680 = vst [vmem:[#allocation2 + $0x38] sm:$0xff] %v536
    %681 = vst [vmem:[#allocation2 + $0x40] sm:$0xff] %v645
    %682 = vst [vmem:[#allocation2 + $0x48] sm:$0xff] %v540
    %683 = vst [vmem:[#allocation2 + $0x50] sm:$0xff] %v542
    %684 = vst [vmem:[#allocation2 + $0x58] sm:$0xff] %v650
    %685 = vst [vmem:[#allocation2 + $0x60] sm:$0xff] %v546
    %686 = vst [vmem:[#allocation2 + $0x68] sm:$0xff] %v548
    %687 = vst [vmem:[#allocation2 + $0x70] sm:$0xff] %v655
    %688 = vst [vmem:[#allocation2 + $0x78] sm:$0xff] %v552
    %689 = vst [vmem:[#allocation2 + $0x80] sm:$0xff] %v554
    %690 = vst [vmem:[#allocation2 + $0x88] sm:$0xff] %v660
    %691 = vst [vmem:[#allocation2 + $0x90] sm:$0xff] %v558
    %692 = vst [vmem:[#allocation2 + $0x98] sm:$0xff] %v560
    %693 = vst [vmem:[#allocation2 + $0xa0] sm:$0xff] %v665
    %694 = vst [vmem:[#allocation2 + $0xa8] sm:$0xff] %v564
    %695 = vst [vmem:[#allocation2 + $0xb0] sm:$0xff] %v566
    %696 = vst [vmem:[#allocation2 + $0xb8] sm:$0xff] %v670
    %v697 = vld [vmem:[#allocation17] sm:$0x7]
    %v699 = vlaneseq
    %v700 = vshrl.u32 %v699, 7
    %v701 = vsub.s32 0, %v700
    %v702 = vrot.slane %v697, %v701
    %v703 = vlaneseq
    %v704 = vshrl.u32 %v703, 7
    %v705 = vsub.s32 1, %v704
    %v706 = vrot.slane %v697, %v705
    %v707 = vlaneseq
    %v708 = vshrl.u32 %v707, 7
    %v709 = vsub.s32 2, %v708
    %v710 = vrot.slane %v697, %v709
    %v714 = vld [vmem:[#allocation8] sm:$0xff]
    %s715 = smul.u32 0, 3
    %s716 = smul.addr %s715, 8
    %s717 = scalar_lea.vmem [#allocation2], %s716
    %v718 = vld [vmem:[%s717] sm:$0xff]
    %v719 = vld [vmem:[%s717 + $0x8] sm:$0xff]
    %v720 = vld [vmem:[%s717 + $0x10] sm:$0xff]
    %v721 = vld [vmem:[#allocation16] sm:$0xff]
    %v722 = vld [vmem:[#allocation16 + $0x8] sm:$0xff]
    %v723 = vld [vmem:[#allocation16 + $0x10] sm:$0xff]
    %v724 = vld [vmem:[#allocation16 + $0x18] sm:$0xff]
    %v725 = vld [vmem:[#allocation16 + $0x20] sm:$0xff]
    %v726 = vld [vmem:[#allocation16 + $0x28] sm:$0xff]
    %v727 = vld [vmem:[#allocation16 + $0x30] sm:$0xff]
    %v728 = vld [vmem:[#allocation16 + $0x38] sm:$0xff]
    %v729 = vld [vmem:[#allocation16 + $0x40] sm:$0xff]
    %v730 = vld [vmem:[#allocation16 + $0x48] sm:$0xff]
    %v731 = vld [vmem:[#allocation16 + $0x50] sm:$0xff]
    %v732 = vld [vmem:[#allocation16 + $0x58] sm:$0xff]
    %v733 = vld [vmem:[#allocation16 + $0x60] sm:$0xff]
    %v734 = vld [vmem:[#allocation16 + $0x68] sm:$0xff]
    %v735 = vld [vmem:[#allocation16 + $0x70] sm:$0xff]
    %v736 = vld [vmem:[#allocation16 + $0x78] sm:$0xff]
    %v737 = vld [vmem:[#allocation16 + $0x80] sm:$0xff]
    %v738 = vld [vmem:[#allocation16 + $0x88] sm:$0xff]
    %v739 = vld [vmem:[#allocation16 + $0x90] sm:$0xff]
    %v740 = vld [vmem:[#allocation16 + $0x98] sm:$0xff]
    %v741 = vld [vmem:[#allocation16 + $0xa0] sm:$0xff]
    %v742 = vld [vmem:[#allocation16 + $0xa8] sm:$0xff]
    %v743 = vld [vmem:[#allocation16 + $0xb0] sm:$0xff]
    %v744 = vld [vmem:[#allocation16 + $0xb8] sm:$0xff]
    %v745 = vld [vmem:[#allocation16 + $0xc0] sm:$0xff]
    %v746 = vld [vmem:[#allocation16 + $0xc8] sm:$0xff]
    %v747 = vld [vmem:[#allocation16 + $0xd0] sm:$0xff]
    %v748 = vld [vmem:[#allocation16 + $0xd8] sm:$0xff]
    %v749 = vld [vmem:[#allocation16 + $0xe0] sm:$0xff]
    %v750 = vld [vmem:[#allocation16 + $0xe8] sm:$0xff]
    %v751 = vld [vmem:[#allocation16 + $0xf0] sm:$0xff]
    %v752 = vld [vmem:[#allocation16 + $0xf8] sm:$0xff]
    %v753 = vld [vmem:[#allocation16 + $0x100] sm:$0xff]
    %v754 = vld [vmem:[#allocation16 + $0x108] sm:$0xff]
    %v755 = vld [vmem:[#allocation16 + $0x110] sm:$0xff]
    %v756 = vld [vmem:[#allocation16 + $0x118] sm:$0xff]
    %v757 = vld [vmem:[#allocation16 + $0x120] sm:$0xff]
    %v758 = vld [vmem:[#allocation16 + $0x128] sm:$0xff]
    %v759 = vld [vmem:[#allocation16 + $0x130] sm:$0xff]
    %v760 = vld [vmem:[#allocation16 + $0x138] sm:$0xff]
    %v761 = vld [vmem:[#allocation16 + $0x140] sm:$0xff]
    %v762 = vld [vmem:[#allocation16 + $0x148] sm:$0xff]
    %v763 = vld [vmem:[#allocation16 + $0x150] sm:$0xff]
    %v764 = vld [vmem:[#allocation16 + $0x158] sm:$0xff]
    %v765 = vld [vmem:[#allocation16 + $0x160] sm:$0xff]
    %v766 = vld [vmem:[#allocation16 + $0x168] sm:$0xff]
    %v767 = vld [vmem:[#allocation16 + $0x170] sm:$0xff]
    %v768 = vld [vmem:[#allocation16 + $0x178] sm:$0xff]
    %769 = vmatprep.subr.mxu0 %v767
    %770 = vmatpush1.msra.mxu0 %v766
    %771 = vmatprep.subr.mxu0 %v764
    %772 = vmatpush1.msra.mxu0 %v763
    %773 = vmatprep.subr.mxu0 %v761
    %774 = vmatpush1.msra.mxu0 %v760
    %775 = vmatprep.subr.mxu0 %v758
    %776 = vmatpush1.msra.mxu0 %v757
    %777 = vmatprep.subr.mxu0 %v755
    %778 = vmatpush1.msra.mxu0 %v754
    %779 = vmatprep.subr.mxu0 %v752
    %780 = vmatpush1.msra.mxu0 %v751
    %781 = vmatprep.subr.mxu0 %v749
    %782 = vmatpush1.msra.mxu0 %v748
    %783 = vmatprep.subr.mxu0 %v746
    %784 = vmatpush1.msra.mxu0 %v745
    %785 = vmatprep.subr.mxu0 %v743
    %786 = vmatpush1.msra.mxu0 %v742
    %787 = vmatprep.subr.mxu0 %v740
    %788 = vmatpush1.msra.mxu0 %v739
    %789 = vmatprep.subr.mxu0 %v737
    %790 = vmatpush1.msra.mxu0 %v736
    %791 = vmatprep.subr.mxu0 %v734
    %792 = vmatpush1.msra.mxu0 %v733
    %793 = vmatprep.subr.mxu0 %v731
    %794 = vmatpush1.msra.mxu0 %v730
    %795 = vmatprep.subr.mxu0 %v728
    %796 = vmatpush1.msra.mxu0 %v727
    %797 = vmatprep.subr.mxu0 %v725
    %798 = vmatpush1.msra.mxu0 %v724
    %799 = vmatprep.subr.mxu0 %v722
    %800 = vmatpush1.msra.mxu0 %v721
    %801 = vmatprep.subr.mxu0 0.0
    %802 = vmatpush2.msra.mxu0 0.0
    %803 = vmatprep.subr.mxu0 0.0
    %804 = vmatpush2.msra.mxu0 0.0
    %805 = vmatprep.subr.mxu0 0.0
    %806 = vmatpush2.msra.mxu0 0.0
    %807 = vmatprep.subr.mxu0 0.0
    %808 = vmatpush2.msra.mxu0 0.0
    %809 = vmatprep.subr.mxu0 0.0
    %810 = vmatpush2.msra.mxu0 0.0
    %811 = vmatprep.subr.mxu0 0.0
    %812 = vmatpush2.msra.mxu0 0.0
    %813 = vmatprep.subr.mxu0 0.0
    %814 = vmatpush2.msra.mxu0 0.0
    %815 = vmatprep.subr.mxu0 0.0
    %816 = vmatpush2.msra.mxu0 0.0
    %817 = vmatprep.subr.mxu0 0.0
    %818 = vmatpush2.msra.mxu0 0.0
    %819 = vmatprep.subr.mxu0 0.0
    %820 = vmatpush2.msra.mxu0 0.0
    %821 = vmatprep.subr.mxu0 0.0
    %822 = vmatpush2.msra.mxu0 0.0
    %823 = vmatprep.subr.mxu0 0.0
    %824 = vmatpush2.msra.mxu0 0.0
    %825 = vmatprep.subr.mxu0 0.0
    %826 = vmatpush2.msra.mxu0 0.0
    %827 = vmatprep.subr.mxu0 0.0
    %828 = vmatpush2.msra.mxu0 0.0
    %829 = vmatprep.subr.mxu0 0.0
    %830 = vmatpush2.msra.mxu0 0.0
    %831 = vmatprep.subr.mxu0 0.0
    %832 = vmatpush2.msra.mxu0 0.0
    %833 = vmatprep.mubr.f32.mxu0 0.0
    %834 = vmatmul.mubr.f32.gmra.mxu0 %v714
    %v835 = vpop.f32.mrf.mxu0
    %v836 = vadd.f32 %v702, %v835
    %v837 = vpop.f32.mrf.mxu0
    %v838 = vadd.f32 %v706, %v837
    %839 = vdwg.mxu0
    %840 = vmatprep.subr.mxu0 0.0
    %841 = vmatpush1.msra.mxu0 %v768
    %842 = vmatprep.subr.mxu0 0.0
    %843 = vmatpush1.msra.mxu0 %v765
    %844 = vmatprep.subr.mxu0 0.0
    %845 = vmatpush1.msra.mxu0 %v762
    %846 = vmatprep.subr.mxu0 0.0
    %847 = vmatpush1.msra.mxu0 %v759
    %848 = vmatprep.subr.mxu0 0.0
    %849 = vmatpush1.msra.mxu0 %v756
    %850 = vmatprep.subr.mxu0 0.0
    %851 = vmatpush1.msra.mxu0 %v753
    %852 = vmatprep.subr.mxu0 0.0
    %853 = vmatpush1.msra.mxu0 %v750
    %854 = vmatprep.subr.mxu0 0.0
    %855 = vmatpush1.msra.mxu0 %v747
    %856 = vmatprep.subr.mxu0 0.0
    %857 = vmatpush1.msra.mxu0 %v744
    %858 = vmatprep.subr.mxu0 0.0
    %859 = vmatpush1.msra.mxu0 %v741
    %860 = vmatprep.subr.mxu0 0.0
    %861 = vmatpush1.msra.mxu0 %v738
    %862 = vmatprep.subr.mxu0 0.0
    %863 = vmatpush1.msra.mxu0 %v735
    %864 = vmatprep.subr.mxu0 0.0
    %865 = vmatpush1.msra.mxu0 %v732
    %866 = vmatprep.subr.mxu0 0.0
    %867 = vmatpush1.msra.mxu0 %v729
    %868 = vmatprep.subr.mxu0 0.0
    %869 = vmatpush1.msra.mxu0 %v726
    %870 = vmatprep.subr.mxu0 0.0
    %871 = vmatpush1.msra.mxu0 %v723
    %872 = vmatprep.subr.mxu0 0.0
    %873 = vmatpush2.msra.mxu0 0.0
    %874 = vmatprep.subr.mxu0 0.0
    %875 = vmatpush2.msra.mxu0 0.0
    %876 = vmatprep.subr.mxu0 0.0
    %877 = vmatpush2.msra.mxu0 0.0
    %878 = vmatprep.subr.mxu0 0.0
    %879 = vmatpush2.msra.mxu0 0.0
    %880 = vmatprep.subr.mxu0 0.0
    %881 = vmatpush2.msra.mxu0 0.0
    %882 = vmatprep.subr.mxu0 0.0
    %883 = vmatpush2.msra.mxu0 0.0
    %884 = vmatprep.subr.mxu0 0.0
    %885 = vmatpush2.msra.mxu0 0.0
    %886 = vmatprep.subr.mxu0 0.0
    %887 = vmatpush2.msra.mxu0 0.0
    %888 = vmatprep.subr.mxu0 0.0
    %889 = vmatpush2.msra.mxu0 0.0
    %890 = vmatprep.subr.mxu0 0.0
    %891 = vmatpush2.msra.mxu0 0.0
    %892 = vmatprep.subr.mxu0 0.0
    %893 = vmatpush2.msra.mxu0 0.0
    %894 = vmatprep.subr.mxu0 0.0
    %895 = vmatpush2.msra.mxu0 0.0
    %896 = vmatprep.subr.mxu0 0.0
    %897 = vmatpush2.msra.mxu0 0.0
    %898 = vmatprep.subr.mxu0 0.0
    %899 = vmatpush2.msra.mxu0 0.0
    %900 = vmatprep.subr.mxu0 0.0
    %901 = vmatpush2.msra.mxu0 0.0
    %902 = vmatprep.subr.mxu0 0.0
    %903 = vmatpush2.msra.mxu0 0.0
    %904 = vmatprep.mubr.f32.mxu0 0.0
    %905 = vmatmul.mubr.f32.gmra.mxu0 %v714
    %v906 = vpop.f32.mrf.mxu0
    %v907 = vadd.f32 %v710, %v906
    %v908 = vpop.f32.mrf.mxu0
    %909 = vdwg.mxu0
    %v910 = vadd.f32 %v718, %v836
    %v911 = vxor.u32 %v910, 2147483648
    %v912 = vmul.f32 %v911, 1.442695
    %v913 = vpow.pop %v912
    %v914 = vadd.f32 %v913, 1.0
    %v915 = vrcp.pop %v914
    %v916 = vmul.f32 1.0, %v915
    %v917 = vadd.f32 %v719, %v838
    %v918 = vxor.u32 %v917, 2147483648
    %v919 = vmul.f32 %v918, 1.442695
    %v920 = vpow.pop %v919
    %v921 = vadd.f32 %v920, 1.0
    %v922 = vrcp.pop %v921
    %v923 = vmul.f32 1.0, %v922
    %v924 = vmul.f32 %v916, %v907
    %v925 = vadd.f32 %v720, %v924
    %v926 = vtanh.pop %v925
    %v927 = vsub.f32 1.0, %v923
    %v928 = vmul.f32 %v927, %v926
    %v929 = vmul.f32 %v923, %v714
    %v930 = vadd.f32 %v928, %v929
    %931 = vst [vmem:[#allocation28] sm:$0xff] %v930
    %s932 = smul.u32 1, 3
    %s933 = smul.addr %s932, 8
    %s934 = scalar_lea.vmem [#allocation2], %s933
    %v935 = vld [vmem:[%s934] sm:$0xff]
    %v936 = vld [vmem:[%s934 + $0x8] sm:$0xff]
    %v937 = vld [vmem:[%s934 + $0x10] sm:$0xff]
    %v938 = vld [vmem:[#allocation16] sm:$0xff]
    %v939 = vld [vmem:[#allocation16 + $0x8] sm:$0xff]
    %v940 = vld [vmem:[#allocation16 + $0x10] sm:$0xff]
    %v941 = vld [vmem:[#allocation16 + $0x18] sm:$0xff]
    %v942 = vld [vmem:[#allocation16 + $0x20] sm:$0xff]
    %v943 = vld [vmem:[#allocation16 + $0x28] sm:$0xff]
    %v944 = vld [vmem:[#allocation16 + $0x30] sm:$0xff]
    %v945 = vld [vmem:[#allocation16 + $0x38] sm:$0xff]
    %v946 = vld [vmem:[#allocation16 + $0x40] sm:$0xff]
    %v947 = vld [vmem:[#allocation16 + $0x48] sm:$0xff]
    %v948 = vld [vmem:[#allocation16 + $0x50] sm:$0xff]
    %v949 = vld [vmem:[#allocation16 + $0x58] sm:$0xff]
    %v950 = vld [vmem:[#allocation16 + $0x60] sm:$0xff]
    %v951 = vld [vmem:[#allocation16 + $0x68] sm:$0xff]
    %v952 = vld [vmem:[#allocation16 + $0x70] sm:$0xff]
    %v953 = vld [vmem:[#allocation16 + $0x78] sm:$0xff]
    %v954 = vld [vmem:[#allocation16 + $0x80] sm:$0xff]
    %v955 = vld [vmem:[#allocation16 + $0x88] sm:$0xff]
    %v956 = vld [vmem:[#allocation16 + $0x90] sm:$0xff]
    %v957 = vld [vmem:[#allocation16 + $0x98] sm:$0xff]
    %v958 = vld [vmem:[#allocation16 + $0xa0] sm:$0xff]
    %v959 = vld [vmem:[#allocation16 + $0xa8] sm:$0xff]
    %v960 = vld [vmem:[#allocation16 + $0xb0] sm:$0xff]
    %v961 = vld [vmem:[#allocation16 + $0xb8] sm:$0xff]
    %v962 = vld [vmem:[#allocation16 + $0xc0] sm:$0xff]
    %v963 = vld [vmem:[#allocation16 + $0xc8] sm:$0xff]
    %v964 = vld [vmem:[#allocation16 + $0xd0] sm:$0xff]
    %v965 = vld [vmem:[#allocation16 + $0xd8] sm:$0xff]
    %v966 = vld [vmem:[#allocation16 + $0xe0] sm:$0xff]
    %v967 = vld [vmem:[#allocation16 + $0xe8] sm:$0xff]
    %v968 = vld [vmem:[#allocation16 + $0xf0] sm:$0xff]
    %v969 = vld [vmem:[#allocation16 + $0xf8] sm:$0xff]
    %v970 = vld [vmem:[#allocation16 + $0x100] sm:$0xff]
    %v971 = vld [vmem:[#allocation16 + $0x108] sm:$0xff]
    %v972 = vld [vmem:[#allocation16 + $0x110] sm:$0xff]
    %v973 = vld [vmem:[#allocation16 + $0x118] sm:$0xff]
    %v974 = vld [vmem:[#allocation16 + $0x120] sm:$0xff]
    %v975 = vld [vmem:[#allocation16 + $0x128] sm:$0xff]
    %v976 = vld [vmem:[#allocation16 + $0x130] sm:$0xff]
    %v977 = vld [vmem:[#allocation16 + $0x138] sm:$0xff]
    %v978 = vld [vmem:[#allocation16 + $0x140] sm:$0xff]
    %v979 = vld [vmem:[#allocation16 + $0x148] sm:$0xff]
    %v980 = vld [vmem:[#allocation16 + $0x150] sm:$0xff]
    %v981 = vld [vmem:[#allocation16 + $0x158] sm:$0xff]
    %v982 = vld [vmem:[#allocation16 + $0x160] sm:$0xff]
    %v983 = vld [vmem:[#allocation16 + $0x168] sm:$0xff]
    %v984 = vld [vmem:[#allocation16 + $0x170] sm:$0xff]
    %v985 = vld [vmem:[#allocation16 + $0x178] sm:$0xff]
    %986 = vmatprep.subr.mxu0 %v984
    %987 = vmatpush1.msra.mxu0 %v983
    %988 = vmatprep.subr.mxu0 %v981
    %989 = vmatpush1.msra.mxu0 %v980
    %990 = vmatprep.subr.mxu0 %v978
    %991 = vmatpush1.msra.mxu0 %v977
    %992 = vmatprep.subr.mxu0 %v975
    %993 = vmatpush1.msra.mxu0 %v974
    %994 = vmatprep.subr.mxu0 %v972
    %995 = vmatpush1.msra.mxu0 %v971
    %996 = vmatprep.subr.mxu0 %v969
    %997 = vmatpush1.msra.mxu0 %v968
    %998 = vmatprep.subr.mxu0 %v966
    %999 = vmatpush1.msra.mxu0 %v965
    %1000 = vmatprep.subr.mxu0 %v963
    %1001 = vmatpush1.msra.mxu0 %v962
    %1002 = vmatprep.subr.mxu0 %v960
    %1003 = vmatpush1.msra.mxu0 %v959
    %1004 = vmatprep.subr.mxu0 %v957
    %1005 = vmatpush1.msra.mxu0 %v956
    %1006 = vmatprep.subr.mxu0 %v954
    %1007 = vmatpush1.msra.mxu0 %v953
    %1008 = vmatprep.subr.mxu0 %v951
    %1009 = vmatpush1.msra.mxu0 %v950
    %1010 = vmatprep.subr.mxu0 %v948
    %1011 = vmatpush1.msra.mxu0 %v947
    %1012 = vmatprep.subr.mxu0 %v945
    %1013 = vmatpush1.msra.mxu0 %v944
    %1014 = vmatprep.subr.mxu0 %v942
    %1015 = vmatpush1.msra.mxu0 %v941
    %1016 = vmatprep.subr.mxu0 %v939
    %1017 = vmatpush1.msra.mxu0 %v938
    %1018 = vmatprep.subr.mxu0 0.0
    %1019 = vmatpush2.msra.mxu0 0.0
    %1020 = vmatprep.subr.mxu0 0.0
    %1021 = vmatpush2.msra.mxu0 0.0
    %1022 = vmatprep.subr.mxu0 0.0
    %1023 = vmatpush2.msra.mxu0 0.0
    %1024 = vmatprep.subr.mxu0 0.0
    %1025 = vmatpush2.msra.mxu0 0.0
    %1026 = vmatprep.subr.mxu0 0.0
    %1027 = vmatpush2.msra.mxu0 0.0
    %1028 = vmatprep.subr.mxu0 0.0
    %1029 = vmatpush2.msra.mxu0 0.0
    %1030 = vmatprep.subr.mxu0 0.0
    %1031 = vmatpush2.msra.mxu0 0.0
    %1032 = vmatprep.subr.mxu0 0.0
    %1033 = vmatpush2.msra.mxu0 0.0
    %1034 = vmatprep.subr.mxu0 0.0
    %1035 = vmatpush2.msra.mxu0 0.0
    %1036 = vmatprep.subr.mxu0 0.0
    %1037 = vmatpush2.msra.mxu0 0.0
    %1038 = vmatprep.subr.mxu0 0.0
    %1039 = vmatpush2.msra.mxu0 0.0
    %1040 = vmatprep.subr.mxu0 0.0
    %1041 = vmatpush2.msra.mxu0 0.0
    %1042 = vmatprep.subr.mxu0 0.0
    %1043 = vmatpush2.msra.mxu0 0.0
    %1044 = vmatprep.subr.mxu0 0.0
    %1045 = vmatpush2.msra.mxu0 0.0
    %1046 = vmatprep.subr.mxu0 0.0
    %1047 = vmatpush2.msra.mxu0 0.0
    %1048 = vmatprep.subr.mxu0 0.0
    %1049 = vmatpush2.msra.mxu0 0.0
    %1050 = vmatprep.mubr.f32.mxu0 0.0
    %1051 = vmatmul.mubr.f32.gmra.mxu0 %v930
    %v1052 = vpop.f32.mrf.mxu0
    %v1053 = vadd.f32 %v702, %v1052
    %v1054 = vpop.f32.mrf.mxu0
    %v1055 = vadd.f32 %v706, %v1054
    %1056 = vdwg.mxu0
    %1057 = vmatprep.subr.mxu0 0.0
    %1058 = vmatpush1.msra.mxu0 %v985
    %1059 = vmatprep.subr.mxu0 0.0
    %1060 = vmatpush1.msra.mxu0 %v982
    %1061 = vmatprep.subr.mxu0 0.0
    %1062 = vmatpush1.msra.mxu0 %v979
    %1063 = vmatprep.subr.mxu0 0.0
    %1064 = vmatpush1.msra.mxu0 %v976
    %1065 = vmatprep.subr.mxu0 0.0
    %1066 = vmatpush1.msra.mxu0 %v973
    %1067 = vmatprep.subr.mxu0 0.0
    %1068 = vmatpush1.msra.mxu0 %v970
    %1069 = vmatprep.subr.mxu0 0.0
    %1070 = vmatpush1.msra.mxu0 %v967
    %1071 = vmatprep.subr.mxu0 0.0
    %1072 = vmatpush1.msra.mxu0 %v964
    %1073 = vmatprep.subr.mxu0 0.0
    %1074 = vmatpush1.msra.mxu0 %v961
    %1075 = vmatprep.subr.mxu0 0.0
    %1076 = vmatpush1.msra.mxu0 %v958
    %1077 = vmatprep.subr.mxu0 0.0
    %1078 = vmatpush1.msra.mxu0 %v955
    %1079 = vmatprep.subr.mxu0 0.0
    %1080 = vmatpush1.msra.mxu0 %v952
    %1081 = vmatprep.subr.mxu0 0.0
    %1082 = vmatpush1.msra.mxu0 %v949
    %1083 = vmatprep.subr.mxu0 0.0
    %1084 = vmatpush1.msra.mxu0 %v946
    %1085 = vmatprep.subr.mxu0 0.0
    %1086 = vmatpush1.msra.mxu0 %v943
    %1087 = vmatprep.subr.mxu0 0.0
    %1088 = vmatpush1.msra.mxu0 %v940
    %1089 = vmatprep.subr.mxu0 0.0
    %1090 = vmatpush2.msra.mxu0 0.0
    %1091 = vmatprep.subr.mxu0 0.0
    %1092 = vmatpush2.msra.mxu0 0.0
    %1093 = vmatprep.subr.mxu0 0.0
    %1094 = vmatpush2.msra.mxu0 0.0
    %1095 = vmatprep.subr.mxu0 0.0
    %1096 = vmatpush2.msra.mxu0 0.0
    %1097 = vmatprep.subr.mxu0 0.0
    %1098 = vmatpush2.msra.mxu0 0.0
    %1099 = vmatprep.subr.mxu0 0.0
    %1100 = vmatpush2.msra.mxu0 0.0
    %1101 = vmatprep.subr.mxu0 0.0
    %1102 = vmatpush2.msra.mxu0 0.0
    %1103 = vmatprep.subr.mxu0 0.0
    %1104 = vmatpush2.msra.mxu0 0.0
    %1105 = vmatprep.subr.mxu0 0.0
    %1106 = vmatpush2.msra.mxu0 0.0
    %1107 = vmatprep.subr.mxu0 0.0
    %1108 = vmatpush2.msra.mxu0 0.0
    %1109 = vmatprep.subr.mxu0 0.0
    %1110 = vmatpush2.msra.mxu0 0.0
    %1111 = vmatprep.subr.mxu0 0.0
    %1112 = vmatpush2.msra.mxu0 0.0
    %1113 = vmatprep.subr.mxu0 0.0
    %1114 = vmatpush2.msra.mxu0 0.0
    %1115 = vmatprep.subr.mxu0 0.0
    %1116 = vmatpush2.msra.mxu0 0.0
    %1117 = vmatprep.subr.mxu0 0.0
    %1118 = vmatpush2.msra.mxu0 0.0
    %1119 = vmatprep.subr.mxu0 0.0
    %1120 = vmatpush2.msra.mxu0 0.0
    %1121 = vmatprep.mubr.f32.mxu0 0.0
    %1122 = vmatmul.mubr.f32.gmra.mxu0 %v930
    %v1123 = vpop.f32.mrf.mxu0
    %v1124 = vadd.f32 %v710, %v1123
    %v1125 = vpop.f32.mrf.mxu0
    %1126 = vdwg.mxu0
    %v1127 = vadd.f32 %v935, %v1053
    %v1128 = vxor.u32 %v1127, 2147483648
    %v1129 = vmul.f32 %v1128, 1.442695
    %v1130 = vpow.pop %v1129
    %v1131 = vadd.f32 %v1130, 1.0
    %v1132 = vrcp.pop %v1131
    %v1133 = vmul.f32 1.0, %v1132
    %v1134 = vadd.f32 %v936, %v1055
    %v1135 = vxor.u32 %v1134, 2147483648
    %v1136 = vmul.f32 %v1135, 1.442695
    %v1137 = vpow.pop %v1136
    %v1138 = vadd.f32 %v1137, 1.0
    %v1139 = vrcp.pop %v1138
    %v1140 = vmul.f32 1.0, %v1139
    %v1141 = vmul.f32 %v1133, %v1124
    %v1142 = vadd.f32 %v937, %v1141
    %v1143 = vtanh.pop %v1142
    %v1144 = vsub.f32 1.0, %v1140
    %v1145 = vmul.f32 %v1144, %v1143
    %v1146 = vmul.f32 %v1140, %v930
    %v1147 = vadd.f32 %v1145, %v1146
    %s1148 = scalar_lea.vmem [#allocation28], 8
    %1149 = vst [vmem:[%s1148] sm:$0xff] %v1147
    %s1150 = smul.u32 2, 3
    %s1151 = smul.addr %s1150, 8
    %s1152 = scalar_lea.vmem [#allocation2], %s1151
    %v1153 = vld [vmem:[%s1152] sm:$0xff]
    %v1154 = vld [vmem:[%s1152 + $0x8] sm:$0xff]
    %v1155 = vld [vmem:[%s1152 + $0x10] sm:$0xff]
    %v1156 = vld [vmem:[#allocation16] sm:$0xff]
    %v1157 = vld [vmem:[#allocation16 + $0x8] sm:$0xff]
    %v1158 = vld [vmem:[#allocation16 + $0x10] sm:$0xff]
    %v1159 = vld [vmem:[#allocation16 + $0x18] sm:$0xff]
    %v1160 = vld [vmem:[#allocation16 + $0x20] sm:$0xff]
    %v1161 = vld [vmem:[#allocation16 + $0x28] sm:$0xff]
    %v1162 = vld [vmem:[#allocation16 + $0x30] sm:$0xff]
    %v1163 = vld [vmem:[#allocation16 + $0x38] sm:$0xff]
    %v1164 = vld [vmem:[#allocation16 + $0x40] sm:$0xff]
    %v1165 = vld [vmem:[#allocation16 + $0x48] sm:$0xff]
    %v1166 = vld [vmem:[#allocation16 + $0x50] sm:$0xff]
    %v1167 = vld [vmem:[#allocation16 + $0x58] sm:$0xff]
    %v1168 = vld [vmem:[#allocation16 + $0x60] sm:$0xff]
    %v1169 = vld [vmem:[#allocation16 + $0x68] sm:$0xff]
    %v1170 = vld [vmem:[#allocation16 + $0x70] sm:$0xff]
    %v1171 = vld [vmem:[#allocation16 + $0x78] sm:$0xff]
    %v1172 = vld [vmem:[#allocation16 + $0x80] sm:$0xff]
    %v1173 = vld [vmem:[#allocation16 + $0x88] sm:$0xff]
    %v1174 = vld [vmem:[#allocation16 + $0x90] sm:$0xff]
    %v1175 = vld [vmem:[#allocation16 + $0x98] sm:$0xff]
    %v1176 = vld [vmem:[#allocation16 + $0xa0] sm:$0xff]
    %v1177 = vld [vmem:[#allocation16 + $0xa8] sm:$0xff]
    %v1178 = vld [vmem:[#allocation16 + $0xb0] sm:$0xff]
    %v1179 = vld [vmem:[#allocation16 + $0xb8] sm:$0xff]
    %v1180 = vld [vmem:[#allocation16 + $0xc0] sm:$0xff]
    %v1181 = vld [vmem:[#allocation16 + $0xc8] sm:$0xff]
    %v1182 = vld [vmem:[#allocation16 + $0xd0] sm:$0xff]
    %v1183 = vld [vmem:[#allocation16 + $0xd8] sm:$0xff]
    %v1184 = vld [vmem:[#allocation16 + $0xe0] sm:$0xff]
    %v1185 = vld [vmem:[#allocation16 + $0xe8] sm:$0xff]
    %v1186 = vld [vmem:[#allocation16 + $0xf0] sm:$0xff]
    %v1187 = vld [vmem:[#allocation16 + $0xf8] sm:$0xff]
    %v1188 = vld [vmem:[#allocation16 + $0x100] sm:$0xff]
    %v1189 = vld [vmem:[#allocation16 + $0x108] sm:$0xff]
    %v1190 = vld [vmem:[#allocation16 + $0x110] sm:$0xff]
    %v1191 = vld [vmem:[#allocation16 + $0x118] sm:$0xff]
    %v1192 = vld [vmem:[#allocation16 + $0x120] sm:$0xff]
    %v1193 = vld [vmem:[#allocation16 + $0x128] sm:$0xff]
    %v1194 = vld [vmem:[#allocation16 + $0x130] sm:$0xff]
    %v1195 = vld [vmem:[#allocation16 + $0x138] sm:$0xff]
    %v1196 = vld [vmem:[#allocation16 + $0x140] sm:$0xff]
    %v1197 = vld [vmem:[#allocation16 + $0x148] sm:$0xff]
    %v1198 = vld [vmem:[#allocation16 + $0x150] sm:$0xff]
    %v1199 = vld [vmem:[#allocation16 + $0x158] sm:$0xff]
    %v1200 = vld [vmem:[#allocation16 + $0x160] sm:$0xff]
    %v1201 = vld [vmem:[#allocation16 + $0x168] sm:$0xff]
    %v1202 = vld [vmem:[#allocation16 + $0x170] sm:$0xff]
    %v1203 = vld [vmem:[#allocation16 + $0x178] sm:$0xff]
    %1204 = vmatprep.subr.mxu0 %v1202
    %1205 = vmatpush1.msra.mxu0 %v1201
    %1206 = vmatprep.subr.mxu0 %v1199
    %1207 = vmatpush1.msra.mxu0 %v1198
    %1208 = vmatprep.subr.mxu0 %v1196
    %1209 = vmatpush1.msra.mxu0 %v1195
    %1210 = vmatprep.subr.mxu0 %v1193
    %1211 = vmatpush1.msra.mxu0 %v1192
    %1212 = vmatprep.subr.mxu0 %v1190
    %1213 = vmatpush1.msra.mxu0 %v1189
    %1214 = vmatprep.subr.mxu0 %v1187
    %1215 = vmatpush1.msra.mxu0 %v1186
    %1216 = vmatprep.subr.mxu0 %v1184
    %1217 = vmatpush1.msra.mxu0 %v1183
    %1218 = vmatprep.subr.mxu0 %v1181
    %1219 = vmatpush1.msra.mxu0 %v1180
    %1220 = vmatprep.subr.mxu0 %v1178
    %1221 = vmatpush1.msra.mxu0 %v1177
    %1222 = vmatprep.subr.mxu0 %v1175
    %1223 = vmatpush1.msra.mxu0 %v1174
    %1224 = vmatprep.subr.mxu0 %v1172
    %1225 = vmatpush1.msra.mxu0 %v1171
    %1226 = vmatprep.subr.mxu0 %v1169
    %1227 = vmatpush1.msra.mxu0 %v1168
    %1228 = vmatprep.subr.mxu0 %v1166
    %1229 = vmatpush1.msra.mxu0 %v1165
    %1230 = vmatprep.subr.mxu0 %v1163
    %1231 = vmatpush1.msra.mxu0 %v1162
    %1232 = vmatprep.subr.mxu0 %v1160
    %1233 = vmatpush1.msra.mxu0 %v1159
    %1234 = vmatprep.subr.mxu0 %v1157
    %1235 = vmatpush1.msra.mxu0 %v1156
    %1236 = vmatprep.subr.mxu0 0.0
    %1237 = vmatpush2.msra.mxu0 0.0
    %1238 = vmatprep.subr.mxu0 0.0
    %1239 = vmatpush2.msra.mxu0 0.0
    %1240 = vmatprep.subr.mxu0 0.0
    %1241 = vmatpush2.msra.mxu0 0.0
    %1242 = vmatprep.subr.mxu0 0.0
    %1243 = vmatpush2.msra.mxu0 0.0
    %1244 = vmatprep.subr.mxu0 0.0
    %1245 = vmatpush2.msra.mxu0 0.0
    %1246 = vmatprep.subr.mxu0 0.0
    %1247 = vmatpush2.msra.mxu0 0.0
    %1248 = vmatprep.subr.mxu0 0.0
    %1249 = vmatpush2.msra.mxu0 0.0
    %1250 = vmatprep.subr.mxu0 0.0
    %1251 = vmatpush2.msra.mxu0 0.0
    %1252 = vmatprep.subr.mxu0 0.0
    %1253 = vmatpush2.msra.mxu0 0.0
    %1254 = vmatprep.subr.mxu0 0.0
    %1255 = vmatpush2.msra.mxu0 0.0
    %1256 = vmatprep.subr.mxu0 0.0
    %1257 = vmatpush2.msra.mxu0 0.0
    %1258 = vmatprep.subr.mxu0 0.0
    %1259 = vmatpush2.msra.mxu0 0.0
    %1260 = vmatprep.subr.mxu0 0.0
    %1261 = vmatpush2.msra.mxu0 0.0
    %1262 = vmatprep.subr.mxu0 0.0
    %1263 = vmatpush2.msra.mxu0 0.0
    %1264 = vmatprep.subr.mxu0 0.0
    %1265 = vmatpush2.msra.mxu0 0.0
    %1266 = vmatprep.subr.mxu0 0.0
    %1267 = vmatpush2.msra.mxu0 0.0
    %1268 = vmatprep.mubr.f32.mxu0 0.0
    %1269 = vmatmul.mubr.f32.gmra.mxu0 %v1147
    %v1270 = vpop.f32.mrf.mxu0
    %v1271 = vadd.f32 %v702, %v1270
    %v1272 = vpop.f32.mrf.mxu0
    %v1273 = vadd.f32 %v706, %v1272
    %1274 = vdwg.mxu0
    %1275 = vmatprep.subr.mxu0 0.0
    %1276 = vmatpush1.msra.mxu0 %v1203
    %1277 = vmatprep.subr.mxu0 0.0
    %1278 = vmatpush1.msra.mxu0 %v1200
    %1279 = vmatprep.subr.mxu0 0.0
    %1280 = vmatpush1.msra.mxu0 %v1197
    %1281 = vmatprep.subr.mxu0 0.0
    %1282 = vmatpush1.msra.mxu0 %v1194
    %1283 = vmatprep.subr.mxu0 0.0
    %1284 = vmatpush1.msra.mxu0 %v1191
    %1285 = vmatprep.subr.mxu0 0.0
    %1286 = vmatpush1.msra.mxu0 %v1188
    %1287 = vmatprep.subr.mxu0 0.0
    %1288 = vmatpush1.msra.mxu0 %v1185
    %1289 = vmatprep.subr.mxu0 0.0
    %1290 = vmatpush1.msra.mxu0 %v1182
    %1291 = vmatprep.subr.mxu0 0.0
    %1292 = vmatpush1.msra.mxu0 %v1179
    %1293 = vmatprep.subr.mxu0 0.0
    %1294 = vmatpush1.msra.mxu0 %v1176
    %1295 = vmatprep.subr.mxu0 0.0
    %1296 = vmatpush1.msra.mxu0 %v1173
    %1297 = vmatprep.subr.mxu0 0.0
    %1298 = vmatpush1.msra.mxu0 %v1170
    %1299 = vmatprep.subr.mxu0 0.0
    %1300 = vmatpush1.msra.mxu0 %v1167
    %1301 = vmatprep.subr.mxu0 0.0
    %1302 = vmatpush1.msra.mxu0 %v1164
    %1303 = vmatprep.subr.mxu0 0.0
    %1304 = vmatpush1.msra.mxu0 %v1161
    %1305 = vmatprep.subr.mxu0 0.0
    %1306 = vmatpush1.msra.mxu0 %v1158
    %1307 = vmatprep.subr.mxu0 0.0
    %1308 = vmatpush2.msra.mxu0 0.0
    %1309 = vmatprep.subr.mxu0 0.0
    %1310 = vmatpush2.msra.mxu0 0.0
    %1311 = vmatprep.subr.mxu0 0.0
    %1312 = vmatpush2.msra.mxu0 0.0
    %1313 = vmatprep.subr.mxu0 0.0
    %1314 = vmatpush2.msra.mxu0 0.0
    %1315 = vmatprep.subr.mxu0 0.0
    %1316 = vmatpush2.msra.mxu0 0.0
    %1317 = vmatprep.subr.mxu0 0.0
    %1318 = vmatpush2.msra.mxu0 0.0
    %1319 = vmatprep.subr.mxu0 0.0
    %1320 = vmatpush2.msra.mxu0 0.0
    %1321 = vmatprep.subr.mxu0 0.0
    %1322 = vmatpush2.msra.mxu0 0.0
    %1323 = vmatprep.subr.mxu0 0.0
    %1324 = vmatpush2.msra.mxu0 0.0
    %1325 = vmatprep.subr.mxu0 0.0
    %1326 = vmatpush2.msra.mxu0 0.0
    %1327 = vmatprep.subr.mxu0 0.0
    %1328 = vmatpush2.msra.mxu0 0.0
    %1329 = vmatprep.subr.mxu0 0.0
    %1330 = vmatpush2.msra.mxu0 0.0
    %1331 = vmatprep.subr.mxu0 0.0
    %1332 = vmatpush2.msra.mxu0 0.0
    %1333 = vmatprep.subr.mxu0 0.0
    %1334 = vmatpush2.msra.mxu0 0.0
    %1335 = vmatprep.subr.mxu0 0.0
    %1336 = vmatpush2.msra.mxu0 0.0
    %1337 = vmatprep.subr.mxu0 0.0
    %1338 = vmatpush2.msra.mxu0 0.0
    %1339 = vmatprep.mubr.f32.mxu0 0.0
    %1340 = vmatmul.mubr.f32.gmra.mxu0 %v1147
    %v1341 = vpop.f32.mrf.mxu0
    %v1342 = vadd.f32 %v710, %v1341
    %v1343 = vpop.f32.mrf.mxu0
    %1344 = vdwg.mxu0
    %v1345 = vadd.f32 %v1153, %v1271
    %v1346 = vxor.u32 %v1345, 2147483648
    %v1347 = vmul.f32 %v1346, 1.442695
    %v1348 = vpow.pop %v1347
    %v1349 = vadd.f32 %v1348, 1.0
    %v1350 = vrcp.pop %v1349
    %v1351 = vmul.f32 1.0, %v1350
    %v1352 = vadd.f32 %v1154, %v1273
    %v1353 = vxor.u32 %v1352, 2147483648
    %v1354 = vmul.f32 %v1353, 1.442695
    %v1355 = vpow.pop %v1354
    %v1356 = vadd.f32 %v1355, 1.0
    %v1357 = vrcp.pop %v1356
    %v1358 = vmul.f32 1.0, %v1357
    %v1359 = vmul.f32 %v1351, %v1342
    %v1360 = vadd.f32 %v1155, %v1359
    %v1361 = vtanh.pop %v1360
    %v1362 = vsub.f32 1.0, %v1358
    %v1363 = vmul.f32 %v1362, %v1361
    %v1364 = vmul.f32 %v1358, %v1147
    %v1365 = vadd.f32 %v1363, %v1364
    %s1366 = scalar_lea.vmem [#allocation28], 16
    %1367 = vst [vmem:[%s1366] sm:$0xff] %v1365
    %s1368 = smul.u32 3, 3
    %s1369 = smul.addr %s1368, 8
    %s1370 = scalar_lea.vmem [#allocation2], %s1369
    %v1371 = vld [vmem:[%s1370] sm:$0xff]
    %v1372 = vld [vmem:[%s1370 + $0x8] sm:$0xff]
    %v1373 = vld [vmem:[%s1370 + $0x10] sm:$0xff]
    %v1374 = vld [vmem:[#allocation16] sm:$0xff]
    %v1375 = vld [vmem:[#allocation16 + $0x8] sm:$0xff]
    %v1376 = vld [vmem:[#allocation16 + $0x10] sm:$0xff]
    %v1377 = vld [vmem:[#allocation16 + $0x18] sm:$0xff]
    %v1378 = vld [vmem:[#allocation16 + $0x20] sm:$0xff]
    %v1379 = vld [vmem:[#allocation16 + $0x28] sm:$0xff]
    %v1380 = vld [vmem:[#allocation16 + $0x30] sm:$0xff]
    %v1381 = vld [vmem:[#allocation16 + $0x38] sm:$0xff]
    %v1382 = vld [vmem:[#allocation16 + $0x40] sm:$0xff]
    %v1383 = vld [vmem:[#allocation16 + $0x48] sm:$0xff]
    %v1384 = vld [vmem:[#allocation16 + $0x50] sm:$0xff]
    %v1385 = vld [vmem:[#allocation16 + $0x58] sm:$0xff]
    %v1386 = vld [vmem:[#allocation16 + $0x60] sm:$0xff]
    %v1387 = vld [vmem:[#allocation16 + $0x68] sm:$0xff]
    %v1388 = vld [vmem:[#allocation16 + $0x70] sm:$0xff]
    %v1389 = vld [vmem:[#allocation16 + $0x78] sm:$0xff]
    %v1390 = vld [vmem:[#allocation16 + $0x80] sm:$0xff]
    %v1391 = vld [vmem:[#allocation16 + $0x88] sm:$0xff]
    %v1392 = vld [vmem:[#allocation16 + $0x90] sm:$0xff]
    %v1393 = vld [vmem:[#allocation16 + $0x98] sm:$0xff]
    %v1394 = vld [vmem:[#allocation16 + $0xa0] sm:$0xff]
    %v1395 = vld [vmem:[#allocation16 + $0xa8] sm:$0xff]
    %v1396 = vld [vmem:[#allocation16 + $0xb0] sm:$0xff]
    %v1397 = vld [vmem:[#allocation16 + $0xb8] sm:$0xff]
    %v1398 = vld [vmem:[#allocation16 + $0xc0] sm:$0xff]
    %v1399 = vld [vmem:[#allocation16 + $0xc8] sm:$0xff]
    %v1400 = vld [vmem:[#allocation16 + $0xd0] sm:$0xff]
    %v1401 = vld [vmem:[#allocation16 + $0xd8] sm:$0xff]
    %v1402 = vld [vmem:[#allocation16 + $0xe0] sm:$0xff]
    %v1403 = vld [vmem:[#allocation16 + $0xe8] sm:$0xff]
    %v1404 = vld [vmem:[#allocation16 + $0xf0] sm:$0xff]
    %v1405 = vld [vmem:[#allocation16 + $0xf8] sm:$0xff]
    %v1406 = vld [vmem:[#allocation16 + $0x100] sm:$0xff]
    %v1407 = vld [vmem:[#allocation16 + $0x108] sm:$0xff]
    %v1408 = vld [vmem:[#allocation16 + $0x110] sm:$0xff]
    %v1409 = vld [vmem:[#allocation16 + $0x118] sm:$0xff]
    %v1410 = vld [vmem:[#allocation16 + $0x120] sm:$0xff]
    %v1411 = vld [vmem:[#allocation16 + $0x128] sm:$0xff]
    %v1412 = vld [vmem:[#allocation16 + $0x130] sm:$0xff]
    %v1413 = vld [vmem:[#allocation16 + $0x138] sm:$0xff]
    %v1414 = vld [vmem:[#allocation16 + $0x140] sm:$0xff]
    %v1415 = vld [vmem:[#allocation16 + $0x148] sm:$0xff]
    %v1416 = vld [vmem:[#allocation16 + $0x150] sm:$0xff]
    %v1417 = vld [vmem:[#allocation16 + $0x158] sm:$0xff]
    %v1418 = vld [vmem:[#allocation16 + $0x160] sm:$0xff]
    %v1419 = vld [vmem:[#allocation16 + $0x168] sm:$0xff]
    %v1420 = vld [vmem:[#allocation16 + $0x170] sm:$0xff]
    %v1421 = vld [vmem:[#allocation16 + $0x178] sm:$0xff]
    %1422 = vmatprep.subr.mxu0 %v1420
    %1423 = vmatpush1.msra.mxu0 %v1419
    %1424 = vmatprep.subr.mxu0 %v1417
    %1425 = vmatpush1.msra.mxu0 %v1416
    %1426 = vmatprep.subr.mxu0 %v1414
    %1427 = vmatpush1.msra.mxu0 %v1413
    %1428 = vmatprep.subr.mxu0 %v1411
    %1429 = vmatpush1.msra.mxu0 %v1410
    %1430 = vmatprep.subr.mxu0 %v1408
    %1431 = vmatpush1.msra.mxu0 %v1407
    %1432 = vmatprep.subr.mxu0 %v1405
    %1433 = vmatpush1.msra.mxu0 %v1404
    %1434 = vmatprep.subr.mxu0 %v1402
    %1435 = vmatpush1.msra.mxu0 %v1401
    %1436 = vmatprep.subr.mxu0 %v1399
    %1437 = vmatpush1.msra.mxu0 %v1398
    %1438 = vmatprep.subr.mxu0 %v1396
    %1439 = vmatpush1.msra.mxu0 %v1395
    %1440 = vmatprep.subr.mxu0 %v1393
    %1441 = vmatpush1.msra.mxu0 %v1392
    %1442 = vmatprep.subr.mxu0 %v1390
    %1443 = vmatpush1.msra.mxu0 %v1389
    %1444 = vmatprep.subr.mxu0 %v1387
    %1445 = vmatpush1.msra.mxu0 %v1386
    %1446 = vmatprep.subr.mxu0 %v1384
    %1447 = vmatpush1.msra.mxu0 %v1383
    %1448 = vmatprep.subr.mxu0 %v1381
    %1449 = vmatpush1.msra.mxu0 %v1380
    %1450 = vmatprep.subr.mxu0 %v1378
    %1451 = vmatpush1.msra.mxu0 %v1377
    %1452 = vmatprep.subr.mxu0 %v1375
    %1453 = vmatpush1.msra.mxu0 %v1374
    %1454 = vmatprep.subr.mxu0 0.0
    %1455 = vmatpush2.msra.mxu0 0.0
    %1456 = vmatprep.subr.mxu0 0.0
    %1457 = vmatpush2.msra.mxu0 0.0
    %1458 = vmatprep.subr.mxu0 0.0
    %1459 = vmatpush2.msra.mxu0 0.0
    %1460 = vmatprep.subr.mxu0 0.0
    %1461 = vmatpush2.msra.mxu0 0.0
    %1462 = vmatprep.subr.mxu0 0.0
    %1463 = vmatpush2.msra.mxu0 0.0
    %1464 = vmatprep.subr.mxu0 0.0
    %1465 = vmatpush2.msra.mxu0 0.0
    %1466 = vmatprep.subr.mxu0 0.0
    %1467 = vmatpush2.msra.mxu0 0.0
    %1468 = vmatprep.subr.mxu0 0.0
    %1469 = vmatpush2.msra.mxu0 0.0
    %1470 = vmatprep.subr.mxu0 0.0
    %1471 = vmatpush2.msra.mxu0 0.0
    %1472 = vmatprep.subr.mxu0 0.0
    %1473 = vmatpush2.msra.mxu0 0.0
    %1474 = vmatprep.subr.mxu0 0.0
    %1475 = vmatpush2.msra.mxu0 0.0
    %1476 = vmatprep.subr.mxu0 0.0
    %1477 = vmatpush2.msra.mxu0 0.0
    %1478 = vmatprep.subr.mxu0 0.0
    %1479 = vmatpush2.msra.mxu0 0.0
    %1480 = vmatprep.subr.mxu0 0.0
    %1481 = vmatpush2.msra.mxu0 0.0
    %1482 = vmatprep.subr.mxu0 0.0
    %1483 = vmatpush2.msra.mxu0 0.0
    %1484 = vmatprep.subr.mxu0 0.0
    %1485 = vmatpush2.msra.mxu0 0.0
    %1486 = vmatprep.mubr.f32.mxu0 0.0
    %1487 = vmatmul.mubr.f32.gmra.mxu0 %v1365
    %v1488 = vpop.f32.mrf.mxu0
    %v1489 = vadd.f32 %v702, %v1488
    %v1490 = vpop.f32.mrf.mxu0
    %v1491 = vadd.f32 %v706, %v1490
    %1492 = vdwg.mxu0
    %1493 = vmatprep.subr.mxu0 0.0
    %1494 = vmatpush1.msra.mxu0 %v1421
    %1495 = vmatprep.subr.mxu0 0.0
    %1496 = vmatpush1.msra.mxu0 %v1418
    %1497 = vmatprep.subr.mxu0 0.0
    %1498 = vmatpush1.msra.mxu0 %v1415
    %1499 = vmatprep.subr.mxu0 0.0
    %1500 = vmatpush1.msra.mxu0 %v1412
    %1501 = vmatprep.subr.mxu0 0.0
    %1502 = vmatpush1.msra.mxu0 %v1409
    %1503 = vmatprep.subr.mxu0 0.0
    %1504 = vmatpush1.msra.mxu0 %v1406
    %1505 = vmatprep.subr.mxu0 0.0
    %1506 = vmatpush1.msra.mxu0 %v1403
    %1507 = vmatprep.subr.mxu0 0.0
    %1508 = vmatpush1.msra.mxu0 %v1400
    %1509 = vmatprep.subr.mxu0 0.0
    %1510 = vmatpush1.msra.mxu0 %v1397
    %1511 = vmatprep.subr.mxu0 0.0
    %1512 = vmatpush1.msra.mxu0 %v1394
    %1513 = vmatprep.subr.mxu0 0.0
    %1514 = vmatpush1.msra.mxu0 %v1391
    %1515 = vmatprep.subr.mxu0 0.0
    %1516 = vmatpush1.msra.mxu0 %v1388
    %1517 = vmatprep.subr.mxu0 0.0
    %1518 = vmatpush1.msra.mxu0 %v1385
    %1519 = vmatprep.subr.mxu0 0.0
    %1520 = vmatpush1.msra.mxu0 %v1382
    %1521 = vmatprep.subr.mxu0 0.0
    %1522 = vmatpush1.msra.mxu0 %v1379
    %1523 = vmatprep.subr.mxu0 0.0
    %1524 = vmatpush1.msra.mxu0 %v1376
    %1525 = vmatprep.subr.mxu0 0.0
    %1526 = vmatpush2.msra.mxu0 0.0
    %1527 = vmatprep.subr.mxu0 0.0
    %1528 = vmatpush2.msra.mxu0 0.0
    %1529 = vmatprep.subr.mxu0 0.0
    %1530 = vmatpush2.msra.mxu0 0.0
    %1531 = vmatprep.subr.mxu0 0.0
    %1532 = vmatpush2.msra.mxu0 0.0
    %1533 = vmatprep.subr.mxu0 0.0
    %1534 = vmatpush2.msra.mxu0 0.0
    %1535 = vmatprep.subr.mxu0 0.0
    %1536 = vmatpush2.msra.mxu0 0.0
    %1537 = vmatprep.subr.mxu0 0.0
    %1538 = vmatpush2.msra.mxu0 0.0
    %1539 = vmatprep.subr.mxu0 0.0
    %1540 = vmatpush2.msra.mxu0 0.0
    %1541 = vmatprep.subr.mxu0 0.0
    %1542 = vmatpush2.msra.mxu0 0.0
    %1543 = vmatprep.subr.mxu0 0.0
    %1544 = vmatpush2.msra.mxu0 0.0
    %1545 = vmatprep.subr.mxu0 0.0
    %1546 = vmatpush2.msra.mxu0 0.0
    %1547 = vmatprep.subr.mxu0 0.0
    %1548 = vmatpush2.msra.mxu0 0.0
    %1549 = vmatprep.subr.mxu0 0.0
    %1550 = vmatpush2.msra.mxu0 0.0
    %1551 = vmatprep.subr.mxu0 0.0
    %1552 = vmatpush2.msra.mxu0 0.0
    %1553 = vmatprep.subr.mxu0 0.0
    %1554 = vmatpush2.msra.mxu0 0.0
    %1555 = vmatprep.subr.mxu0 0.0
    %1556 = vmatpush2.msra.mxu0 0.0
    %1557 = vmatprep.mubr.f32.mxu0 0.0
    %1558 = vmatmul.mubr.f32.gmra.mxu0 %v1365
    %v1559 = vpop.f32.mrf.mxu0
    %v1560 = vadd.f32 %v710, %v1559
    %v1561 = vpop.f32.mrf.mxu0
    %1562 = vdwg.mxu0
    %v1563 = vadd.f32 %v1371, %v1489
    %v1564 = vxor.u32 %v1563, 2147483648
    %v1565 = vmul.f32 %v1564, 1.442695
    %v1566 = vpow.pop %v1565
    %v1567 = vadd.f32 %v1566, 1.0
    %v1568 = vrcp.pop %v1567
    %v1569 = vmul.f32 1.0, %v1568
    %v1570 = vadd.f32 %v1372, %v1491
    %v1571 = vxor.u32 %v1570, 2147483648
    %v1572 = vmul.f32 %v1571, 1.442695
    %v1573 = vpow.pop %v1572
    %v1574 = vadd.f32 %v1573, 1.0
    %v1575 = vrcp.pop %v1574
    %v1576 = vmul.f32 1.0, %v1575
    %v1577 = vmul.f32 %v1569, %v1560
    %v1578 = vadd.f32 %v1373, %v1577
    %v1579 = vtanh.pop %v1578
    %v1580 = vsub.f32 1.0, %v1576
    %v1581 = vmul.f32 %v1580, %v1579
    %v1582 = vmul.f32 %v1576, %v1365
    %v1583 = vadd.f32 %v1581, %v1582
    %s1584 = scalar_lea.vmem [#allocation28], 24
    %1585 = vst [vmem:[%s1584] sm:$0xff] %v1583
    %s1586 = smul.u32 4, 3
    %s1587 = smul.addr %s1586, 8
    %s1588 = scalar_lea.vmem [#allocation2], %s1587
    %v1589 = vld [vmem:[%s1588] sm:$0xff]
    %v1590 = vld [vmem:[%s1588 + $0x8] sm:$0xff]
    %v1591 = vld [vmem:[%s1588 + $0x10] sm:$0xff]
    %v1592 = vld [vmem:[#allocation16] sm:$0xff]
    %v1593 = vld [vmem:[#allocation16 + $0x8] sm:$0xff]
    %v1594 = vld [vmem:[#allocation16 + $0x10] sm:$0xff]
    %v1595 = vld [vmem:[#allocation16 + $0x18] sm:$0xff]
    %v1596 = vld [vmem:[#allocation16 + $0x20] sm:$0xff]
    %v1597 = vld [vmem:[#allocation16 + $0x28] sm:$0xff]
    %v1598 = vld [vmem:[#allocation16 + $0x30] sm:$0xff]
    %v1599 = vld [vmem:[#allocation16 + $0x38] sm:$0xff]
    %v1600 = vld [vmem:[#allocation16 + $0x40] sm:$0xff]
    %v1601 = vld [vmem:[#allocation16 + $0x48] sm:$0xff]
    %v1602 = vld [vmem:[#allocation16 + $0x50] sm:$0xff]
    %v1603 = vld [vmem:[#allocation16 + $0x58] sm:$0xff]
    %v1604 = vld [vmem:[#allocation16 + $0x60] sm:$0xff]
    %v1605 = vld [vmem:[#allocation16 + $0x68] sm:$0xff]
    %v1606 = vld [vmem:[#allocation16 + $0x70] sm:$0xff]
    %v1607 = vld [vmem:[#allocation16 + $0x78] sm:$0xff]
    %v1608 = vld [vmem:[#allocation16 + $0x80] sm:$0xff]
    %v1609 = vld [vmem:[#allocation16 + $0x88] sm:$0xff]
    %v1610 = vld [vmem:[#allocation16 + $0x90] sm:$0xff]
    %v1611 = vld [vmem:[#allocation16 + $0x98] sm:$0xff]
    %v1612 = vld [vmem:[#allocation16 + $0xa0] sm:$0xff]
    %v1613 = vld [vmem:[#allocation16 + $0xa8] sm:$0xff]
    %v1614 = vld [vmem:[#allocation16 + $0xb0] sm:$0xff]
    %v1615 = vld [vmem:[#allocation16 + $0xb8] sm:$0xff]
    %v1616 = vld [vmem:[#allocation16 + $0xc0] sm:$0xff]
    %v1617 = vld [vmem:[#allocation16 + $0xc8] sm:$0xff]
    %v1618 = vld [vmem:[#allocation16 + $0xd0] sm:$0xff]
    %v1619 = vld [vmem:[#allocation16 + $0xd8] sm:$0xff]
    %v1620 = vld [vmem:[#allocation16 + $0xe0] sm:$0xff]
    %v1621 = vld [vmem:[#allocation16 + $0xe8] sm:$0xff]
    %v1622 = vld [vmem:[#allocation16 + $0xf0] sm:$0xff]
    %v1623 = vld [vmem:[#allocation16 + $0xf8] sm:$0xff]
    %v1624 = vld [vmem:[#allocation16 + $0x100] sm:$0xff]
    %v1625 = vld [vmem:[#allocation16 + $0x108] sm:$0xff]
    %v1626 = vld [vmem:[#allocation16 + $0x110] sm:$0xff]
    %v1627 = vld [vmem:[#allocation16 + $0x118] sm:$0xff]
    %v1628 = vld [vmem:[#allocation16 + $0x120] sm:$0xff]
    %v1629 = vld [vmem:[#allocation16 + $0x128] sm:$0xff]
    %v1630 = vld [vmem:[#allocation16 + $0x130] sm:$0xff]
    %v1631 = vld [vmem:[#allocation16 + $0x138] sm:$0xff]
    %v1632 = vld [vmem:[#allocation16 + $0x140] sm:$0xff]
    %v1633 = vld [vmem:[#allocation16 + $0x148] sm:$0xff]
    %v1634 = vld [vmem:[#allocation16 + $0x150] sm:$0xff]
    %v1635 = vld [vmem:[#allocation16 + $0x158] sm:$0xff]
    %v1636 = vld [vmem:[#allocation16 + $0x160] sm:$0xff]
    %v1637 = vld [vmem:[#allocation16 + $0x168] sm:$0xff]
    %v1638 = vld [vmem:[#allocation16 + $0x170] sm:$0xff]
    %v1639 = vld [vmem:[#allocation16 + $0x178] sm:$0xff]
    %1640 = vmatprep.subr.mxu0 %v1638
    %1641 = vmatpush1.msra.mxu0 %v1637
    %1642 = vmatprep.subr.mxu0 %v1635
    %1643 = vmatpush1.msra.mxu0 %v1634
    %1644 = vmatprep.subr.mxu0 %v1632
    %1645 = vmatpush1.msra.mxu0 %v1631
    %1646 = vmatprep.subr.mxu0 %v1629
    %1647 = vmatpush1.msra.mxu0 %v1628
    %1648 = vmatprep.subr.mxu0 %v1626
    %1649 = vmatpush1.msra.mxu0 %v1625
    %1650 = vmatprep.subr.mxu0 %v1623
    %1651 = vmatpush1.msra.mxu0 %v1622
    %1652 = vmatprep.subr.mxu0 %v1620
    %1653 = vmatpush1.msra.mxu0 %v1619
    %1654 = vmatprep.subr.mxu0 %v1617
    %1655 = vmatpush1.msra.mxu0 %v1616
    %1656 = vmatprep.subr.mxu0 %v1614
    %1657 = vmatpush1.msra.mxu0 %v1613
    %1658 = vmatprep.subr.mxu0 %v1611
    %1659 = vmatpush1.msra.mxu0 %v1610
    %1660 = vmatprep.subr.mxu0 %v1608
    %1661 = vmatpush1.msra.mxu0 %v1607
    %1662 = vmatprep.subr.mxu0 %v1605
    %1663 = vmatpush1.msra.mxu0 %v1604
    %1664 = vmatprep.subr.mxu0 %v1602
    %1665 = vmatpush1.msra.mxu0 %v1601
    %1666 = vmatprep.subr.mxu0 %v1599
    %1667 = vmatpush1.msra.mxu0 %v1598
    %1668 = vmatprep.subr.mxu0 %v1596
    %1669 = vmatpush1.msra.mxu0 %v1595
    %1670 = vmatprep.subr.mxu0 %v1593
    %1671 = vmatpush1.msra.mxu0 %v1592
    %1672 = vmatprep.subr.mxu0 0.0
    %1673 = vmatpush2.msra.mxu0 0.0
    %1674 = vmatprep.subr.mxu0 0.0
    %1675 = vmatpush2.msra.mxu0 0.0
    %1676 = vmatprep.subr.mxu0 0.0
    %1677 = vmatpush2.msra.mxu0 0.0
    %1678 = vmatprep.subr.mxu0 0.0
    %1679 = vmatpush2.msra.mxu0 0.0
    %1680 = vmatprep.subr.mxu0 0.0
    %1681 = vmatpush2.msra.mxu0 0.0
    %1682 = vmatprep.subr.mxu0 0.0
    %1683 = vmatpush2.msra.mxu0 0.0
    %1684 = vmatprep.subr.mxu0 0.0
    %1685 = vmatpush2.msra.mxu0 0.0
    %1686 = vmatprep.subr.mxu0 0.0
    %1687 = vmatpush2.msra.mxu0 0.0
    %1688 = vmatprep.subr.mxu0 0.0
    %1689 = vmatpush2.msra.mxu0 0.0
    %1690 = vmatprep.subr.mxu0 0.0
    %1691 = vmatpush2.msra.mxu0 0.0
    %1692 = vmatprep.subr.mxu0 0.0
    %1693 = vmatpush2.msra.mxu0 0.0
    %1694 = vmatprep.subr.mxu0 0.0
    %1695 = vmatpush2.msra.mxu0 0.0
    %1696 = vmatprep.subr.mxu0 0.0
    %1697 = vmatpush2.msra.mxu0 0.0
    %1698 = vmatprep.subr.mxu0 0.0
    %1699 = vmatpush2.msra.mxu0 0.0
    %1700 = vmatprep.subr.mxu0 0.0
    %1701 = vmatpush2.msra.mxu0 0.0
    %1702 = vmatprep.subr.mxu0 0.0
    %1703 = vmatpush2.msra.mxu0 0.0
    %1704 = vmatprep.mubr.f32.mxu0 0.0
    %1705 = vmatmul.mubr.f32.gmra.mxu0 %v1583
    %v1706 = vpop.f32.mrf.mxu0
    %v1707 = vadd.f32 %v702, %v1706
    %v1708 = vpop.f32.mrf.mxu0
    %v1709 = vadd.f32 %v706, %v1708
    %1710 = vdwg.mxu0
    %1711 = vmatprep.subr.mxu0 0.0
    %1712 = vmatpush1.msra.mxu0 %v1639
    %1713 = vmatprep.subr.mxu0 0.0
    %1714 = vmatpush1.msra.mxu0 %v1636
    %1715 = vmatprep.subr.mxu0 0.0
    %1716 = vmatpush1.msra.mxu0 %v1633
    %1717 = vmatprep.subr.mxu0 0.0
    %1718 = vmatpush1.msra.mxu0 %v1630
    %1719 = vmatprep.subr.mxu0 0.0
    %1720 = vmatpush1.msra.mxu0 %v1627
    %1721 = vmatprep.subr.mxu0 0.0
    %1722 = vmatpush1.msra.mxu0 %v1624
    %1723 = vmatprep.subr.mxu0 0.0
    %1724 = vmatpush1.msra.mxu0 %v1621
    %1725 = vmatprep.subr.mxu0 0.0
    %1726 = vmatpush1.msra.mxu0 %v1618
    %1727 = vmatprep.subr.mxu0 0.0
    %1728 = vmatpush1.msra.mxu0 %v1615
    %1729 = vmatprep.subr.mxu0 0.0
    %1730 = vmatpush1.msra.mxu0 %v1612
    %1731 = vmatprep.subr.mxu0 0.0
    %1732 = vmatpush1.msra.mxu0 %v1609
    %1733 = vmatprep.subr.mxu0 0.0
    %1734 = vmatpush1.msra.mxu0 %v1606
    %1735 = vmatprep.subr.mxu0 0.0
    %1736 = vmatpush1.msra.mxu0 %v1603
    %1737 = vmatprep.subr.mxu0 0.0
    %1738 = vmatpush1.msra.mxu0 %v1600
    %1739 = vmatprep.subr.mxu0 0.0
    %1740 = vmatpush1.msra.mxu0 %v1597
    %1741 = vmatprep.subr.mxu0 0.0
    %1742 = vmatpush1.msra.mxu0 %v1594
    %1743 = vmatprep.subr.mxu0 0.0
    %1744 = vmatpush2.msra.mxu0 0.0
    %1745 = vmatprep.subr.mxu0 0.0
    %1746 = vmatpush2.msra.mxu0 0.0
    %1747 = vmatprep.subr.mxu0 0.0
    %1748 = vmatpush2.msra.mxu0 0.0
    %1749 = vmatprep.subr.mxu0 0.0
    %1750 = vmatpush2.msra.mxu0 0.0
    %1751 = vmatprep.subr.mxu0 0.0
    %1752 = vmatpush2.msra.mxu0 0.0
    %1753 = vmatprep.subr.mxu0 0.0
    %1754 = vmatpush2.msra.mxu0 0.0
    %1755 = vmatprep.subr.mxu0 0.0
    %1756 = vmatpush2.msra.mxu0 0.0
    %1757 = vmatprep.subr.mxu0 0.0
    %1758 = vmatpush2.msra.mxu0 0.0
    %1759 = vmatprep.subr.mxu0 0.0
    %1760 = vmatpush2.msra.mxu0 0.0
    %1761 = vmatprep.subr.mxu0 0.0
    %1762 = vmatpush2.msra.mxu0 0.0
    %1763 = vmatprep.subr.mxu0 0.0
    %1764 = vmatpush2.msra.mxu0 0.0
    %1765 = vmatprep.subr.mxu0 0.0
    %1766 = vmatpush2.msra.mxu0 0.0
    %1767 = vmatprep.subr.mxu0 0.0
    %1768 = vmatpush2.msra.mxu0 0.0
    %1769 = vmatprep.subr.mxu0 0.0
    %1770 = vmatpush2.msra.mxu0 0.0
    %1771 = vmatprep.subr.mxu0 0.0
    %1772 = vmatpush2.msra.mxu0 0.0
    %1773 = vmatprep.subr.mxu0 0.0
    %1774 = vmatpush2.msra.mxu0 0.0
    %1775 = vmatprep.mubr.f32.mxu0 0.0
    %1776 = vmatmul.mubr.f32.gmra.mxu0 %v1583
    %v1777 = vpop.f32.mrf.mxu0
    %v1778 = vadd.f32 %v710, %v1777
    %v1779 = vpop.f32.mrf.mxu0
    %1780 = vdwg.mxu0
    %v1781 = vadd.f32 %v1589, %v1707
    %v1782 = vxor.u32 %v1781, 2147483648
    %v1783 = vmul.f32 %v1782, 1.442695
    %v1784 = vpow.pop %v1783
    %v1785 = vadd.f32 %v1784, 1.0
    %v1786 = vrcp.pop %v1785
    %v1787 = vmul.f32 1.0, %v1786
    %v1788 = vadd.f32 %v1590, %v1709
    %v1789 = vxor.u32 %v1788, 2147483648
    %v1790 = vmul.f32 %v1789, 1.442695
    %v1791 = vpow.pop %v1790
    %v1792 = vadd.f32 %v1791, 1.0
    %v1793 = vrcp.pop %v1792
    %v1794 = vmul.f32 1.0, %v1793
    %v1795 = vmul.f32 %v1787, %v1778
    %v1796 = vadd.f32 %v1591, %v1795
    %v1797 = vtanh.pop %v1796
    %v1798 = vsub.f32 1.0, %v1794
    %v1799 = vmul.f32 %v1798, %v1797
    %v1800 = vmul.f32 %v1794, %v1583
    %v1801 = vadd.f32 %v1799, %v1800
    %s1802 = scalar_lea.vmem [#allocation28], 32
    %1803 = vst [vmem:[%s1802] sm:$0xff] %v1801
    %s1804 = smul.u32 5, 3
    %s1805 = smul.addr %s1804, 8
    %s1806 = scalar_lea.vmem [#allocation2], %s1805
    %v1807 = vld [vmem:[%s1806] sm:$0xff]
    %v1808 = vld [vmem:[%s1806 + $0x8] sm:$0xff]
    %v1809 = vld [vmem:[%s1806 + $0x10] sm:$0xff]
    %v1810 = vld [vmem:[#allocation16] sm:$0xff]
    %v1811 = vld [vmem:[#allocation16 + $0x8] sm:$0xff]
    %v1812 = vld [vmem:[#allocation16 + $0x10] sm:$0xff]
    %v1813 = vld [vmem:[#allocation16 + $0x18] sm:$0xff]
    %v1814 = vld [vmem:[#allocation16 + $0x20] sm:$0xff]
    %v1815 = vld [vmem:[#allocation16 + $0x28] sm:$0xff]
    %v1816 = vld [vmem:[#allocation16 + $0x30] sm:$0xff]
    %v1817 = vld [vmem:[#allocation16 + $0x38] sm:$0xff]
    %v1818 = vld [vmem:[#allocation16 + $0x40] sm:$0xff]
    %v1819 = vld [vmem:[#allocation16 + $0x48] sm:$0xff]
    %v1820 = vld [vmem:[#allocation16 + $0x50] sm:$0xff]
    %v1821 = vld [vmem:[#allocation16 + $0x58] sm:$0xff]
    %v1822 = vld [vmem:[#allocation16 + $0x60] sm:$0xff]
    %v1823 = vld [vmem:[#allocation16 + $0x68] sm:$0xff]
    %v1824 = vld [vmem:[#allocation16 + $0x70] sm:$0xff]
    %v1825 = vld [vmem:[#allocation16 + $0x78] sm:$0xff]
    %v1826 = vld [vmem:[#allocation16 + $0x80] sm:$0xff]
    %v1827 = vld [vmem:[#allocation16 + $0x88] sm:$0xff]
    %v1828 = vld [vmem:[#allocation16 + $0x90] sm:$0xff]
    %v1829 = vld [vmem:[#allocation16 + $0x98] sm:$0xff]
    %v1830 = vld [vmem:[#allocation16 + $0xa0] sm:$0xff]
    %v1831 = vld [vmem:[#allocation16 + $0xa8] sm:$0xff]
    %v1832 = vld [vmem:[#allocation16 + $0xb0] sm:$0xff]
    %v1833 = vld [vmem:[#allocation16 + $0xb8] sm:$0xff]
    %v1834 = vld [vmem:[#allocation16 + $0xc0] sm:$0xff]
    %v1835 = vld [vmem:[#allocation16 + $0xc8] sm:$0xff]
    %v1836 = vld [vmem:[#allocation16 + $0xd0] sm:$0xff]
    %v1837 = vld [vmem:[#allocation16 + $0xd8] sm:$0xff]
    %v1838 = vld [vmem:[#allocation16 + $0xe0] sm:$0xff]
    %v1839 = vld [vmem:[#allocation16 + $0xe8] sm:$0xff]
    %v1840 = vld [vmem:[#allocation16 + $0xf0] sm:$0xff]
    %v1841 = vld [vmem:[#allocation16 + $0xf8] sm:$0xff]
    %v1842 = vld [vmem:[#allocation16 + $0x100] sm:$0xff]
    %v1843 = vld [vmem:[#allocation16 + $0x108] sm:$0xff]
    %v1844 = vld [vmem:[#allocation16 + $0x110] sm:$0xff]
    %v1845 = vld [vmem:[#allocation16 + $0x118] sm:$0xff]
    %v1846 = vld [vmem:[#allocation16 + $0x120] sm:$0xff]
    %v1847 = vld [vmem:[#allocation16 + $0x128] sm:$0xff]
    %v1848 = vld [vmem:[#allocation16 + $0x130] sm:$0xff]
    %v1849 = vld [vmem:[#allocation16 + $0x138] sm:$0xff]
    %v1850 = vld [vmem:[#allocation16 + $0x140] sm:$0xff]
    %v1851 = vld [vmem:[#allocation16 + $0x148] sm:$0xff]
    %v1852 = vld [vmem:[#allocation16 + $0x150] sm:$0xff]
    %v1853 = vld [vmem:[#allocation16 + $0x158] sm:$0xff]
    %v1854 = vld [vmem:[#allocation16 + $0x160] sm:$0xff]
    %v1855 = vld [vmem:[#allocation16 + $0x168] sm:$0xff]
    %v1856 = vld [vmem:[#allocation16 + $0x170] sm:$0xff]
    %v1857 = vld [vmem:[#allocation16 + $0x178] sm:$0xff]
    %1858 = vmatprep.subr.mxu0 %v1856
    %1859 = vmatpush1.msra.mxu0 %v1855
    %1860 = vmatprep.subr.mxu0 %v1853
    %1861 = vmatpush1.msra.mxu0 %v1852
    %1862 = vmatprep.subr.mxu0 %v1850
    %1863 = vmatpush1.msra.mxu0 %v1849
    %1864 = vmatprep.subr.mxu0 %v1847
    %1865 = vmatpush1.msra.mxu0 %v1846
    %1866 = vmatprep.subr.mxu0 %v1844
    %1867 = vmatpush1.msra.mxu0 %v1843
    %1868 = vmatprep.subr.mxu0 %v1841
    %1869 = vmatpush1.msra.mxu0 %v1840
    %1870 = vmatprep.subr.mxu0 %v1838
    %1871 = vmatpush1.msra.mxu0 %v1837
    %1872 = vmatprep.subr.mxu0 %v1835
    %1873 = vmatpush1.msra.mxu0 %v1834
    %1874 = vmatprep.subr.mxu0 %v1832
    %1875 = vmatpush1.msra.mxu0 %v1831
    %1876 = vmatprep.subr.mxu0 %v1829
    %1877 = vmatpush1.msra.mxu0 %v1828
    %1878 = vmatprep.subr.mxu0 %v1826
    %1879 = vmatpush1.msra.mxu0 %v1825
    %1880 = vmatprep.subr.mxu0 %v1823
    %1881 = vmatpush1.msra.mxu0 %v1822
    %1882 = vmatprep.subr.mxu0 %v1820
    %1883 = vmatpush1.msra.mxu0 %v1819
    %1884 = vmatprep.subr.mxu0 %v1817
    %1885 = vmatpush1.msra.mxu0 %v1816
    %1886 = vmatprep.subr.mxu0 %v1814
    %1887 = vmatpush1.msra.mxu0 %v1813
    %1888 = vmatprep.subr.mxu0 %v1811
    %1889 = vmatpush1.msra.mxu0 %v1810
    %1890 = vmatprep.subr.mxu0 0.0
    %1891 = vmatpush2.msra.mxu0 0.0
    %1892 = vmatprep.subr.mxu0 0.0
    %1893 = vmatpush2.msra.mxu0 0.0
    %1894 = vmatprep.subr.mxu0 0.0
    %1895 = vmatpush2.msra.mxu0 0.0
    %1896 = vmatprep.subr.mxu0 0.0
    %1897 = vmatpush2.msra.mxu0 0.0
    %1898 = vmatprep.subr.mxu0 0.0
    %1899 = vmatpush2.msra.mxu0 0.0
    %1900 = vmatprep.subr.mxu0 0.0
    %1901 = vmatpush2.msra.mxu0 0.0
    %1902 = vmatprep.subr.mxu0 0.0
    %1903 = vmatpush2.msra.mxu0 0.0
    %1904 = vmatprep.subr.mxu0 0.0
    %1905 = vmatpush2.msra.mxu0 0.0
    %1906 = vmatprep.subr.mxu0 0.0
    %1907 = vmatpush2.msra.mxu0 0.0
    %1908 = vmatprep.subr.mxu0 0.0
    %1909 = vmatpush2.msra.mxu0 0.0
    %1910 = vmatprep.subr.mxu0 0.0
    %1911 = vmatpush2.msra.mxu0 0.0
    %1912 = vmatprep.subr.mxu0 0.0
    %1913 = vmatpush2.msra.mxu0 0.0
    %1914 = vmatprep.subr.mxu0 0.0
    %1915 = vmatpush2.msra.mxu0 0.0
    %1916 = vmatprep.subr.mxu0 0.0
    %1917 = vmatpush2.msra.mxu0 0.0
    %1918 = vmatprep.subr.mxu0 0.0
    %1919 = vmatpush2.msra.mxu0 0.0
    %1920 = vmatprep.subr.mxu0 0.0
    %1921 = vmatpush2.msra.mxu0 0.0
    %1922 = vmatprep.mubr.f32.mxu0 0.0
    %1923 = vmatmul.mubr.f32.gmra.mxu0 %v1801
    %v1924 = vpop.f32.mrf.mxu0
    %v1925 = vadd.f32 %v702, %v1924
    %v1926 = vpop.f32.mrf.mxu0
    %v1927 = vadd.f32 %v706, %v1926
    %1928 = vdwg.mxu0
    %1929 = vmatprep.subr.mxu0 0.0
    %1930 = vmatpush1.msra.mxu0 %v1857
    %1931 = vmatprep.subr.mxu0 0.0
    %1932 = vmatpush1.msra.mxu0 %v1854
    %1933 = vmatprep.subr.mxu0 0.0
    %1934 = vmatpush1.msra.mxu0 %v1851
    %1935 = vmatprep.subr.mxu0 0.0
    %1936 = vmatpush1.msra.mxu0 %v1848
    %1937 = vmatprep.subr.mxu0 0.0
    %1938 = vmatpush1.msra.mxu0 %v1845
    %1939 = vmatprep.subr.mxu0 0.0
    %1940 = vmatpush1.msra.mxu0 %v1842
    %1941 = vmatprep.subr.mxu0 0.0
    %1942 = vmatpush1.msra.mxu0 %v1839
    %1943 = vmatprep.subr.mxu0 0.0
    %1944 = vmatpush1.msra.mxu0 %v1836
    %1945 = vmatprep.subr.mxu0 0.0
    %1946 = vmatpush1.msra.mxu0 %v1833
    %1947 = vmatprep.subr.mxu0 0.0
    %1948 = vmatpush1.msra.mxu0 %v1830
    %1949 = vmatprep.subr.mxu0 0.0
    %1950 = vmatpush1.msra.mxu0 %v1827
    %1951 = vmatprep.subr.mxu0 0.0
    %1952 = vmatpush1.msra.mxu0 %v1824
    %1953 = vmatprep.subr.mxu0 0.0
    %1954 = vmatpush1.msra.mxu0 %v1821
    %1955 = vmatprep.subr.mxu0 0.0
    %1956 = vmatpush1.msra.mxu0 %v1818
    %1957 = vmatprep.subr.mxu0 0.0
    %1958 = vmatpush1.msra.mxu0 %v1815
    %1959 = vmatprep.subr.mxu0 0.0
    %1960 = vmatpush1.msra.mxu0 %v1812
    %1961 = vmatprep.subr.mxu0 0.0
    %1962 = vmatpush2.msra.mxu0 0.0
    %1963 = vmatprep.subr.mxu0 0.0
    %1964 = vmatpush2.msra.mxu0 0.0
    %1965 = vmatprep.subr.mxu0 0.0
    %1966 = vmatpush2.msra.mxu0 0.0
    %1967 = vmatprep.subr.mxu0 0.0
    %1968 = vmatpush2.msra.mxu0 0.0
    %1969 = vmatprep.subr.mxu0 0.0
    %1970 = vmatpush2.msra.mxu0 0.0
    %1971 = vmatprep.subr.mxu0 0.0
    %1972 = vmatpush2.msra.mxu0 0.0
    %1973 = vmatprep.subr.mxu0 0.0
    %1974 = vmatpush2.msra.mxu0 0.0
    %1975 = vmatprep.subr.mxu0 0.0
    %1976 = vmatpush2.msra.mxu0 0.0
    %1977 = vmatprep.subr.mxu0 0.0
    %1978 = vmatpush2.msra.mxu0 0.0
    %1979 = vmatprep.subr.mxu0 0.0
    %1980 = vmatpush2.msra.mxu0 0.0
    %1981 = vmatprep.subr.mxu0 0.0
    %1982 = vmatpush2.msra.mxu0 0.0
    %1983 = vmatprep.subr.mxu0 0.0
    %1984 = vmatpush2.msra.mxu0 0.0
    %1985 = vmatprep.subr.mxu0 0.0
    %1986 = vmatpush2.msra.mxu0 0.0
    %1987 = vmatprep.subr.mxu0 0.0
    %1988 = vmatpush2.msra.mxu0 0.0
    %1989 = vmatprep.subr.mxu0 0.0
    %1990 = vmatpush2.msra.mxu0 0.0
    %1991 = vmatprep.subr.mxu0 0.0
    %1992 = vmatpush2.msra.mxu0 0.0
    %1993 = vmatprep.mubr.f32.mxu0 0.0
    %1994 = vmatmul.mubr.f32.gmra.mxu0 %v1801
    %v1995 = vpop.f32.mrf.mxu0
    %v1996 = vadd.f32 %v710, %v1995
    %v1997 = vpop.f32.mrf.mxu0
    %1998 = vdwg.mxu0
    %v1999 = vadd.f32 %v1807, %v1925
    %v2000 = vxor.u32 %v1999, 2147483648
    %v2001 = vmul.f32 %v2000, 1.442695
    %v2002 = vpow.pop %v2001
    %v2003 = vadd.f32 %v2002, 1.0
    %v2004 = vrcp.pop %v2003
    %v2005 = vmul.f32 1.0, %v2004
    %v2006 = vadd.f32 %v1808, %v1927
    %v2007 = vxor.u32 %v2006, 2147483648
    %v2008 = vmul.f32 %v2007, 1.442695
    %v2009 = vpow.pop %v2008
    %v2010 = vadd.f32 %v2009, 1.0
    %v2011 = vrcp.pop %v2010
    %v2012 = vmul.f32 1.0, %v2011
    %v2013 = vmul.f32 %v2005, %v1996
    %v2014 = vadd.f32 %v1809, %v2013
    %v2015 = vtanh.pop %v2014
    %v2016 = vsub.f32 1.0, %v2012
    %v2017 = vmul.f32 %v2016, %v2015
    %v2018 = vmul.f32 %v2012, %v1801
    %v2019 = vadd.f32 %v2017, %v2018
    %s2020 = scalar_lea.vmem [#allocation28], 40
    %2021 = vst [vmem:[%s2020] sm:$0xff] %v2019
    %s2022 = smul.u32 6, 3
    %s2023 = smul.addr %s2022, 8
    %s2024 = scalar_lea.vmem [#allocation2], %s2023
    %v2025 = vld [vmem:[%s2024] sm:$0xff]
    %v2026 = vld [vmem:[%s2024 + $0x8] sm:$0xff]
    %v2027 = vld [vmem:[%s2024 + $0x10] sm:$0xff]
    %v2028 = vld [vmem:[#allocation16] sm:$0xff]
    %v2029 = vld [vmem:[#allocation16 + $0x8] sm:$0xff]
    %v2030 = vld [vmem:[#allocation16 + $0x10] sm:$0xff]
    %v2031 = vld [vmem:[#allocation16 + $0x18] sm:$0xff]
    %v2032 = vld [vmem:[#allocation16 + $0x20] sm:$0xff]
    %v2033 = vld [vmem:[#allocation16 + $0x28] sm:$0xff]
    %v2034 = vld [vmem:[#allocation16 + $0x30] sm:$0xff]
    %v2035 = vld [vmem:[#allocation16 + $0x38] sm:$0xff]
    %v2036 = vld [vmem:[#allocation16 + $0x40] sm:$0xff]
    %v2037 = vld [vmem:[#allocation16 + $0x48] sm:$0xff]
    %v2038 = vld [vmem:[#allocation16 + $0x50] sm:$0xff]
    %v2039 = vld [vmem:[#allocation16 + $0x58] sm:$0xff]
    %v2040 = vld [vmem:[#allocation16 + $0x60] sm:$0xff]
    %v2041 = vld [vmem:[#allocation16 + $0x68] sm:$0xff]
    %v2042 = vld [vmem:[#allocation16 + $0x70] sm:$0xff]
    %v2043 = vld [vmem:[#allocation16 + $0x78] sm:$0xff]
    %v2044 = vld [vmem:[#allocation16 + $0x80] sm:$0xff]
    %v2045 = vld [vmem:[#allocation16 + $0x88] sm:$0xff]
    %v2046 = vld [vmem:[#allocation16 + $0x90] sm:$0xff]
    %v2047 = vld [vmem:[#allocation16 + $0x98] sm:$0xff]
    %v2048 = vld [vmem:[#allocation16 + $0xa0] sm:$0xff]
    %v2049 = vld [vmem:[#allocation16 + $0xa8] sm:$0xff]
    %v2050 = vld [vmem:[#allocation16 + $0xb0] sm:$0xff]
    %v2051 = vld [vmem:[#allocation16 + $0xb8] sm:$0xff]
    %v2052 = vld [vmem:[#allocation16 + $0xc0] sm:$0xff]
    %v2053 = vld [vmem:[#allocation16 + $0xc8] sm:$0xff]
    %v2054 = vld [vmem:[#allocation16 + $0xd0] sm:$0xff]
    %v2055 = vld [vmem:[#allocation16 + $0xd8] sm:$0xff]
    %v2056 = vld [vmem:[#allocation16 + $0xe0] sm:$0xff]
    %v2057 = vld [vmem:[#allocation16 + $0xe8] sm:$0xff]
    %v2058 = vld [vmem:[#allocation16 + $0xf0] sm:$0xff]
    %v2059 = vld [vmem:[#allocation16 + $0xf8] sm:$0xff]
    %v2060 = vld [vmem:[#allocation16 + $0x100] sm:$0xff]
    %v2061 = vld [vmem:[#allocation16 + $0x108] sm:$0xff]
    %v2062 = vld [vmem:[#allocation16 + $0x110] sm:$0xff]
    %v2063 = vld [vmem:[#allocation16 + $0x118] sm:$0xff]
    %v2064 = vld [vmem:[#allocation16 + $0x120] sm:$0xff]
    %v2065 = vld [vmem:[#allocation16 + $0x128] sm:$0xff]
    %v2066 = vld [vmem:[#allocation16 + $0x130] sm:$0xff]
    %v2067 = vld [vmem:[#allocation16 + $0x138] sm:$0xff]
    %v2068 = vld [vmem:[#allocation16 + $0x140] sm:$0xff]
    %v2069 = vld [vmem:[#allocation16 + $0x148] sm:$0xff]
    %v2070 = vld [vmem:[#allocation16 + $0x150] sm:$0xff]
    %v2071 = vld [vmem:[#allocation16 + $0x158] sm:$0xff]
    %v2072 = vld [vmem:[#allocation16 + $0x160] sm:$0xff]
    %v2073 = vld [vmem:[#allocation16 + $0x168] sm:$0xff]
    %v2074 = vld [vmem:[#allocation16 + $0x170] sm:$0xff]
    %v2075 = vld [vmem:[#allocation16 + $0x178] sm:$0xff]
    %2076 = vmatprep.subr.mxu0 %v2074
    %2077 = vmatpush1.msra.mxu0 %v2073
    %2078 = vmatprep.subr.mxu0 %v2071
    %2079 = vmatpush1.msra.mxu0 %v2070
    %2080 = vmatprep.subr.mxu0 %v2068
    %2081 = vmatpush1.msra.mxu0 %v2067
    %2082 = vmatprep.subr.mxu0 %v2065
    %2083 = vmatpush1.msra.mxu0 %v2064
    %2084 = vmatprep.subr.mxu0 %v2062
    %2085 = vmatpush1.msra.mxu0 %v2061
    %2086 = vmatprep.subr.mxu0 %v2059
    %2087 = vmatpush1.msra.mxu0 %v2058
    %2088 = vmatprep.subr.mxu0 %v2056
    %2089 = vmatpush1.msra.mxu0 %v2055
    %2090 = vmatprep.subr.mxu0 %v2053
    %2091 = vmatpush1.msra.mxu0 %v2052
    %2092 = vmatprep.subr.mxu0 %v2050
    %2093 = vmatpush1.msra.mxu0 %v2049
    %2094 = vmatprep.subr.mxu0 %v2047
    %2095 = vmatpush1.msra.mxu0 %v2046
    %2096 = vmatprep.subr.mxu0 %v2044
    %2097 = vmatpush1.msra.mxu0 %v2043
    %2098 = vmatprep.subr.mxu0 %v2041
    %2099 = vmatpush1.msra.mxu0 %v2040
    %2100 = vmatprep.subr.mxu0 %v2038
    %2101 = vmatpush1.msra.mxu0 %v2037
    %2102 = vmatprep.subr.mxu0 %v2035
    %2103 = vmatpush1.msra.mxu0 %v2034
    %2104 = vmatprep.subr.mxu0 %v2032
    %2105 = vmatpush1.msra.mxu0 %v2031
    %2106 = vmatprep.subr.mxu0 %v2029
    %2107 = vmatpush1.msra.mxu0 %v2028
    %2108 = vmatprep.subr.mxu0 0.0
    %2109 = vmatpush2.msra.mxu0 0.0
    %2110 = vmatprep.subr.mxu0 0.0
    %2111 = vmatpush2.msra.mxu0 0.0
    %2112 = vmatprep.subr.mxu0 0.0
    %2113 = vmatpush2.msra.mxu0 0.0
    %2114 = vmatprep.subr.mxu0 0.0
    %2115 = vmatpush2.msra.mxu0 0.0
    %2116 = vmatprep.subr.mxu0 0.0
    %2117 = vmatpush2.msra.mxu0 0.0
    %2118 = vmatprep.subr.mxu0 0.0
    %2119 = vmatpush2.msra.mxu0 0.0
    %2120 = vmatprep.subr.mxu0 0.0
    %2121 = vmatpush2.msra.mxu0 0.0
    %2122 = vmatprep.subr.mxu0 0.0
    %2123 = vmatpush2.msra.mxu0 0.0
    %2124 = vmatprep.subr.mxu0 0.0
    %2125 = vmatpush2.msra.mxu0 0.0
    %2126 = vmatprep.subr.mxu0 0.0
    %2127 = vmatpush2.msra.mxu0 0.0
    %2128 = vmatprep.subr.mxu0 0.0
    %2129 = vmatpush2.msra.mxu0 0.0
    %2130 = vmatprep.subr.mxu0 0.0
    %2131 = vmatpush2.msra.mxu0 0.0
    %2132 = vmatprep.subr.mxu0 0.0
    %2133 = vmatpush2.msra.mxu0 0.0
    %2134 = vmatprep.subr.mxu0 0.0
    %2135 = vmatpush2.msra.mxu0 0.0
    %2136 = vmatprep.subr.mxu0 0.0
    %2137 = vmatpush2.msra.mxu0 0.0
    %2138 = vmatprep.subr.mxu0 0.0
    %2139 = vmatpush2.msra.mxu0 0.0
    %2140 = vmatprep.mubr.f32.mxu0 0.0
    %2141 = vmatmul.mubr.f32.gmra.mxu0 %v2019
    %v2142 = vpop.f32.mrf.mxu0
    %v2143 = vadd.f32 %v702, %v2142
    %v2144 = vpop.f32.mrf.mxu0
    %v2145 = vadd.f32 %v706, %v2144
    %2146 = vdwg.mxu0
    %2147 = vmatprep.subr.mxu0 0.0
    %2148 = vmatpush1.msra.mxu0 %v2075
    %2149 = vmatprep.subr.mxu0 0.0
    %2150 = vmatpush1.msra.mxu0 %v2072
    %2151 = vmatprep.subr.mxu0 0.0
    %2152 = vmatpush1.msra.mxu0 %v2069
    %2153 = vmatprep.subr.mxu0 0.0
    %2154 = vmatpush1.msra.mxu0 %v2066
    %2155 = vmatprep.subr.mxu0 0.0
    %2156 = vmatpush1.msra.mxu0 %v2063
    %2157 = vmatprep.subr.mxu0 0.0
    %2158 = vmatpush1.msra.mxu0 %v2060
    %2159 = vmatprep.subr.mxu0 0.0
    %2160 = vmatpush1.msra.mxu0 %v2057
    %2161 = vmatprep.subr.mxu0 0.0
    %2162 = vmatpush1.msra.mxu0 %v2054
    %2163 = vmatprep.subr.mxu0 0.0
    %2164 = vmatpush1.msra.mxu0 %v2051
    %2165 = vmatprep.subr.mxu0 0.0
    %2166 = vmatpush1.msra.mxu0 %v2048
    %2167 = vmatprep.subr.mxu0 0.0
    %2168 = vmatpush1.msra.mxu0 %v2045
    %2169 = vmatprep.subr.mxu0 0.0
    %2170 = vmatpush1.msra.mxu0 %v2042
    %2171 = vmatprep.subr.mxu0 0.0
    %2172 = vmatpush1.msra.mxu0 %v2039
    %2173 = vmatprep.subr.mxu0 0.0
    %2174 = vmatpush1.msra.mxu0 %v2036
    %2175 = vmatprep.subr.mxu0 0.0
    %2176 = vmatpush1.msra.mxu0 %v2033
    %2177 = vmatprep.subr.mxu0 0.0
    %2178 = vmatpush1.msra.mxu0 %v2030
    %2179 = vmatprep.subr.mxu0 0.0
    %2180 = vmatpush2.msra.mxu0 0.0
    %2181 = vmatprep.subr.mxu0 0.0
    %2182 = vmatpush2.msra.mxu0 0.0
    %2183 = vmatprep.subr.mxu0 0.0
    %2184 = vmatpush2.msra.mxu0 0.0
    %2185 = vmatprep.subr.mxu0 0.0
    %2186 = vmatpush2.msra.mxu0 0.0
    %2187 = vmatprep.subr.mxu0 0.0
    %2188 = vmatpush2.msra.mxu0 0.0
    %2189 = vmatprep.subr.mxu0 0.0
    %2190 = vmatpush2.msra.mxu0 0.0
    %2191 = vmatprep.subr.mxu0 0.0
    %2192 = vmatpush2.msra.mxu0 0.0
    %2193 = vmatprep.subr.mxu0 0.0
    %2194 = vmatpush2.msra.mxu0 0.0
    %2195 = vmatprep.subr.mxu0 0.0
    %2196 = vmatpush2.msra.mxu0 0.0
    %2197 = vmatprep.subr.mxu0 0.0
    %2198 = vmatpush2.msra.mxu0 0.0
    %2199 = vmatprep.subr.mxu0 0.0
    %2200 = vmatpush2.msra.mxu0 0.0
    %2201 = vmatprep.subr.mxu0 0.0
    %2202 = vmatpush2.msra.mxu0 0.0
    %2203 = vmatprep.subr.mxu0 0.0
    %2204 = vmatpush2.msra.mxu0 0.0
    %2205 = vmatprep.subr.mxu0 0.0
    %2206 = vmatpush2.msra.mxu0 0.0
    %2207 = vmatprep.subr.mxu0 0.0
    %2208 = vmatpush2.msra.mxu0 0.0
    %2209 = vmatprep.subr.mxu0 0.0
    %2210 = vmatpush2.msra.mxu0 0.0
    %2211 = vmatprep.mubr.f32.mxu0 0.0
    %2212 = vmatmul.mubr.f32.gmra.mxu0 %v2019
    %v2213 = vpop.f32.mrf.mxu0
    %v2214 = vadd.f32 %v710, %v2213
    %v2215 = vpop.f32.mrf.mxu0
    %2216 = vdwg.mxu0
    %v2217 = vadd.f32 %v2025, %v2143
    %v2218 = vxor.u32 %v2217, 2147483648
    %v2219 = vmul.f32 %v2218, 1.442695
    %v2220 = vpow.pop %v2219
    %v2221 = vadd.f32 %v2220, 1.0
    %v2222 = vrcp.pop %v2221
    %v2223 = vmul.f32 1.0, %v2222
    %v2224 = vadd.f32 %v2026, %v2145
    %v2225 = vxor.u32 %v2224, 2147483648
    %v2226 = vmul.f32 %v2225, 1.442695
    %v2227 = vpow.pop %v2226
    %v2228 = vadd.f32 %v2227, 1.0
    %v2229 = vrcp.pop %v2228
    %v2230 = vmul.f32 1.0, %v2229
    %v2231 = vmul.f32 %v2223, %v2214
    %v2232 = vadd.f32 %v2027, %v2231
    %v2233 = vtanh.pop %v2232
    %v2234 = vsub.f32 1.0, %v2230
    %v2235 = vmul.f32 %v2234, %v2233
    %v2236 = vmul.f32 %v2230, %v2019
    %v2237 = vadd.f32 %v2235, %v2236
    %s2238 = scalar_lea.vmem [#allocation28], 48
    %2239 = vst [vmem:[%s2238] sm:$0xff] %v2237
    %s2240 = smul.u32 7, 3
    %s2241 = smul.addr %s2240, 8
    %s2242 = scalar_lea.vmem [#allocation2], %s2241
    %v2243 = vld [vmem:[%s2242] sm:$0xff]
    %v2244 = vld [vmem:[%s2242 + $0x8] sm:$0xff]
    %v2245 = vld [vmem:[%s2242 + $0x10] sm:$0xff]
    %v2246 = vld [vmem:[#allocation16] sm:$0xff]
    %v2247 = vld [vmem:[#allocation16 + $0x8] sm:$0xff]
    %v2248 = vld [vmem:[#allocation16 + $0x10] sm:$0xff]
    %v2249 = vld [vmem:[#allocation16 + $0x18] sm:$0xff]
    %v2250 = vld [vmem:[#allocation16 + $0x20] sm:$0xff]
    %v2251 = vld [vmem:[#allocation16 + $0x28] sm:$0xff]
    %v2252 = vld [vmem:[#allocation16 + $0x30] sm:$0xff]
    %v2253 = vld [vmem:[#allocation16 + $0x38] sm:$0xff]
    %v2254 = vld [vmem:[#allocation16 + $0x40] sm:$0xff]
    %v2255 = vld [vmem:[#allocation16 + $0x48] sm:$0xff]
    %v2256 = vld [vmem:[#allocation16 + $0x50] sm:$0xff]
    %v2257 = vld [vmem:[#allocation16 + $0x58] sm:$0xff]
    %v2258 = vld [vmem:[#allocation16 + $0x60] sm:$0xff]
    %v2259 = vld [vmem:[#allocation16 + $0x68] sm:$0xff]
    %v2260 = vld [vmem:[#allocation16 + $0x70] sm:$0xff]
    %v2261 = vld [vmem:[#allocation16 + $0x78] sm:$0xff]
    %v2262 = vld [vmem:[#allocation16 + $0x80] sm:$0xff]
    %v2263 = vld [vmem:[#allocation16 + $0x88] sm:$0xff]
    %v2264 = vld [vmem:[#allocation16 + $0x90] sm:$0xff]
    %v2265 = vld [vmem:[#allocation16 + $0x98] sm:$0xff]
    %v2266 = vld [vmem:[#allocation16 + $0xa0] sm:$0xff]
    %v2267 = vld [vmem:[#allocation16 + $0xa8] sm:$0xff]
    %v2268 = vld [vmem:[#allocation16 + $0xb0] sm:$0xff]
    %v2269 = vld [vmem:[#allocation16 + $0xb8] sm:$0xff]
    %v2270 = vld [vmem:[#allocation16 + $0xc0] sm:$0xff]
    %v2271 = vld [vmem:[#allocation16 + $0xc8] sm:$0xff]
    %v2272 = vld [vmem:[#allocation16 + $0xd0] sm:$0xff]
    %v2273 = vld [vmem:[#allocation16 + $0xd8] sm:$0xff]
    %v2274 = vld [vmem:[#allocation16 + $0xe0] sm:$0xff]
    %v2275 = vld [vmem:[#allocation16 + $0xe8] sm:$0xff]
    %v2276 = vld [vmem:[#allocation16 + $0xf0] sm:$0xff]
    %v2277 = vld [vmem:[#allocation16 + $0xf8] sm:$0xff]
    %v2278 = vld [vmem:[#allocation16 + $0x100] sm:$0xff]
    %v2279 = vld [vmem:[#allocation16 + $0x108] sm:$0xff]
    %v2280 = vld [vmem:[#allocation16 + $0x110] sm:$0xff]
    %v2281 = vld [vmem:[#allocation16 + $0x118] sm:$0xff]
    %v2282 = vld [vmem:[#allocation16 + $0x120] sm:$0xff]
    %v2283 = vld [vmem:[#allocation16 + $0x128] sm:$0xff]
    %v2284 = vld [vmem:[#allocation16 + $0x130] sm:$0xff]
    %v2285 = vld [vmem:[#allocation16 + $0x138] sm:$0xff]
    %v2286 = vld [vmem:[#allocation16 + $0x140] sm:$0xff]
    %v2287 = vld [vmem:[#allocation16 + $0x148] sm:$0xff]
    %v2288 = vld [vmem:[#allocation16 + $0x150] sm:$0xff]
    %v2289 = vld [vmem:[#allocation16 + $0x158] sm:$0xff]
    %v2290 = vld [vmem:[#allocation16 + $0x160] sm:$0xff]
    %v2291 = vld [vmem:[#allocation16 + $0x168] sm:$0xff]
    %v2292 = vld [vmem:[#allocation16 + $0x170] sm:$0xff]
    %v2293 = vld [vmem:[#allocation16 + $0x178] sm:$0xff]
    %2294 = vmatprep.subr.mxu0 %v2292
    %2295 = vmatpush1.msra.mxu0 %v2291
    %2296 = vmatprep.subr.mxu0 %v2289
    %2297 = vmatpush1.msra.mxu0 %v2288
    %2298 = vmatprep.subr.mxu0 %v2286
    %2299 = vmatpush1.msra.mxu0 %v2285
    %2300 = vmatprep.subr.mxu0 %v2283
    %2301 = vmatpush1.msra.mxu0 %v2282
    %2302 = vmatprep.subr.mxu0 %v2280
    %2303 = vmatpush1.msra.mxu0 %v2279
    %2304 = vmatprep.subr.mxu0 %v2277
    %2305 = vmatpush1.msra.mxu0 %v2276
    %2306 = vmatprep.subr.mxu0 %v2274
    %2307 = vmatpush1.msra.mxu0 %v2273
    %2308 = vmatprep.subr.mxu0 %v2271
    %2309 = vmatpush1.msra.mxu0 %v2270
    %2310 = vmatprep.subr.mxu0 %v2268
    %2311 = vmatpush1.msra.mxu0 %v2267
    %2312 = vmatprep.subr.mxu0 %v2265
    %2313 = vmatpush1.msra.mxu0 %v2264
    %2314 = vmatprep.subr.mxu0 %v2262
    %2315 = vmatpush1.msra.mxu0 %v2261
    %2316 = vmatprep.subr.mxu0 %v2259
    %2317 = vmatpush1.msra.mxu0 %v2258
    %2318 = vmatprep.subr.mxu0 %v2256
    %2319 = vmatpush1.msra.mxu0 %v2255
    %2320 = vmatprep.subr.mxu0 %v2253
    %2321 = vmatpush1.msra.mxu0 %v2252
    %2322 = vmatprep.subr.mxu0 %v2250
    %2323 = vmatpush1.msra.mxu0 %v2249
    %2324 = vmatprep.subr.mxu0 %v2247
    %2325 = vmatpush1.msra.mxu0 %v2246
    %2326 = vmatprep.subr.mxu0 0.0
    %2327 = vmatpush2.msra.mxu0 0.0
    %2328 = vmatprep.subr.mxu0 0.0
    %2329 = vmatpush2.msra.mxu0 0.0
    %2330 = vmatprep.subr.mxu0 0.0
    %2331 = vmatpush2.msra.mxu0 0.0
    %2332 = vmatprep.subr.mxu0 0.0
    %2333 = vmatpush2.msra.mxu0 0.0
    %2334 = vmatprep.subr.mxu0 0.0
    %2335 = vmatpush2.msra.mxu0 0.0
    %2336 = vmatprep.subr.mxu0 0.0
    %2337 = vmatpush2.msra.mxu0 0.0
    %2338 = vmatprep.subr.mxu0 0.0
    %2339 = vmatpush2.msra.mxu0 0.0
    %2340 = vmatprep.subr.mxu0 0.0
    %2341 = vmatpush2.msra.mxu0 0.0
    %2342 = vmatprep.subr.mxu0 0.0
    %2343 = vmatpush2.msra.mxu0 0.0
    %2344 = vmatprep.subr.mxu0 0.0
    %2345 = vmatpush2.msra.mxu0 0.0
    %2346 = vmatprep.subr.mxu0 0.0
    %2347 = vmatpush2.msra.mxu0 0.0
    %2348 = vmatprep.subr.mxu0 0.0
    %2349 = vmatpush2.msra.mxu0 0.0
    %2350 = vmatprep.subr.mxu0 0.0
    %2351 = vmatpush2.msra.mxu0 0.0
    %2352 = vmatprep.subr.mxu0 0.0
    %2353 = vmatpush2.msra.mxu0 0.0
    %2354 = vmatprep.subr.mxu0 0.0
    %2355 = vmatpush2.msra.mxu0 0.0
    %2356 = vmatprep.subr.mxu0 0.0
    %2357 = vmatpush2.msra.mxu0 0.0
    %2358 = vmatprep.mubr.f32.mxu0 0.0
    %2359 = vmatmul.mubr.f32.gmra.mxu0 %v2237
    %v2360 = vpop.f32.mrf.mxu0
    %v2361 = vadd.f32 %v702, %v2360
    %v2362 = vpop.f32.mrf.mxu0
    %v2363 = vadd.f32 %v706, %v2362
    %2364 = vdwg.mxu0
    %2365 = vmatprep.subr.mxu0 0.0
    %2366 = vmatpush1.msra.mxu0 %v2293
    %2367 = vmatprep.subr.mxu0 0.0
    %2368 = vmatpush1.msra.mxu0 %v2290
    %2369 = vmatprep.subr.mxu0 0.0
    %2370 = vmatpush1.msra.mxu0 %v2287
    %2371 = vmatprep.subr.mxu0 0.0
    %2372 = vmatpush1.msra.mxu0 %v2284
    %2373 = vmatprep.subr.mxu0 0.0
    %2374 = vmatpush1.msra.mxu0 %v2281
    %2375 = vmatprep.subr.mxu0 0.0
    %2376 = vmatpush1.msra.mxu0 %v2278
    %2377 = vmatprep.subr.mxu0 0.0
    %2378 = vmatpush1.msra.mxu0 %v2275
    %2379 = vmatprep.subr.mxu0 0.0
    %2380 = vmatpush1.msra.mxu0 %v2272
    %2381 = vmatprep.subr.mxu0 0.0
    %2382 = vmatpush1.msra.mxu0 %v2269
    %2383 = vmatprep.subr.mxu0 0.0
    %2384 = vmatpush1.msra.mxu0 %v2266
    %2385 = vmatprep.subr.mxu0 0.0
    %2386 = vmatpush1.msra.mxu0 %v2263
    %2387 = vmatprep.subr.mxu0 0.0
    %2388 = vmatpush1.msra.mxu0 %v2260
    %2389 = vmatprep.subr.mxu0 0.0
    %2390 = vmatpush1.msra.mxu0 %v2257
    %2391 = vmatprep.subr.mxu0 0.0
    %2392 = vmatpush1.msra.mxu0 %v2254
    %2393 = vmatprep.subr.mxu0 0.0
    %2394 = vmatpush1.msra.mxu0 %v2251
    %2395 = vmatprep.subr.mxu0 0.0
    %2396 = vmatpush1.msra.mxu0 %v2248
    %2397 = vmatprep.subr.mxu0 0.0
    %2398 = vmatpush2.msra.mxu0 0.0
    %2399 = vmatprep.subr.mxu0 0.0
    %2400 = vmatpush2.msra.mxu0 0.0
    %2401 = vmatprep.subr.mxu0 0.0
    %2402 = vmatpush2.msra.mxu0 0.0
    %2403 = vmatprep.subr.mxu0 0.0
    %2404 = vmatpush2.msra.mxu0 0.0
    %2405 = vmatprep.subr.mxu0 0.0
    %2406 = vmatpush2.msra.mxu0 0.0
    %2407 = vmatprep.subr.mxu0 0.0
    %2408 = vmatpush2.msra.mxu0 0.0
    %2409 = vmatprep.subr.mxu0 0.0
    %2410 = vmatpush2.msra.mxu0 0.0
    %2411 = vmatprep.subr.mxu0 0.0
    %2412 = vmatpush2.msra.mxu0 0.0
    %2413 = vmatprep.subr.mxu0 0.0
    %2414 = vmatpush2.msra.mxu0 0.0
    %2415 = vmatprep.subr.mxu0 0.0
    %2416 = vmatpush2.msra.mxu0 0.0
    %2417 = vmatprep.subr.mxu0 0.0
    %2418 = vmatpush2.msra.mxu0 0.0
    %2419 = vmatprep.subr.mxu0 0.0
    %2420 = vmatpush2.msra.mxu0 0.0
    %2421 = vmatprep.subr.mxu0 0.0
    %2422 = vmatpush2.msra.mxu0 0.0
    %2423 = vmatprep.subr.mxu0 0.0
    %2424 = vmatpush2.msra.mxu0 0.0
    %2425 = vmatprep.subr.mxu0 0.0
    %2426 = vmatpush2.msra.mxu0 0.0
    %2427 = vmatprep.subr.mxu0 0.0
    %2428 = vmatpush2.msra.mxu0 0.0
    %2429 = vmatprep.mubr.f32.mxu0 0.0
    %2430 = vmatmul.mubr.f32.gmra.mxu0 %v2237
    %v2431 = vpop.f32.mrf.mxu0
    %v2432 = vadd.f32 %v710, %v2431
    %v2433 = vpop.f32.mrf.mxu0
    %2434 = vdwg.mxu0
    %v2435 = vadd.f32 %v2243, %v2361
    %v2436 = vxor.u32 %v2435, 2147483648
    %v2437 = vmul.f32 %v2436, 1.442695
    %v2438 = vpow.pop %v2437
    %v2439 = vadd.f32 %v2438, 1.0
    %v2440 = vrcp.pop %v2439
    %v2441 = vmul.f32 1.0, %v2440
    %v2442 = vadd.f32 %v2244, %v2363
    %v2443 = vxor.u32 %v2442, 2147483648
    %v2444 = vmul.f32 %v2443, 1.442695
    %v2445 = vpow.pop %v2444
    %v2446 = vadd.f32 %v2445, 1.0
    %v2447 = vrcp.pop %v2446
    %v2448 = vmul.f32 1.0, %v2447
    %v2449 = vmul.f32 %v2441, %v2432
    %v2450 = vadd.f32 %v2245, %v2449
    %v2451 = vtanh.pop %v2450
    %v2452 = vsub.f32 1.0, %v2448
    %v2453 = vmul.f32 %v2452, %v2451
    %v2454 = vmul.f32 %v2448, %v2237
    %v2455 = vadd.f32 %v2453, %v2454
    %s2456 = scalar_lea.vmem [#allocation28], 56
    %2457 = vst [vmem:[%s2456] sm:$0xff] %v2455
    %s2458 = smul.u32 4, 162
    %s2459 = smul.u32 %s2458, 4
    %s2460 = sshll.u32 %s2459, 4
    %2461 = dma.done [#allocation4], %s2460
    %v2462 = vld [vmem:[#allocation3] sm:$0xff]
    %v2463 = vld [vmem:[#allocation3 + $0x8] sm:$0xff]
    %v2464 = vld [vmem:[#allocation3 + $0x10] sm:$0xff]
    %v2465 = vld [vmem:[#allocation3 + $0x18] sm:$0xff]
    %v2466 = vld [vmem:[#allocation3 + $0x20] sm:$0xff]
    %v2467 = vld [vmem:[#allocation3 + $0x28] sm:$0xff]
    %v2468 = vld [vmem:[#allocation3 + $0x30] sm:$0xff]
    %v2469 = vld [vmem:[#allocation3 + $0x38] sm:$0xff]
    %v2470 = vld [vmem:[#allocation3 + $0x40] sm:$0xff]
    %v2471 = vld [vmem:[#allocation3 + $0x48] sm:$0xff]
    %v2472 = vld [vmem:[#allocation3 + $0x50] sm:$0xff]
    %v2473 = vld [vmem:[#allocation3 + $0x58] sm:$0xff]
    %v2474 = vld [vmem:[#allocation3 + $0x60] sm:$0xff]
    %v2475 = vld [vmem:[#allocation3 + $0x68] sm:$0xff]
    %v2476 = vld [vmem:[#allocation3 + $0x70] sm:$0xff]
    %v2477 = vld [vmem:[#allocation3 + $0x78] sm:$0xff]
    %v2478 = vld [vmem:[#allocation3 + $0x80] sm:$0xff]
    %v2479 = vld [vmem:[#allocation3 + $0x88] sm:$0xff]
    %v2480 = vld [vmem:[#allocation3 + $0x90] sm:$0xff]
    %v2481 = vld [vmem:[#allocation3 + $0x98] sm:$0xff]
    %v2482 = vld [vmem:[#allocation3 + $0xa0] sm:$0xff]
    %v2483 = vld [vmem:[#allocation3 + $0xa8] sm:$0xff]
    %v2484 = vld [vmem:[#allocation3 + $0xb0] sm:$0xff]
    %v2485 = vld [vmem:[#allocation3 + $0xb8] sm:$0xff]
    %v2486 = vld [vmem:[#allocation3 + $0xc0] sm:$0xff]
    %v2487 = vld [vmem:[#allocation3 + $0xc8] sm:$0xff]
    %v2488 = vld [vmem:[#allocation3 + $0xd0] sm:$0xff]
    %v2489 = vld [vmem:[#allocation3 + $0xd8] sm:$0xff]
    %v2490 = vld [vmem:[#allocation3 + $0xe0] sm:$0xff]
    %v2491 = vld [vmem:[#allocation3 + $0xe8] sm:$0xff]
    %v2492 = vld [vmem:[#allocation3 + $0xf0] sm:$0xff]
    %v2493 = vld [vmem:[#allocation3 + $0xf8] sm:$0xff]
    %v2494 = vld [vmem:[#allocation3 + $0x100] sm:$0xff]
    %v2495 = vld [vmem:[#allocation3 + $0x108] sm:$0xff]
    %v2496 = vld [vmem:[#allocation3 + $0x110] sm:$0xff]
    %v2497 = vld [vmem:[#allocation3 + $0x118] sm:$0xff]
    %v2498 = vld [vmem:[#allocation3 + $0x120] sm:$0xff]
    %v2499 = vld [vmem:[#allocation3 + $0x128] sm:$0xff]
    %v2500 = vld [vmem:[#allocation3 + $0x130] sm:$0xff]
    %v2501 = vld [vmem:[#allocation3 + $0x138] sm:$0xff]
    %v2502 = vld [vmem:[#allocation3 + $0x140] sm:$0xff]
    %v2503 = vld [vmem:[#allocation3 + $0x148] sm:$0xff]
    %v2504 = vld [vmem:[#allocation3 + $0x150] sm:$0xff]
    %v2505 = vld [vmem:[#allocation3 + $0x158] sm:$0xff]
    %v2506 = vld [vmem:[#allocation3 + $0x160] sm:$0xff]
    %v2507 = vld [vmem:[#allocation3 + $0x168] sm:$0xff]
    %v2508 = vld [vmem:[#allocation3 + $0x170] sm:$0xff]
    %v2509 = vld [vmem:[#allocation3 + $0x178] sm:$0xff]
    %v2510 = vld [vmem:[#allocation3 + $0x180] sm:$0xff]
    %v2511 = vld [vmem:[#allocation3 + $0x188] sm:$0xff]
    %v2512 = vld [vmem:[#allocation3 + $0x190] sm:$0xff]
    %v2513 = vld [vmem:[#allocation3 + $0x198] sm:$0xff]
    %v2514 = vld [vmem:[#allocation3 + $0x1a0] sm:$0xff]
    %v2515 = vld [vmem:[#allocation3 + $0x1a8] sm:$0xff]
    %v2516 = vld [vmem:[#allocation3 + $0x1b0] sm:$0xff]
    %v2517 = vld [vmem:[#allocation3 + $0x1b8] sm:$0xff]
    %v2518 = vld [vmem:[#allocation3 + $0x1c0] sm:$0xff]
    %v2519 = vld [vmem:[#allocation3 + $0x1c8] sm:$0xff]
    %v2520 = vld [vmem:[#allocation3 + $0x1d0] sm:$0xff]
    %v2521 = vld [vmem:[#allocation3 + $0x1d8] sm:$0xff]
    %v2522 = vld [vmem:[#allocation3 + $0x1e0] sm:$0xff]
    %v2523 = vld [vmem:[#allocation3 + $0x1e8] sm:$0xff]
    %v2524 = vld [vmem:[#allocation3 + $0x1f0] sm:$0xff]
    %v2525 = vld [vmem:[#allocation3 + $0x1f8] sm:$0xff]
    %v2526 = vld [vmem:[#allocation3 + $0x200] sm:$0xff]
    %v2527 = vld [vmem:[#allocation3 + $0x208] sm:$0xff]
    %v2528 = vld [vmem:[#allocation3 + $0x210] sm:$0xff]
    %v2529 = vld [vmem:[#allocation3 + $0x218] sm:$0xff]
    %v2530 = vld [vmem:[#allocation3 + $0x220] sm:$0xff]
    %v2531 = vld [vmem:[#allocation3 + $0x228] sm:$0xff]
    %v2532 = vld [vmem:[#allocation3 + $0x230] sm:$0xff]
    %v2533 = vld [vmem:[#allocation3 + $0x238] sm:$0xff]
    %v2534 = vld [vmem:[#allocation3 + $0x240] sm:$0xff]
    %v2535 = vld [vmem:[#allocation3 + $0x248] sm:$0xff]
    %v2536 = vld [vmem:[#allocation3 + $0x250] sm:$0xff]
    %v2537 = vld [vmem:[#allocation3 + $0x258] sm:$0xff]
    %v2538 = vld [vmem:[#allocation3 + $0x260] sm:$0xff]
    %v2539 = vld [vmem:[#allocation3 + $0x268] sm:$0xff]
    %v2540 = vld [vmem:[#allocation3 + $0x270] sm:$0xff]
    %v2541 = vld [vmem:[#allocation3 + $0x278] sm:$0xff]
    %v2542 = vld [vmem:[#allocation3 + $0x280] sm:$0xff]
    %v2543 = vld [vmem:[#allocation3 + $0x288] sm:$0xff]
    %v2544 = vld [vmem:[#allocation3 + $0x290] sm:$0xff]
    %v2545 = vld [vmem:[#allocation3 + $0x298] sm:$0xff]
    %v2546 = vld [vmem:[#allocation3 + $0x2a0] sm:$0xff]
    %v2547 = vld [vmem:[#allocation3 + $0x2a8] sm:$0xff]
    %v2548 = vld [vmem:[#allocation3 + $0x2b0] sm:$0xff]
    %v2549 = vld [vmem:[#allocation3 + $0x2b8] sm:$0xff]
    %v2550 = vld [vmem:[#allocation3 + $0x2c0] sm:$0xff]
    %v2551 = vld [vmem:[#allocation3 + $0x2c8] sm:$0xff]
    %v2552 = vld [vmem:[#allocation3 + $0x2d0] sm:$0xff]
    %v2553 = vld [vmem:[#allocation3 + $0x2d8] sm:$0xff]
    %v2554 = vld [vmem:[#allocation3 + $0x2e0] sm:$0xff]
    %v2555 = vld [vmem:[#allocation3 + $0x2e8] sm:$0xff]
    %v2556 = vld [vmem:[#allocation3 + $0x2f0] sm:$0xff]
    %v2557 = vld [vmem:[#allocation3 + $0x2f8] sm:$0xff]
    %v2558 = vld [vmem:[#allocation3 + $0x300] sm:$0xff]
    %v2559 = vld [vmem:[#allocation3 + $0x308] sm:$0xff]
    %v2560 = vld [vmem:[#allocation3 + $0x310] sm:$0xff]
    %v2561 = vld [vmem:[#allocation3 + $0x318] sm:$0xff]
    %v2562 = vld [vmem:[#allocation3 + $0x320] sm:$0xff]
    %v2563 = vld [vmem:[#allocation3 + $0x328] sm:$0xff]
    %v2564 = vld [vmem:[#allocation3 + $0x330] sm:$0xff]
    %v2565 = vld [vmem:[#allocation3 + $0x338] sm:$0xff]
    %v2566 = vld [vmem:[#allocation3 + $0x340] sm:$0xff]
    %v2567 = vld [vmem:[#allocation3 + $0x348] sm:$0xff]
    %v2568 = vld [vmem:[#allocation3 + $0x350] sm:$0xff]
    %v2569 = vld [vmem:[#allocation3 + $0x358] sm:$0xff]
    %v2570 = vld [vmem:[#allocation3 + $0x360] sm:$0xff]
    %v2571 = vld [vmem:[#allocation3 + $0x368] sm:$0xff]
    %v2572 = vld [vmem:[#allocation3 + $0x370] sm:$0xff]
    %v2573 = vld [vmem:[#allocation3 + $0x378] sm:$0xff]
    %v2574 = vld [vmem:[#allocation3 + $0x380] sm:$0xff]
    %v2575 = vld [vmem:[#allocation3 + $0x388] sm:$0xff]
    %v2576 = vld [vmem:[#allocation3 + $0x390] sm:$0xff]
    %v2577 = vld [vmem:[#allocation3 + $0x398] sm:$0xff]
    %v2578 = vld [vmem:[#allocation3 + $0x3a0] sm:$0xff]
    %v2579 = vld [vmem:[#allocation3 + $0x3a8] sm:$0xff]
    %v2580 = vld [vmem:[#allocation3 + $0x3b0] sm:$0xff]
    %v2581 = vld [vmem:[#allocation3 + $0x3b8] sm:$0xff]
    %v2582 = vld [vmem:[#allocation3 + $0x3c0] sm:$0xff]
    %v2583 = vld [vmem:[#allocation3 + $0x3c8] sm:$0xff]
    %v2584 = vld [vmem:[#allocation3 + $0x3d0] sm:$0xff]
    %v2585 = vld [vmem:[#allocation3 + $0x3d8] sm:$0xff]
    %v2586 = vld [vmem:[#allocation3 + $0x3e0] sm:$0xff]
    %v2587 = vld [vmem:[#allocation3 + $0x3e8] sm:$0xff]
    %v2588 = vld [vmem:[#allocation3 + $0x3f0] sm:$0xff]
    %v2589 = vld [vmem:[#allocation3 + $0x3f8] sm:$0xff]
    %v2590 = vld [vmem:[#allocation3 + $0x400] sm:$0xff]
    %v2591 = vld [vmem:[#allocation3 + $0x408] sm:$0xff]
    %v2592 = vld [vmem:[#allocation3 + $0x410] sm:$0xff]
    %v2593 = vld [vmem:[#allocation3 + $0x418] sm:$0xff]
    %v2594 = vld [vmem:[#allocation3 + $0x420] sm:$0xff]
    %v2595 = vld [vmem:[#allocation3 + $0x428] sm:$0xff]
    %v2596 = vld [vmem:[#allocation3 + $0x430] sm:$0xff]
    %v2597 = vld [vmem:[#allocation3 + $0x438] sm:$0xff]
    %v2598 = vld [vmem:[#allocation3 + $0x440] sm:$0xff]
    %v2599 = vld [vmem:[#allocation3 + $0x448] sm:$0xff]
    %v2600 = vld [vmem:[#allocation3 + $0x450] sm:$0xff]
    %v2601 = vld [vmem:[#allocation3 + $0x458] sm:$0xff]
    %v2602 = vld [vmem:[#allocation3 + $0x460] sm:$0xff]
    %v2603 = vld [vmem:[#allocation3 + $0x468] sm:$0xff]
    %v2604 = vld [vmem:[#allocation3 + $0x470] sm:$0xff]
    %v2605 = vld [vmem:[#allocation3 + $0x478] sm:$0xff]
    %v2606 = vld [vmem:[#allocation3 + $0x480] sm:$0xff]
    %v2607 = vld [vmem:[#allocation3 + $0x488] sm:$0xff]
    %v2608 = vld [vmem:[#allocation3 + $0x490] sm:$0xff]
    %v2609 = vld [vmem:[#allocation3 + $0x498] sm:$0xff]
    %v2610 = vld [vmem:[#allocation3 + $0x4a0] sm:$0xff]
    %v2611 = vld [vmem:[#allocation3 + $0x4a8] sm:$0xff]
    %v2612 = vld [vmem:[#allocation3 + $0x4b0] sm:$0xff]
    %v2613 = vld [vmem:[#allocation3 + $0x4b8] sm:$0xff]
    %v2614 = vld [vmem:[#allocation3 + $0x4c0] sm:$0xff]
    %v2615 = vld [vmem:[#allocation3 + $0x4c8] sm:$0xff]
    %v2616 = vld [vmem:[#allocation3 + $0x4d0] sm:$0xff]
    %v2617 = vld [vmem:[#allocation3 + $0x4d8] sm:$0xff]
    %v2618 = vld [vmem:[#allocation3 + $0x4e0] sm:$0xff]
    %v2619 = vld [vmem:[#allocation3 + $0x4e8] sm:$0xff]
    %v2620 = vld [vmem:[#allocation3 + $0x4f0] sm:$0xff]
    %v2621 = vld [vmem:[#allocation3 + $0x4f8] sm:$0xff]
    %v2622 = vld [vmem:[#allocation3 + $0x500] sm:$0xff]
    %v2623 = vld [vmem:[#allocation3 + $0x508] sm:$0xff]
    %v2624 = vld [vmem:[#allocation3 + $0x510] sm:$0xff]
    %v2625 = vld [vmem:[#allocation3 + $0x518] sm:$0xff]
    %v2626 = vld [vmem:[#allocation3 + $0x520] sm:$0xff]
    %v2627 = vld [vmem:[#allocation3 + $0x528] sm:$0xff]
    %v2628 = vld [vmem:[#allocation3 + $0x530] sm:$0xff]
    %v2629 = vld [vmem:[#allocation3 + $0x538] sm:$0xff]
    %v2630 = vld [vmem:[#allocation3 + $0x540] sm:$0xff]
    %v2631 = vld [vmem:[#allocation3 + $0x548] sm:$0xff]
    %v2632 = vld [vmem:[#allocation3 + $0x550] sm:$0xff]
    %v2633 = vld [vmem:[#allocation3 + $0x558] sm:$0xff]
    %v2634 = vld [vmem:[#allocation3 + $0x560] sm:$0xff]
    %v2635 = vld [vmem:[#allocation3 + $0x568] sm:$0xff]
    %v2636 = vld [vmem:[#allocation3 + $0x570] sm:$0xff]
    %v2637 = vld [vmem:[#allocation3 + $0x578] sm:$0xff]
    %v2638 = vld [vmem:[#allocation3 + $0x580] sm:$0xff]
    %v2639 = vld [vmem:[#allocation3 + $0x588] sm:$0xff]
    %v2640 = vld [vmem:[#allocation3 + $0x590] sm:$0xff]
    %v2641 = vld [vmem:[#allocation3 + $0x598] sm:$0xff]
    %v2642 = vld [vmem:[#allocation3 + $0x5a0] sm:$0xff]
    %v2643 = vld [vmem:[#allocation3 + $0x5a8] sm:$0xff]
    %v2644 = vld [vmem:[#allocation3 + $0x5b0] sm:$0xff]
    %v2645 = vld [vmem:[#allocation3 + $0x5b8] sm:$0xff]
    %v2646 = vld [vmem:[#allocation3 + $0x5c0] sm:$0xff]
    %v2647 = vld [vmem:[#allocation3 + $0x5c8] sm:$0xff]
    %v2648 = vld [vmem:[#allocation3 + $0x5d0] sm:$0xff]
    %v2649 = vld [vmem:[#allocation3 + $0x5d8] sm:$0xff]
    %v2650 = vld [vmem:[#allocation3 + $0x5e0] sm:$0xff]
    %v2651 = vld [vmem:[#allocation3 + $0x5e8] sm:$0xff]
    %v2652 = vld [vmem:[#allocation3 + $0x5f0] sm:$0xff]
    %v2653 = vld [vmem:[#allocation3 + $0x5f8] sm:$0xff]
    %v2654 = vld [vmem:[#allocation3 + $0x600] sm:$0xff]
    %v2655 = vld [vmem:[#allocation3 + $0x608] sm:$0xff]
    %v2656 = vld [vmem:[#allocation3 + $0x610] sm:$0xff]
    %v2657 = vld [vmem:[#allocation3 + $0x618] sm:$0xff]
    %v2658 = vld [vmem:[#allocation3 + $0x620] sm:$0xff]
    %v2659 = vld [vmem:[#allocation3 + $0x628] sm:$0xff]
    %v2660 = vld [vmem:[#allocation3 + $0x630] sm:$0xff]
    %v2661 = vld [vmem:[#allocation3 + $0x638] sm:$0xff]
    %v2662 = vld [vmem:[#allocation3 + $0x640] sm:$0xff]
    %v2663 = vld [vmem:[#allocation3 + $0x648] sm:$0xff]
    %v2664 = vld [vmem:[#allocation3 + $0x650] sm:$0xff]
    %v2665 = vld [vmem:[#allocation3 + $0x658] sm:$0xff]
    %v2666 = vld [vmem:[#allocation3 + $0x660] sm:$0xff]
    %v2667 = vld [vmem:[#allocation3 + $0x668] sm:$0xff]
    %v2668 = vld [vmem:[#allocation3 + $0x670] sm:$0xff]
    %v2669 = vld [vmem:[#allocation3 + $0x678] sm:$0xff]
    %v2670 = vld [vmem:[#allocation3 + $0x680] sm:$0xff]
    %v2671 = vld [vmem:[#allocation3 + $0x688] sm:$0xff]
    %v2672 = vld [vmem:[#allocation3 + $0x690] sm:$0xff]
    %v2673 = vld [vmem:[#allocation3 + $0x698] sm:$0xff]
    %v2674 = vld [vmem:[#allocation3 + $0x6a0] sm:$0xff]
    %v2675 = vld [vmem:[#allocation3 + $0x6a8] sm:$0xff]
    %v2676 = vld [vmem:[#allocation3 + $0x6b0] sm:$0xff]
    %v2677 = vld [vmem:[#allocation3 + $0x6b8] sm:$0xff]
    %v2678 = vld [vmem:[#allocation3 + $0x6c0] sm:$0xff]
    %v2679 = vld [vmem:[#allocation3 + $0x6c8] sm:$0xff]
    %v2680 = vld [vmem:[#allocation3 + $0x6d0] sm:$0xff]
    %v2681 = vld [vmem:[#allocation3 + $0x6d8] sm:$0xff]
    %v2682 = vld [vmem:[#allocation3 + $0x6e0] sm:$0xff]
    %v2683 = vld [vmem:[#allocation3 + $0x6e8] sm:$0xff]
    %v2684 = vld [vmem:[#allocation3 + $0x6f0] sm:$0xff]
    %v2685 = vld [vmem:[#allocation3 + $0x6f8] sm:$0xff]
    %v2686 = vld [vmem:[#allocation3 + $0x700] sm:$0xff]
    %v2687 = vld [vmem:[#allocation3 + $0x708] sm:$0xff]
    %v2688 = vld [vmem:[#allocation3 + $0x710] sm:$0xff]
    %v2689 = vld [vmem:[#allocation3 + $0x718] sm:$0xff]
    %v2690 = vld [vmem:[#allocation3 + $0x720] sm:$0xff]
    %v2691 = vld [vmem:[#allocation3 + $0x728] sm:$0xff]
    %v2692 = vld [vmem:[#allocation3 + $0x730] sm:$0xff]
    %v2693 = vld [vmem:[#allocation3 + $0x738] sm:$0xff]
    %v2694 = vld [vmem:[#allocation3 + $0x740] sm:$0xff]
    %v2695 = vld [vmem:[#allocation3 + $0x748] sm:$0xff]
    %v2696 = vld [vmem:[#allocation3 + $0x750] sm:$0xff]
    %v2697 = vld [vmem:[#allocation3 + $0x758] sm:$0xff]
    %v2698 = vld [vmem:[#allocation3 + $0x760] sm:$0xff]
    %v2699 = vld [vmem:[#allocation3 + $0x768] sm:$0xff]
    %v2700 = vld [vmem:[#allocation3 + $0x770] sm:$0xff]
    %v2701 = vld [vmem:[#allocation3 + $0x778] sm:$0xff]
    %v2702 = vld [vmem:[#allocation3 + $0x780] sm:$0xff]
    %v2703 = vld [vmem:[#allocation3 + $0x788] sm:$0xff]
    %v2704 = vld [vmem:[#allocation3 + $0x790] sm:$0xff]
    %v2705 = vld [vmem:[#allocation3 + $0x798] sm:$0xff]
    %v2706 = vld [vmem:[#allocation3 + $0x7a0] sm:$0xff]
    %v2707 = vld [vmem:[#allocation3 + $0x7a8] sm:$0xff]
    %v2708 = vld [vmem:[#allocation3 + $0x7b0] sm:$0xff]
    %v2709 = vld [vmem:[#allocation3 + $0x7b8] sm:$0xff]
    %v2710 = vld [vmem:[#allocation3 + $0x7c0] sm:$0xff]
    %v2711 = vld [vmem:[#allocation3 + $0x7c8] sm:$0xff]
    %v2712 = vld [vmem:[#allocation3 + $0x7d0] sm:$0xff]
    %v2713 = vld [vmem:[#allocation3 + $0x7d8] sm:$0xff]
    %v2714 = vld [vmem:[#allocation3 + $0x7e0] sm:$0xff]
    %v2715 = vld [vmem:[#allocation3 + $0x7e8] sm:$0xff]
    %v2716 = vld [vmem:[#allocation3 + $0x7f0] sm:$0xff]
    %v2717 = vld [vmem:[#allocation3 + $0x7f8] sm:$0xff]
    %v2718 = vld [vmem:[#allocation3 + $0x800] sm:$0xff]
    %v2719 = vld [vmem:[#allocation3 + $0x808] sm:$0xff]
    %v2720 = vld [vmem:[#allocation3 + $0x810] sm:$0xff]
    %v2721 = vld [vmem:[#allocation3 + $0x818] sm:$0xff]
    %v2722 = vld [vmem:[#allocation3 + $0x820] sm:$0xff]
    %v2723 = vld [vmem:[#allocation3 + $0x828] sm:$0xff]
    %v2724 = vld [vmem:[#allocation3 + $0x830] sm:$0xff]
    %v2725 = vld [vmem:[#allocation3 + $0x838] sm:$0xff]
    %v2726 = vld [vmem:[#allocation3 + $0x840] sm:$0xff]
    %v2727 = vld [vmem:[#allocation3 + $0x848] sm:$0xff]
    %v2728 = vld [vmem:[#allocation3 + $0x850] sm:$0xff]
    %v2729 = vld [vmem:[#allocation3 + $0x858] sm:$0xff]
    %v2730 = vld [vmem:[#allocation3 + $0x860] sm:$0xff]
    %v2731 = vld [vmem:[#allocation3 + $0x868] sm:$0xff]
    %v2732 = vld [vmem:[#allocation3 + $0x870] sm:$0xff]
    %v2733 = vld [vmem:[#allocation3 + $0x878] sm:$0xff]
    %v2734 = vld [vmem:[#allocation3 + $0x880] sm:$0xff]
    %v2735 = vld [vmem:[#allocation3 + $0x888] sm:$0xff]
    %v2736 = vld [vmem:[#allocation3 + $0x890] sm:$0xff]
    %v2737 = vld [vmem:[#allocation3 + $0x898] sm:$0xff]
    %v2738 = vld [vmem:[#allocation3 + $0x8a0] sm:$0xff]
    %v2739 = vld [vmem:[#allocation3 + $0x8a8] sm:$0xff]
    %v2740 = vld [vmem:[#allocation3 + $0x8b0] sm:$0xff]
    %v2741 = vld [vmem:[#allocation3 + $0x8b8] sm:$0xff]
    %v2742 = vld [vmem:[#allocation3 + $0x8c0] sm:$0xff]
    %v2743 = vld [vmem:[#allocation3 + $0x8c8] sm:$0xff]
    %v2744 = vld [vmem:[#allocation3 + $0x8d0] sm:$0xff]
    %v2745 = vld [vmem:[#allocation3 + $0x8d8] sm:$0xff]
    %v2746 = vld [vmem:[#allocation3 + $0x8e0] sm:$0xff]
    %v2747 = vld [vmem:[#allocation3 + $0x8e8] sm:$0xff]
    %v2748 = vld [vmem:[#allocation3 + $0x8f0] sm:$0xff]
    %v2749 = vld [vmem:[#allocation3 + $0x8f8] sm:$0xff]
    %v2750 = vld [vmem:[#allocation3 + $0x900] sm:$0xff]
    %v2751 = vld [vmem:[#allocation3 + $0x908] sm:$0xff]
    %v2752 = vld [vmem:[#allocation3 + $0x910] sm:$0xff]
    %v2753 = vld [vmem:[#allocation3 + $0x918] sm:$0xff]
    %v2754 = vld [vmem:[#allocation3 + $0x920] sm:$0xff]
    %v2755 = vld [vmem:[#allocation3 + $0x928] sm:$0xff]
    %v2756 = vld [vmem:[#allocation3 + $0x930] sm:$0xff]
    %v2757 = vld [vmem:[#allocation3 + $0x938] sm:$0xff]
    %v2758 = vld [vmem:[#allocation3 + $0x940] sm:$0xff]
    %v2759 = vld [vmem:[#allocation3 + $0x948] sm:$0xff]
    %v2760 = vld [vmem:[#allocation3 + $0x950] sm:$0xff]
    %v2761 = vld [vmem:[#allocation3 + $0x958] sm:$0xff]
    %v2762 = vld [vmem:[#allocation3 + $0x960] sm:$0xff]
    %v2763 = vld [vmem:[#allocation3 + $0x968] sm:$0xff]
    %v2764 = vld [vmem:[#allocation3 + $0x970] sm:$0xff]
    %v2765 = vld [vmem:[#allocation3 + $0x978] sm:$0xff]
    %v2766 = vld [vmem:[#allocation3 + $0x980] sm:$0xff]
    %v2767 = vld [vmem:[#allocation3 + $0x988] sm:$0xff]
    %v2768 = vld [vmem:[#allocation3 + $0x990] sm:$0xff]
    %v2769 = vld [vmem:[#allocation3 + $0x998] sm:$0xff]
    %v2770 = vld [vmem:[#allocation3 + $0x9a0] sm:$0xff]
    %v2771 = vld [vmem:[#allocation3 + $0x9a8] sm:$0xff]
    %v2772 = vld [vmem:[#allocation3 + $0x9b0] sm:$0xff]
    %v2773 = vld [vmem:[#allocation3 + $0x9b8] sm:$0xff]
    %v2774 = vld [vmem:[#allocation3 + $0x9c0] sm:$0xff]
    %v2775 = vld [vmem:[#allocation3 + $0x9c8] sm:$0xff]
    %v2776 = vld [vmem:[#allocation3 + $0x9d0] sm:$0xff]
    %v2777 = vld [vmem:[#allocation3 + $0x9d8] sm:$0xff]
    %v2778 = vld [vmem:[#allocation3 + $0x9e0] sm:$0xff]
    %v2779 = vld [vmem:[#allocation3 + $0x9e8] sm:$0xff]
    %v2780 = vld [vmem:[#allocation3 + $0x9f0] sm:$0xff]
    %v2781 = vld [vmem:[#allocation3 + $0x9f8] sm:$0xff]
    %v2782 = vld [vmem:[#allocation3 + $0xa00] sm:$0xff]
    %v2783 = vld [vmem:[#allocation3 + $0xa08] sm:$0xff]
    %v2784 = vld [vmem:[#allocation3 + $0xa10] sm:$0xff]
    %v2785 = vld [vmem:[#allocation3 + $0xa18] sm:$0xff]
    %v2786 = vld [vmem:[#allocation28] sm:$0xff]
    %v2787 = vld [vmem:[#allocation28 + $0x8] sm:$0xff]
    %v2788 = vld [vmem:[#allocation28 + $0x10] sm:$0xff]
    %v2789 = vld [vmem:[#allocation28 + $0x18] sm:$0xff]
    %v2790 = vld [vmem:[#allocation28 + $0x20] sm:$0xff]
    %v2791 = vld [vmem:[#allocation28 + $0x28] sm:$0xff]
    %v2792 = vld [vmem:[#allocation28 + $0x30] sm:$0xff]
    %v2793 = vld [vmem:[#allocation28 + $0x38] sm:$0xff]
    %v2794 = vpack.c.bf16 %v2787, %v2786
    %v2795 = vpack.c.bf16 %v2789, %v2788
    %v2796 = vpack.c.bf16 %v2791, %v2790
    %v2797 = vpack.c.bf16 %v2793, %v2792
    %v2798 = vld [vmem:[#allocation19] sm:$0xf]
    %v2800 = vlaneseq
    %v2801 = vshrl.u32 %v2800, 7
    %v2802 = vsub.s32 0, %v2801
    %v2803 = vrot.slane %v2798, %v2802
    %v2804 = vlaneseq
    %v2805 = vshrl.u32 %v2804, 7
    %v2806 = vsub.s32 1, %v2805
    %v2807 = vrot.slane %v2798, %v2806
    %v2808 = vlaneseq
    %v2809 = vshrl.u32 %v2808, 7
    %v2810 = vsub.s32 2, %v2809
    %v2811 = vrot.slane %v2798, %v2810
    %v2812 = vlaneseq
    %v2813 = vshrl.u32 %v2812, 7
    %v2814 = vsub.s32 3, %v2813
    %v2815 = vrot.slane %v2798, %v2814
    %v2852 = vunpack.c.l.b16 %v2462
    %v2853 = vunpack.c.h.b16 %v2462
    %v2854 = vunpack.c.l.b16 %v2463
    %v2855 = vunpack.c.h.b16 %v2463
    %v2856 = vunpack.c.l.b16 %v2464
    %v2857 = vunpack.c.h.b16 %v2464
    %v2858 = vunpack.c.l.b16 %v2465
    %v2859 = vunpack.c.h.b16 %v2465
    %v2860 = vunpack.c.l.b16 %v2466
    %v2861 = vunpack.c.h.b16 %v2466
    %v2862 = vunpack.c.l.b16 %v2467
    %v2863 = vunpack.c.h.b16 %v2467
    %v2864 = vunpack.c.l.b16 %v2468
    %v2865 = vunpack.c.h.b16 %v2468
    %v2866 = vunpack.c.l.b16 %v2469
    %v2867 = vunpack.c.h.b16 %v2469
    %v2868 = vunpack.c.l.b16 %v2470
    %v2869 = vunpack.c.h.b16 %v2470
    %v2870 = vunpack.c.l.b16 %v2471
    %v2871 = vunpack.c.h.b16 %v2471
    %v2872 = vunpack.c.l.b16 %v2472
    %v2873 = vunpack.c.h.b16 %v2472
    %v2874 = vunpack.c.l.b16 %v2473
    %v2875 = vunpack.c.h.b16 %v2473
    %v2876 = vunpack.c.l.b16 %v2474
    %v2877 = vunpack.c.h.b16 %v2474
    %v2878 = vunpack.c.l.b16 %v2475
    %v2879 = vunpack.c.h.b16 %v2475
    %v2880 = vunpack.c.l.b16 %v2476
    %v2881 = vunpack.c.h.b16 %v2476
    %v2882 = vunpack.c.l.b16 %v2477
    %v2883 = vunpack.c.h.b16 %v2477
    %v2884 = vunpack.c.l.b16 %v2478
    %v2885 = vunpack.c.h.b16 %v2478
    %v2886 = vunpack.c.l.b16 %v2479
    %v2887 = vunpack.c.h.b16 %v2479
    %v2888 = vunpack.c.l.b16 %v2480
    %v2889 = vunpack.c.h.b16 %v2480
    %v2890 = vunpack.c.l.b16 %v2481
    %v2891 = vunpack.c.h.b16 %v2481
    %v2892 = vunpack.c.l.b16 %v2482
    %v2893 = vunpack.c.h.b16 %v2482
    %v2894 = vunpack.c.l.b16 %v2483
    %v2895 = vunpack.c.h.b16 %v2483
    %v2896 = vunpack.c.l.b16 %v2484
    %v2897 = vunpack.c.h.b16 %v2484
    %v2898 = vunpack.c.l.b16 %v2485
    %v2899 = vunpack.c.h.b16 %v2485
    %v2900 = vunpack.c.l.b16 %v2486
    %v2901 = vunpack.c.h.b16 %v2486
    %v2902 = vunpack.c.l.b16 %v2487
    %v2903 = vunpack.c.h.b16 %v2487
    %v2904 = vunpack.c.l.b16 %v2488
    %v2905 = vunpack.c.h.b16 %v2488
    %v2906 = vunpack.c.l.b16 %v2489
    %v2907 = vunpack.c.h.b16 %v2489
    %v2908 = vunpack.c.l.b16 %v2490
    %v2909 = vunpack.c.h.b16 %v2490
    %v2910 = vunpack.c.l.b16 %v2491
    %v2911 = vunpack.c.h.b16 %v2491
    %v2912 = vunpack.c.l.b16 %v2492
    %v2913 = vunpack.c.h.b16 %v2492
    %v2914 = vunpack.c.l.b16 %v2493
    %v2915 = vunpack.c.h.b16 %v2493
    %v2916 = vpack.c.b16 %v2856, %v2852
    %v2917 = vpack.c.b16 %v2857, %v2853
    %v2918 = vpack.c.b16 %v2858, %v2854
    %v2919 = vpack.c.b16 %v2859, %v2855
    %v2920 = vpack.c.b16 %v2864, %v2860
    %v2921 = vpack.c.b16 %v2865, %v2861
    %v2922 = vpack.c.b16 %v2866, %v2862
    %v2923 = vpack.c.b16 %v2867, %v2863
    %v2924 = vpack.c.b16 %v2872, %v2868
    %v2925 = vpack.c.b16 %v2873, %v2869
    %v2926 = vpack.c.b16 %v2874, %v2870
    %v2927 = vpack.c.b16 %v2875, %v2871
    %v2928 = vpack.c.b16 %v2880, %v2876
    %v2929 = vpack.c.b16 %v2881, %v2877
    %v2930 = vpack.c.b16 %v2882, %v2878
    %v2931 = vpack.c.b16 %v2883, %v2879
    %v2932 = vpack.c.b16 %v2888, %v2884
    %v2933 = vpack.c.b16 %v2889, %v2885
    %v2934 = vpack.c.b16 %v2890, %v2886
    %v2935 = vpack.c.b16 %v2891, %v2887
    %v2936 = vpack.c.b16 %v2896, %v2892
    %v2937 = vpack.c.b16 %v2897, %v2893
    %v2938 = vpack.c.b16 %v2898, %v2894
    %v2939 = vpack.c.b16 %v2899, %v2895
    %v2940 = vpack.c.b16 %v2904, %v2900
    %v2941 = vpack.c.b16 %v2905, %v2901
    %v2942 = vpack.c.b16 %v2906, %v2902
    %v2943 = vpack.c.b16 %v2907, %v2903
    %v2944 = vpack.c.b16 %v2912, %v2908
    %v2945 = vpack.c.b16 %v2913, %v2909
    %v2946 = vpack.c.b16 %v2914, %v2910
    %v2947 = vpack.c.b16 %v2915, %v2911
    %2980 = vmatprep.subr.bf16.mxu0 %v2945
    %2981 = vmatpush1.bf16.msra.mxu0 %v2944
    %2982 = vmatprep.subr.bf16.mxu0 %v2941
    %2983 = vmatpush1.bf16.msra.mxu0 %v2940
    %2984 = vmatprep.subr.bf16.mxu0 %v2937
    %2985 = vmatpush1.bf16.msra.mxu0 %v2936
    %2986 = vmatprep.subr.bf16.mxu0 %v2933
    %2987 = vmatpush1.bf16.msra.mxu0 %v2932
    %2988 = vmatprep.subr.bf16.mxu0 %v2929
    %2989 = vmatpush1.bf16.msra.mxu0 %v2928
    %2990 = vmatprep.subr.bf16.mxu0 %v2925
    %2991 = vmatpush1.bf16.msra.mxu0 %v2924
    %2992 = vmatprep.subr.bf16.mxu0 %v2921
    %2993 = vmatpush1.bf16.msra.mxu0 %v2920
    %2994 = vmatprep.subr.bf16.mxu0 %v2917
    %2995 = vmatpush1.bf16.msra.mxu0 %v2916
    %2996 = vmatprep.subr.bf16.mxu0 0
    %2997 = vmatpush2.bf16.msra.mxu0 0
    %2998 = vmatprep.subr.bf16.mxu0 0
    %2999 = vmatpush2.bf16.msra.mxu0 0
    %3000 = vmatprep.subr.bf16.mxu0 0
    %3001 = vmatpush2.bf16.msra.mxu0 0
    %3002 = vmatprep.subr.bf16.mxu0 0
    %3003 = vmatpush2.bf16.msra.mxu0 0
    %3004 = vmatprep.subr.bf16.mxu0 0
    %3005 = vmatpush2.bf16.msra.mxu0 0
    %3006 = vmatprep.subr.bf16.mxu0 0
    %3007 = vmatpush2.bf16.msra.mxu0 0
    %3008 = vmatprep.subr.bf16.mxu0 0
    %3009 = vmatpush2.bf16.msra.mxu0 0
    %3010 = vmatprep.subr.bf16.mxu0 0
    %3011 = vmatpush2.bf16.msra.mxu0 0
    %3012 = vmatprep.mubr.bf16.mxu0 0
    %3013 = vmatmul.mubr.bf16.gmra.mxu0 %v2794
    %v3014 = vpop.f32.mrf.mxu0
    %v3015 = vadd.f32 %v2803, %v3014
    %v3016 = vpop.f32.mrf.mxu0
    %v3017 = vadd.f32 %v2807, %v3016
    %v3018 = vpop.f32.mrf.mxu0
    %v3019 = vadd.f32 %v2803, %v3018
    %v3020 = vpop.f32.mrf.mxu0
    %v3021 = vadd.f32 %v2807, %v3020
    %3022 = vmatprep.mubr.bf16.mxu0 0
    %3023 = vmatmul.mubr.bf16.gmra.mxu0 %v2795
    %v3024 = vpop.f32.mrf.mxu0
    %v3025 = vadd.f32 %v2803, %v3024
    %v3026 = vpop.f32.mrf.mxu0
    %v3027 = vadd.f32 %v2807, %v3026
    %v3028 = vpop.f32.mrf.mxu0
    %v3029 = vadd.f32 %v2803, %v3028
    %v3030 = vpop.f32.mrf.mxu0
    %v3031 = vadd.f32 %v2807, %v3030
    %3032 = vmatprep.mubr.bf16.mxu0 0
    %3033 = vmatmul.mubr.bf16.gmra.mxu0 %v2796
    %v3034 = vpop.f32.mrf.mxu0
    %v3035 = vadd.f32 %v2803, %v3034
    %v3036 = vpop.f32.mrf.mxu0
    %v3037 = vadd.f32 %v2807, %v3036
    %v3038 = vpop.f32.mrf.mxu0
    %v3039 = vadd.f32 %v2803, %v3038
    %v3040 = vpop.f32.mrf.mxu0
    %v3041 = vadd.f32 %v2807, %v3040
    %3042 = vmatprep.mubr.bf16.mxu0 0
    %3043 = vmatmul.mubr.bf16.gmra.mxu0 %v2797
    %v3044 = vpop.f32.mrf.mxu0
    %v3045 = vadd.f32 %v2803, %v3044
    %v3046 = vpop.f32.mrf.mxu0
    %v3047 = vadd.f32 %v2807, %v3046
    %v3048 = vpop.f32.mrf.mxu0
    %v3049 = vadd.f32 %v2803, %v3048
    %v3050 = vpop.f32.mrf.mxu0
    %v3051 = vadd.f32 %v2807, %v3050
    %3052 = vdwg.mxu0
    %3053 = vmatprep.subr.bf16.mxu0 %v2947
    %3054 = vmatpush1.bf16.msra.mxu0 %v2946
    %3055 = vmatprep.subr.bf16.mxu0 %v2943
    %3056 = vmatpush1.bf16.msra.mxu0 %v2942
    %3057 = vmatprep.subr.bf16.mxu0 %v2939
    %3058 = vmatpush1.bf16.msra.mxu0 %v2938
    %3059 = vmatprep.subr.bf16.mxu0 %v2935
    %3060 = vmatpush1.bf16.msra.mxu0 %v2934
    %3061 = vmatprep.subr.bf16.mxu0 %v2931
    %3062 = vmatpush1.bf16.msra.mxu0 %v2930
    %3063 = vmatprep.subr.bf16.mxu0 %v2927
    %3064 = vmatpush1.bf16.msra.mxu0 %v2926
    %3065 = vmatprep.subr.bf16.mxu0 %v2923
    %3066 = vmatpush1.bf16.msra.mxu0 %v2922
    %3067 = vmatprep.subr.bf16.mxu0 %v2919
    %3068 = vmatpush1.bf16.msra.mxu0 %v2918
    %3069 = vmatprep.subr.bf16.mxu0 0
    %3070 = vmatpush2.bf16.msra.mxu0 0
    %3071 = vmatprep.subr.bf16.mxu0 0
    %3072 = vmatpush2.bf16.msra.mxu0 0
    %3073 = vmatprep.subr.bf16.mxu0 0
    %3074 = vmatpush2.bf16.msra.mxu0 0
    %3075 = vmatprep.subr.bf16.mxu0 0
    %3076 = vmatpush2.bf16.msra.mxu0 0
    %3077 = vmatprep.subr.bf16.mxu0 0
    %3078 = vmatpush2.bf16.msra.mxu0 0
    %3079 = vmatprep.subr.bf16.mxu0 0
    %3080 = vmatpush2.bf16.msra.mxu0 0
    %3081 = vmatprep.subr.bf16.mxu0 0
    %3082 = vmatpush2.bf16.msra.mxu0 0
    %3083 = vmatprep.subr.bf16.mxu0 0
    %3084 = vmatpush2.bf16.msra.mxu0 0
    %3085 = vmatprep.mubr.bf16.mxu0 0
    %3086 = vmatmul.mubr.bf16.gmra.mxu0 %v2794
    %v3087 = vpop.f32.mrf.mxu0
    %v3088 = vadd.f32 %v2811, %v3087
    %v3089 = vpop.f32.mrf.mxu0
    %v3090 = vadd.f32 %v2815, %v3089
    %v3091 = vpop.f32.mrf.mxu0
    %v3092 = vadd.f32 %v2811, %v3091
    %v3093 = vpop.f32.mrf.mxu0
    %v3094 = vadd.f32 %v2815, %v3093
    %3095 = vmatprep.mubr.bf16.mxu0 0
    %3096 = vmatmul.mubr.bf16.gmra.mxu0 %v2795
    %v3097 = vpop.f32.mrf.mxu0
    %v3098 = vadd.f32 %v2811, %v3097
    %v3099 = vpop.f32.mrf.mxu0
    %v3100 = vadd.f32 %v2815, %v3099
    %v3101 = vpop.f32.mrf.mxu0
    %v3102 = vadd.f32 %v2811, %v3101
    %v3103 = vpop.f32.mrf.mxu0
    %v3104 = vadd.f32 %v2815, %v3103
    %3105 = vmatprep.mubr.bf16.mxu0 0
    %3106 = vmatmul.mubr.bf16.gmra.mxu0 %v2796
    %v3107 = vpop.f32.mrf.mxu0
    %v3108 = vadd.f32 %v2811, %v3107
    %v3109 = vpop.f32.mrf.mxu0
    %v3110 = vadd.f32 %v2815, %v3109
    %v3111 = vpop.f32.mrf.mxu0
    %v3112 = vadd.f32 %v2811, %v3111
    %v3113 = vpop.f32.mrf.mxu0
    %v3114 = vadd.f32 %v2815, %v3113
    %3115 = vmatprep.mubr.bf16.mxu0 0
    %3116 = vmatmul.mubr.bf16.gmra.mxu0 %v2797
    %v3117 = vpop.f32.mrf.mxu0
    %v3118 = vadd.f32 %v2811, %v3117
    %v3119 = vpop.f32.mrf.mxu0
    %v3120 = vadd.f32 %v2815, %v3119
    %v3121 = vpop.f32.mrf.mxu0
    %v3122 = vadd.f32 %v2811, %v3121
    %v3123 = vpop.f32.mrf.mxu0
    %v3124 = vadd.f32 %v2815, %v3123
    %3125 = vdwg.mxu0
    %v3126 = vmax.f32 %v3015, 0.0
    %v3127 = vmax.f32 %v3017, 0.0
    %v3128 = vmax.f32 %v3088, 0.0
    %v3129 = vmax.f32 %v3090, 0.0
    %v3130 = vmax.f32 %v3019, 0.0
    %v3131 = vmax.f32 %v3021, 0.0
    %v3132 = vmax.f32 %v3092, 0.0
    %v3133 = vmax.f32 %v3094, 0.0
    %v3134 = vmax.f32 %v3025, 0.0
    %v3135 = vmax.f32 %v3027, 0.0
    %v3136 = vmax.f32 %v3098, 0.0
    %v3137 = vmax.f32 %v3100, 0.0
    %v3138 = vmax.f32 %v3029, 0.0
    %v3139 = vmax.f32 %v3031, 0.0
    %v3140 = vmax.f32 %v3102, 0.0
    %v3141 = vmax.f32 %v3104, 0.0
    %v3142 = vmax.f32 %v3035, 0.0
    %v3143 = vmax.f32 %v3037, 0.0
    %v3144 = vmax.f32 %v3108, 0.0
    %v3145 = vmax.f32 %v3110, 0.0
    %v3146 = vmax.f32 %v3039, 0.0
    %v3147 = vmax.f32 %v3041, 0.0
    %v3148 = vmax.f32 %v3112, 0.0
    %v3149 = vmax.f32 %v3114, 0.0
    %v3150 = vmax.f32 %v3045, 0.0
    %v3151 = vmax.f32 %v3047, 0.0
    %v3152 = vmax.f32 %v3118, 0.0
    %v3153 = vmax.f32 %v3120, 0.0
    %v3154 = vmax.f32 %v3049, 0.0
    %v3155 = vmax.f32 %v3051, 0.0
    %v3156 = vmax.f32 %v3122, 0.0
    %v3157 = vmax.f32 %v3124, 0.0
    %v3158 = vpack.c.bf16 %v3130, %v3126
    %v3159 = vpack.c.bf16 %v3131, %v3127
    %v3160 = vpack.c.bf16 %v3132, %v3128
    %v3161 = vpack.c.bf16 %v3133, %v3129
    %v3162 = vpack.c.bf16 %v3138, %v3134
    %v3163 = vpack.c.bf16 %v3139, %v3135
    %v3164 = vpack.c.bf16 %v3140, %v3136
    %v3165 = vpack.c.bf16 %v3141, %v3137
    %v3166 = vpack.c.bf16 %v3146, %v3142
    %v3167 = vpack.c.bf16 %v3147, %v3143
    %v3168 = vpack.c.bf16 %v3148, %v3144
    %v3169 = vpack.c.bf16 %v3149, %v3145
    %v3170 = vpack.c.bf16 %v3154, %v3150
    %v3171 = vpack.c.bf16 %v3155, %v3151
    %v3172 = vpack.c.bf16 %v3156, %v3152
    %v3173 = vpack.c.bf16 %v3157, %v3153
    %v3174 = vld [vmem:[#allocation20] sm:$0xf]
    %v3176 = vlaneseq
    %v3177 = vshrl.u32 %v3176, 7
    %v3178 = vsub.s32 0, %v3177
    %v3179 = vrot.slane %v3174, %v3178
    %v3180 = vlaneseq
    %v3181 = vshrl.u32 %v3180, 7
    %v3182 = vsub.s32 1, %v3181
    %v3183 = vrot.slane %v3174, %v3182
    %v3184 = vlaneseq
    %v3185 = vshrl.u32 %v3184, 7
    %v3186 = vsub.s32 2, %v3185
    %v3187 = vrot.slane %v3174, %v3186
    %v3188 = vlaneseq
    %v3189 = vshrl.u32 %v3188, 7
    %v3190 = vsub.s32 3, %v3189
    %v3191 = vrot.slane %v3174, %v3190
    %v3324 = vunpack.c.l.b16 %v2494
    %v3325 = vunpack.c.h.b16 %v2494
    %v3326 = vunpack.c.l.b16 %v2495
    %v3327 = vunpack.c.h.b16 %v2495
    %v3328 = vunpack.c.l.b16 %v2496
    %v3329 = vunpack.c.h.b16 %v2496
    %v3330 = vunpack.c.l.b16 %v2497
    %v3331 = vunpack.c.h.b16 %v2497
    %v3332 = vunpack.c.l.b16 %v2498
    %v3333 = vunpack.c.h.b16 %v2498
    %v3334 = vunpack.c.l.b16 %v2499
    %v3335 = vunpack.c.h.b16 %v2499
    %v3336 = vunpack.c.l.b16 %v2500
    %v3337 = vunpack.c.h.b16 %v2500
    %v3338 = vunpack.c.l.b16 %v2501
    %v3339 = vunpack.c.h.b16 %v2501
    %v3340 = vunpack.c.l.b16 %v2502
    %v3341 = vunpack.c.h.b16 %v2502
    %v3342 = vunpack.c.l.b16 %v2503
    %v3343 = vunpack.c.h.b16 %v2503
    %v3344 = vunpack.c.l.b16 %v2504
    %v3345 = vunpack.c.h.b16 %v2504
    %v3346 = vunpack.c.l.b16 %v2505
    %v3347 = vunpack.c.h.b16 %v2505
    %v3348 = vunpack.c.l.b16 %v2506
    %v3349 = vunpack.c.h.b16 %v2506
    %v3350 = vunpack.c.l.b16 %v2507
    %v3351 = vunpack.c.h.b16 %v2507
    %v3352 = vunpack.c.l.b16 %v2508
    %v3353 = vunpack.c.h.b16 %v2508
    %v3354 = vunpack.c.l.b16 %v2509
    %v3355 = vunpack.c.h.b16 %v2509
    %v3356 = vunpack.c.l.b16 %v2510
    %v3357 = vunpack.c.h.b16 %v2510
    %v3358 = vunpack.c.l.b16 %v2511
    %v3359 = vunpack.c.h.b16 %v2511
    %v3360 = vunpack.c.l.b16 %v2512
    %v3361 = vunpack.c.h.b16 %v2512
    %v3362 = vunpack.c.l.b16 %v2513
    %v3363 = vunpack.c.h.b16 %v2513
    %v3364 = vunpack.c.l.b16 %v2514
    %v3365 = vunpack.c.h.b16 %v2514
    %v3366 = vunpack.c.l.b16 %v2515
    %v3367 = vunpack.c.h.b16 %v2515
    %v3368 = vunpack.c.l.b16 %v2516
    %v3369 = vunpack.c.h.b16 %v2516
    %v3370 = vunpack.c.l.b16 %v2517
    %v3371 = vunpack.c.h.b16 %v2517
    %v3372 = vunpack.c.l.b16 %v2518
    %v3373 = vunpack.c.h.b16 %v2518
    %v3374 = vunpack.c.l.b16 %v2519
    %v3375 = vunpack.c.h.b16 %v2519
    %v3376 = vunpack.c.l.b16 %v2520
    %v3377 = vunpack.c.h.b16 %v2520
    %v3378 = vunpack.c.l.b16 %v2521
    %v3379 = vunpack.c.h.b16 %v2521
    %v3380 = vunpack.c.l.b16 %v2522
    %v3381 = vunpack.c.h.b16 %v2522
    %v3382 = vunpack.c.l.b16 %v2523
    %v3383 = vunpack.c.h.b16 %v2523
    %v3384 = vunpack.c.l.b16 %v2524
    %v3385 = vunpack.c.h.b16 %v2524
    %v3386 = vunpack.c.l.b16 %v2525
    %v3387 = vunpack.c.h.b16 %v2525
    %v3388 = vunpack.c.l.b16 %v2526
    %v3389 = vunpack.c.h.b16 %v2526
    %v3390 = vunpack.c.l.b16 %v2527
    %v3391 = vunpack.c.h.b16 %v2527
    %v3392 = vunpack.c.l.b16 %v2528
    %v3393 = vunpack.c.h.b16 %v2528
    %v3394 = vunpack.c.l.b16 %v2529
    %v3395 = vunpack.c.h.b16 %v2529
    %v3396 = vunpack.c.l.b16 %v2530
    %v3397 = vunpack.c.h.b16 %v2530
    %v3398 = vunpack.c.l.b16 %v2531
    %v3399 = vunpack.c.h.b16 %v2531
    %v3400 = vunpack.c.l.b16 %v2532
    %v3401 = vunpack.c.h.b16 %v2532
    %v3402 = vunpack.c.l.b16 %v2533
    %v3403 = vunpack.c.h.b16 %v2533
    %v3404 = vunpack.c.l.b16 %v2534
    %v3405 = vunpack.c.h.b16 %v2534
    %v3406 = vunpack.c.l.b16 %v2535
    %v3407 = vunpack.c.h.b16 %v2535
    %v3408 = vunpack.c.l.b16 %v2536
    %v3409 = vunpack.c.h.b16 %v2536
    %v3410 = vunpack.c.l.b16 %v2537
    %v3411 = vunpack.c.h.b16 %v2537
    %v3412 = vunpack.c.l.b16 %v2538
    %v3413 = vunpack.c.h.b16 %v2538
    %v3414 = vunpack.c.l.b16 %v2539
    %v3415 = vunpack.c.h.b16 %v2539
    %v3416 = vunpack.c.l.b16 %v2540
    %v3417 = vunpack.c.h.b16 %v2540
    %v3418 = vunpack.c.l.b16 %v2541
    %v3419 = vunpack.c.h.b16 %v2541
    %v3420 = vunpack.c.l.b16 %v2542
    %v3421 = vunpack.c.h.b16 %v2542
    %v3422 = vunpack.c.l.b16 %v2543
    %v3423 = vunpack.c.h.b16 %v2543
    %v3424 = vunpack.c.l.b16 %v2544
    %v3425 = vunpack.c.h.b16 %v2544
    %v3426 = vunpack.c.l.b16 %v2545
    %v3427 = vunpack.c.h.b16 %v2545
    %v3428 = vunpack.c.l.b16 %v2546
    %v3429 = vunpack.c.h.b16 %v2546
    %v3430 = vunpack.c.l.b16 %v2547
    %v3431 = vunpack.c.h.b16 %v2547
    %v3432 = vunpack.c.l.b16 %v2548
    %v3433 = vunpack.c.h.b16 %v2548
    %v3434 = vunpack.c.l.b16 %v2549
    %v3435 = vunpack.c.h.b16 %v2549
    %v3436 = vunpack.c.l.b16 %v2550
    %v3437 = vunpack.c.h.b16 %v2550
    %v3438 = vunpack.c.l.b16 %v2551
    %v3439 = vunpack.c.h.b16 %v2551
    %v3440 = vunpack.c.l.b16 %v2552
    %v3441 = vunpack.c.h.b16 %v2552
    %v3442 = vunpack.c.l.b16 %v2553
    %v3443 = vunpack.c.h.b16 %v2553
    %v3444 = vunpack.c.l.b16 %v2554
    %v3445 = vunpack.c.h.b16 %v2554
    %v3446 = vunpack.c.l.b16 %v2555
    %v3447 = vunpack.c.h.b16 %v2555
    %v3448 = vunpack.c.l.b16 %v2556
    %v3449 = vunpack.c.h.b16 %v2556
    %v3450 = vunpack.c.l.b16 %v2557
    %v3451 = vunpack.c.h.b16 %v2557
    %v3452 = vunpack.c.l.b16 %v2558
    %v3453 = vunpack.c.h.b16 %v2558
    %v3454 = vunpack.c.l.b16 %v2559
    %v3455 = vunpack.c.h.b16 %v2559
    %v3456 = vunpack.c.l.b16 %v2560
    %v3457 = vunpack.c.h.b16 %v2560
    %v3458 = vunpack.c.l.b16 %v2561
    %v3459 = vunpack.c.h.b16 %v2561
    %v3460 = vunpack.c.l.b16 %v2562
    %v3461 = vunpack.c.h.b16 %v2562
    %v3462 = vunpack.c.l.b16 %v2563
    %v3463 = vunpack.c.h.b16 %v2563
    %v3464 = vunpack.c.l.b16 %v2564
    %v3465 = vunpack.c.h.b16 %v2564
    %v3466 = vunpack.c.l.b16 %v2565
    %v3467 = vunpack.c.h.b16 %v2565
    %v3468 = vunpack.c.l.b16 %v2566
    %v3469 = vunpack.c.h.b16 %v2566
    %v3470 = vunpack.c.l.b16 %v2567
    %v3471 = vunpack.c.h.b16 %v2567
    %v3472 = vunpack.c.l.b16 %v2568
    %v3473 = vunpack.c.h.b16 %v2568
    %v3474 = vunpack.c.l.b16 %v2569
    %v3475 = vunpack.c.h.b16 %v2569
    %v3476 = vunpack.c.l.b16 %v2570
    %v3477 = vunpack.c.h.b16 %v2570
    %v3478 = vunpack.c.l.b16 %v2571
    %v3479 = vunpack.c.h.b16 %v2571
    %v3480 = vunpack.c.l.b16 %v2572
    %v3481 = vunpack.c.h.b16 %v2572
    %v3482 = vunpack.c.l.b16 %v2573
    %v3483 = vunpack.c.h.b16 %v2573
    %v3484 = vunpack.c.l.b16 %v2574
    %v3485 = vunpack.c.h.b16 %v2574
    %v3486 = vunpack.c.l.b16 %v2575
    %v3487 = vunpack.c.h.b16 %v2575
    %v3488 = vunpack.c.l.b16 %v2576
    %v3489 = vunpack.c.h.b16 %v2576
    %v3490 = vunpack.c.l.b16 %v2577
    %v3491 = vunpack.c.h.b16 %v2577
    %v3492 = vunpack.c.l.b16 %v2578
    %v3493 = vunpack.c.h.b16 %v2578
    %v3494 = vunpack.c.l.b16 %v2579
    %v3495 = vunpack.c.h.b16 %v2579
    %v3496 = vunpack.c.l.b16 %v2580
    %v3497 = vunpack.c.h.b16 %v2580
    %v3498 = vunpack.c.l.b16 %v2581
    %v3499 = vunpack.c.h.b16 %v2581
    %v3500 = vunpack.c.l.b16 %v2582
    %v3501 = vunpack.c.h.b16 %v2582
    %v3502 = vunpack.c.l.b16 %v2583
    %v3503 = vunpack.c.h.b16 %v2583
    %v3504 = vunpack.c.l.b16 %v2584
    %v3505 = vunpack.c.h.b16 %v2584
    %v3506 = vunpack.c.l.b16 %v2585
    %v3507 = vunpack.c.h.b16 %v2585
    %v3508 = vunpack.c.l.b16 %v2586
    %v3509 = vunpack.c.h.b16 %v2586
    %v3510 = vunpack.c.l.b16 %v2587
    %v3511 = vunpack.c.h.b16 %v2587
    %v3512 = vunpack.c.l.b16 %v2588
    %v3513 = vunpack.c.h.b16 %v2588
    %v3514 = vunpack.c.l.b16 %v2589
    %v3515 = vunpack.c.h.b16 %v2589
    %v3516 = vunpack.c.l.b16 %v2590
    %v3517 = vunpack.c.h.b16 %v2590
    %v3518 = vunpack.c.l.b16 %v2591
    %v3519 = vunpack.c.h.b16 %v2591
    %v3520 = vunpack.c.l.b16 %v2592
    %v3521 = vunpack.c.h.b16 %v2592
    %v3522 = vunpack.c.l.b16 %v2593
    %v3523 = vunpack.c.h.b16 %v2593
    %v3524 = vunpack.c.l.b16 %v2594
    %v3525 = vunpack.c.h.b16 %v2594
    %v3526 = vunpack.c.l.b16 %v2595
    %v3527 = vunpack.c.h.b16 %v2595
    %v3528 = vunpack.c.l.b16 %v2596
    %v3529 = vunpack.c.h.b16 %v2596
    %v3530 = vunpack.c.l.b16 %v2597
    %v3531 = vunpack.c.h.b16 %v2597
    %v3532 = vunpack.c.l.b16 %v2598
    %v3533 = vunpack.c.h.b16 %v2598
    %v3534 = vunpack.c.l.b16 %v2599
    %v3535 = vunpack.c.h.b16 %v2599
    %v3536 = vunpack.c.l.b16 %v2600
    %v3537 = vunpack.c.h.b16 %v2600
    %v3538 = vunpack.c.l.b16 %v2601
    %v3539 = vunpack.c.h.b16 %v2601
    %v3540 = vunpack.c.l.b16 %v2602
    %v3541 = vunpack.c.h.b16 %v2602
    %v3542 = vunpack.c.l.b16 %v2603
    %v3543 = vunpack.c.h.b16 %v2603
    %v3544 = vunpack.c.l.b16 %v2604
    %v3545 = vunpack.c.h.b16 %v2604
    %v3546 = vunpack.c.l.b16 %v2605
    %v3547 = vunpack.c.h.b16 %v2605
    %v3548 = vunpack.c.l.b16 %v2606
    %v3549 = vunpack.c.h.b16 %v2606
    %v3550 = vunpack.c.l.b16 %v2607
    %v3551 = vunpack.c.h.b16 %v2607
    %v3552 = vunpack.c.l.b16 %v2608
    %v3553 = vunpack.c.h.b16 %v2608
    %v3554 = vunpack.c.l.b16 %v2609
    %v3555 = vunpack.c.h.b16 %v2609
    %v3556 = vunpack.c.l.b16 %v2610
    %v3557 = vunpack.c.h.b16 %v2610
    %v3558 = vunpack.c.l.b16 %v2611
    %v3559 = vunpack.c.h.b16 %v2611
    %v3560 = vunpack.c.l.b16 %v2612
    %v3561 = vunpack.c.h.b16 %v2612
    %v3562 = vunpack.c.l.b16 %v2613
    %v3563 = vunpack.c.h.b16 %v2613
    %v3564 = vunpack.c.l.b16 %v2614
    %v3565 = vunpack.c.h.b16 %v2614
    %v3566 = vunpack.c.l.b16 %v2615
    %v3567 = vunpack.c.h.b16 %v2615
    %v3568 = vunpack.c.l.b16 %v2616
    %v3569 = vunpack.c.h.b16 %v2616
    %v3570 = vunpack.c.l.b16 %v2617
    %v3571 = vunpack.c.h.b16 %v2617
    %v3572 = vunpack.c.l.b16 %v2618
    %v3573 = vunpack.c.h.b16 %v2618
    %v3574 = vunpack.c.l.b16 %v2619
    %v3575 = vunpack.c.h.b16 %v2619
    %v3576 = vunpack.c.l.b16 %v2620
    %v3577 = vunpack.c.h.b16 %v2620
    %v3578 = vunpack.c.l.b16 %v2621
    %v3579 = vunpack.c.h.b16 %v2621
    %v3580 = vpack.c.b16 %v3328, %v3324
    %v3581 = vpack.c.b16 %v3329, %v3325
    %v3582 = vpack.c.b16 %v3330, %v3326
    %v3583 = vpack.c.b16 %v3331, %v3327
    %v3584 = vpack.c.b16 %v3336, %v3332
    %v3585 = vpack.c.b16 %v3337, %v3333
    %v3586 = vpack.c.b16 %v3338, %v3334
    %v3587 = vpack.c.b16 %v3339, %v3335
    %v3588 = vpack.c.b16 %v3344, %v3340
    %v3589 = vpack.c.b16 %v3345, %v3341
    %v3590 = vpack.c.b16 %v3346, %v3342
    %v3591 = vpack.c.b16 %v3347, %v3343
    %v3592 = vpack.c.b16 %v3352, %v3348
    %v3593 = vpack.c.b16 %v3353, %v3349
    %v3594 = vpack.c.b16 %v3354, %v3350
    %v3595 = vpack.c.b16 %v3355, %v3351
    %v3596 = vpack.c.b16 %v3360, %v3356
    %v3597 = vpack.c.b16 %v3361, %v3357
    %v3598 = vpack.c.b16 %v3362, %v3358
    %v3599 = vpack.c.b16 %v3363, %v3359
    %v3600 = vpack.c.b16 %v3368, %v3364
    %v3601 = vpack.c.b16 %v3369, %v3365
    %v3602 = vpack.c.b16 %v3370, %v3366
    %v3603 = vpack.c.b16 %v3371, %v3367
    %v3604 = vpack.c.b16 %v3376, %v3372
    %v3605 = vpack.c.b16 %v3377, %v3373
    %v3606 = vpack.c.b16 %v3378, %v3374
    %v3607 = vpack.c.b16 %v3379, %v3375
    %v3608 = vpack.c.b16 %v3384, %v3380
    %v3609 = vpack.c.b16 %v3385, %v3381
    %v3610 = vpack.c.b16 %v3386, %v3382
    %v3611 = vpack.c.b16 %v3387, %v3383
    %v3612 = vpack.c.b16 %v3392, %v3388
    %v3613 = vpack.c.b16 %v3393, %v3389
    %v3614 = vpack.c.b16 %v3394, %v3390
    %v3615 = vpack.c.b16 %v3395, %v3391
    %v3616 = vpack.c.b16 %v3400, %v3396
    %v3617 = vpack.c.b16 %v3401, %v3397
    %v3618 = vpack.c.b16 %v3402, %v3398
    %v3619 = vpack.c.b16 %v3403, %v3399
    %v3620 = vpack.c.b16 %v3408, %v3404
    %v3621 = vpack.c.b16 %v3409, %v3405
    %v3622 = vpack.c.b16 %v3410, %v3406
    %v3623 = vpack.c.b16 %v3411, %v3407
    %v3624 = vpack.c.b16 %v3416, %v3412
    %v3625 = vpack.c.b16 %v3417, %v3413
    %v3626 = vpack.c.b16 %v3418, %v3414
    %v3627 = vpack.c.b16 %v3419, %v3415
    %v3628 = vpack.c.b16 %v3424, %v3420
    %v3629 = vpack.c.b16 %v3425, %v3421
    %v3630 = vpack.c.b16 %v3426, %v3422
    %v3631 = vpack.c.b16 %v3427, %v3423
    %v3632 = vpack.c.b16 %v3432, %v3428
    %v3633 = vpack.c.b16 %v3433, %v3429
    %v3634 = vpack.c.b16 %v3434, %v3430
    %v3635 = vpack.c.b16 %v3435, %v3431
    %v3636 = vpack.c.b16 %v3440, %v3436
    %v3637 = vpack.c.b16 %v3441, %v3437
    %v3638 = vpack.c.b16 %v3442, %v3438
    %v3639 = vpack.c.b16 %v3443, %v3439
    %v3640 = vpack.c.b16 %v3448, %v3444
    %v3641 = vpack.c.b16 %v3449, %v3445
    %v3642 = vpack.c.b16 %v3450, %v3446
    %v3643 = vpack.c.b16 %v3451, %v3447
    %v3644 = vpack.c.b16 %v3456, %v3452
    %v3645 = vpack.c.b16 %v3457, %v3453
    %v3646 = vpack.c.b16 %v3458, %v3454
    %v3647 = vpack.c.b16 %v3459, %v3455
    %v3648 = vpack.c.b16 %v3464, %v3460
    %v3649 = vpack.c.b16 %v3465, %v3461
    %v3650 = vpack.c.b16 %v3466, %v3462
    %v3651 = vpack.c.b16 %v3467, %v3463
    %v3652 = vpack.c.b16 %v3472, %v3468
    %v3653 = vpack.c.b16 %v3473, %v3469
    %v3654 = vpack.c.b16 %v3474, %v3470
    %v3655 = vpack.c.b16 %v3475, %v3471
    %v3656 = vpack.c.b16 %v3480, %v3476
    %v3657 = vpack.c.b16 %v3481, %v3477
    %v3658 = vpack.c.b16 %v3482, %v3478
    %v3659 = vpack.c.b16 %v3483, %v3479
    %v3660 = vpack.c.b16 %v3488, %v3484
    %v3661 = vpack.c.b16 %v3489, %v3485
    %v3662 = vpack.c.b16 %v3490, %v3486
    %v3663 = vpack.c.b16 %v3491, %v3487
    %v3664 = vpack.c.b16 %v3496, %v3492
    %v3665 = vpack.c.b16 %v3497, %v3493
    %v3666 = vpack.c.b16 %v3498, %v3494
    %v3667 = vpack.c.b16 %v3499, %v3495
    %v3668 = vpack.c.b16 %v3504, %v3500
    %v3669 = vpack.c.b16 %v3505, %v3501
    %v3670 = vpack.c.b16 %v3506, %v3502
    %v3671 = vpack.c.b16 %v3507, %v3503
    %v3672 = vpack.c.b16 %v3512, %v3508
    %v3673 = vpack.c.b16 %v3513, %v3509
    %v3674 = vpack.c.b16 %v3514, %v3510
    %v3675 = vpack.c.b16 %v3515, %v3511
    %v3676 = vpack.c.b16 %v3520, %v3516
    %v3677 = vpack.c.b16 %v3521, %v3517
    %v3678 = vpack.c.b16 %v3522, %v3518
    %v3679 = vpack.c.b16 %v3523, %v3519
    %v3680 = vpack.c.b16 %v3528, %v3524
    %v3681 = vpack.c.b16 %v3529, %v3525
    %v3682 = vpack.c.b16 %v3530, %v3526
    %v3683 = vpack.c.b16 %v3531, %v3527
    %v3684 = vpack.c.b16 %v3536, %v3532
    %v3685 = vpack.c.b16 %v3537, %v3533
    %v3686 = vpack.c.b16 %v3538, %v3534
    %v3687 = vpack.c.b16 %v3539, %v3535
    %v3688 = vpack.c.b16 %v3544, %v3540
    %v3689 = vpack.c.b16 %v3545, %v3541
    %v3690 = vpack.c.b16 %v3546, %v3542
    %v3691 = vpack.c.b16 %v3547, %v3543
    %v3692 = vpack.c.b16 %v3552, %v3548
    %v3693 = vpack.c.b16 %v3553, %v3549
    %v3694 = vpack.c.b16 %v3554, %v3550
    %v3695 = vpack.c.b16 %v3555, %v3551
    %v3696 = vpack.c.b16 %v3560, %v3556
    %v3697 = vpack.c.b16 %v3561, %v3557
    %v3698 = vpack.c.b16 %v3562, %v3558
    %v3699 = vpack.c.b16 %v3563, %v3559
    %v3700 = vpack.c.b16 %v3568, %v3564
    %v3701 = vpack.c.b16 %v3569, %v3565
    %v3702 = vpack.c.b16 %v3570, %v3566
    %v3703 = vpack.c.b16 %v3571, %v3567
    %v3704 = vpack.c.b16 %v3576, %v3572
    %v3705 = vpack.c.b16 %v3577, %v3573
    %v3706 = vpack.c.b16 %v3578, %v3574
    %v3707 = vpack.c.b16 %v3579, %v3575
    %3836 = vmatprep.subr.bf16.mxu0 %v3609
    %3837 = vmatpush1.bf16.msra.mxu0 %v3608
    %3838 = vmatprep.subr.bf16.mxu0 %v3605
    %3839 = vmatpush1.bf16.msra.mxu0 %v3604
    %3840 = vmatprep.subr.bf16.mxu0 %v3601
    %3841 = vmatpush1.bf16.msra.mxu0 %v3600
    %3842 = vmatprep.subr.bf16.mxu0 %v3597
    %3843 = vmatpush1.bf16.msra.mxu0 %v3596
    %3844 = vmatprep.subr.bf16.mxu0 %v3593
    %3845 = vmatpush1.bf16.msra.mxu0 %v3592
    %3846 = vmatprep.subr.bf16.mxu0 %v3589
    %3847 = vmatpush1.bf16.msra.mxu0 %v3588
    %3848 = vmatprep.subr.bf16.mxu0 %v3585
    %3849 = vmatpush1.bf16.msra.mxu0 %v3584
    %3850 = vmatprep.subr.bf16.mxu0 %v3581
    %3851 = vmatpush1.bf16.msra.mxu0 %v3580
    %3852 = vmatprep.subr.bf16.mxu0 %v3641
    %3853 = vmatpush2.bf16.msra.mxu0 %v3640
    %3854 = vmatprep.subr.bf16.mxu0 %v3637
    %3855 = vmatpush2.bf16.msra.mxu0 %v3636
    %3856 = vmatprep.subr.bf16.mxu0 %v3633
    %3857 = vmatpush2.bf16.msra.mxu0 %v3632
    %3858 = vmatprep.subr.bf16.mxu0 %v3629
    %3859 = vmatpush2.bf16.msra.mxu0 %v3628
    %3860 = vmatprep.subr.bf16.mxu0 %v3625
    %3861 = vmatpush2.bf16.msra.mxu0 %v3624
    %3862 = vmatprep.subr.bf16.mxu0 %v3621
    %3863 = vmatpush2.bf16.msra.mxu0 %v3620
    %3864 = vmatprep.subr.bf16.mxu0 %v3617
    %3865 = vmatpush2.bf16.msra.mxu0 %v3616
    %3866 = vmatprep.subr.bf16.mxu0 %v3613
    %3867 = vmatpush2.bf16.msra.mxu0 %v3612
    %3868 = vmatprep.mubr.bf16.mxu0 %v3159
    %3869 = vmatmul.mubr.bf16.gmra.mxu0 %v3158
    %v3870 = vpop.f32.mrf.mxu0
    %v3871 = vadd.f32 %v3179, %v3870
    %v3872 = vpop.f32.mrf.mxu0
    %v3873 = vadd.f32 %v3183, %v3872
    %v3874 = vpop.f32.mrf.mxu0
    %v3875 = vadd.f32 %v3179, %v3874
    %v3876 = vpop.f32.mrf.mxu0
    %v3877 = vadd.f32 %v3183, %v3876
    %3878 = vmatprep.mubr.bf16.mxu0 %v3163
    %3879 = vmatmul.mubr.bf16.gmra.mxu0 %v3162
    %v3880 = vpop.f32.mrf.mxu0
    %v3881 = vadd.f32 %v3179, %v3880
    %v3882 = vpop.f32.mrf.mxu0
    %v3883 = vadd.f32 %v3183, %v3882
    %v3884 = vpop.f32.mrf.mxu0
    %v3885 = vadd.f32 %v3179, %v3884
    %v3886 = vpop.f32.mrf.mxu0
    %v3887 = vadd.f32 %v3183, %v3886
    %3888 = vmatprep.mubr.bf16.mxu0 %v3167
    %3889 = vmatmul.mubr.bf16.gmra.mxu0 %v3166
    %v3890 = vpop.f32.mrf.mxu0
    %v3891 = vadd.f32 %v3179, %v3890
    %v3892 = vpop.f32.mrf.mxu0
    %v3893 = vadd.f32 %v3183, %v3892
    %v3894 = vpop.f32.mrf.mxu0
    %v3895 = vadd.f32 %v3179, %v3894
    %v3896 = vpop.f32.mrf.mxu0
    %v3897 = vadd.f32 %v3183, %v3896
    %3898 = vmatprep.mubr.bf16.mxu0 %v3171
    %3899 = vmatmul.mubr.bf16.gmra.mxu0 %v3170
    %v3900 = vpop.f32.mrf.mxu0
    %v3901 = vadd.f32 %v3179, %v3900
    %v3902 = vpop.f32.mrf.mxu0
    %v3903 = vadd.f32 %v3183, %v3902
    %v3904 = vpop.f32.mrf.mxu0
    %v3905 = vadd.f32 %v3179, %v3904
    %v3906 = vpop.f32.mrf.mxu0
    %v3907 = vadd.f32 %v3183, %v3906
    %3908 = vdwg.mxu0
    %3909 = vmatprep.subr.bf16.mxu0 %v3673
    %3910 = vmatpush1.bf16.msra.mxu0 %v3672
    %3911 = vmatprep.subr.bf16.mxu0 %v3669
    %3912 = vmatpush1.bf16.msra.mxu0 %v3668
    %3913 = vmatprep.subr.bf16.mxu0 %v3665
    %3914 = vmatpush1.bf16.msra.mxu0 %v3664
    %3915 = vmatprep.subr.bf16.mxu0 %v3661
    %3916 = vmatpush1.bf16.msra.mxu0 %v3660
    %3917 = vmatprep.subr.bf16.mxu0 %v3657
    %3918 = vmatpush1.bf16.msra.mxu0 %v3656
    %3919 = vmatprep.subr.bf16.mxu0 %v3653
    %3920 = vmatpush1.bf16.msra.mxu0 %v3652
    %3921 = vmatprep.subr.bf16.mxu0 %v3649
    %3922 = vmatpush1.bf16.msra.mxu0 %v3648
    %3923 = vmatprep.subr.bf16.mxu0 %v3645
    %3924 = vmatpush1.bf16.msra.mxu0 %v3644
    %3925 = vmatprep.subr.bf16.mxu0 %v3705
    %3926 = vmatpush2.bf16.msra.mxu0 %v3704
    %3927 = vmatprep.subr.bf16.mxu0 %v3701
    %3928 = vmatpush2.bf16.msra.mxu0 %v3700
    %3929 = vmatprep.subr.bf16.mxu0 %v3697
    %3930 = vmatpush2.bf16.msra.mxu0 %v3696
    %3931 = vmatprep.subr.bf16.mxu0 %v3693
    %3932 = vmatpush2.bf16.msra.mxu0 %v3692
    %3933 = vmatprep.subr.bf16.mxu0 %v3689
    %3934 = vmatpush2.bf16.msra.mxu0 %v3688
    %3935 = vmatprep.subr.bf16.mxu0 %v3685
    %3936 = vmatpush2.bf16.msra.mxu0 %v3684
    %3937 = vmatprep.subr.bf16.mxu0 %v3681
    %3938 = vmatpush2.bf16.msra.mxu0 %v3680
    %3939 = vmatprep.subr.bf16.mxu0 %v3677
    %3940 = vmatpush2.bf16.msra.mxu0 %v3676
    %3941 = vmatprep.mubr.bf16.mxu0 %v3161
    %3942 = vmatmul.mubr.bf16.gmra.mxu0 %v3160
    %v3943 = vpop.f32.mrf.mxu0
    %v3944 = vadd.f32 %v3871, %v3943
    %v3945 = vpop.f32.mrf.mxu0
    %v3946 = vadd.f32 %v3873, %v3945
    %v3947 = vpop.f32.mrf.mxu0
    %v3948 = vadd.f32 %v3875, %v3947
    %v3949 = vpop.f32.mrf.mxu0
    %v3950 = vadd.f32 %v3877, %v3949
    %3951 = vmatprep.mubr.bf16.mxu0 %v3165
    %3952 = vmatmul.mubr.bf16.gmra.mxu0 %v3164
    %v3953 = vpop.f32.mrf.mxu0
    %v3954 = vadd.f32 %v3881, %v3953
    %v3955 = vpop.f32.mrf.mxu0
    %v3956 = vadd.f32 %v3883, %v3955
    %v3957 = vpop.f32.mrf.mxu0
    %v3958 = vadd.f32 %v3885, %v3957
    %v3959 = vpop.f32.mrf.mxu0
    %v3960 = vadd.f32 %v3887, %v3959
    %3961 = vmatprep.mubr.bf16.mxu0 %v3169
    %3962 = vmatmul.mubr.bf16.gmra.mxu0 %v3168
    %v3963 = vpop.f32.mrf.mxu0
    %v3964 = vadd.f32 %v3891, %v3963
    %v3965 = vpop.f32.mrf.mxu0
    %v3966 = vadd.f32 %v3893, %v3965
    %v3967 = vpop.f32.mrf.mxu0
    %v3968 = vadd.f32 %v3895, %v3967
    %v3969 = vpop.f32.mrf.mxu0
    %v3970 = vadd.f32 %v3897, %v3969
    %3971 = vmatprep.mubr.bf16.mxu0 %v3173
    %3972 = vmatmul.mubr.bf16.gmra.mxu0 %v3172
    %v3973 = vpop.f32.mrf.mxu0
    %v3974 = vadd.f32 %v3901, %v3973
    %v3975 = vpop.f32.mrf.mxu0
    %v3976 = vadd.f32 %v3903, %v3975
    %v3977 = vpop.f32.mrf.mxu0
    %v3978 = vadd.f32 %v3905, %v3977
    %v3979 = vpop.f32.mrf.mxu0
    %v3980 = vadd.f32 %v3907, %v3979
    %3981 = vdwg.mxu0
    %3982 = vmatprep.subr.bf16.mxu0 %v3611
    %3983 = vmatpush1.bf16.msra.mxu0 %v3610
    %3984 = vmatprep.subr.bf16.mxu0 %v3607
    %3985 = vmatpush1.bf16.msra.mxu0 %v3606
    %3986 = vmatprep.subr.bf16.mxu0 %v3603
    %3987 = vmatpush1.bf16.msra.mxu0 %v3602
    %3988 = vmatprep.subr.bf16.mxu0 %v3599
    %3989 = vmatpush1.bf16.msra.mxu0 %v3598
    %3990 = vmatprep.subr.bf16.mxu0 %v3595
    %3991 = vmatpush1.bf16.msra.mxu0 %v3594
    %3992 = vmatprep.subr.bf16.mxu0 %v3591
    %3993 = vmatpush1.bf16.msra.mxu0 %v3590
    %3994 = vmatprep.subr.bf16.mxu0 %v3587
    %3995 = vmatpush1.bf16.msra.mxu0 %v3586
    %3996 = vmatprep.subr.bf16.mxu0 %v3583
    %3997 = vmatpush1.bf16.msra.mxu0 %v3582
    %3998 = vmatprep.subr.bf16.mxu0 %v3643
    %3999 = vmatpush2.bf16.msra.mxu0 %v3642
    %4000 = vmatprep.subr.bf16.mxu0 %v3639
    %4001 = vmatpush2.bf16.msra.mxu0 %v3638
    %4002 = vmatprep.subr.bf16.mxu0 %v3635
    %4003 = vmatpush2.bf16.msra.mxu0 %v3634
    %4004 = vmatprep.subr.bf16.mxu0 %v3631
    %4005 = vmatpush2.bf16.msra.mxu0 %v3630
    %4006 = vmatprep.subr.bf16.mxu0 %v3627
    %4007 = vmatpush2.bf16.msra.mxu0 %v3626
    %4008 = vmatprep.subr.bf16.mxu0 %v3623
    %4009 = vmatpush2.bf16.msra.mxu0 %v3622
    %4010 = vmatprep.subr.bf16.mxu0 %v3619
    %4011 = vmatpush2.bf16.msra.mxu0 %v3618
    %4012 = vmatprep.subr.bf16.mxu0 %v3615
    %4013 = vmatpush2.bf16.msra.mxu0 %v3614
    %4014 = vmatprep.mubr.bf16.mxu0 %v3159
    %4015 = vmatmul.mubr.bf16.gmra.mxu0 %v3158
    %v4016 = vpop.f32.mrf.mxu0
    %v4017 = vadd.f32 %v3187, %v4016
    %v4018 = vpop.f32.mrf.mxu0
    %v4019 = vadd.f32 %v3191, %v4018
    %v4020 = vpop.f32.mrf.mxu0
    %v4021 = vadd.f32 %v3187, %v4020
    %v4022 = vpop.f32.mrf.mxu0
    %v4023 = vadd.f32 %v3191, %v4022
    %4024 = vmatprep.mubr.bf16.mxu0 %v3163
    %4025 = vmatmul.mubr.bf16.gmra.mxu0 %v3162
    %v4026 = vpop.f32.mrf.mxu0
    %v4027 = vadd.f32 %v3187, %v4026
    %v4028 = vpop.f32.mrf.mxu0
    %v4029 = vadd.f32 %v3191, %v4028
    %v4030 = vpop.f32.mrf.mxu0
    %v4031 = vadd.f32 %v3187, %v4030
    %v4032 = vpop.f32.mrf.mxu0
    %v4033 = vadd.f32 %v3191, %v4032
    %4034 = vmatprep.mubr.bf16.mxu0 %v3167
    %4035 = vmatmul.mubr.bf16.gmra.mxu0 %v3166
    %v4036 = vpop.f32.mrf.mxu0
    %v4037 = vadd.f32 %v3187, %v4036
    %v4038 = vpop.f32.mrf.mxu0
    %v4039 = vadd.f32 %v3191, %v4038
    %v4040 = vpop.f32.mrf.mxu0
    %v4041 = vadd.f32 %v3187, %v4040
    %v4042 = vpop.f32.mrf.mxu0
    %v4043 = vadd.f32 %v3191, %v4042
    %4044 = vmatprep.mubr.bf16.mxu0 %v3171
    %4045 = vmatmul.mubr.bf16.gmra.mxu0 %v3170
    %v4046 = vpop.f32.mrf.mxu0
    %v4047 = vadd.f32 %v3187, %v4046
    %v4048 = vpop.f32.mrf.mxu0
    %v4049 = vadd.f32 %v3191, %v4048
    %v4050 = vpop.f32.mrf.mxu0
    %v4051 = vadd.f32 %v3187, %v4050
    %v4052 = vpop.f32.mrf.mxu0
    %v4053 = vadd.f32 %v3191, %v4052
    %4054 = vdwg.mxu0
    %4055 = vmatprep.subr.bf16.mxu0 %v3675
    %4056 = vmatpush1.bf16.msra.mxu0 %v3674
    %4057 = vmatprep.subr.bf16.mxu0 %v3671
    %4058 = vmatpush1.bf16.msra.mxu0 %v3670
    %4059 = vmatprep.subr.bf16.mxu0 %v3667
    %4060 = vmatpush1.bf16.msra.mxu0 %v3666
    %4061 = vmatprep.subr.bf16.mxu0 %v3663
    %4062 = vmatpush1.bf16.msra.mxu0 %v3662
    %4063 = vmatprep.subr.bf16.mxu0 %v3659
    %4064 = vmatpush1.bf16.msra.mxu0 %v3658
    %4065 = vmatprep.subr.bf16.mxu0 %v3655
    %4066 = vmatpush1.bf16.msra.mxu0 %v3654
    %4067 = vmatprep.subr.bf16.mxu0 %v3651
    %4068 = vmatpush1.bf16.msra.mxu0 %v3650
    %4069 = vmatprep.subr.bf16.mxu0 %v3647
    %4070 = vmatpush1.bf16.msra.mxu0 %v3646
    %4071 = vmatprep.subr.bf16.mxu0 %v3707
    %4072 = vmatpush2.bf16.msra.mxu0 %v3706
    %4073 = vmatprep.subr.bf16.mxu0 %v3703
    %4074 = vmatpush2.bf16.msra.mxu0 %v3702
    %4075 = vmatprep.subr.bf16.mxu0 %v3699
    %4076 = vmatpush2.bf16.msra.mxu0 %v3698
    %4077 = vmatprep.subr.bf16.mxu0 %v3695
    %4078 = vmatpush2.bf16.msra.mxu0 %v3694
    %4079 = vmatprep.subr.bf16.mxu0 %v3691
    %4080 = vmatpush2.bf16.msra.mxu0 %v3690
    %4081 = vmatprep.subr.bf16.mxu0 %v3687
    %4082 = vmatpush2.bf16.msra.mxu0 %v3686
    %4083 = vmatprep.subr.bf16.mxu0 %v3683
    %4084 = vmatpush2.bf16.msra.mxu0 %v3682
    %4085 = vmatprep.subr.bf16.mxu0 %v3679
    %4086 = vmatpush2.bf16.msra.mxu0 %v3678
    %4087 = vmatprep.mubr.bf16.mxu0 %v3161
    %4088 = vmatmul.mubr.bf16.gmra.mxu0 %v3160
    %v4089 = vpop.f32.mrf.mxu0
    %v4090 = vadd.f32 %v4017, %v4089
    %v4091 = vpop.f32.mrf.mxu0
    %v4092 = vadd.f32 %v4019, %v4091
    %v4093 = vpop.f32.mrf.mxu0
    %v4094 = vadd.f32 %v4021, %v4093
    %v4095 = vpop.f32.mrf.mxu0
    %v4096 = vadd.f32 %v4023, %v4095
    %4097 = vmatprep.mubr.bf16.mxu0 %v3165
    %4098 = vmatmul.mubr.bf16.gmra.mxu0 %v3164
    %v4099 = vpop.f32.mrf.mxu0
    %v4100 = vadd.f32 %v4027, %v4099
    %v4101 = vpop.f32.mrf.mxu0
    %v4102 = vadd.f32 %v4029, %v4101
    %v4103 = vpop.f32.mrf.mxu0
    %v4104 = vadd.f32 %v4031, %v4103
    %v4105 = vpop.f32.mrf.mxu0
    %v4106 = vadd.f32 %v4033, %v4105
    %4107 = vmatprep.mubr.bf16.mxu0 %v3169
    %4108 = vmatmul.mubr.bf16.gmra.mxu0 %v3168
    %v4109 = vpop.f32.mrf.mxu0
    %v4110 = vadd.f32 %v4037, %v4109
    %v4111 = vpop.f32.mrf.mxu0
    %v4112 = vadd.f32 %v4039, %v4111
    %v4113 = vpop.f32.mrf.mxu0
    %v4114 = vadd.f32 %v4041, %v4113
    %v4115 = vpop.f32.mrf.mxu0
    %v4116 = vadd.f32 %v4043, %v4115
    %4117 = vmatprep.mubr.bf16.mxu0 %v3173
    %4118 = vmatmul.mubr.bf16.gmra.mxu0 %v3172
    %v4119 = vpop.f32.mrf.mxu0
    %v4120 = vadd.f32 %v4047, %v4119
    %v4121 = vpop.f32.mrf.mxu0
    %v4122 = vadd.f32 %v4049, %v4121
    %v4123 = vpop.f32.mrf.mxu0
    %v4124 = vadd.f32 %v4051, %v4123
    %v4125 = vpop.f32.mrf.mxu0
    %v4126 = vadd.f32 %v4053, %v4125
    %4127 = vdwg.mxu0
    %v4128 = vmax.f32 %v3944, 0.0
    %v4129 = vmax.f32 %v3946, 0.0
    %v4130 = vmax.f32 %v4090, 0.0
    %v4131 = vmax.f32 %v4092, 0.0
    %v4132 = vmax.f32 %v3948, 0.0
    %v4133 = vmax.f32 %v3950, 0.0
    %v4134 = vmax.f32 %v4094, 0.0
    %v4135 = vmax.f32 %v4096, 0.0
    %v4136 = vmax.f32 %v3954, 0.0
    %v4137 = vmax.f32 %v3956, 0.0
    %v4138 = vmax.f32 %v4100, 0.0
    %v4139 = vmax.f32 %v4102, 0.0
    %v4140 = vmax.f32 %v3958, 0.0
    %v4141 = vmax.f32 %v3960, 0.0
    %v4142 = vmax.f32 %v4104, 0.0
    %v4143 = vmax.f32 %v4106, 0.0
    %v4144 = vmax.f32 %v3964, 0.0
    %v4145 = vmax.f32 %v3966, 0.0
    %v4146 = vmax.f32 %v4110, 0.0
    %v4147 = vmax.f32 %v4112, 0.0
    %v4148 = vmax.f32 %v3968, 0.0
    %v4149 = vmax.f32 %v3970, 0.0
    %v4150 = vmax.f32 %v4114, 0.0
    %v4151 = vmax.f32 %v4116, 0.0
    %v4152 = vmax.f32 %v3974, 0.0
    %v4153 = vmax.f32 %v3976, 0.0
    %v4154 = vmax.f32 %v4120, 0.0
    %v4155 = vmax.f32 %v4122, 0.0
    %v4156 = vmax.f32 %v3978, 0.0
    %v4157 = vmax.f32 %v3980, 0.0
    %v4158 = vmax.f32 %v4124, 0.0
    %v4159 = vmax.f32 %v4126, 0.0
    %v4160 = vpack.c.bf16 %v4132, %v4128
    %v4161 = vpack.c.bf16 %v4133, %v4129
    %v4162 = vpack.c.bf16 %v4134, %v4130
    %v4163 = vpack.c.bf16 %v4135, %v4131
    %v4164 = vpack.c.bf16 %v4140, %v4136
    %v4165 = vpack.c.bf16 %v4141, %v4137
    %v4166 = vpack.c.bf16 %v4142, %v4138
    %v4167 = vpack.c.bf16 %v4143, %v4139
    %v4168 = vpack.c.bf16 %v4148, %v4144
    %v4169 = vpack.c.bf16 %v4149, %v4145
    %v4170 = vpack.c.bf16 %v4150, %v4146
    %v4171 = vpack.c.bf16 %v4151, %v4147
    %v4172 = vpack.c.bf16 %v4156, %v4152
    %v4173 = vpack.c.bf16 %v4157, %v4153
    %v4174 = vpack.c.bf16 %v4158, %v4154
    %v4175 = vpack.c.bf16 %v4159, %v4155
    %v4176 = vld [vmem:[%s11] sm:$0xf]
    %v4177 = vld [vmem:[%s11 + $0x4] sm:$0xf]
    %v4178 = vld [vmem:[%s11 + $0x8] sm:$0xf]
    %v4179 = vld [vmem:[%s11 + $0xc] sm:$0xf]
    %v4180 = vld [vmem:[%s11 + $0x10] sm:$0xf]
    %v4181 = vld [vmem:[%s11 + $0x14] sm:$0xf]
    %v4182 = vld [vmem:[%s11 + $0x18] sm:$0xf]
    %v4183 = vld [vmem:[%s11 + $0x1c] sm:$0xf]
    %v4184 = vld [vmem:[%s11 + $0x20] sm:$0xf]
    %v4185 = vld [vmem:[%s11 + $0x24] sm:$0xf]
    %v4186 = vld [vmem:[%s11 + $0x28] sm:$0xf]
    %v4187 = vld [vmem:[%s11 + $0x2c] sm:$0xf]
    %v4188 = vld [vmem:[%s11 + $0x30] sm:$0xf]
    %v4189 = vld [vmem:[%s11 + $0x34] sm:$0xf]
    %v4190 = vld [vmem:[%s11 + $0x38] sm:$0xf]
    %v4191 = vld [vmem:[%s11 + $0x3c] sm:$0xf]
    %v4192 = vld [vmem:[%s11 + $0x40] sm:$0xf]
    %v4193 = vld [vmem:[%s11 + $0x44] sm:$0xf]
    %v4194 = vld [vmem:[%s11 + $0x48] sm:$0xf]
    %v4195 = vld [vmem:[%s11 + $0x4c] sm:$0xf]
    %v4196 = vld [vmem:[%s11 + $0x50] sm:$0xf]
    %v4197 = vld [vmem:[%s11 + $0x54] sm:$0xf]
    %v4198 = vld [vmem:[%s11 + $0x58] sm:$0xf]
    %v4199 = vld [vmem:[%s11 + $0x5c] sm:$0xf]
    %v4200 = vld [vmem:[%s11 + $0x60] sm:$0xf]
    %v4201 = vld [vmem:[%s11 + $0x64] sm:$0xf]
    %v4202 = vld [vmem:[%s11 + $0x68] sm:$0xf]
    %v4203 = vld [vmem:[%s11 + $0x6c] sm:$0xf]
    %v4204 = vld [vmem:[%s11 + $0x70] sm:$0xf]
    %v4205 = vld [vmem:[%s11 + $0x74] sm:$0xf]
    %v4206 = vld [vmem:[%s11 + $0x78] sm:$0xf]
    %v4207 = vld [vmem:[%s11 + $0x7c] sm:$0xf]
    %v4208 = vld [vmem:[%s11 + $0x80] sm:$0xf]
    %v4209 = vld [vmem:[%s11 + $0x84] sm:$0xf]
    %v4210 = vld [vmem:[%s11 + $0x88] sm:$0xf]
    %v4211 = vld [vmem:[%s11 + $0x8c] sm:$0xf]
    %v4212 = vld [vmem:[%s11 + $0x90] sm:$0xf]
    %v4213 = vld [vmem:[%s11 + $0x94] sm:$0xf]
    %v4214 = vld [vmem:[%s11 + $0x98] sm:$0xf]
    %v4215 = vld [vmem:[%s11 + $0x9c] sm:$0xf]
    %v4216 = vld [vmem:[%s11 + $0xa0] sm:$0xf]
    %v4217 = vld [vmem:[%s11 + $0xa4] sm:$0xf]
    %v4218 = vld [vmem:[%s11 + $0xa8] sm:$0xf]
    %v4219 = vld [vmem:[%s11 + $0xac] sm:$0xf]
    %v4220 = vld [vmem:[%s11 + $0xb0] sm:$0xf]
    %v4221 = vld [vmem:[%s11 + $0xb4] sm:$0xf]
    %v4222 = vld [vmem:[%s11 + $0xb8] sm:$0xf]
    %v4223 = vld [vmem:[%s11 + $0xbc] sm:$0xf]
    %v4224 = vld [vmem:[%s11 + $0xc0] sm:$0xf]
    %v4225 = vld [vmem:[%s11 + $0xc4] sm:$0xf]
    %v4226 = vld [vmem:[%s11 + $0xc8] sm:$0xf]
    %v4227 = vld [vmem:[%s11 + $0xcc] sm:$0xf]
    %v4228 = vld [vmem:[%s11 + $0xd0] sm:$0xf]
    %v4229 = vld [vmem:[%s11 + $0xd4] sm:$0xf]
    %v4230 = vld [vmem:[%s11 + $0xd8] sm:$0xf]
    %v4231 = vld [vmem:[%s11 + $0xdc] sm:$0xf]
    %v4232 = vld [vmem:[%s11 + $0xe0] sm:$0xf]
    %v4233 = vld [vmem:[%s11 + $0xe4] sm:$0xf]
    %v4234 = vld [vmem:[%s11 + $0xe8] sm:$0xf]
    %v4235 = vld [vmem:[%s11 + $0xec] sm:$0xf]
    %v4236 = vld [vmem:[%s11 + $0xf0] sm:$0xf]
    %v4237 = vld [vmem:[%s11 + $0xf4] sm:$0xf]
    %v4238 = vld [vmem:[%s11 + $0xf8] sm:$0xf]
    %v4239 = vld [vmem:[%s11 + $0xfc] sm:$0xf]
    %v4240 = vld [vmem:[#allocation22] sm:$0x1]
    %v4242 = vlaneseq
    %v4243 = vshrl.u32 %v4242, 7
    %v4244 = vsub.s32 0, %v4243
    %v4245 = vrot.slane %v4240, %v4244
    %v4311 = vunpack.c.l.b16 %v4176
    %v4312 = vunpack.c.l.b16 %v4177
    %v4313 = vunpack.c.l.b16 %v4178
    %v4314 = vunpack.c.l.b16 %v4179
    %v4315 = vunpack.c.l.b16 %v4180
    %v4316 = vunpack.c.l.b16 %v4181
    %v4317 = vunpack.c.l.b16 %v4182
    %v4318 = vunpack.c.l.b16 %v4183
    %v4319 = vunpack.c.l.b16 %v4184
    %v4320 = vunpack.c.l.b16 %v4185
    %v4321 = vunpack.c.l.b16 %v4186
    %v4322 = vunpack.c.l.b16 %v4187
    %v4323 = vunpack.c.l.b16 %v4188
    %v4324 = vunpack.c.l.b16 %v4189
    %v4325 = vunpack.c.l.b16 %v4190
    %v4326 = vunpack.c.l.b16 %v4191
    %v4327 = vunpack.c.l.b16 %v4192
    %v4328 = vunpack.c.l.b16 %v4193
    %v4329 = vunpack.c.l.b16 %v4194
    %v4330 = vunpack.c.l.b16 %v4195
    %v4331 = vunpack.c.l.b16 %v4196
    %v4332 = vunpack.c.l.b16 %v4197
    %v4333 = vunpack.c.l.b16 %v4198
    %v4334 = vunpack.c.l.b16 %v4199
    %v4335 = vunpack.c.l.b16 %v4200
    %v4336 = vunpack.c.l.b16 %v4201
    %v4337 = vunpack.c.l.b16 %v4202
    %v4338 = vunpack.c.l.b16 %v4203
    %v4339 = vunpack.c.l.b16 %v4204
    %v4340 = vunpack.c.l.b16 %v4205
    %v4341 = vunpack.c.l.b16 %v4206
    %v4342 = vunpack.c.l.b16 %v4207
    %v4343 = vunpack.c.l.b16 %v4208
    %v4344 = vunpack.c.l.b16 %v4209
    %v4345 = vunpack.c.l.b16 %v4210
    %v4346 = vunpack.c.l.b16 %v4211
    %v4347 = vunpack.c.l.b16 %v4212
    %v4348 = vunpack.c.l.b16 %v4213
    %v4349 = vunpack.c.l.b16 %v4214
    %v4350 = vunpack.c.l.b16 %v4215
    %v4351 = vunpack.c.l.b16 %v4216
    %v4352 = vunpack.c.l.b16 %v4217
    %v4353 = vunpack.c.l.b16 %v4218
    %v4354 = vunpack.c.l.b16 %v4219
    %v4355 = vunpack.c.l.b16 %v4220
    %v4356 = vunpack.c.l.b16 %v4221
    %v4357 = vunpack.c.l.b16 %v4222
    %v4358 = vunpack.c.l.b16 %v4223
    %v4359 = vunpack.c.l.b16 %v4224
    %v4360 = vunpack.c.l.b16 %v4225
    %v4361 = vunpack.c.l.b16 %v4226
    %v4362 = vunpack.c.l.b16 %v4227
    %v4363 = vunpack.c.l.b16 %v4228
    %v4364 = vunpack.c.l.b16 %v4229
    %v4365 = vunpack.c.l.b16 %v4230
    %v4366 = vunpack.c.l.b16 %v4231
    %v4367 = vunpack.c.l.b16 %v4232
    %v4368 = vunpack.c.l.b16 %v4233
    %v4369 = vunpack.c.l.b16 %v4234
    %v4370 = vunpack.c.l.b16 %v4235
    %v4371 = vunpack.c.l.b16 %v4236
    %v4372 = vunpack.c.l.b16 %v4237
    %v4373 = vunpack.c.l.b16 %v4238
    %v4374 = vunpack.c.l.b16 %v4239
    %v4375 = vpack.c.b16 %v4312, %v4311
    %v4376 = vpack.c.b16 %v4314, %v4313
    %v4377 = vpack.c.b16 %v4316, %v4315
    %v4378 = vpack.c.b16 %v4318, %v4317
    %v4379 = vpack.c.b16 %v4320, %v4319
    %v4380 = vpack.c.b16 %v4322, %v4321
    %v4381 = vpack.c.b16 %v4324, %v4323
    %v4382 = vpack.c.b16 %v4326, %v4325
    %v4383 = vpack.c.b16 %v4328, %v4327
    %v4384 = vpack.c.b16 %v4330, %v4329
    %v4385 = vpack.c.b16 %v4332, %v4331
    %v4386 = vpack.c.b16 %v4334, %v4333
    %v4387 = vpack.c.b16 %v4336, %v4335
    %v4388 = vpack.c.b16 %v4338, %v4337
    %v4389 = vpack.c.b16 %v4340, %v4339
    %v4390 = vpack.c.b16 %v4342, %v4341
    %v4391 = vpack.c.b16 %v4344, %v4343
    %v4392 = vpack.c.b16 %v4346, %v4345
    %v4393 = vpack.c.b16 %v4348, %v4347
    %v4394 = vpack.c.b16 %v4350, %v4349
    %v4395 = vpack.c.b16 %v4352, %v4351
    %v4396 = vpack.c.b16 %v4354, %v4353
    %v4397 = vpack.c.b16 %v4356, %v4355
    %v4398 = vpack.c.b16 %v4358, %v4357
    %v4399 = vpack.c.b16 %v4360, %v4359
    %v4400 = vpack.c.b16 %v4362, %v4361
    %v4401 = vpack.c.b16 %v4364, %v4363
    %v4402 = vpack.c.b16 %v4366, %v4365
    %v4403 = vpack.c.b16 %v4368, %v4367
    %v4404 = vpack.c.b16 %v4370, %v4369
    %v4405 = vpack.c.b16 %v4372, %v4371
    %v4406 = vpack.c.b16 %v4374, %v4373
    %4439 = vmatprep.subr.bf16.mxu0 0
    %4440 = vmatpush1.bf16.msra.mxu0 %v4382
    %4441 = vmatprep.subr.bf16.mxu0 0
    %4442 = vmatpush1.bf16.msra.mxu0 %v4381
    %4443 = vmatprep.subr.bf16.mxu0 0
    %4444 = vmatpush1.bf16.msra.mxu0 %v4380
    %4445 = vmatprep.subr.bf16.mxu0 0
    %4446 = vmatpush1.bf16.msra.mxu0 %v4379
    %4447 = vmatprep.subr.bf16.mxu0 0
    %4448 = vmatpush1.bf16.msra.mxu0 %v4378
    %4449 = vmatprep.subr.bf16.mxu0 0
    %4450 = vmatpush1.bf16.msra.mxu0 %v4377
    %4451 = vmatprep.subr.bf16.mxu0 0
    %4452 = vmatpush1.bf16.msra.mxu0 %v4376
    %4453 = vmatprep.subr.bf16.mxu0 0
    %4454 = vmatpush1.bf16.msra.mxu0 %v4375
    %4455 = vmatprep.subr.bf16.mxu0 0
    %4456 = vmatpush2.bf16.msra.mxu0 %v4390
    %4457 = vmatprep.subr.bf16.mxu0 0
    %4458 = vmatpush2.bf16.msra.mxu0 %v4389
    %4459 = vmatprep.subr.bf16.mxu0 0
    %4460 = vmatpush2.bf16.msra.mxu0 %v4388
    %4461 = vmatprep.subr.bf16.mxu0 0
    %4462 = vmatpush2.bf16.msra.mxu0 %v4387
    %4463 = vmatprep.subr.bf16.mxu0 0
    %4464 = vmatpush2.bf16.msra.mxu0 %v4386
    %4465 = vmatprep.subr.bf16.mxu0 0
    %4466 = vmatpush2.bf16.msra.mxu0 %v4385
    %4467 = vmatprep.subr.bf16.mxu0 0
    %4468 = vmatpush2.bf16.msra.mxu0 %v4384
    %4469 = vmatprep.subr.bf16.mxu0 0
    %4470 = vmatpush2.bf16.msra.mxu0 %v4383
    %4471 = vmatprep.mubr.bf16.mxu0 %v4161
    %4472 = vmatmul.mubr.bf16.gmra.mxu0 %v4160
    %v4473 = vpop.f32.mrf.mxu0
    %v4474 = vadd.f32 %v4245, %v4473
    %v4475 = vpop.f32.mrf.mxu0
    %v4476 = vpop.f32.mrf.mxu0
    %v4477 = vadd.f32 %v4245, %v4476
    %v4478 = vpop.f32.mrf.mxu0
    %4479 = vmatprep.mubr.bf16.mxu0 %v4165
    %4480 = vmatmul.mubr.bf16.gmra.mxu0 %v4164
    %v4481 = vpop.f32.mrf.mxu0
    %v4482 = vadd.f32 %v4245, %v4481
    %v4483 = vpop.f32.mrf.mxu0
    %v4484 = vpop.f32.mrf.mxu0
    %v4485 = vadd.f32 %v4245, %v4484
    %v4486 = vpop.f32.mrf.mxu0
    %4487 = vmatprep.mubr.bf16.mxu0 %v4169
    %4488 = vmatmul.mubr.bf16.gmra.mxu0 %v4168
    %v4489 = vpop.f32.mrf.mxu0
    %v4490 = vadd.f32 %v4245, %v4489
    %v4491 = vpop.f32.mrf.mxu0
    %v4492 = vpop.f32.mrf.mxu0
    %v4493 = vadd.f32 %v4245, %v4492
    %v4494 = vpop.f32.mrf.mxu0
    %4495 = vmatprep.mubr.bf16.mxu0 %v4173
    %4496 = vmatmul.mubr.bf16.gmra.mxu0 %v4172
    %v4497 = vpop.f32.mrf.mxu0
    %v4498 = vadd.f32 %v4245, %v4497
    %v4499 = vpop.f32.mrf.mxu0
    %v4500 = vpop.f32.mrf.mxu0
    %v4501 = vadd.f32 %v4245, %v4500
    %v4502 = vpop.f32.mrf.mxu0
    %4503 = vdwg.mxu0
    %4504 = vmatprep.subr.bf16.mxu0 0
    %4505 = vmatpush1.bf16.msra.mxu0 %v4398
    %4506 = vmatprep.subr.bf16.mxu0 0
    %4507 = vmatpush1.bf16.msra.mxu0 %v4397
    %4508 = vmatprep.subr.bf16.mxu0 0
    %4509 = vmatpush1.bf16.msra.mxu0 %v4396
    %4510 = vmatprep.subr.bf16.mxu0 0
    %4511 = vmatpush1.bf16.msra.mxu0 %v4395
    %4512 = vmatprep.subr.bf16.mxu0 0
    %4513 = vmatpush1.bf16.msra.mxu0 %v4394
    %4514 = vmatprep.subr.bf16.mxu0 0
    %4515 = vmatpush1.bf16.msra.mxu0 %v4393
    %4516 = vmatprep.subr.bf16.mxu0 0
    %4517 = vmatpush1.bf16.msra.mxu0 %v4392
    %4518 = vmatprep.subr.bf16.mxu0 0
    %4519 = vmatpush1.bf16.msra.mxu0 %v4391
    %4520 = vmatprep.subr.bf16.mxu0 0
    %4521 = vmatpush2.bf16.msra.mxu0 %v4406
    %4522 = vmatprep.subr.bf16.mxu0 0
    %4523 = vmatpush2.bf16.msra.mxu0 %v4405
    %4524 = vmatprep.subr.bf16.mxu0 0
    %4525 = vmatpush2.bf16.msra.mxu0 %v4404
    %4526 = vmatprep.subr.bf16.mxu0 0
    %4527 = vmatpush2.bf16.msra.mxu0 %v4403
    %4528 = vmatprep.subr.bf16.mxu0 0
    %4529 = vmatpush2.bf16.msra.mxu0 %v4402
    %4530 = vmatprep.subr.bf16.mxu0 0
    %4531 = vmatpush2.bf16.msra.mxu0 %v4401
    %4532 = vmatprep.subr.bf16.mxu0 0
    %4533 = vmatpush2.bf16.msra.mxu0 %v4400
    %4534 = vmatprep.subr.bf16.mxu0 0
    %4535 = vmatpush2.bf16.msra.mxu0 %v4399
    %4536 = vmatprep.mubr.bf16.mxu0 %v4163
    %4537 = vmatmul.mubr.bf16.gmra.mxu0 %v4162
    %v4538 = vpop.f32.mrf.mxu0
    %v4539 = vadd.f32 %v4474, %v4538
    %v4540 = vpop.f32.mrf.mxu0
    %v4541 = vpop.f32.mrf.mxu0
    %v4542 = vadd.f32 %v4477, %v4541
    %v4543 = vpop.f32.mrf.mxu0
    %4544 = vmatprep.mubr.bf16.mxu0 %v4167
    %4545 = vmatmul.mubr.bf16.gmra.mxu0 %v4166
    %v4546 = vpop.f32.mrf.mxu0
    %v4547 = vadd.f32 %v4482, %v4546
    %v4548 = vpop.f32.mrf.mxu0
    %v4549 = vpop.f32.mrf.mxu0
    %v4550 = vadd.f32 %v4485, %v4549
    %v4551 = vpop.f32.mrf.mxu0
    %4552 = vmatprep.mubr.bf16.mxu0 %v4171
    %4553 = vmatmul.mubr.bf16.gmra.mxu0 %v4170
    %v4554 = vpop.f32.mrf.mxu0
    %v4555 = vadd.f32 %v4490, %v4554
    %v4556 = vpop.f32.mrf.mxu0
    %v4557 = vpop.f32.mrf.mxu0
    %v4558 = vadd.f32 %v4493, %v4557
    %v4559 = vpop.f32.mrf.mxu0
    %4560 = vmatprep.mubr.bf16.mxu0 %v4175
    %4561 = vmatmul.mubr.bf16.gmra.mxu0 %v4174
    %v4562 = vpop.f32.mrf.mxu0
    %v4563 = vadd.f32 %v4498, %v4562
    %v4564 = vpop.f32.mrf.mxu0
    %v4565 = vpop.f32.mrf.mxu0
    %v4566 = vadd.f32 %v4501, %v4565
    %v4567 = vpop.f32.mrf.mxu0
    %4568 = vdwg.mxu0
    %vm4569 = vcmask 80896
    %v4570 = vsel %vm4569, %v4539, -inf
    %4571 = vmax.xlane.f32.xlu0 %v4570
    %v4572 = vpop.xlane.xlu0 %4571
    %v4573 = vsel %vm4569, %v4542, -inf
    %4574 = vmax.xlane.f32.xlu0 %v4573
    %v4575 = vpop.xlane.xlu0 %4574
    %v4576 = vsel %vm4569, %v4547, -inf
    %4577 = vmax.xlane.f32.xlu0 %v4576
    %v4578 = vpop.xlane.xlu0 %4577
    %v4579 = vsel %vm4569, %v4550, -inf
    %4580 = vmax.xlane.f32.xlu0 %v4579
    %v4581 = vpop.xlane.xlu0 %4580
    %v4582 = vsel %vm4569, %v4555, -inf
    %4583 = vmax.xlane.f32.xlu0 %v4582
    %v4584 = vpop.xlane.xlu0 %4583
    %v4585 = vsel %vm4569, %v4558, -inf
    %4586 = vmax.xlane.f32.xlu0 %v4585
    %v4587 = vpop.xlane.xlu0 %4586
    %v4588 = vsel %vm4569, %v4563, -inf
    %4589 = vmax.xlane.f32.xlu0 %v4588
    %v4590 = vpop.xlane.xlu0 %4589
    %v4591 = vsel %vm4569, %v4566, -inf
    %4592 = vmax.xlane.f32.xlu0 %v4591
    %v4593 = vpop.xlane.xlu0 %4592
    %v4594 = vsub.f32 %v4539, %v4572
    %v4595 = vsub.f32 %v4542, %v4575
    %v4596 = vsub.f32 %v4547, %v4578
    %v4597 = vsub.f32 %v4550, %v4581
    %v4598 = vsub.f32 %v4555, %v4584
    %v4599 = vsub.f32 %v4558, %v4587
    %v4600 = vsub.f32 %v4563, %v4590
    %v4601 = vsub.f32 %v4566, %v4593
    %v4602 = vmul.f32 %v4594, 1.442695
    %v4603 = vpow.pop %v4602
    %v4604 = vmul.f32 %v4595, 1.442695
    %v4605 = vpow.pop %v4604
    %v4606 = vmul.f32 %v4596, 1.442695
    %v4607 = vpow.pop %v4606
    %v4608 = vmul.f32 %v4597, 1.442695
    %v4609 = vpow.pop %v4608
    %v4610 = vmul.f32 %v4598, 1.442695
    %v4611 = vpow.pop %v4610
    %v4612 = vmul.f32 %v4599, 1.442695
    %v4613 = vpow.pop %v4612
    %v4614 = vmul.f32 %v4600, 1.442695
    %v4615 = vpow.pop %v4614
    %v4616 = vmul.f32 %v4601, 1.442695
    %v4617 = vpow.pop %v4616
    %v4618 = vsel %vm4569, %v4603, 0.0
    %4619 = vadd.xlane.f32.xlu0 %v4618
    %v4620 = vpop.xlane.xlu0 %4619
    %v4621 = vsel %vm4569, %v4605, 0.0
    %4622 = vadd.xlane.f32.xlu0 %v4621
    %v4623 = vpop.xlane.xlu0 %4622
    %v4624 = vsel %vm4569, %v4607, 0.0
    %4625 = vadd.xlane.f32.xlu0 %v4624
    %v4626 = vpop.xlane.xlu0 %4625
    %v4627 = vsel %vm4569, %v4609, 0.0
    %4628 = vadd.xlane.f32.xlu0 %v4627
    %v4629 = vpop.xlane.xlu0 %4628
    %v4630 = vsel %vm4569, %v4611, 0.0
    %4631 = vadd.xlane.f32.xlu0 %v4630
    %v4632 = vpop.xlane.xlu0 %4631
    %v4633 = vsel %vm4569, %v4613, 0.0
    %4634 = vadd.xlane.f32.xlu0 %v4633
    %v4635 = vpop.xlane.xlu0 %4634
    %v4636 = vsel %vm4569, %v4615, 0.0
    %4637 = vadd.xlane.f32.xlu0 %v4636
    %v4638 = vpop.xlane.xlu0 %4637
    %v4639 = vsel %vm4569, %v4617, 0.0
    %4640 = vadd.xlane.f32.xlu0 %v4639
    %v4641 = vpop.xlane.xlu0 %4640
    %v4642 = vrcp.pop %v4620
    %v4643 = vrcp.pop %v4623
    %v4644 = vrcp.pop %v4626
    %v4645 = vrcp.pop %v4629
    %v4646 = vrcp.pop %v4632
    %v4647 = vrcp.pop %v4635
    %v4648 = vrcp.pop %v4638
    %v4649 = vrcp.pop %v4641
    %v4650 = vmul.f32 %v4603, %v4642
    %v4651 = vmul.f32 %v4605, %v4643
    %v4652 = vmul.f32 %v4607, %v4644
    %v4653 = vmul.f32 %v4609, %v4645
    %v4654 = vmul.f32 %v4611, %v4646
    %v4655 = vmul.f32 %v4613, %v4647
    %v4656 = vmul.f32 %v4615, %v4648
    %v4657 = vmul.f32 %v4617, %v4649
    %v4658 = vld [vmem:[%s2] sm:$0xff]
    %v4659 = vld [vmem:[%s2 + $0x8] sm:$0xff]
    %v4660 = vld [vmem:[%s2 + $0x10] sm:$0xff]
    %v4661 = vld [vmem:[%s2 + $0x18] sm:$0xff]
    %v4662 = vld [vmem:[%s2 + $0x20] sm:$0xff]
    %v4663 = vld [vmem:[%s2 + $0x28] sm:$0xff]
    %v4664 = vld [vmem:[%s2 + $0x30] sm:$0xff]
    %v4665 = vld [vmem:[%s2 + $0x38] sm:$0xff]
    %v4666 = vadd.f32 %v4539, %v4658
    %v4667 = vadd.f32 %v4542, %v4659
    %v4668 = vadd.f32 %v4547, %v4660
    %v4669 = vadd.f32 %v4550, %v4661
    %v4670 = vadd.f32 %v4555, %v4662
    %v4671 = vadd.f32 %v4558, %v4663
    %v4672 = vadd.f32 %v4563, %v4664
    %v4673 = vadd.f32 %v4566, %v4665
    %v4674 = vsel %vm4569, %v4666, -inf
    %4675 = vmax.xlane.f32.xlu0 %v4674
    %v4676 = vpop.xlane.xlu0 %4675
    %v4677 = vsel %vm4569, %v4667, -inf
    %4678 = vmax.xlane.f32.xlu0 %v4677
    %v4679 = vpop.xlane.xlu0 %4678
    %v4680 = vsel %vm4569, %v4668, -inf
    %4681 = vmax.xlane.f32.xlu0 %v4680
    %v4682 = vpop.xlane.xlu0 %4681
    %v4683 = vsel %vm4569, %v4669, -inf
    %4684 = vmax.xlane.f32.xlu0 %v4683
    %v4685 = vpop.xlane.xlu0 %4684
    %v4686 = vsel %vm4569, %v4670, -inf
    %4687 = vmax.xlane.f32.xlu0 %v4686
    %v4688 = vpop.xlane.xlu0 %4687
    %v4689 = vsel %vm4569, %v4671, -inf
    %4690 = vmax.xlane.f32.xlu0 %v4689
    %v4691 = vpop.xlane.xlu0 %4690
    %v4692 = vsel %vm4569, %v4672, -inf
    %4693 = vmax.xlane.f32.xlu0 %v4692
    %v4694 = vpop.xlane.xlu0 %4693
    %v4695 = vsel %vm4569, %v4673, -inf
    %4696 = vmax.xlane.f32.xlu0 %v4695
    %v4697 = vpop.xlane.xlu0 %4696
    %v4698 = vsub.f32 %v4666, %v4676
    %v4699 = vsub.f32 %v4667, %v4679
    %v4700 = vsub.f32 %v4668, %v4682
    %v4701 = vsub.f32 %v4669, %v4685
    %v4702 = vsub.f32 %v4670, %v4688
    %v4703 = vsub.f32 %v4671, %v4691
    %v4704 = vsub.f32 %v4672, %v4694
    %v4705 = vsub.f32 %v4673, %v4697
    %v4706 = vmul.f32 %v4698, 1.442695
    %v4707 = vpow.pop %v4706
    %v4708 = vmul.f32 %v4699, 1.442695
    %v4709 = vpow.pop %v4708
    %v4710 = vmul.f32 %v4700, 1.442695
    %v4711 = vpow.pop %v4710
    %v4712 = vmul.f32 %v4701, 1.442695
    %v4713 = vpow.pop %v4712
    %v4714 = vmul.f32 %v4702, 1.442695
    %v4715 = vpow.pop %v4714
    %v4716 = vmul.f32 %v4703, 1.442695
    %v4717 = vpow.pop %v4716
    %v4718 = vmul.f32 %v4704, 1.442695
    %v4719 = vpow.pop %v4718
    %v4720 = vmul.f32 %v4705, 1.442695
    %v4721 = vpow.pop %v4720
    %v4722 = vsel %vm4569, %v4707, 0.0
    %4723 = vadd.xlane.f32.xlu0 %v4722
    %v4724 = vpop.xlane.xlu0 %4723
    %v4725 = vsel %vm4569, %v4709, 0.0
    %4726 = vadd.xlane.f32.xlu0 %v4725
    %v4727 = vpop.xlane.xlu0 %4726
    %v4728 = vsel %vm4569, %v4711, 0.0
    %4729 = vadd.xlane.f32.xlu0 %v4728
    %v4730 = vpop.xlane.xlu0 %4729
    %v4731 = vsel %vm4569, %v4713, 0.0
    %4732 = vadd.xlane.f32.xlu0 %v4731
    %v4733 = vpop.xlane.xlu0 %4732
    %v4734 = vsel %vm4569, %v4715, 0.0
    %4735 = vadd.xlane.f32.xlu0 %v4734
    %v4736 = vpop.xlane.xlu0 %4735
    %v4737 = vsel %vm4569, %v4717, 0.0
    %4738 = vadd.xlane.f32.xlu0 %v4737
    %v4739 = vpop.xlane.xlu0 %4738
    %v4740 = vsel %vm4569, %v4719, 0.0
    %4741 = vadd.xlane.f32.xlu0 %v4740
    %v4742 = vpop.xlane.xlu0 %4741
    %v4743 = vsel %vm4569, %v4721, 0.0
    %4744 = vadd.xlane.f32.xlu0 %v4743
    %v4745 = vpop.xlane.xlu0 %4744
    %v4746 = vrcp.pop %v4724
    %v4747 = vrcp.pop %v4727
    %v4748 = vrcp.pop %v4730
    %v4749 = vrcp.pop %v4733
    %v4750 = vrcp.pop %v4736
    %v4751 = vrcp.pop %v4739
    %v4752 = vrcp.pop %v4742
    %v4753 = vrcp.pop %v4745
    %v4754 = vmul.f32 %v4707, %v4746
    %v4755 = vmul.f32 %v4709, %v4747
    %v4756 = vmul.f32 %v4711, %v4748
    %v4757 = vmul.f32 %v4713, %v4749
    %v4758 = vmul.f32 %v4715, %v4750
    %v4759 = vmul.f32 %v4717, %v4751
    %v4760 = vmul.f32 %v4719, %v4752
    %v4761 = vmul.f32 %v4721, %v4753
    %v4762 = vsel %vm4569, %v4754, 0.0
    %v4763 = vsel %vm4569, %v4755, 0.0
    %v4764 = vsel %vm4569, %v4756, 0.0
    %v4765 = vsel %vm4569, %v4757, 0.0
    %v4766 = vsel %vm4569, %v4758, 0.0
    %v4767 = vsel %vm4569, %v4759, 0.0
    %v4768 = vsel %vm4569, %v4760, 0.0
    %v4769 = vsel %vm4569, %v4761, 0.0
    %v4770 = vpack.c.bf16 %v4763, %v4762
    %v4771 = vpack.c.bf16 %v4765, %v4764
    %v4772 = vpack.c.bf16 %v4767, %v4766
    %v4773 = vpack.c.bf16 %v4769, %v4768
    %v4778 = vunpack.c.l.b16 %v2654
    %v4779 = vunpack.c.h.b16 %v2654
    %v4780 = vunpack.c.l.b16 %v2655
    %v4781 = vunpack.c.h.b16 %v2655
    %v4782 = vunpack.c.l.b16 %v2656
    %v4783 = vunpack.c.h.b16 %v2656
    %v4784 = vunpack.c.l.b16 %v2657
    %v4785 = vunpack.c.h.b16 %v2657
    %v4786 = vpack.c.b16 %v4782, %v4778
    %v4787 = vpack.c.b16 %v4783, %v4779
    %v4788 = vpack.c.b16 %v4784, %v4780
    %v4789 = vpack.c.b16 %v4785, %v4781
    %vm4794 = vcmask 130048
    %v4796 = vsel %vm4794, %v4770, 0
    %v4799 = vsel %vm4794, %v4771, 0
    %v4802 = vsel %vm4794, %v4772, 0
    %v4805 = vsel %vm4794, %v4773, 0
    %4807 = vmatprep.subr.bf16.mxu0 0
    %4808 = vmatpush1.bf16.msra.mxu0 0
    %4809 = vmatprep.subr.bf16.mxu0 0
    %4810 = vmatpush1.bf16.msra.mxu0 0
    %4811 = vmatprep.subr.bf16.mxu0 0
    %4812 = vmatpush1.bf16.msra.mxu0 0
    %4813 = vmatprep.subr.bf16.mxu0 0
    %4814 = vmatpush1.bf16.msra.mxu0 0
    %4815 = vmatprep.subr.bf16.mxu0 0
    %4816 = vmatpush1.bf16.msra.mxu0 0
    %4817 = vmatprep.subr.bf16.mxu0 0
    %4818 = vmatpush1.bf16.msra.mxu0 0
    %4819 = vmatprep.subr.bf16.mxu0 0
    %4820 = vmatpush1.bf16.msra.mxu0 0
    %4821 = vmatprep.subr.bf16.mxu0 %v4787
    %4822 = vmatpush1.bf16.msra.mxu0 %v4786
    %4823 = vmatprep.subr.bf16.mxu0 0
    %4824 = vmatpush2.bf16.msra.mxu0 0
    %4825 = vmatprep.subr.bf16.mxu0 0
    %4826 = vmatpush2.bf16.msra.mxu0 0
    %4827 = vmatprep.subr.bf16.mxu0 0
    %4828 = vmatpush2.bf16.msra.mxu0 0
    %4829 = vmatprep.subr.bf16.mxu0 0
    %4830 = vmatpush2.bf16.msra.mxu0 0
    %4831 = vmatprep.subr.bf16.mxu0 0
    %4832 = vmatpush2.bf16.msra.mxu0 0
    %4833 = vmatprep.subr.bf16.mxu0 0
    %4834 = vmatpush2.bf16.msra.mxu0 0
    %4835 = vmatprep.subr.bf16.mxu0 0
    %4836 = vmatpush2.bf16.msra.mxu0 0
    %4837 = vmatprep.subr.bf16.mxu0 0
    %4838 = vmatpush2.bf16.msra.mxu0 0
    %4839 = vmatprep.mubr.bf16.mxu0 0
    %4840 = vmatmul.mubr.bf16.gmra.mxu0 %v4796
    %v4841 = vpop.f32.mrf.mxu0
    %v4842 = vadd.f32 0.0, %v4841
    %v4843 = vpop.f32.mrf.mxu0
    %v4844 = vadd.f32 0.0, %v4843
    %v4845 = vpop.f32.mrf.mxu0
    %v4846 = vadd.f32 0.0, %v4845
    %v4847 = vpop.f32.mrf.mxu0
    %v4848 = vadd.f32 0.0, %v4847
    %4849 = vmatprep.mubr.bf16.mxu0 0
    %4850 = vmatmul.mubr.bf16.gmra.mxu0 %v4799
    %v4851 = vpop.f32.mrf.mxu0
    %v4852 = vadd.f32 0.0, %v4851
    %v4853 = vpop.f32.mrf.mxu0
    %v4854 = vadd.f32 0.0, %v4853
    %v4855 = vpop.f32.mrf.mxu0
    %v4856 = vadd.f32 0.0, %v4855
    %v4857 = vpop.f32.mrf.mxu0
    %v4858 = vadd.f32 0.0, %v4857
    %4859 = vmatprep.mubr.bf16.mxu0 0
    %4860 = vmatmul.mubr.bf16.gmra.mxu0 %v4802
    %v4861 = vpop.f32.mrf.mxu0
    %v4862 = vadd.f32 0.0, %v4861
    %v4863 = vpop.f32.mrf.mxu0
    %v4864 = vadd.f32 0.0, %v4863
    %v4865 = vpop.f32.mrf.mxu0
    %v4866 = vadd.f32 0.0, %v4865
    %v4867 = vpop.f32.mrf.mxu0
    %v4868 = vadd.f32 0.0, %v4867
    %4869 = vmatprep.mubr.bf16.mxu0 0
    %4870 = vmatmul.mubr.bf16.gmra.mxu0 %v4805
    %v4871 = vpop.f32.mrf.mxu0
    %v4872 = vadd.f32 0.0, %v4871
    %v4873 = vpop.f32.mrf.mxu0
    %v4874 = vadd.f32 0.0, %v4873
    %v4875 = vpop.f32.mrf.mxu0
    %v4876 = vadd.f32 0.0, %v4875
    %v4877 = vpop.f32.mrf.mxu0
    %v4878 = vadd.f32 0.0, %v4877
    %4879 = vdwg.mxu0
    %4880 = vmatprep.subr.bf16.mxu0 0
    %4881 = vmatpush1.bf16.msra.mxu0 0
    %4882 = vmatprep.subr.bf16.mxu0 0
    %4883 = vmatpush1.bf16.msra.mxu0 0
    %4884 = vmatprep.subr.bf16.mxu0 0
    %4885 = vmatpush1.bf16.msra.mxu0 0
    %4886 = vmatprep.subr.bf16.mxu0 0
    %4887 = vmatpush1.bf16.msra.mxu0 0
    %4888 = vmatprep.subr.bf16.mxu0 0
    %4889 = vmatpush1.bf16.msra.mxu0 0
    %4890 = vmatprep.subr.bf16.mxu0 0
    %4891 = vmatpush1.bf16.msra.mxu0 0
    %4892 = vmatprep.subr.bf16.mxu0 0
    %4893 = vmatpush1.bf16.msra.mxu0 0
    %4894 = vmatprep.subr.bf16.mxu0 %v4789
    %4895 = vmatpush1.bf16.msra.mxu0 %v4788
    %4896 = vmatprep.subr.bf16.mxu0 0
    %4897 = vmatpush2.bf16.msra.mxu0 0
    %4898 = vmatprep.subr.bf16.mxu0 0
    %4899 = vmatpush2.bf16.msra.mxu0 0
    %4900 = vmatprep.subr.bf16.mxu0 0
    %4901 = vmatpush2.bf16.msra.mxu0 0
    %4902 = vmatprep.subr.bf16.mxu0 0
    %4903 = vmatpush2.bf16.msra.mxu0 0
    %4904 = vmatprep.subr.bf16.mxu0 0
    %4905 = vmatpush2.bf16.msra.mxu0 0
    %4906 = vmatprep.subr.bf16.mxu0 0
    %4907 = vmatpush2.bf16.msra.mxu0 0
    %4908 = vmatprep.subr.bf16.mxu0 0
    %4909 = vmatpush2.bf16.msra.mxu0 0
    %4910 = vmatprep.subr.bf16.mxu0 0
    %4911 = vmatpush2.bf16.msra.mxu0 0
    %4912 = vmatprep.mubr.bf16.mxu0 0
    %4913 = vmatmul.mubr.bf16.gmra.mxu0 %v4796
    %v4914 = vpop.f32.mrf.mxu0
    %v4915 = vadd.f32 0.0, %v4914
    %v4916 = vpop.f32.mrf.mxu0
    %v4917 = vadd.f32 0.0, %v4916
    %v4918 = vpop.f32.mrf.mxu0
    %v4919 = vadd.f32 0.0, %v4918
    %v4920 = vpop.f32.mrf.mxu0
    %v4921 = vadd.f32 0.0, %v4920
    %4922 = vmatprep.mubr.bf16.mxu0 0
    %4923 = vmatmul.mubr.bf16.gmra.mxu0 %v4799
    %v4924 = vpop.f32.mrf.mxu0
    %v4925 = vadd.f32 0.0, %v4924
    %v4926 = vpop.f32.mrf.mxu0
    %v4927 = vadd.f32 0.0, %v4926
    %v4928 = vpop.f32.mrf.mxu0
    %v4929 = vadd.f32 0.0, %v4928
    %v4930 = vpop.f32.mrf.mxu0
    %v4931 = vadd.f32 0.0, %v4930
    %4932 = vmatprep.mubr.bf16.mxu0 0
    %4933 = vmatmul.mubr.bf16.gmra.mxu0 %v4802
    %v4934 = vpop.f32.mrf.mxu0
    %v4935 = vadd.f32 0.0, %v4934
    %v4936 = vpop.f32.mrf.mxu0
    %v4937 = vadd.f32 0.0, %v4936
    %v4938 = vpop.f32.mrf.mxu0
    %v4939 = vadd.f32 0.0, %v4938
    %v4940 = vpop.f32.mrf.mxu0
    %v4941 = vadd.f32 0.0, %v4940
    %4942 = vmatprep.mubr.bf16.mxu0 0
    %4943 = vmatmul.mubr.bf16.gmra.mxu0 %v4805
    %v4944 = vpop.f32.mrf.mxu0
    %v4945 = vadd.f32 0.0, %v4944
    %v4946 = vpop.f32.mrf.mxu0
    %v4947 = vadd.f32 0.0, %v4946
    %v4948 = vpop.f32.mrf.mxu0
    %v4949 = vadd.f32 0.0, %v4948
    %v4950 = vpop.f32.mrf.mxu0
    %v4951 = vadd.f32 0.0, %v4950
    %4952 = vdwg.mxu0
    %v4985 = vunpack.c.l.b16 %v2622
    %v4986 = vunpack.c.h.b16 %v2622
    %v4987 = vunpack.c.l.b16 %v2623
    %v4988 = vunpack.c.h.b16 %v2623
    %v4989 = vunpack.c.l.b16 %v2624
    %v4990 = vunpack.c.h.b16 %v2624
    %v4991 = vunpack.c.l.b16 %v2625
    %v4992 = vunpack.c.h.b16 %v2625
    %v4993 = vunpack.c.l.b16 %v2626
    %v4994 = vunpack.c.h.b16 %v2626
    %v4995 = vunpack.c.l.b16 %v2627
    %v4996 = vunpack.c.h.b16 %v2627
    %v4997 = vunpack.c.l.b16 %v2628
    %v4998 = vunpack.c.h.b16 %v2628
    %v4999 = vunpack.c.l.b16 %v2629
    %v5000 = vunpack.c.h.b16 %v2629
    %v5001 = vunpack.c.l.b16 %v2630
    %v5002 = vunpack.c.h.b16 %v2630
    %v5003 = vunpack.c.l.b16 %v2631
    %v5004 = vunpack.c.h.b16 %v2631
    %v5005 = vunpack.c.l.b16 %v2632
    %v5006 = vunpack.c.h.b16 %v2632
    %v5007 = vunpack.c.l.b16 %v2633
    %v5008 = vunpack.c.h.b16 %v2633
    %v5009 = vunpack.c.l.b16 %v2634
    %v5010 = vunpack.c.h.b16 %v2634
    %v5011 = vunpack.c.l.b16 %v2635
    %v5012 = vunpack.c.h.b16 %v2635
    %v5013 = vunpack.c.l.b16 %v2636
    %v5014 = vunpack.c.h.b16 %v2636
    %v5015 = vunpack.c.l.b16 %v2637
    %v5016 = vunpack.c.h.b16 %v2637
    %v5017 = vunpack.c.l.b16 %v2638
    %v5018 = vunpack.c.h.b16 %v2638
    %v5019 = vunpack.c.l.b16 %v2639
    %v5020 = vunpack.c.h.b16 %v2639
    %v5021 = vunpack.c.l.b16 %v2640
    %v5022 = vunpack.c.h.b16 %v2640
    %v5023 = vunpack.c.l.b16 %v2641
    %v5024 = vunpack.c.h.b16 %v2641
    %v5025 = vunpack.c.l.b16 %v2642
    %v5026 = vunpack.c.h.b16 %v2642
    %v5027 = vunpack.c.l.b16 %v2643
    %v5028 = vunpack.c.h.b16 %v2643
    %v5029 = vunpack.c.l.b16 %v2644
    %v5030 = vunpack.c.h.b16 %v2644
    %v5031 = vunpack.c.l.b16 %v2645
    %v5032 = vunpack.c.h.b16 %v2645
    %v5033 = vunpack.c.l.b16 %v2646
    %v5034 = vunpack.c.h.b16 %v2646
    %v5035 = vunpack.c.l.b16 %v2647
    %v5036 = vunpack.c.h.b16 %v2647
    %v5037 = vunpack.c.l.b16 %v2648
    %v5038 = vunpack.c.h.b16 %v2648
    %v5039 = vunpack.c.l.b16 %v2649
    %v5040 = vunpack.c.h.b16 %v2649
    %v5041 = vunpack.c.l.b16 %v2650
    %v5042 = vunpack.c.h.b16 %v2650
    %v5043 = vunpack.c.l.b16 %v2651
    %v5044 = vunpack.c.h.b16 %v2651
    %v5045 = vunpack.c.l.b16 %v2652
    %v5046 = vunpack.c.h.b16 %v2652
    %v5047 = vunpack.c.l.b16 %v2653
    %v5048 = vunpack.c.h.b16 %v2653
    %v5049 = vpack.c.b16 %v4989, %v4985
    %v5050 = vpack.c.b16 %v4990, %v4986
    %v5051 = vpack.c.b16 %v4991, %v4987
    %v5052 = vpack.c.b16 %v4992, %v4988
    %v5053 = vpack.c.b16 %v4997, %v4993
    %v5054 = vpack.c.b16 %v4998, %v4994
    %v5055 = vpack.c.b16 %v4999, %v4995
    %v5056 = vpack.c.b16 %v5000, %v4996
    %v5057 = vpack.c.b16 %v5005, %v5001
    %v5058 = vpack.c.b16 %v5006, %v5002
    %v5059 = vpack.c.b16 %v5007, %v5003
    %v5060 = vpack.c.b16 %v5008, %v5004
    %v5061 = vpack.c.b16 %v5013, %v5009
    %v5062 = vpack.c.b16 %v5014, %v5010
    %v5063 = vpack.c.b16 %v5015, %v5011
    %v5064 = vpack.c.b16 %v5016, %v5012
    %v5065 = vpack.c.b16 %v5021, %v5017
    %v5066 = vpack.c.b16 %v5022, %v5018
    %v5067 = vpack.c.b16 %v5023, %v5019
    %v5068 = vpack.c.b16 %v5024, %v5020
    %v5069 = vpack.c.b16 %v5029, %v5025
    %v5070 = vpack.c.b16 %v5030, %v5026
    %v5071 = vpack.c.b16 %v5031, %v5027
    %v5072 = vpack.c.b16 %v5032, %v5028
    %v5073 = vpack.c.b16 %v5037, %v5033
    %v5074 = vpack.c.b16 %v5038, %v5034
    %v5075 = vpack.c.b16 %v5039, %v5035
    %v5076 = vpack.c.b16 %v5040, %v5036
    %v5077 = vpack.c.b16 %v5045, %v5041
    %v5078 = vpack.c.b16 %v5046, %v5042
    %v5079 = vpack.c.b16 %v5047, %v5043
    %v5080 = vpack.c.b16 %v5048, %v5044
    %5113 = vmatprep.subr.bf16.mxu0 %v5078
    %5114 = vmatpush1.bf16.msra.mxu0 %v5077
    %5115 = vmatprep.subr.bf16.mxu0 %v5074
    %5116 = vmatpush1.bf16.msra.mxu0 %v5073
    %5117 = vmatprep.subr.bf16.mxu0 %v5070
    %5118 = vmatpush1.bf16.msra.mxu0 %v5069
    %5119 = vmatprep.subr.bf16.mxu0 %v5066
    %5120 = vmatpush1.bf16.msra.mxu0 %v5065
    %5121 = vmatprep.subr.bf16.mxu0 %v5062
    %5122 = vmatpush1.bf16.msra.mxu0 %v5061
    %5123 = vmatprep.subr.bf16.mxu0 %v5058
    %5124 = vmatpush1.bf16.msra.mxu0 %v5057
    %5125 = vmatprep.subr.bf16.mxu0 %v5054
    %5126 = vmatpush1.bf16.msra.mxu0 %v5053
    %5127 = vmatprep.subr.bf16.mxu0 %v5050
    %5128 = vmatpush1.bf16.msra.mxu0 %v5049
    %5129 = vmatprep.subr.bf16.mxu0 0
    %5130 = vmatpush2.bf16.msra.mxu0 0
    %5131 = vmatprep.subr.bf16.mxu0 0
    %5132 = vmatpush2.bf16.msra.mxu0 0
    %5133 = vmatprep.subr.bf16.mxu0 0
    %5134 = vmatpush2.bf16.msra.mxu0 0
    %5135 = vmatprep.subr.bf16.mxu0 0
    %5136 = vmatpush2.bf16.msra.mxu0 0
    %5137 = vmatprep.subr.bf16.mxu0 0
    %5138 = vmatpush2.bf16.msra.mxu0 0
    %5139 = vmatprep.subr.bf16.mxu0 0
    %5140 = vmatpush2.bf16.msra.mxu0 0
    %5141 = vmatprep.subr.bf16.mxu0 0
    %5142 = vmatpush2.bf16.msra.mxu0 0
    %5143 = vmatprep.subr.bf16.mxu0 0
    %5144 = vmatpush2.bf16.msra.mxu0 0
    %5145 = vmatprep.mubr.bf16.mxu0 0
    %5146 = vmatmul.mubr.bf16.gmra.mxu0 %v2794
    %v5147 = vpop.f32.mrf.mxu0
    %v5148 = vadd.f32 %v4842, %v5147
    %v5149 = vpop.f32.mrf.mxu0
    %v5150 = vadd.f32 %v4844, %v5149
    %v5151 = vpop.f32.mrf.mxu0
    %v5152 = vadd.f32 %v4846, %v5151
    %v5153 = vpop.f32.mrf.mxu0
    %v5154 = vadd.f32 %v4848, %v5153
    %5155 = vmatprep.mubr.bf16.mxu0 0
    %5156 = vmatmul.mubr.bf16.gmra.mxu0 %v2795
    %v5157 = vpop.f32.mrf.mxu0
    %v5158 = vadd.f32 %v4852, %v5157
    %v5159 = vpop.f32.mrf.mxu0
    %v5160 = vadd.f32 %v4854, %v5159
    %v5161 = vpop.f32.mrf.mxu0
    %v5162 = vadd.f32 %v4856, %v5161
    %v5163 = vpop.f32.mrf.mxu0
    %v5164 = vadd.f32 %v4858, %v5163
    %5165 = vmatprep.mubr.bf16.mxu0 0
    %5166 = vmatmul.mubr.bf16.gmra.mxu0 %v2796
    %v5167 = vpop.f32.mrf.mxu0
    %v5168 = vadd.f32 %v4862, %v5167
    %v5169 = vpop.f32.mrf.mxu0
    %v5170 = vadd.f32 %v4864, %v5169
    %v5171 = vpop.f32.mrf.mxu0
    %v5172 = vadd.f32 %v4866, %v5171
    %v5173 = vpop.f32.mrf.mxu0
    %v5174 = vadd.f32 %v4868, %v5173
    %5175 = vmatprep.mubr.bf16.mxu0 0
    %5176 = vmatmul.mubr.bf16.gmra.mxu0 %v2797
    %v5177 = vpop.f32.mrf.mxu0
    %v5178 = vadd.f32 %v4872, %v5177
    %v5179 = vpop.f32.mrf.mxu0
    %v5180 = vadd.f32 %v4874, %v5179
    %v5181 = vpop.f32.mrf.mxu0
    %v5182 = vadd.f32 %v4876, %v5181
    %v5183 = vpop.f32.mrf.mxu0
    %v5184 = vadd.f32 %v4878, %v5183
    %5185 = vdwg.mxu0
    %5186 = vmatprep.subr.bf16.mxu0 %v5080
    %5187 = vmatpush1.bf16.msra.mxu0 %v5079
    %5188 = vmatprep.subr.bf16.mxu0 %v5076
    %5189 = vmatpush1.bf16.msra.mxu0 %v5075
    %5190 = vmatprep.subr.bf16.mxu0 %v5072
    %5191 = vmatpush1.bf16.msra.mxu0 %v5071
    %5192 = vmatprep.subr.bf16.mxu0 %v5068
    %5193 = vmatpush1.bf16.msra.mxu0 %v5067
    %5194 = vmatprep.subr.bf16.mxu0 %v5064
    %5195 = vmatpush1.bf16.msra.mxu0 %v5063
    %5196 = vmatprep.subr.bf16.mxu0 %v5060
    %5197 = vmatpush1.bf16.msra.mxu0 %v5059
    %5198 = vmatprep.subr.bf16.mxu0 %v5056
    %5199 = vmatpush1.bf16.msra.mxu0 %v5055
    %5200 = vmatprep.subr.bf16.mxu0 %v5052
    %5201 = vmatpush1.bf16.msra.mxu0 %v5051
    %5202 = vmatprep.subr.bf16.mxu0 0
    %5203 = vmatpush2.bf16.msra.mxu0 0
    %5204 = vmatprep.subr.bf16.mxu0 0
    %5205 = vmatpush2.bf16.msra.mxu0 0
    %5206 = vmatprep.subr.bf16.mxu0 0
    %5207 = vmatpush2.bf16.msra.mxu0 0
    %5208 = vmatprep.subr.bf16.mxu0 0
    %5209 = vmatpush2.bf16.msra.mxu0 0
    %5210 = vmatprep.subr.bf16.mxu0 0
    %5211 = vmatpush2.bf16.msra.mxu0 0
    %5212 = vmatprep.subr.bf16.mxu0 0
    %5213 = vmatpush2.bf16.msra.mxu0 0
    %5214 = vmatprep.subr.bf16.mxu0 0
    %5215 = vmatpush2.bf16.msra.mxu0 0
    %5216 = vmatprep.subr.bf16.mxu0 0
    %5217 = vmatpush2.bf16.msra.mxu0 0
    %5218 = vmatprep.mubr.bf16.mxu0 0
    %5219 = vmatmul.mubr.bf16.gmra.mxu0 %v2794
    %v5220 = vpop.f32.mrf.mxu0
    %v5221 = vadd.f32 %v4915, %v5220
    %v5222 = vpop.f32.mrf.mxu0
    %v5223 = vadd.f32 %v4917, %v5222
    %v5224 = vpop.f32.mrf.mxu0
    %v5225 = vadd.f32 %v4919, %v5224
    %v5226 = vpop.f32.mrf.mxu0
    %v5227 = vadd.f32 %v4921, %v5226
    %5228 = vmatprep.mubr.bf16.mxu0 0
    %5229 = vmatmul.mubr.bf16.gmra.mxu0 %v2795
    %v5230 = vpop.f32.mrf.mxu0
    %v5231 = vadd.f32 %v4925, %v5230
    %v5232 = vpop.f32.mrf.mxu0
    %v5233 = vadd.f32 %v4927, %v5232
    %v5234 = vpop.f32.mrf.mxu0
    %v5235 = vadd.f32 %v4929, %v5234
    %v5236 = vpop.f32.mrf.mxu0
    %v5237 = vadd.f32 %v4931, %v5236
    %5238 = vmatprep.mubr.bf16.mxu0 0
    %5239 = vmatmul.mubr.bf16.gmra.mxu0 %v2796
    %v5240 = vpop.f32.mrf.mxu0
    %v5241 = vadd.f32 %v4935, %v5240
    %v5242 = vpop.f32.mrf.mxu0
    %v5243 = vadd.f32 %v4937, %v5242
    %v5244 = vpop.f32.mrf.mxu0
    %v5245 = vadd.f32 %v4939, %v5244
    %v5246 = vpop.f32.mrf.mxu0
    %v5247 = vadd.f32 %v4941, %v5246
    %5248 = vmatprep.mubr.bf16.mxu0 0
    %5249 = vmatmul.mubr.bf16.gmra.mxu0 %v2797
    %v5250 = vpop.f32.mrf.mxu0
    %v5251 = vadd.f32 %v4945, %v5250
    %v5252 = vpop.f32.mrf.mxu0
    %v5253 = vadd.f32 %v4947, %v5252
    %v5254 = vpop.f32.mrf.mxu0
    %v5255 = vadd.f32 %v4949, %v5254
    %v5256 = vpop.f32.mrf.mxu0
    %v5257 = vadd.f32 %v4951, %v5256
    %5258 = vdwg.mxu0
    %v5259 = vld [vmem:[#allocation23] sm:$0xf]
    %v5261 = vlaneseq
    %v5262 = vshrl.u32 %v5261, 7
    %v5263 = vsub.s32 0, %v5262
    %v5264 = vrot.slane %v5259, %v5263
    %v5265 = vlaneseq
    %v5266 = vshrl.u32 %v5265, 7
    %v5267 = vsub.s32 1, %v5266
    %v5268 = vrot.slane %v5259, %v5267
    %v5269 = vlaneseq
    %v5270 = vshrl.u32 %v5269, 7
    %v5271 = vsub.s32 2, %v5270
    %v5272 = vrot.slane %v5259, %v5271
    %v5273 = vlaneseq
    %v5274 = vshrl.u32 %v5273, 7
    %v5275 = vsub.s32 3, %v5274
    %v5276 = vrot.slane %v5259, %v5275
    %v5281 = vadd.f32 %v5148, %v5264
    %v5282 = vadd.f32 %v5150, %v5268
    %v5283 = vadd.f32 %v5221, %v5272
    %v5284 = vadd.f32 %v5223, %v5276
    %v5285 = vadd.f32 %v5152, %v5264
    %v5286 = vadd.f32 %v5154, %v5268
    %v5287 = vadd.f32 %v5225, %v5272
    %v5288 = vadd.f32 %v5227, %v5276
    %v5289 = vadd.f32 %v5158, %v5264
    %v5290 = vadd.f32 %v5160, %v5268
    %v5291 = vadd.f32 %v5231, %v5272
    %v5292 = vadd.f32 %v5233, %v5276
    %v5293 = vadd.f32 %v5162, %v5264
    %v5294 = vadd.f32 %v5164, %v5268
    %v5295 = vadd.f32 %v5235, %v5272
    %v5296 = vadd.f32 %v5237, %v5276
    %v5297 = vadd.f32 %v5168, %v5264
    %v5298 = vadd.f32 %v5170, %v5268
    %v5299 = vadd.f32 %v5241, %v5272
    %v5300 = vadd.f32 %v5243, %v5276
    %v5301 = vadd.f32 %v5172, %v5264
    %v5302 = vadd.f32 %v5174, %v5268
    %v5303 = vadd.f32 %v5245, %v5272
    %v5304 = vadd.f32 %v5247, %v5276
    %v5305 = vadd.f32 %v5178, %v5264
    %v5306 = vadd.f32 %v5180, %v5268
    %v5307 = vadd.f32 %v5251, %v5272
    %v5308 = vadd.f32 %v5253, %v5276
    %v5309 = vadd.f32 %v5182, %v5264
    %v5310 = vadd.f32 %v5184, %v5268
    %v5311 = vadd.f32 %v5255, %v5272
    %v5312 = vadd.f32 %v5257, %v5276
    %v5313 = vmax.f32 %v5281, 0.0
    %v5314 = vmax.f32 %v5282, 0.0
    %v5315 = vmax.f32 %v5283, 0.0
    %v5316 = vmax.f32 %v5284, 0.0
    %v5317 = vmax.f32 %v5285, 0.0
    %v5318 = vmax.f32 %v5286, 0.0
    %v5319 = vmax.f32 %v5287, 0.0
    %v5320 = vmax.f32 %v5288, 0.0
    %v5321 = vmax.f32 %v5289, 0.0
    %v5322 = vmax.f32 %v5290, 0.0
    %v5323 = vmax.f32 %v5291, 0.0
    %v5324 = vmax.f32 %v5292, 0.0
    %v5325 = vmax.f32 %v5293, 0.0
    %v5326 = vmax.f32 %v5294, 0.0
    %v5327 = vmax.f32 %v5295, 0.0
    %v5328 = vmax.f32 %v5296, 0.0
    %v5329 = vmax.f32 %v5297, 0.0
    %v5330 = vmax.f32 %v5298, 0.0
    %v5331 = vmax.f32 %v5299, 0.0
    %v5332 = vmax.f32 %v5300, 0.0
    %v5333 = vmax.f32 %v5301, 0.0
    %v5334 = vmax.f32 %v5302, 0.0
    %v5335 = vmax.f32 %v5303, 0.0
    %v5336 = vmax.f32 %v5304, 0.0
    %v5337 = vmax.f32 %v5305, 0.0
    %v5338 = vmax.f32 %v5306, 0.0
    %v5339 = vmax.f32 %v5307, 0.0
    %v5340 = vmax.f32 %v5308, 0.0
    %v5341 = vmax.f32 %v5309, 0.0
    %v5342 = vmax.f32 %v5310, 0.0
    %v5343 = vmax.f32 %v5311, 0.0
    %v5344 = vmax.f32 %v5312, 0.0
    %v5345 = vpack.c.bf16 %v5317, %v5313
    %v5346 = vpack.c.bf16 %v5318, %v5314
    %v5347 = vpack.c.bf16 %v5319, %v5315
    %v5348 = vpack.c.bf16 %v5320, %v5316
    %v5349 = vpack.c.bf16 %v5325, %v5321
    %v5350 = vpack.c.bf16 %v5326, %v5322
    %v5351 = vpack.c.bf16 %v5327, %v5323
    %v5352 = vpack.c.bf16 %v5328, %v5324
    %v5353 = vpack.c.bf16 %v5333, %v5329
    %v5354 = vpack.c.bf16 %v5334, %v5330
    %v5355 = vpack.c.bf16 %v5335, %v5331
    %v5356 = vpack.c.bf16 %v5336, %v5332
    %v5357 = vpack.c.bf16 %v5341, %v5337
    %v5358 = vpack.c.bf16 %v5342, %v5338
    %v5359 = vpack.c.bf16 %v5343, %v5339
    %v5360 = vpack.c.bf16 %v5344, %v5340
    %v5361 = vld [vmem:[#allocation25] sm:$0xf]
    %v5363 = vlaneseq
    %v5364 = vshrl.u32 %v5363, 7
    %v5365 = vsub.s32 0, %v5364
    %v5366 = vrot.slane %v5361, %v5365
    %v5367 = vlaneseq
    %v5368 = vshrl.u32 %v5367, 7
    %v5369 = vsub.s32 1, %v5368
    %v5370 = vrot.slane %v5361, %v5369
    %v5371 = vlaneseq
    %v5372 = vshrl.u32 %v5371, 7
    %v5373 = vsub.s32 2, %v5372
    %v5374 = vrot.slane %v5361, %v5373
    %v5375 = vlaneseq
    %v5376 = vshrl.u32 %v5375, 7
    %v5377 = vsub.s32 3, %v5376
    %v5378 = vrot.slane %v5361, %v5377
    %v5511 = vunpack.c.l.b16 %v2658
    %v5512 = vunpack.c.h.b16 %v2658
    %v5513 = vunpack.c.l.b16 %v2659
    %v5514 = vunpack.c.h.b16 %v2659
    %v5515 = vunpack.c.l.b16 %v2660
    %v5516 = vunpack.c.h.b16 %v2660
    %v5517 = vunpack.c.l.b16 %v2661
    %v5518 = vunpack.c.h.b16 %v2661
    %v5519 = vunpack.c.l.b16 %v2662
    %v5520 = vunpack.c.h.b16 %v2662
    %v5521 = vunpack.c.l.b16 %v2663
    %v5522 = vunpack.c.h.b16 %v2663
    %v5523 = vunpack.c.l.b16 %v2664
    %v5524 = vunpack.c.h.b16 %v2664
    %v5525 = vunpack.c.l.b16 %v2665
    %v5526 = vunpack.c.h.b16 %v2665
    %v5527 = vunpack.c.l.b16 %v2666
    %v5528 = vunpack.c.h.b16 %v2666
    %v5529 = vunpack.c.l.b16 %v2667
    %v5530 = vunpack.c.h.b16 %v2667
    %v5531 = vunpack.c.l.b16 %v2668
    %v5532 = vunpack.c.h.b16 %v2668
    %v5533 = vunpack.c.l.b16 %v2669
    %v5534 = vunpack.c.h.b16 %v2669
    %v5535 = vunpack.c.l.b16 %v2670
    %v5536 = vunpack.c.h.b16 %v2670
    %v5537 = vunpack.c.l.b16 %v2671
    %v5538 = vunpack.c.h.b16 %v2671
    %v5539 = vunpack.c.l.b16 %v2672
    %v5540 = vunpack.c.h.b16 %v2672
    %v5541 = vunpack.c.l.b16 %v2673
    %v5542 = vunpack.c.h.b16 %v2673
    %v5543 = vunpack.c.l.b16 %v2674
    %v5544 = vunpack.c.h.b16 %v2674
    %v5545 = vunpack.c.l.b16 %v2675
    %v5546 = vunpack.c.h.b16 %v2675
    %v5547 = vunpack.c.l.b16 %v2676
    %v5548 = vunpack.c.h.b16 %v2676
    %v5549 = vunpack.c.l.b16 %v2677
    %v5550 = vunpack.c.h.b16 %v2677
    %v5551 = vunpack.c.l.b16 %v2678
    %v5552 = vunpack.c.h.b16 %v2678
    %v5553 = vunpack.c.l.b16 %v2679
    %v5554 = vunpack.c.h.b16 %v2679
    %v5555 = vunpack.c.l.b16 %v2680
    %v5556 = vunpack.c.h.b16 %v2680
    %v5557 = vunpack.c.l.b16 %v2681
    %v5558 = vunpack.c.h.b16 %v2681
    %v5559 = vunpack.c.l.b16 %v2682
    %v5560 = vunpack.c.h.b16 %v2682
    %v5561 = vunpack.c.l.b16 %v2683
    %v5562 = vunpack.c.h.b16 %v2683
    %v5563 = vunpack.c.l.b16 %v2684
    %v5564 = vunpack.c.h.b16 %v2684
    %v5565 = vunpack.c.l.b16 %v2685
    %v5566 = vunpack.c.h.b16 %v2685
    %v5567 = vunpack.c.l.b16 %v2686
    %v5568 = vunpack.c.h.b16 %v2686
    %v5569 = vunpack.c.l.b16 %v2687
    %v5570 = vunpack.c.h.b16 %v2687
    %v5571 = vunpack.c.l.b16 %v2688
    %v5572 = vunpack.c.h.b16 %v2688
    %v5573 = vunpack.c.l.b16 %v2689
    %v5574 = vunpack.c.h.b16 %v2689
    %v5575 = vunpack.c.l.b16 %v2690
    %v5576 = vunpack.c.h.b16 %v2690
    %v5577 = vunpack.c.l.b16 %v2691
    %v5578 = vunpack.c.h.b16 %v2691
    %v5579 = vunpack.c.l.b16 %v2692
    %v5580 = vunpack.c.h.b16 %v2692
    %v5581 = vunpack.c.l.b16 %v2693
    %v5582 = vunpack.c.h.b16 %v2693
    %v5583 = vunpack.c.l.b16 %v2694
    %v5584 = vunpack.c.h.b16 %v2694
    %v5585 = vunpack.c.l.b16 %v2695
    %v5586 = vunpack.c.h.b16 %v2695
    %v5587 = vunpack.c.l.b16 %v2696
    %v5588 = vunpack.c.h.b16 %v2696
    %v5589 = vunpack.c.l.b16 %v2697
    %v5590 = vunpack.c.h.b16 %v2697
    %v5591 = vunpack.c.l.b16 %v2698
    %v5592 = vunpack.c.h.b16 %v2698
    %v5593 = vunpack.c.l.b16 %v2699
    %v5594 = vunpack.c.h.b16 %v2699
    %v5595 = vunpack.c.l.b16 %v2700
    %v5596 = vunpack.c.h.b16 %v2700
    %v5597 = vunpack.c.l.b16 %v2701
    %v5598 = vunpack.c.h.b16 %v2701
    %v5599 = vunpack.c.l.b16 %v2702
    %v5600 = vunpack.c.h.b16 %v2702
    %v5601 = vunpack.c.l.b16 %v2703
    %v5602 = vunpack.c.h.b16 %v2703
    %v5603 = vunpack.c.l.b16 %v2704
    %v5604 = vunpack.c.h.b16 %v2704
    %v5605 = vunpack.c.l.b16 %v2705
    %v5606 = vunpack.c.h.b16 %v2705
    %v5607 = vunpack.c.l.b16 %v2706
    %v5608 = vunpack.c.h.b16 %v2706
    %v5609 = vunpack.c.l.b16 %v2707
    %v5610 = vunpack.c.h.b16 %v2707
    %v5611 = vunpack.c.l.b16 %v2708
    %v5612 = vunpack.c.h.b16 %v2708
    %v5613 = vunpack.c.l.b16 %v2709
    %v5614 = vunpack.c.h.b16 %v2709
    %v5615 = vunpack.c.l.b16 %v2710
    %v5616 = vunpack.c.h.b16 %v2710
    %v5617 = vunpack.c.l.b16 %v2711
    %v5618 = vunpack.c.h.b16 %v2711
    %v5619 = vunpack.c.l.b16 %v2712
    %v5620 = vunpack.c.h.b16 %v2712
    %v5621 = vunpack.c.l.b16 %v2713
    %v5622 = vunpack.c.h.b16 %v2713
    %v5623 = vunpack.c.l.b16 %v2714
    %v5624 = vunpack.c.h.b16 %v2714
    %v5625 = vunpack.c.l.b16 %v2715
    %v5626 = vunpack.c.h.b16 %v2715
    %v5627 = vunpack.c.l.b16 %v2716
    %v5628 = vunpack.c.h.b16 %v2716
    %v5629 = vunpack.c.l.b16 %v2717
    %v5630 = vunpack.c.h.b16 %v2717
    %v5631 = vunpack.c.l.b16 %v2718
    %v5632 = vunpack.c.h.b16 %v2718
    %v5633 = vunpack.c.l.b16 %v2719
    %v5634 = vunpack.c.h.b16 %v2719
    %v5635 = vunpack.c.l.b16 %v2720
    %v5636 = vunpack.c.h.b16 %v2720
    %v5637 = vunpack.c.l.b16 %v2721
    %v5638 = vunpack.c.h.b16 %v2721
    %v5639 = vunpack.c.l.b16 %v2722
    %v5640 = vunpack.c.h.b16 %v2722
    %v5641 = vunpack.c.l.b16 %v2723
    %v5642 = vunpack.c.h.b16 %v2723
    %v5643 = vunpack.c.l.b16 %v2724
    %v5644 = vunpack.c.h.b16 %v2724
    %v5645 = vunpack.c.l.b16 %v2725
    %v5646 = vunpack.c.h.b16 %v2725
    %v5647 = vunpack.c.l.b16 %v2726
    %v5648 = vunpack.c.h.b16 %v2726
    %v5649 = vunpack.c.l.b16 %v2727
    %v5650 = vunpack.c.h.b16 %v2727
    %v5651 = vunpack.c.l.b16 %v2728
    %v5652 = vunpack.c.h.b16 %v2728
    %v5653 = vunpack.c.l.b16 %v2729
    %v5654 = vunpack.c.h.b16 %v2729
    %v5655 = vunpack.c.l.b16 %v2730
    %v5656 = vunpack.c.h.b16 %v2730
    %v5657 = vunpack.c.l.b16 %v2731
    %v5658 = vunpack.c.h.b16 %v2731
    %v5659 = vunpack.c.l.b16 %v2732
    %v5660 = vunpack.c.h.b16 %v2732
    %v5661 = vunpack.c.l.b16 %v2733
    %v5662 = vunpack.c.h.b16 %v2733
    %v5663 = vunpack.c.l.b16 %v2734
    %v5664 = vunpack.c.h.b16 %v2734
    %v5665 = vunpack.c.l.b16 %v2735
    %v5666 = vunpack.c.h.b16 %v2735
    %v5667 = vunpack.c.l.b16 %v2736
    %v5668 = vunpack.c.h.b16 %v2736
    %v5669 = vunpack.c.l.b16 %v2737
    %v5670 = vunpack.c.h.b16 %v2737
    %v5671 = vunpack.c.l.b16 %v2738
    %v5672 = vunpack.c.h.b16 %v2738
    %v5673 = vunpack.c.l.b16 %v2739
    %v5674 = vunpack.c.h.b16 %v2739
    %v5675 = vunpack.c.l.b16 %v2740
    %v5676 = vunpack.c.h.b16 %v2740
    %v5677 = vunpack.c.l.b16 %v2741
    %v5678 = vunpack.c.h.b16 %v2741
    %v5679 = vunpack.c.l.b16 %v2742
    %v5680 = vunpack.c.h.b16 %v2742
    %v5681 = vunpack.c.l.b16 %v2743
    %v5682 = vunpack.c.h.b16 %v2743
    %v5683 = vunpack.c.l.b16 %v2744
    %v5684 = vunpack.c.h.b16 %v2744
    %v5685 = vunpack.c.l.b16 %v2745
    %v5686 = vunpack.c.h.b16 %v2745
    %v5687 = vunpack.c.l.b16 %v2746
    %v5688 = vunpack.c.h.b16 %v2746
    %v5689 = vunpack.c.l.b16 %v2747
    %v5690 = vunpack.c.h.b16 %v2747
    %v5691 = vunpack.c.l.b16 %v2748
    %v5692 = vunpack.c.h.b16 %v2748
    %v5693 = vunpack.c.l.b16 %v2749
    %v5694 = vunpack.c.h.b16 %v2749
    %v5695 = vunpack.c.l.b16 %v2750
    %v5696 = vunpack.c.h.b16 %v2750
    %v5697 = vunpack.c.l.b16 %v2751
    %v5698 = vunpack.c.h.b16 %v2751
    %v5699 = vunpack.c.l.b16 %v2752
    %v5700 = vunpack.c.h.b16 %v2752
    %v5701 = vunpack.c.l.b16 %v2753
    %v5702 = vunpack.c.h.b16 %v2753
    %v5703 = vunpack.c.l.b16 %v2754
    %v5704 = vunpack.c.h.b16 %v2754
    %v5705 = vunpack.c.l.b16 %v2755
    %v5706 = vunpack.c.h.b16 %v2755
    %v5707 = vunpack.c.l.b16 %v2756
    %v5708 = vunpack.c.h.b16 %v2756
    %v5709 = vunpack.c.l.b16 %v2757
    %v5710 = vunpack.c.h.b16 %v2757
    %v5711 = vunpack.c.l.b16 %v2758
    %v5712 = vunpack.c.h.b16 %v2758
    %v5713 = vunpack.c.l.b16 %v2759
    %v5714 = vunpack.c.h.b16 %v2759
    %v5715 = vunpack.c.l.b16 %v2760
    %v5716 = vunpack.c.h.b16 %v2760
    %v5717 = vunpack.c.l.b16 %v2761
    %v5718 = vunpack.c.h.b16 %v2761
    %v5719 = vunpack.c.l.b16 %v2762
    %v5720 = vunpack.c.h.b16 %v2762
    %v5721 = vunpack.c.l.b16 %v2763
    %v5722 = vunpack.c.h.b16 %v2763
    %v5723 = vunpack.c.l.b16 %v2764
    %v5724 = vunpack.c.h.b16 %v2764
    %v5725 = vunpack.c.l.b16 %v2765
    %v5726 = vunpack.c.h.b16 %v2765
    %v5727 = vunpack.c.l.b16 %v2766
    %v5728 = vunpack.c.h.b16 %v2766
    %v5729 = vunpack.c.l.b16 %v2767
    %v5730 = vunpack.c.h.b16 %v2767
    %v5731 = vunpack.c.l.b16 %v2768
    %v5732 = vunpack.c.h.b16 %v2768
    %v5733 = vunpack.c.l.b16 %v2769
    %v5734 = vunpack.c.h.b16 %v2769
    %v5735 = vunpack.c.l.b16 %v2770
    %v5736 = vunpack.c.h.b16 %v2770
    %v5737 = vunpack.c.l.b16 %v2771
    %v5738 = vunpack.c.h.b16 %v2771
    %v5739 = vunpack.c.l.b16 %v2772
    %v5740 = vunpack.c.h.b16 %v2772
    %v5741 = vunpack.c.l.b16 %v2773
    %v5742 = vunpack.c.h.b16 %v2773
    %v5743 = vunpack.c.l.b16 %v2774
    %v5744 = vunpack.c.h.b16 %v2774
    %v5745 = vunpack.c.l.b16 %v2775
    %v5746 = vunpack.c.h.b16 %v2775
    %v5747 = vunpack.c.l.b16 %v2776
    %v5748 = vunpack.c.h.b16 %v2776
    %v5749 = vunpack.c.l.b16 %v2777
    %v5750 = vunpack.c.h.b16 %v2777
    %v5751 = vunpack.c.l.b16 %v2778
    %v5752 = vunpack.c.h.b16 %v2778
    %v5753 = vunpack.c.l.b16 %v2779
    %v5754 = vunpack.c.h.b16 %v2779
    %v5755 = vunpack.c.l.b16 %v2780
    %v5756 = vunpack.c.h.b16 %v2780
    %v5757 = vunpack.c.l.b16 %v2781
    %v5758 = vunpack.c.h.b16 %v2781
    %v5759 = vunpack.c.l.b16 %v2782
    %v5760 = vunpack.c.h.b16 %v2782
    %v5761 = vunpack.c.l.b16 %v2783
    %v5762 = vunpack.c.h.b16 %v2783
    %v5763 = vunpack.c.l.b16 %v2784
    %v5764 = vunpack.c.h.b16 %v2784
    %v5765 = vunpack.c.l.b16 %v2785
    %v5766 = vunpack.c.h.b16 %v2785
    %v5767 = vpack.c.b16 %v5515, %v5511
    %v5768 = vpack.c.b16 %v5516, %v5512
    %v5769 = vpack.c.b16 %v5517, %v5513
    %v5770 = vpack.c.b16 %v5518, %v5514
    %v5771 = vpack.c.b16 %v5523, %v5519
    %v5772 = vpack.c.b16 %v5524, %v5520
    %v5773 = vpack.c.b16 %v5525, %v5521
    %v5774 = vpack.c.b16 %v5526, %v5522
    %v5775 = vpack.c.b16 %v5531, %v5527
    %v5776 = vpack.c.b16 %v5532, %v5528
    %v5777 = vpack.c.b16 %v5533, %v5529
    %v5778 = vpack.c.b16 %v5534, %v5530
    %v5779 = vpack.c.b16 %v5539, %v5535
    %v5780 = vpack.c.b16 %v5540, %v5536
    %v5781 = vpack.c.b16 %v5541, %v5537
    %v5782 = vpack.c.b16 %v5542, %v5538
    %v5783 = vpack.c.b16 %v5547, %v5543
    %v5784 = vpack.c.b16 %v5548, %v5544
    %v5785 = vpack.c.b16 %v5549, %v5545
    %v5786 = vpack.c.b16 %v5550, %v5546
    %v5787 = vpack.c.b16 %v5555, %v5551
    %v5788 = vpack.c.b16 %v5556, %v5552
    %v5789 = vpack.c.b16 %v5557, %v5553
    %v5790 = vpack.c.b16 %v5558, %v5554
    %v5791 = vpack.c.b16 %v5563, %v5559
    %v5792 = vpack.c.b16 %v5564, %v5560
    %v5793 = vpack.c.b16 %v5565, %v5561
    %v5794 = vpack.c.b16 %v5566, %v5562
    %v5795 = vpack.c.b16 %v5571, %v5567
    %v5796 = vpack.c.b16 %v5572, %v5568
    %v5797 = vpack.c.b16 %v5573, %v5569
    %v5798 = vpack.c.b16 %v5574, %v5570
    %v5799 = vpack.c.b16 %v5579, %v5575
    %v5800 = vpack.c.b16 %v5580, %v5576
    %v5801 = vpack.c.b16 %v5581, %v5577
    %v5802 = vpack.c.b16 %v5582, %v5578
    %v5803 = vpack.c.b16 %v5587, %v5583
    %v5804 = vpack.c.b16 %v5588, %v5584
    %v5805 = vpack.c.b16 %v5589, %v5585
    %v5806 = vpack.c.b16 %v5590, %v5586
    %v5807 = vpack.c.b16 %v5595, %v5591
    %v5808 = vpack.c.b16 %v5596, %v5592
    %v5809 = vpack.c.b16 %v5597, %v5593
    %v5810 = vpack.c.b16 %v5598, %v5594
    %v5811 = vpack.c.b16 %v5603, %v5599
    %v5812 = vpack.c.b16 %v5604, %v5600
    %v5813 = vpack.c.b16 %v5605, %v5601
    %v5814 = vpack.c.b16 %v5606, %v5602
    %v5815 = vpack.c.b16 %v5611, %v5607
    %v5816 = vpack.c.b16 %v5612, %v5608
    %v5817 = vpack.c.b16 %v5613, %v5609
    %v5818 = vpack.c.b16 %v5614, %v5610
    %v5819 = vpack.c.b16 %v5619, %v5615
    %v5820 = vpack.c.b16 %v5620, %v5616
    %v5821 = vpack.c.b16 %v5621, %v5617
    %v5822 = vpack.c.b16 %v5622, %v5618
    %v5823 = vpack.c.b16 %v5627, %v5623
    %v5824 = vpack.c.b16 %v5628, %v5624
    %v5825 = vpack.c.b16 %v5629, %v5625
    %v5826 = vpack.c.b16 %v5630, %v5626
    %v5827 = vpack.c.b16 %v5635, %v5631
    %v5828 = vpack.c.b16 %v5636, %v5632
    %v5829 = vpack.c.b16 %v5637, %v5633
    %v5830 = vpack.c.b16 %v5638, %v5634
    %v5831 = vpack.c.b16 %v5643, %v5639
    %v5832 = vpack.c.b16 %v5644, %v5640
    %v5833 = vpack.c.b16 %v5645, %v5641
    %v5834 = vpack.c.b16 %v5646, %v5642
    %v5835 = vpack.c.b16 %v5651, %v5647
    %v5836 = vpack.c.b16 %v5652, %v5648
    %v5837 = vpack.c.b16 %v5653, %v5649
    %v5838 = vpack.c.b16 %v5654, %v5650
    %v5839 = vpack.c.b16 %v5659, %v5655
    %v5840 = vpack.c.b16 %v5660, %v5656
    %v5841 = vpack.c.b16 %v5661, %v5657
    %v5842 = vpack.c.b16 %v5662, %v5658
    %v5843 = vpack.c.b16 %v5667, %v5663
    %v5844 = vpack.c.b16 %v5668, %v5664
    %v5845 = vpack.c.b16 %v5669, %v5665
    %v5846 = vpack.c.b16 %v5670, %v5666
    %v5847 = vpack.c.b16 %v5675, %v5671
    %v5848 = vpack.c.b16 %v5676, %v5672
    %v5849 = vpack.c.b16 %v5677, %v5673
    %v5850 = vpack.c.b16 %v5678, %v5674
    %v5851 = vpack.c.b16 %v5683, %v5679
    %v5852 = vpack.c.b16 %v5684, %v5680
    %v5853 = vpack.c.b16 %v5685, %v5681
    %v5854 = vpack.c.b16 %v5686, %v5682
    %v5855 = vpack.c.b16 %v5691, %v5687
    %v5856 = vpack.c.b16 %v5692, %v5688
    %v5857 = vpack.c.b16 %v5693, %v5689
    %v5858 = vpack.c.b16 %v5694, %v5690
    %v5859 = vpack.c.b16 %v5699, %v5695
    %v5860 = vpack.c.b16 %v5700, %v5696
    %v5861 = vpack.c.b16 %v5701, %v5697
    %v5862 = vpack.c.b16 %v5702, %v5698
    %v5863 = vpack.c.b16 %v5707, %v5703
    %v5864 = vpack.c.b16 %v5708, %v5704
    %v5865 = vpack.c.b16 %v5709, %v5705
    %v5866 = vpack.c.b16 %v5710, %v5706
    %v5867 = vpack.c.b16 %v5715, %v5711
    %v5868 = vpack.c.b16 %v5716, %v5712
    %v5869 = vpack.c.b16 %v5717, %v5713
    %v5870 = vpack.c.b16 %v5718, %v5714
    %v5871 = vpack.c.b16 %v5723, %v5719
    %v5872 = vpack.c.b16 %v5724, %v5720
    %v5873 = vpack.c.b16 %v5725, %v5721
    %v5874 = vpack.c.b16 %v5726, %v5722
    %v5875 = vpack.c.b16 %v5731, %v5727
    %v5876 = vpack.c.b16 %v5732, %v5728
    %v5877 = vpack.c.b16 %v5733, %v5729
    %v5878 = vpack.c.b16 %v5734, %v5730
    %v5879 = vpack.c.b16 %v5739, %v5735
    %v5880 = vpack.c.b16 %v5740, %v5736
    %v5881 = vpack.c.b16 %v5741, %v5737
    %v5882 = vpack.c.b16 %v5742, %v5738
    %v5883 = vpack.c.b16 %v5747, %v5743
    %v5884 = vpack.c.b16 %v5748, %v5744
    %v5885 = vpack.c.b16 %v5749, %v5745
    %v5886 = vpack.c.b16 %v5750, %v5746
    %v5887 = vpack.c.b16 %v5755, %v5751
    %v5888 = vpack.c.b16 %v5756, %v5752
    %v5889 = vpack.c.b16 %v5757, %v5753
    %v5890 = vpack.c.b16 %v5758, %v5754
    %v5891 = vpack.c.b16 %v5763, %v5759
    %v5892 = vpack.c.b16 %v5764, %v5760
    %v5893 = vpack.c.b16 %v5765, %v5761
    %v5894 = vpack.c.b16 %v5766, %v5762
    %6023 = vmatprep.subr.bf16.mxu0 %v5796
    %6024 = vmatpush1.bf16.msra.mxu0 %v5795
    %6025 = vmatprep.subr.bf16.mxu0 %v5792
    %6026 = vmatpush1.bf16.msra.mxu0 %v5791
    %6027 = vmatprep.subr.bf16.mxu0 %v5788
    %6028 = vmatpush1.bf16.msra.mxu0 %v5787
    %6029 = vmatprep.subr.bf16.mxu0 %v5784
    %6030 = vmatpush1.bf16.msra.mxu0 %v5783
    %6031 = vmatprep.subr.bf16.mxu0 %v5780
    %6032 = vmatpush1.bf16.msra.mxu0 %v5779
    %6033 = vmatprep.subr.bf16.mxu0 %v5776
    %6034 = vmatpush1.bf16.msra.mxu0 %v5775
    %6035 = vmatprep.subr.bf16.mxu0 %v5772
    %6036 = vmatpush1.bf16.msra.mxu0 %v5771
    %6037 = vmatprep.subr.bf16.mxu0 %v5768
    %6038 = vmatpush1.bf16.msra.mxu0 %v5767
    %6039 = vmatprep.subr.bf16.mxu0 %v5828
    %6040 = vmatpush2.bf16.msra.mxu0 %v5827
    %6041 = vmatprep.subr.bf16.mxu0 %v5824
    %6042 = vmatpush2.bf16.msra.mxu0 %v5823
    %6043 = vmatprep.subr.bf16.mxu0 %v5820
    %6044 = vmatpush2.bf16.msra.mxu0 %v5819
    %6045 = vmatprep.subr.bf16.mxu0 %v5816
    %6046 = vmatpush2.bf16.msra.mxu0 %v5815
    %6047 = vmatprep.subr.bf16.mxu0 %v5812
    %6048 = vmatpush2.bf16.msra.mxu0 %v5811
    %6049 = vmatprep.subr.bf16.mxu0 %v5808
    %6050 = vmatpush2.bf16.msra.mxu0 %v5807
    %6051 = vmatprep.subr.bf16.mxu0 %v5804
    %6052 = vmatpush2.bf16.msra.mxu0 %v5803
    %6053 = vmatprep.subr.bf16.mxu0 %v5800
    %6054 = vmatpush2.bf16.msra.mxu0 %v5799
    %6055 = vmatprep.mubr.bf16.mxu0 %v5346
    %6056 = vmatmul.mubr.bf16.gmra.mxu0 %v5345
    %v6057 = vpop.f32.mrf.mxu0
    %v6058 = vadd.f32 %v5366, %v6057
    %v6059 = vpop.f32.mrf.mxu0
    %v6060 = vadd.f32 %v5370, %v6059
    %v6061 = vpop.f32.mrf.mxu0
    %v6062 = vadd.f32 %v5366, %v6061
    %v6063 = vpop.f32.mrf.mxu0
    %v6064 = vadd.f32 %v5370, %v6063
    %6065 = vmatprep.mubr.bf16.mxu0 %v5350
    %6066 = vmatmul.mubr.bf16.gmra.mxu0 %v5349
    %v6067 = vpop.f32.mrf.mxu0
    %v6068 = vadd.f32 %v5366, %v6067
    %v6069 = vpop.f32.mrf.mxu0
    %v6070 = vadd.f32 %v5370, %v6069
    %v6071 = vpop.f32.mrf.mxu0
    %v6072 = vadd.f32 %v5366, %v6071
    %v6073 = vpop.f32.mrf.mxu0
    %v6074 = vadd.f32 %v5370, %v6073
    %6075 = vmatprep.mubr.bf16.mxu0 %v5354
    %6076 = vmatmul.mubr.bf16.gmra.mxu0 %v5353
    %v6077 = vpop.f32.mrf.mxu0
    %v6078 = vadd.f32 %v5366, %v6077
    %v6079 = vpop.f32.mrf.mxu0
    %v6080 = vadd.f32 %v5370, %v6079
    %v6081 = vpop.f32.mrf.mxu0
    %v6082 = vadd.f32 %v5366, %v6081
    %v6083 = vpop.f32.mrf.mxu0
    %v6084 = vadd.f32 %v5370, %v6083
    %6085 = vmatprep.mubr.bf16.mxu0 %v5358
    %6086 = vmatmul.mubr.bf16.gmra.mxu0 %v5357
    %v6087 = vpop.f32.mrf.mxu0
    %v6088 = vadd.f32 %v5366, %v6087
    %v6089 = vpop.f32.mrf.mxu0
    %v6090 = vadd.f32 %v5370, %v6089
    %v6091 = vpop.f32.mrf.mxu0
    %v6092 = vadd.f32 %v5366, %v6091
    %v6093 = vpop.f32.mrf.mxu0
    %v6094 = vadd.f32 %v5370, %v6093
    %6095 = vdwg.mxu0
    %6096 = vmatprep.subr.bf16.mxu0 %v5860
    %6097 = vmatpush1.bf16.msra.mxu0 %v5859
    %6098 = vmatprep.subr.bf16.mxu0 %v5856
    %6099 = vmatpush1.bf16.msra.mxu0 %v5855
    %6100 = vmatprep.subr.bf16.mxu0 %v5852
    %6101 = vmatpush1.bf16.msra.mxu0 %v5851
    %6102 = vmatprep.subr.bf16.mxu0 %v5848
    %6103 = vmatpush1.bf16.msra.mxu0 %v5847
    %6104 = vmatprep.subr.bf16.mxu0 %v5844
    %6105 = vmatpush1.bf16.msra.mxu0 %v5843
    %6106 = vmatprep.subr.bf16.mxu0 %v5840
    %6107 = vmatpush1.bf16.msra.mxu0 %v5839
    %6108 = vmatprep.subr.bf16.mxu0 %v5836
    %6109 = vmatpush1.bf16.msra.mxu0 %v5835
    %6110 = vmatprep.subr.bf16.mxu0 %v5832
    %6111 = vmatpush1.bf16.msra.mxu0 %v5831
    %6112 = vmatprep.subr.bf16.mxu0 %v5892
    %6113 = vmatpush2.bf16.msra.mxu0 %v5891
    %6114 = vmatprep.subr.bf16.mxu0 %v5888
    %6115 = vmatpush2.bf16.msra.mxu0 %v5887
    %6116 = vmatprep.subr.bf16.mxu0 %v5884
    %6117 = vmatpush2.bf16.msra.mxu0 %v5883
    %6118 = vmatprep.subr.bf16.mxu0 %v5880
    %6119 = vmatpush2.bf16.msra.mxu0 %v5879
    %6120 = vmatprep.subr.bf16.mxu0 %v5876
    %6121 = vmatpush2.bf16.msra.mxu0 %v5875
    %6122 = vmatprep.subr.bf16.mxu0 %v5872
    %6123 = vmatpush2.bf16.msra.mxu0 %v5871
    %6124 = vmatprep.subr.bf16.mxu0 %v5868
    %6125 = vmatpush2.bf16.msra.mxu0 %v5867
    %6126 = vmatprep.subr.bf16.mxu0 %v5864
    %6127 = vmatpush2.bf16.msra.mxu0 %v5863
    %6128 = vmatprep.mubr.bf16.mxu0 %v5348
    %6129 = vmatmul.mubr.bf16.gmra.mxu0 %v5347
    %v6130 = vpop.f32.mrf.mxu0
    %v6131 = vadd.f32 %v6058, %v6130
    %v6132 = vpop.f32.mrf.mxu0
    %v6133 = vadd.f32 %v6060, %v6132
    %v6134 = vpop.f32.mrf.mxu0
    %v6135 = vadd.f32 %v6062, %v6134
    %v6136 = vpop.f32.mrf.mxu0
    %v6137 = vadd.f32 %v6064, %v6136
    %6138 = vmatprep.mubr.bf16.mxu0 %v5352
    %6139 = vmatmul.mubr.bf16.gmra.mxu0 %v5351
    %v6140 = vpop.f32.mrf.mxu0
    %v6141 = vadd.f32 %v6068, %v6140
    %v6142 = vpop.f32.mrf.mxu0
    %v6143 = vadd.f32 %v6070, %v6142
    %v6144 = vpop.f32.mrf.mxu0
    %v6145 = vadd.f32 %v6072, %v6144
    %v6146 = vpop.f32.mrf.mxu0
    %v6147 = vadd.f32 %v6074, %v6146
    %6148 = vmatprep.mubr.bf16.mxu0 %v5356
    %6149 = vmatmul.mubr.bf16.gmra.mxu0 %v5355
    %v6150 = vpop.f32.mrf.mxu0
    %v6151 = vadd.f32 %v6078, %v6150
    %v6152 = vpop.f32.mrf.mxu0
    %v6153 = vadd.f32 %v6080, %v6152
    %v6154 = vpop.f32.mrf.mxu0
    %v6155 = vadd.f32 %v6082, %v6154
    %v6156 = vpop.f32.mrf.mxu0
    %v6157 = vadd.f32 %v6084, %v6156
    %6158 = vmatprep.mubr.bf16.mxu0 %v5360
    %6159 = vmatmul.mubr.bf16.gmra.mxu0 %v5359
    %v6160 = vpop.f32.mrf.mxu0
    %v6161 = vadd.f32 %v6088, %v6160
    %v6162 = vpop.f32.mrf.mxu0
    %v6163 = vadd.f32 %v6090, %v6162
    %v6164 = vpop.f32.mrf.mxu0
    %v6165 = vadd.f32 %v6092, %v6164
    %v6166 = vpop.f32.mrf.mxu0
    %v6167 = vadd.f32 %v6094, %v6166
    %6168 = vdwg.mxu0
    %6169 = vmatprep.subr.bf16.mxu0 %v5798
    %6170 = vmatpush1.bf16.msra.mxu0 %v5797
    %6171 = vmatprep.subr.bf16.mxu0 %v5794
    %6172 = vmatpush1.bf16.msra.mxu0 %v5793
    %6173 = vmatprep.subr.bf16.mxu0 %v5790
    %6174 = vmatpush1.bf16.msra.mxu0 %v5789
    %6175 = vmatprep.subr.bf16.mxu0 %v5786
    %6176 = vmatpush1.bf16.msra.mxu0 %v5785
    %6177 = vmatprep.subr.bf16.mxu0 %v5782
    %6178 = vmatpush1.bf16.msra.mxu0 %v5781
    %6179 = vmatprep.subr.bf16.mxu0 %v5778
    %6180 = vmatpush1.bf16.msra.mxu0 %v5777
    %6181 = vmatprep.subr.bf16.mxu0 %v5774
    %6182 = vmatpush1.bf16.msra.mxu0 %v5773
    %6183 = vmatprep.subr.bf16.mxu0 %v5770
    %6184 = vmatpush1.bf16.msra.mxu0 %v5769
    %6185 = vmatprep.subr.bf16.mxu0 %v5830
    %6186 = vmatpush2.bf16.msra.mxu0 %v5829
    %6187 = vmatprep.subr.bf16.mxu0 %v5826
    %6188 = vmatpush2.bf16.msra.mxu0 %v5825
    %6189 = vmatprep.subr.bf16.mxu0 %v5822
    %6190 = vmatpush2.bf16.msra.mxu0 %v5821
    %6191 = vmatprep.subr.bf16.mxu0 %v5818
    %6192 = vmatpush2.bf16.msra.mxu0 %v5817
    %6193 = vmatprep.subr.bf16.mxu0 %v5814
    %6194 = vmatpush2.bf16.msra.mxu0 %v5813
    %6195 = vmatprep.subr.bf16.mxu0 %v5810
    %6196 = vmatpush2.bf16.msra.mxu0 %v5809
    %6197 = vmatprep.subr.bf16.mxu0 %v5806
    %6198 = vmatpush2.bf16.msra.mxu0 %v5805
    %6199 = vmatprep.subr.bf16.mxu0 %v5802
    %6200 = vmatpush2.bf16.msra.mxu0 %v5801
    %6201 = vmatprep.mubr.bf16.mxu0 %v5346
    %6202 = vmatmul.mubr.bf16.gmra.mxu0 %v5345
    %v6203 = vpop.f32.mrf.mxu0
    %v6204 = vadd.f32 %v5374, %v6203
    %v6205 = vpop.f32.mrf.mxu0
    %v6206 = vadd.f32 %v5378, %v6205
    %v6207 = vpop.f32.mrf.mxu0
    %v6208 = vadd.f32 %v5374, %v6207
    %v6209 = vpop.f32.mrf.mxu0
    %v6210 = vadd.f32 %v5378, %v6209
    %6211 = vmatprep.mubr.bf16.mxu0 %v5350
    %6212 = vmatmul.mubr.bf16.gmra.mxu0 %v5349
    %v6213 = vpop.f32.mrf.mxu0
    %v6214 = vadd.f32 %v5374, %v6213
    %v6215 = vpop.f32.mrf.mxu0
    %v6216 = vadd.f32 %v5378, %v6215
    %v6217 = vpop.f32.mrf.mxu0
    %v6218 = vadd.f32 %v5374, %v6217
    %v6219 = vpop.f32.mrf.mxu0
    %v6220 = vadd.f32 %v5378, %v6219
    %6221 = vmatprep.mubr.bf16.mxu0 %v5354
    %6222 = vmatmul.mubr.bf16.gmra.mxu0 %v5353
    %v6223 = vpop.f32.mrf.mxu0
    %v6224 = vadd.f32 %v5374, %v6223
    %v6225 = vpop.f32.mrf.mxu0
    %v6226 = vadd.f32 %v5378, %v6225
    %v6227 = vpop.f32.mrf.mxu0
    %v6228 = vadd.f32 %v5374, %v6227
    %v6229 = vpop.f32.mrf.mxu0
    %v6230 = vadd.f32 %v5378, %v6229
    %6231 = vmatprep.mubr.bf16.mxu0 %v5358
    %6232 = vmatmul.mubr.bf16.gmra.mxu0 %v5357
    %v6233 = vpop.f32.mrf.mxu0
    %v6234 = vadd.f32 %v5374, %v6233
    %v6235 = vpop.f32.mrf.mxu0
    %v6236 = vadd.f32 %v5378, %v6235
    %v6237 = vpop.f32.mrf.mxu0
    %v6238 = vadd.f32 %v5374, %v6237
    %v6239 = vpop.f32.mrf.mxu0
    %v6240 = vadd.f32 %v5378, %v6239
    %6241 = vdwg.mxu0
    %6242 = vmatprep.subr.bf16.mxu0 %v5862
    %6243 = vmatpush1.bf16.msra.mxu0 %v5861
    %6244 = vmatprep.subr.bf16.mxu0 %v5858
    %6245 = vmatpush1.bf16.msra.mxu0 %v5857
    %6246 = vmatprep.subr.bf16.mxu0 %v5854
    %6247 = vmatpush1.bf16.msra.mxu0 %v5853
    %6248 = vmatprep.subr.bf16.mxu0 %v5850
    %6249 = vmatpush1.bf16.msra.mxu0 %v5849
    %6250 = vmatprep.subr.bf16.mxu0 %v5846
    %6251 = vmatpush1.bf16.msra.mxu0 %v5845
    %6252 = vmatprep.subr.bf16.mxu0 %v5842
    %6253 = vmatpush1.bf16.msra.mxu0 %v5841
    %6254 = vmatprep.subr.bf16.mxu0 %v5838
    %6255 = vmatpush1.bf16.msra.mxu0 %v5837
    %6256 = vmatprep.subr.bf16.mxu0 %v5834
    %6257 = vmatpush1.bf16.msra.mxu0 %v5833
    %6258 = vmatprep.subr.bf16.mxu0 %v5894
    %6259 = vmatpush2.bf16.msra.mxu0 %v5893
    %6260 = vmatprep.subr.bf16.mxu0 %v5890
    %6261 = vmatpush2.bf16.msra.mxu0 %v5889
    %6262 = vmatprep.subr.bf16.mxu0 %v5886
    %6263 = vmatpush2.bf16.msra.mxu0 %v5885
    %6264 = vmatprep.subr.bf16.mxu0 %v5882
    %6265 = vmatpush2.bf16.msra.mxu0 %v5881
    %6266 = vmatprep.subr.bf16.mxu0 %v5878
    %6267 = vmatpush2.bf16.msra.mxu0 %v5877
    %6268 = vmatprep.subr.bf16.mxu0 %v5874
    %6269 = vmatpush2.bf16.msra.mxu0 %v5873
    %6270 = vmatprep.subr.bf16.mxu0 %v5870
    %6271 = vmatpush2.bf16.msra.mxu0 %v5869
    %6272 = vmatprep.subr.bf16.mxu0 %v5866
    %6273 = vmatpush2.bf16.msra.mxu0 %v5865
    %6274 = vmatprep.mubr.bf16.mxu0 %v5348
    %6275 = vmatmul.mubr.bf16.gmra.mxu0 %v5347
    %v6276 = vpop.f32.mrf.mxu0
    %v6277 = vadd.f32 %v6204, %v6276
    %v6278 = vpop.f32.mrf.mxu0
    %v6279 = vadd.f32 %v6206, %v6278
    %v6280 = vpop.f32.mrf.mxu0
    %v6281 = vadd.f32 %v6208, %v6280
    %v6282 = vpop.f32.mrf.mxu0
    %v6283 = vadd.f32 %v6210, %v6282
    %6284 = vmatprep.mubr.bf16.mxu0 %v5352
    %6285 = vmatmul.mubr.bf16.gmra.mxu0 %v5351
    %v6286 = vpop.f32.mrf.mxu0
    %v6287 = vadd.f32 %v6214, %v6286
    %v6288 = vpop.f32.mrf.mxu0
    %v6289 = vadd.f32 %v6216, %v6288
    %v6290 = vpop.f32.mrf.mxu0
    %v6291 = vadd.f32 %v6218, %v6290
    %v6292 = vpop.f32.mrf.mxu0
    %v6293 = vadd.f32 %v6220, %v6292
    %6294 = vmatprep.mubr.bf16.mxu0 %v5356
    %6295 = vmatmul.mubr.bf16.gmra.mxu0 %v5355
    %v6296 = vpop.f32.mrf.mxu0
    %v6297 = vadd.f32 %v6224, %v6296
    %v6298 = vpop.f32.mrf.mxu0
    %v6299 = vadd.f32 %v6226, %v6298
    %v6300 = vpop.f32.mrf.mxu0
    %v6301 = vadd.f32 %v6228, %v6300
    %v6302 = vpop.f32.mrf.mxu0
    %v6303 = vadd.f32 %v6230, %v6302
    %6304 = vmatprep.mubr.bf16.mxu0 %v5360
    %6305 = vmatmul.mubr.bf16.gmra.mxu0 %v5359
    %v6306 = vpop.f32.mrf.mxu0
    %v6307 = vadd.f32 %v6234, %v6306
    %v6308 = vpop.f32.mrf.mxu0
    %v6309 = vadd.f32 %v6236, %v6308
    %v6310 = vpop.f32.mrf.mxu0
    %v6311 = vadd.f32 %v6238, %v6310
    %v6312 = vpop.f32.mrf.mxu0
    %v6313 = vadd.f32 %v6240, %v6312
    %6314 = vdwg.mxu0
    %v6315 = vmax.f32 %v6131, 0.0
    %v6316 = vmax.f32 %v6133, 0.0
    %v6317 = vmax.f32 %v6277, 0.0
    %v6318 = vmax.f32 %v6279, 0.0
    %v6319 = vmax.f32 %v6135, 0.0
    %v6320 = vmax.f32 %v6137, 0.0
    %v6321 = vmax.f32 %v6281, 0.0
    %v6322 = vmax.f32 %v6283, 0.0
    %v6323 = vmax.f32 %v6141, 0.0
    %v6324 = vmax.f32 %v6143, 0.0
    %v6325 = vmax.f32 %v6287, 0.0
    %v6326 = vmax.f32 %v6289, 0.0
    %v6327 = vmax.f32 %v6145, 0.0
    %v6328 = vmax.f32 %v6147, 0.0
    %v6329 = vmax.f32 %v6291, 0.0
    %v6330 = vmax.f32 %v6293, 0.0
    %v6331 = vmax.f32 %v6151, 0.0
    %v6332 = vmax.f32 %v6153, 0.0
    %v6333 = vmax.f32 %v6297, 0.0
    %v6334 = vmax.f32 %v6299, 0.0
    %v6335 = vmax.f32 %v6155, 0.0
    %v6336 = vmax.f32 %v6157, 0.0
    %v6337 = vmax.f32 %v6301, 0.0
    %v6338 = vmax.f32 %v6303, 0.0
    %v6339 = vmax.f32 %v6161, 0.0
    %v6340 = vmax.f32 %v6163, 0.0
    %v6341 = vmax.f32 %v6307, 0.0
    %v6342 = vmax.f32 %v6309, 0.0
    %v6343 = vmax.f32 %v6165, 0.0
    %v6344 = vmax.f32 %v6167, 0.0
    %v6345 = vmax.f32 %v6311, 0.0
    %v6346 = vmax.f32 %v6313, 0.0
    %v6347 = vpack.c.bf16 %v6319, %v6315
    %v6348 = vpack.c.bf16 %v6320, %v6316
    %v6349 = vpack.c.bf16 %v6321, %v6317
    %v6350 = vpack.c.bf16 %v6322, %v6318
    %v6351 = vpack.c.bf16 %v6327, %v6323
    %v6352 = vpack.c.bf16 %v6328, %v6324
    %v6353 = vpack.c.bf16 %v6329, %v6325
    %v6354 = vpack.c.bf16 %v6330, %v6326
    %v6355 = vpack.c.bf16 %v6335, %v6331
    %v6356 = vpack.c.bf16 %v6336, %v6332
    %v6357 = vpack.c.bf16 %v6337, %v6333
    %v6358 = vpack.c.bf16 %v6338, %v6334
    %v6359 = vpack.c.bf16 %v6343, %v6339
    %v6360 = vpack.c.bf16 %v6344, %v6340
    %v6361 = vpack.c.bf16 %v6345, %v6341
    %v6362 = vpack.c.bf16 %v6346, %v6342
    %v6363 = vld [vmem:[%s12] sm:$0xf]
    %v6364 = vld [vmem:[%s12 + $0x4] sm:$0xf]
    %v6365 = vld [vmem:[%s12 + $0x8] sm:$0xf]
    %v6366 = vld [vmem:[%s12 + $0xc] sm:$0xf]
    %v6367 = vld [vmem:[%s12 + $0x10] sm:$0xf]
    %v6368 = vld [vmem:[%s12 + $0x14] sm:$0xf]
    %v6369 = vld [vmem:[%s12 + $0x18] sm:$0xf]
    %v6370 = vld [vmem:[%s12 + $0x1c] sm:$0xf]
    %v6371 = vld [vmem:[%s12 + $0x20] sm:$0xf]
    %v6372 = vld [vmem:[%s12 + $0x24] sm:$0xf]
    %v6373 = vld [vmem:[%s12 + $0x28] sm:$0xf]
    %v6374 = vld [vmem:[%s12 + $0x2c] sm:$0xf]
    %v6375 = vld [vmem:[%s12 + $0x30] sm:$0xf]
    %v6376 = vld [vmem:[%s12 + $0x34] sm:$0xf]
    %v6377 = vld [vmem:[%s12 + $0x38] sm:$0xf]
    %v6378 = vld [vmem:[%s12 + $0x3c] sm:$0xf]
    %v6379 = vld [vmem:[%s12 + $0x40] sm:$0xf]
    %v6380 = vld [vmem:[%s12 + $0x44] sm:$0xf]
    %v6381 = vld [vmem:[%s12 + $0x48] sm:$0xf]
    %v6382 = vld [vmem:[%s12 + $0x4c] sm:$0xf]
    %v6383 = vld [vmem:[%s12 + $0x50] sm:$0xf]
    %v6384 = vld [vmem:[%s12 + $0x54] sm:$0xf]
    %v6385 = vld [vmem:[%s12 + $0x58] sm:$0xf]
    %v6386 = vld [vmem:[%s12 + $0x5c] sm:$0xf]
    %v6387 = vld [vmem:[%s12 + $0x60] sm:$0xf]
    %v6388 = vld [vmem:[%s12 + $0x64] sm:$0xf]
    %v6389 = vld [vmem:[%s12 + $0x68] sm:$0xf]
    %v6390 = vld [vmem:[%s12 + $0x6c] sm:$0xf]
    %v6391 = vld [vmem:[%s12 + $0x70] sm:$0xf]
    %v6392 = vld [vmem:[%s12 + $0x74] sm:$0xf]
    %v6393 = vld [vmem:[%s12 + $0x78] sm:$0xf]
    %v6394 = vld [vmem:[%s12 + $0x7c] sm:$0xf]
    %v6395 = vld [vmem:[%s12 + $0x80] sm:$0xf]
    %v6396 = vld [vmem:[%s12 + $0x84] sm:$0xf]
    %v6397 = vld [vmem:[%s12 + $0x88] sm:$0xf]
    %v6398 = vld [vmem:[%s12 + $0x8c] sm:$0xf]
    %v6399 = vld [vmem:[%s12 + $0x90] sm:$0xf]
    %v6400 = vld [vmem:[%s12 + $0x94] sm:$0xf]
    %v6401 = vld [vmem:[%s12 + $0x98] sm:$0xf]
    %v6402 = vld [vmem:[%s12 + $0x9c] sm:$0xf]
    %v6403 = vld [vmem:[%s12 + $0xa0] sm:$0xf]
    %v6404 = vld [vmem:[%s12 + $0xa4] sm:$0xf]
    %v6405 = vld [vmem:[%s12 + $0xa8] sm:$0xf]
    %v6406 = vld [vmem:[%s12 + $0xac] sm:$0xf]
    %v6407 = vld [vmem:[%s12 + $0xb0] sm:$0xf]
    %v6408 = vld [vmem:[%s12 + $0xb4] sm:$0xf]
    %v6409 = vld [vmem:[%s12 + $0xb8] sm:$0xf]
    %v6410 = vld [vmem:[%s12 + $0xbc] sm:$0xf]
    %v6411 = vld [vmem:[%s12 + $0xc0] sm:$0xf]
    %v6412 = vld [vmem:[%s12 + $0xc4] sm:$0xf]
    %v6413 = vld [vmem:[%s12 + $0xc8] sm:$0xf]
    %v6414 = vld [vmem:[%s12 + $0xcc] sm:$0xf]
    %v6415 = vld [vmem:[%s12 + $0xd0] sm:$0xf]
    %v6416 = vld [vmem:[%s12 + $0xd4] sm:$0xf]
    %v6417 = vld [vmem:[%s12 + $0xd8] sm:$0xf]
    %v6418 = vld [vmem:[%s12 + $0xdc] sm:$0xf]
    %v6419 = vld [vmem:[%s12 + $0xe0] sm:$0xf]
    %v6420 = vld [vmem:[%s12 + $0xe4] sm:$0xf]
    %v6421 = vld [vmem:[%s12 + $0xe8] sm:$0xf]
    %v6422 = vld [vmem:[%s12 + $0xec] sm:$0xf]
    %v6423 = vld [vmem:[%s12 + $0xf0] sm:$0xf]
    %v6424 = vld [vmem:[%s12 + $0xf4] sm:$0xf]
    %v6425 = vld [vmem:[%s12 + $0xf8] sm:$0xf]
    %v6426 = vld [vmem:[%s12 + $0xfc] sm:$0xf]
    %v6427 = vld [vmem:[#allocation26] sm:$0x1]
    %v6429 = vlaneseq
    %v6430 = vshrl.u32 %v6429, 7
    %v6431 = vsub.s32 0, %v6430
    %v6432 = vrot.slane %v6427, %v6431
    %v6498 = vunpack.c.l.b16 %v6363
    %v6499 = vunpack.c.l.b16 %v6364
    %v6500 = vunpack.c.l.b16 %v6365
    %v6501 = vunpack.c.l.b16 %v6366
    %v6502 = vunpack.c.l.b16 %v6367
    %v6503 = vunpack.c.l.b16 %v6368
    %v6504 = vunpack.c.l.b16 %v6369
    %v6505 = vunpack.c.l.b16 %v6370
    %v6506 = vunpack.c.l.b16 %v6371
    %v6507 = vunpack.c.l.b16 %v6372
    %v6508 = vunpack.c.l.b16 %v6373
    %v6509 = vunpack.c.l.b16 %v6374
    %v6510 = vunpack.c.l.b16 %v6375
    %v6511 = vunpack.c.l.b16 %v6376
    %v6512 = vunpack.c.l.b16 %v6377
    %v6513 = vunpack.c.l.b16 %v6378
    %v6514 = vunpack.c.l.b16 %v6379
    %v6515 = vunpack.c.l.b16 %v6380
    %v6516 = vunpack.c.l.b16 %v6381
    %v6517 = vunpack.c.l.b16 %v6382
    %v6518 = vunpack.c.l.b16 %v6383
    %v6519 = vunpack.c.l.b16 %v6384
    %v6520 = vunpack.c.l.b16 %v6385
    %v6521 = vunpack.c.l.b16 %v6386
    %v6522 = vunpack.c.l.b16 %v6387
    %v6523 = vunpack.c.l.b16 %v6388
    %v6524 = vunpack.c.l.b16 %v6389
    %v6525 = vunpack.c.l.b16 %v6390
    %v6526 = vunpack.c.l.b16 %v6391
    %v6527 = vunpack.c.l.b16 %v6392
    %v6528 = vunpack.c.l.b16 %v6393
    %v6529 = vunpack.c.l.b16 %v6394
    %v6530 = vunpack.c.l.b16 %v6395
    %v6531 = vunpack.c.l.b16 %v6396
    %v6532 = vunpack.c.l.b16 %v6397
    %v6533 = vunpack.c.l.b16 %v6398
    %v6534 = vunpack.c.l.b16 %v6399
    %v6535 = vunpack.c.l.b16 %v6400
    %v6536 = vunpack.c.l.b16 %v6401
    %v6537 = vunpack.c.l.b16 %v6402
    %v6538 = vunpack.c.l.b16 %v6403
    %v6539 = vunpack.c.l.b16 %v6404
    %v6540 = vunpack.c.l.b16 %v6405
    %v6541 = vunpack.c.l.b16 %v6406
    %v6542 = vunpack.c.l.b16 %v6407
    %v6543 = vunpack.c.l.b16 %v6408
    %v6544 = vunpack.c.l.b16 %v6409
    %v6545 = vunpack.c.l.b16 %v6410
    %v6546 = vunpack.c.l.b16 %v6411
    %v6547 = vunpack.c.l.b16 %v6412
    %v6548 = vunpack.c.l.b16 %v6413
    %v6549 = vunpack.c.l.b16 %v6414
    %v6550 = vunpack.c.l.b16 %v6415
    %v6551 = vunpack.c.l.b16 %v6416
    %v6552 = vunpack.c.l.b16 %v6417
    %v6553 = vunpack.c.l.b16 %v6418
    %v6554 = vunpack.c.l.b16 %v6419
    %v6555 = vunpack.c.l.b16 %v6420
    %v6556 = vunpack.c.l.b16 %v6421
    %v6557 = vunpack.c.l.b16 %v6422
    %v6558 = vunpack.c.l.b16 %v6423
    %v6559 = vunpack.c.l.b16 %v6424
    %v6560 = vunpack.c.l.b16 %v6425
    %v6561 = vunpack.c.l.b16 %v6426
    %v6562 = vpack.c.b16 %v6499, %v6498
    %v6563 = vpack.c.b16 %v6501, %v6500
    %v6564 = vpack.c.b16 %v6503, %v6502
    %v6565 = vpack.c.b16 %v6505, %v6504
    %v6566 = vpack.c.b16 %v6507, %v6506
    %v6567 = vpack.c.b16 %v6509, %v6508
    %v6568 = vpack.c.b16 %v6511, %v6510
    %v6569 = vpack.c.b16 %v6513, %v6512
    %v6570 = vpack.c.b16 %v6515, %v6514
    %v6571 = vpack.c.b16 %v6517, %v6516
    %v6572 = vpack.c.b16 %v6519, %v6518
    %v6573 = vpack.c.b16 %v6521, %v6520
    %v6574 = vpack.c.b16 %v6523, %v6522
    %v6575 = vpack.c.b16 %v6525, %v6524
    %v6576 = vpack.c.b16 %v6527, %v6526
    %v6577 = vpack.c.b16 %v6529, %v6528
    %v6578 = vpack.c.b16 %v6531, %v6530
    %v6579 = vpack.c.b16 %v6533, %v6532
    %v6580 = vpack.c.b16 %v6535, %v6534
    %v6581 = vpack.c.b16 %v6537, %v6536
    %v6582 = vpack.c.b16 %v6539, %v6538
    %v6583 = vpack.c.b16 %v6541, %v6540
    %v6584 = vpack.c.b16 %v6543, %v6542
    %v6585 = vpack.c.b16 %v6545, %v6544
    %v6586 = vpack.c.b16 %v6547, %v6546
    %v6587 = vpack.c.b16 %v6549, %v6548
    %v6588 = vpack.c.b16 %v6551, %v6550
    %v6589 = vpack.c.b16 %v6553, %v6552
    %v6590 = vpack.c.b16 %v6555, %v6554
    %v6591 = vpack.c.b16 %v6557, %v6556
    %v6592 = vpack.c.b16 %v6559, %v6558
    %v6593 = vpack.c.b16 %v6561, %v6560
    %6626 = vmatprep.subr.bf16.mxu0 0
    %6627 = vmatpush1.bf16.msra.mxu0 %v6569
    %6628 = vmatprep.subr.bf16.mxu0 0
    %6629 = vmatpush1.bf16.msra.mxu0 %v6568
    %6630 = vmatprep.subr.bf16.mxu0 0
    %6631 = vmatpush1.bf16.msra.mxu0 %v6567
    %6632 = vmatprep.subr.bf16.mxu0 0
    %6633 = vmatpush1.bf16.msra.mxu0 %v6566
    %6634 = vmatprep.subr.bf16.mxu0 0
    %6635 = vmatpush1.bf16.msra.mxu0 %v6565
    %6636 = vmatprep.subr.bf16.mxu0 0
    %6637 = vmatpush1.bf16.msra.mxu0 %v6564
    %6638 = vmatprep.subr.bf16.mxu0 0
    %6639 = vmatpush1.bf16.msra.mxu0 %v6563
    %6640 = vmatprep.subr.bf16.mxu0 0
    %6641 = vmatpush1.bf16.msra.mxu0 %v6562
    %6642 = vmatprep.subr.bf16.mxu0 0
    %6643 = vmatpush2.bf16.msra.mxu0 %v6577
    %6644 = vmatprep.subr.bf16.mxu0 0
    %6645 = vmatpush2.bf16.msra.mxu0 %v6576
    %6646 = vmatprep.subr.bf16.mxu0 0
    %6647 = vmatpush2.bf16.msra.mxu0 %v6575
    %6648 = vmatprep.subr.bf16.mxu0 0
    %6649 = vmatpush2.bf16.msra.mxu0 %v6574
    %6650 = vmatprep.subr.bf16.mxu0 0
    %6651 = vmatpush2.bf16.msra.mxu0 %v6573
    %6652 = vmatprep.subr.bf16.mxu0 0
    %6653 = vmatpush2.bf16.msra.mxu0 %v6572
    %6654 = vmatprep.subr.bf16.mxu0 0
    %6655 = vmatpush2.bf16.msra.mxu0 %v6571
    %6656 = vmatprep.subr.bf16.mxu0 0
    %6657 = vmatpush2.bf16.msra.mxu0 %v6570
    %6658 = vmatprep.mubr.bf16.mxu0 %v6348
    %6659 = vmatmul.mubr.bf16.gmra.mxu0 %v6347
    %v6660 = vpop.f32.mrf.mxu0
    %v6661 = vadd.f32 %v6432, %v6660
    %v6662 = vpop.f32.mrf.mxu0
    %v6663 = vpop.f32.mrf.mxu0
    %v6664 = vadd.f32 %v6432, %v6663
    %v6665 = vpop.f32.mrf.mxu0
    %6666 = vmatprep.mubr.bf16.mxu0 %v6352
    %6667 = vmatmul.mubr.bf16.gmra.mxu0 %v6351
    %v6668 = vpop.f32.mrf.mxu0
    %v6669 = vadd.f32 %v6432, %v6668
    %v6670 = vpop.f32.mrf.mxu0
    %v6671 = vpop.f32.mrf.mxu0
    %v6672 = vadd.f32 %v6432, %v6671
    %v6673 = vpop.f32.mrf.mxu0
    %6674 = vmatprep.mubr.bf16.mxu0 %v6356
    %6675 = vmatmul.mubr.bf16.gmra.mxu0 %v6355
    %v6676 = vpop.f32.mrf.mxu0
    %v6677 = vadd.f32 %v6432, %v6676
    %v6678 = vpop.f32.mrf.mxu0
    %v6679 = vpop.f32.mrf.mxu0
    %v6680 = vadd.f32 %v6432, %v6679
    %v6681 = vpop.f32.mrf.mxu0
    %6682 = vmatprep.mubr.bf16.mxu0 %v6360
    %6683 = vmatmul.mubr.bf16.gmra.mxu0 %v6359
    %v6684 = vpop.f32.mrf.mxu0
    %v6685 = vadd.f32 %v6432, %v6684
    %v6686 = vpop.f32.mrf.mxu0
    %v6687 = vpop.f32.mrf.mxu0
    %v6688 = vadd.f32 %v6432, %v6687
    %v6689 = vpop.f32.mrf.mxu0
    %6690 = vdwg.mxu0
    %6691 = vmatprep.subr.bf16.mxu0 0
    %6692 = vmatpush1.bf16.msra.mxu0 %v6585
    %6693 = vmatprep.subr.bf16.mxu0 0
    %6694 = vmatpush1.bf16.msra.mxu0 %v6584
    %6695 = vmatprep.subr.bf16.mxu0 0
    %6696 = vmatpush1.bf16.msra.mxu0 %v6583
    %6697 = vmatprep.subr.bf16.mxu0 0
    %6698 = vmatpush1.bf16.msra.mxu0 %v6582
    %6699 = vmatprep.subr.bf16.mxu0 0
    %6700 = vmatpush1.bf16.msra.mxu0 %v6581
    %6701 = vmatprep.subr.bf16.mxu0 0
    %6702 = vmatpush1.bf16.msra.mxu0 %v6580
    %6703 = vmatprep.subr.bf16.mxu0 0
    %6704 = vmatpush1.bf16.msra.mxu0 %v6579
    %6705 = vmatprep.subr.bf16.mxu0 0
    %6706 = vmatpush1.bf16.msra.mxu0 %v6578
    %6707 = vmatprep.subr.bf16.mxu0 0
    %6708 = vmatpush2.bf16.msra.mxu0 %v6593
    %6709 = vmatprep.subr.bf16.mxu0 0
    %6710 = vmatpush2.bf16.msra.mxu0 %v6592
    %6711 = vmatprep.subr.bf16.mxu0 0
    %6712 = vmatpush2.bf16.msra.mxu0 %v6591
    %6713 = vmatprep.subr.bf16.mxu0 0
    %6714 = vmatpush2.bf16.msra.mxu0 %v6590
    %6715 = vmatprep.subr.bf16.mxu0 0
    %6716 = vmatpush2.bf16.msra.mxu0 %v6589
    %6717 = vmatprep.subr.bf16.mxu0 0
    %6718 = vmatpush2.bf16.msra.mxu0 %v6588
    %6719 = vmatprep.subr.bf16.mxu0 0
    %6720 = vmatpush2.bf16.msra.mxu0 %v6587
    %6721 = vmatprep.subr.bf16.mxu0 0
    %6722 = vmatpush2.bf16.msra.mxu0 %v6586
    %6723 = vmatprep.mubr.bf16.mxu0 %v6350
    %6724 = vmatmul.mubr.bf16.gmra.mxu0 %v6349
    %v6725 = vpop.f32.mrf.mxu0
    %v6726 = vadd.f32 %v6661, %v6725
    %v6727 = vpop.f32.mrf.mxu0
    %v6728 = vpop.f32.mrf.mxu0
    %v6729 = vadd.f32 %v6664, %v6728
    %v6730 = vpop.f32.mrf.mxu0
    %6731 = vmatprep.mubr.bf16.mxu0 %v6354
    %6732 = vmatmul.mubr.bf16.gmra.mxu0 %v6353
    %v6733 = vpop.f32.mrf.mxu0
    %v6734 = vadd.f32 %v6669, %v6733
    %v6735 = vpop.f32.mrf.mxu0
    %v6736 = vpop.f32.mrf.mxu0
    %v6737 = vadd.f32 %v6672, %v6736
    %v6738 = vpop.f32.mrf.mxu0
    %6739 = vmatprep.mubr.bf16.mxu0 %v6358
    %6740 = vmatmul.mubr.bf16.gmra.mxu0 %v6357
    %v6741 = vpop.f32.mrf.mxu0
    %v6742 = vadd.f32 %v6677, %v6741
    %v6743 = vpop.f32.mrf.mxu0
    %v6744 = vpop.f32.mrf.mxu0
    %v6745 = vadd.f32 %v6680, %v6744
    %v6746 = vpop.f32.mrf.mxu0
    %6747 = vmatprep.mubr.bf16.mxu0 %v6362
    %6748 = vmatmul.mubr.bf16.gmra.mxu0 %v6361
    %v6749 = vpop.f32.mrf.mxu0
    %v6750 = vadd.f32 %v6685, %v6749
    %v6751 = vpop.f32.mrf.mxu0
    %v6752 = vpop.f32.mrf.mxu0
    %v6753 = vadd.f32 %v6688, %v6752
    %v6754 = vpop.f32.mrf.mxu0
    %6755 = vdwg.mxu0
    %v6756 = vmax.f32 %v6726, 0.0
    %v6757 = vmax.f32 %v6729, 0.0
    %v6758 = vmax.f32 %v6734, 0.0
    %v6759 = vmax.f32 %v6737, 0.0
    %v6760 = vmax.f32 %v6742, 0.0
    %v6761 = vmax.f32 %v6745, 0.0
    %v6762 = vmax.f32 %v6750, 0.0
    %v6763 = vmax.f32 %v6753, 0.0
    %v6764 = vand.u32 2147483647, %v6726
    %v6765 = vand.u32 2147483647, %v6729
    %v6766 = vand.u32 2147483647, %v6734
    %v6767 = vand.u32 2147483647, %v6737
    %v6768 = vand.u32 2147483647, %v6742
    %v6769 = vand.u32 2147483647, %v6745
    %v6770 = vand.u32 2147483647, %v6750
    %v6771 = vand.u32 2147483647, %v6753
    %v6772 = vsub.f32 0.0, %v6764
    %v6773 = vsub.f32 0.0, %v6765
    %v6774 = vsub.f32 0.0, %v6766
    %v6775 = vsub.f32 0.0, %v6767
    %v6776 = vsub.f32 0.0, %v6768
    %v6777 = vsub.f32 0.0, %v6769
    %v6778 = vsub.f32 0.0, %v6770
    %v6779 = vsub.f32 0.0, %v6771
    %v6780 = vmul.f32 %v6772, 1.442695
    %v6781 = vpow.pop %v6780
    %v6782 = vmul.f32 %v6773, 1.442695
    %v6783 = vpow.pop %v6782
    %v6784 = vmul.f32 %v6774, 1.442695
    %v6785 = vpow.pop %v6784
    %v6786 = vmul.f32 %v6775, 1.442695
    %v6787 = vpow.pop %v6786
    %v6788 = vmul.f32 %v6776, 1.442695
    %v6789 = vpow.pop %v6788
    %v6790 = vmul.f32 %v6777, 1.442695
    %v6791 = vpow.pop %v6790
    %v6792 = vmul.f32 %v6778, 1.442695
    %v6793 = vpow.pop %v6792
    %v6794 = vmul.f32 %v6779, 1.442695
    %v6795 = vpow.pop %v6794
    %v6796 = vadd.f32 %v6781, 1.0
    %v6797 = vadd.f32 %v6783, 1.0
    %v6798 = vadd.f32 %v6785, 1.0
    %v6799 = vadd.f32 %v6787, 1.0
    %v6800 = vadd.f32 %v6789, 1.0
    %v6801 = vadd.f32 %v6791, 1.0
    %v6802 = vadd.f32 %v6793, 1.0
    %v6803 = vadd.f32 %v6795, 1.0
    %v6804 = vlog2.pop %v6796
    %v6805 = vmul.f32 %v6804, 0.6931472
    %v6806 = vlog2.pop %v6797
    %v6807 = vmul.f32 %v6806, 0.6931472
    %v6808 = vlog2.pop %v6798
    %v6809 = vmul.f32 %v6808, 0.6931472
    %v6810 = vlog2.pop %v6799
    %v6811 = vmul.f32 %v6810, 0.6931472
    %v6812 = vlog2.pop %v6800
    %v6813 = vmul.f32 %v6812, 0.6931472
    %v6814 = vlog2.pop %v6801
    %v6815 = vmul.f32 %v6814, 0.6931472
    %v6816 = vlog2.pop %v6802
    %v6817 = vmul.f32 %v6816, 0.6931472
    %v6818 = vlog2.pop %v6803
    %v6819 = vmul.f32 %v6818, 0.6931472
    %v6820 = vadd.f32 %v6756, %v6805
    %v6821 = vadd.f32 %v6757, %v6807
    %v6822 = vadd.f32 %v6758, %v6809
    %v6823 = vadd.f32 %v6759, %v6811
    %v6824 = vadd.f32 %v6760, %v6813
    %v6825 = vadd.f32 %v6761, %v6815
    %v6826 = vadd.f32 %v6762, %v6817
    %v6827 = vadd.f32 %v6763, %v6819
    %v6828 = vld [vmem:[%s3] sm:$0xff]
    %v6829 = vld [vmem:[%s3 + $0x8] sm:$0xff]
    %v6830 = vld [vmem:[%s3 + $0x10] sm:$0xff]
    %v6831 = vld [vmem:[%s3 + $0x18] sm:$0xff]
    %v6832 = vld [vmem:[%s3 + $0x20] sm:$0xff]
    %v6833 = vld [vmem:[%s3 + $0x28] sm:$0xff]
    %v6834 = vld [vmem:[%s3 + $0x30] sm:$0xff]
    %v6835 = vld [vmem:[%s3 + $0x38] sm:$0xff]
    %v6836 = vadd.f32 %v6820, 1e-10
    %v6837 = vadd.f32 %v6821, 1e-10
    %v6838 = vadd.f32 %v6822, 1e-10
    %v6839 = vadd.f32 %v6823, 1e-10
    %v6840 = vadd.f32 %v6824, 1e-10
    %v6841 = vadd.f32 %v6825, 1e-10
    %v6842 = vadd.f32 %v6826, 1e-10
    %v6843 = vadd.f32 %v6827, 1e-10
    %v6844 = vrsqrt.pop %v6836
    %v6845 = vmul.f32 %v6836, %v6844
    %vm6846 = vcmp.eq.f32.partialorder %v6836, inf
    %v6847 = vsel %vm6846, %v6836, %v6845
    %vm6848 = vcmp.eq.f32.partialorder %v6836, 0.0
    %v6849 = vand.u32 %v6836, 2147483648
    %v6850 = vsel %vm6848, %v6849, %v6847
    %v6851 = vrsqrt.pop %v6837
    %v6852 = vmul.f32 %v6837, %v6851
    %vm6853 = vcmp.eq.f32.partialorder %v6837, inf
    %v6854 = vsel %vm6853, %v6837, %v6852
    %vm6855 = vcmp.eq.f32.partialorder %v6837, 0.0
    %v6856 = vand.u32 %v6837, 2147483648
    %v6857 = vsel %vm6855, %v6856, %v6854
    %v6858 = vrsqrt.pop %v6838
    %v6859 = vmul.f32 %v6838, %v6858
    %vm6860 = vcmp.eq.f32.partialorder %v6838, inf
    %v6861 = vsel %vm6860, %v6838, %v6859
    %vm6862 = vcmp.eq.f32.partialorder %v6838, 0.0
    %v6863 = vand.u32 %v6838, 2147483648
    %v6864 = vsel %vm6862, %v6863, %v6861
    %v6865 = vrsqrt.pop %v6839
    %v6866 = vmul.f32 %v6839, %v6865
    %vm6867 = vcmp.eq.f32.partialorder %v6839, inf
    %v6868 = vsel %vm6867, %v6839, %v6866
    %vm6869 = vcmp.eq.f32.partialorder %v6839, 0.0
    %v6870 = vand.u32 %v6839, 2147483648
    %v6871 = vsel %vm6869, %v6870, %v6868
    %v6872 = vrsqrt.pop %v6840
    %v6873 = vmul.f32 %v6840, %v6872
    %vm6874 = vcmp.eq.f32.partialorder %v6840, inf
    %v6875 = vsel %vm6874, %v6840, %v6873
    %vm6876 = vcmp.eq.f32.partialorder %v6840, 0.0
    %v6877 = vand.u32 %v6840, 2147483648
    %v6878 = vsel %vm6876, %v6877, %v6875
    %v6879 = vrsqrt.pop %v6841
    %v6880 = vmul.f32 %v6841, %v6879
    %vm6881 = vcmp.eq.f32.partialorder %v6841, inf
    %v6882 = vsel %vm6881, %v6841, %v6880
    %vm6883 = vcmp.eq.f32.partialorder %v6841, 0.0
    %v6884 = vand.u32 %v6841, 2147483648
    %v6885 = vsel %vm6883, %v6884, %v6882
    %v6886 = vrsqrt.pop %v6842
    %v6887 = vmul.f32 %v6842, %v6886
    %vm6888 = vcmp.eq.f32.partialorder %v6842, inf
    %v6889 = vsel %vm6888, %v6842, %v6887
    %vm6890 = vcmp.eq.f32.partialorder %v6842, 0.0
    %v6891 = vand.u32 %v6842, 2147483648
    %v6892 = vsel %vm6890, %v6891, %v6889
    %v6893 = vrsqrt.pop %v6843
    %v6894 = vmul.f32 %v6843, %v6893
    %vm6895 = vcmp.eq.f32.partialorder %v6843, inf
    %v6896 = vsel %vm6895, %v6843, %v6894
    %vm6897 = vcmp.eq.f32.partialorder %v6843, 0.0
    %v6898 = vand.u32 %v6843, 2147483648
    %v6899 = vsel %vm6897, %v6898, %v6896
    %6908 = vrot.lane.b32.xlu0 %v6850, 96
    %v6909 = vpop.permute.xlu0 %6908
    %6910 = vrot.lane.b32.xlu0 %v6857, 96
    %v6911 = vpop.permute.xlu0 %6910
    %6912 = vrot.lane.b32.xlu0 %v6864, 96
    %v6913 = vpop.permute.xlu0 %6912
    %6914 = vrot.lane.b32.xlu0 %v6871, 96
    %v6915 = vpop.permute.xlu0 %6914
    %6916 = vrot.lane.b32.xlu0 %v6878, 96
    %v6917 = vpop.permute.xlu0 %6916
    %6918 = vrot.lane.b32.xlu0 %v6885, 96
    %v6919 = vpop.permute.xlu0 %6918
    %6920 = vrot.lane.b32.xlu0 %v6892, 96
    %v6921 = vpop.permute.xlu0 %6920
    %6922 = vrot.lane.b32.xlu0 %v6899, 96
    %v6923 = vpop.permute.xlu0 %6922
    %v6932 = vmul.f32 %v6828, %v6909
    %v6933 = vmul.f32 %v6829, %v6911
    %v6934 = vmul.f32 %v6830, %v6913
    %v6935 = vmul.f32 %v6831, %v6915
    %v6936 = vmul.f32 %v6832, %v6917
    %v6937 = vmul.f32 %v6833, %v6919
    %v6938 = vmul.f32 %v6834, %v6921
    %v6939 = vmul.f32 %v6835, %v6923
    %v6940 = vadd.f32 %v6726, %v6932
    %v6941 = vadd.f32 %v6729, %v6933
    %v6942 = vadd.f32 %v6734, %v6934
    %v6943 = vadd.f32 %v6737, %v6935
    %v6944 = vadd.f32 %v6742, %v6936
    %v6945 = vadd.f32 %v6745, %v6937
    %v6946 = vadd.f32 %v6750, %v6938
    %v6947 = vadd.f32 %v6753, %v6939
    %6956 = vrot.lane.b32.xlu0 %v4650, 10
    %v6957 = vpop.permute.xlu0 %6956
    %6958 = vrot.lane.b32.xlu0 %v4651, 10
    %v6959 = vpop.permute.xlu0 %6958
    %6960 = vrot.lane.b32.xlu0 %v4652, 10
    %v6961 = vpop.permute.xlu0 %6960
    %6962 = vrot.lane.b32.xlu0 %v4653, 10
    %v6963 = vpop.permute.xlu0 %6962
    %6964 = vrot.lane.b32.xlu0 %v4654, 10
    %v6965 = vpop.permute.xlu0 %6964
    %6966 = vrot.lane.b32.xlu0 %v4655, 10
    %v6967 = vpop.permute.xlu0 %6966
    %6968 = vrot.lane.b32.xlu0 %v4656, 10
    %v6969 = vpop.permute.xlu0 %6968
    %6970 = vrot.lane.b32.xlu0 %v4657, 10
    %v6971 = vpop.permute.xlu0 %6970
    %6988 = vrot.lane.b32.xlu0 %v4754, 20
    %v6989 = vpop.permute.xlu0 %6988
    %6990 = vrot.lane.b32.xlu0 %v4755, 20
    %v6991 = vpop.permute.xlu0 %6990
    %6992 = vrot.lane.b32.xlu0 %v4756, 20
    %v6993 = vpop.permute.xlu0 %6992
    %6994 = vrot.lane.b32.xlu0 %v4757, 20
    %v6995 = vpop.permute.xlu0 %6994
    %6996 = vrot.lane.b32.xlu0 %v4758, 20
    %v6997 = vpop.permute.xlu0 %6996
    %6998 = vrot.lane.b32.xlu0 %v4759, 20
    %v6999 = vpop.permute.xlu0 %6998
    %7000 = vrot.lane.b32.xlu0 %v4760, 20
    %v7001 = vpop.permute.xlu0 %7000
    %7002 = vrot.lane.b32.xlu0 %v4761, 20
    %v7003 = vpop.permute.xlu0 %7002
    %7020 = vrot.lane.b32.xlu0 %v6726, 30
    %v7021 = vpop.permute.xlu0 %7020
    %7022 = vrot.lane.b32.xlu0 %v6729, 30
    %v7023 = vpop.permute.xlu0 %7022
    %7024 = vrot.lane.b32.xlu0 %v6734, 30
    %v7025 = vpop.permute.xlu0 %7024
    %7026 = vrot.lane.b32.xlu0 %v6737, 30
    %v7027 = vpop.permute.xlu0 %7026
    %7028 = vrot.lane.b32.xlu0 %v6742, 30
    %v7029 = vpop.permute.xlu0 %7028
    %7030 = vrot.lane.b32.xlu0 %v6745, 30
    %v7031 = vpop.permute.xlu0 %7030
    %7032 = vrot.lane.b32.xlu0 %v6750, 30
    %v7033 = vpop.permute.xlu0 %7032
    %7034 = vrot.lane.b32.xlu0 %v6753, 30
    %v7035 = vpop.permute.xlu0 %7034
    %7052 = vrot.lane.b32.xlu0 %v6820, 30
    %v7053 = vpop.permute.xlu0 %7052
    %7054 = vrot.lane.b32.xlu0 %v6821, 30
    %v7055 = vpop.permute.xlu0 %7054
    %7056 = vrot.lane.b32.xlu0 %v6822, 30
    %v7057 = vpop.permute.xlu0 %7056
    %7058 = vrot.lane.b32.xlu0 %v6823, 30
    %v7059 = vpop.permute.xlu0 %7058
    %7060 = vrot.lane.b32.xlu0 %v6824, 30
    %v7061 = vpop.permute.xlu0 %7060
    %7062 = vrot.lane.b32.xlu0 %v6825, 30
    %v7063 = vpop.permute.xlu0 %7062
    %7064 = vrot.lane.b32.xlu0 %v6826, 30
    %v7065 = vpop.permute.xlu0 %7064
    %7066 = vrot.lane.b32.xlu0 %v6827, 30
    %v7067 = vpop.permute.xlu0 %7066
    %7084 = vrot.lane.b32.xlu0 %v6940, 94
    %v7085 = vpop.permute.xlu0 %7084
    %7086 = vrot.lane.b32.xlu0 %v6941, 94
    %v7087 = vpop.permute.xlu0 %7086
    %7088 = vrot.lane.b32.xlu0 %v6942, 94
    %v7089 = vpop.permute.xlu0 %7088
    %7090 = vrot.lane.b32.xlu0 %v6943, 94
    %v7091 = vpop.permute.xlu0 %7090
    %7092 = vrot.lane.b32.xlu0 %v6944, 94
    %v7093 = vpop.permute.xlu0 %7092
    %7094 = vrot.lane.b32.xlu0 %v6945, 94
    %v7095 = vpop.permute.xlu0 %7094
    %7096 = vrot.lane.b32.xlu0 %v6946, 94
    %v7097 = vpop.permute.xlu0 %7096
    %7098 = vrot.lane.b32.xlu0 %v6947, 94
    %v7099 = vpop.permute.xlu0 %7098
    %v7108 = vsel %vm4569, %v4539, %v6957
    %v7109 = vsel %vm4569, %v4542, %v6959
    %v7110 = vsel %vm4569, %v4547, %v6961
    %v7111 = vsel %vm4569, %v4550, %v6963
    %v7112 = vsel %vm4569, %v4555, %v6965
    %v7113 = vsel %vm4569, %v4558, %v6967
    %v7114 = vsel %vm4569, %v4563, %v6969
    %v7115 = vsel %vm4569, %v4566, %v6971
    %vm7116 = vcmask 162816
    %v7117 = vsel %vm7116, %v7108, %v6989
    %v7118 = vsel %vm7116, %v7109, %v6991
    %v7119 = vsel %vm7116, %v7110, %v6993
    %v7120 = vsel %vm7116, %v7111, %v6995
    %v7121 = vsel %vm7116, %v7112, %v6997
    %v7122 = vsel %vm7116, %v7113, %v6999
    %v7123 = vsel %vm7116, %v7114, %v7001
    %v7124 = vsel %vm7116, %v7115, %v7003
    %vm7125 = vcmask 244736
    %v7126 = vsel %vm7125, %v7117, %v7021
    %v7127 = vsel %vm7125, %v7118, %v7023
    %v7128 = vsel %vm7125, %v7119, %v7025
    %v7129 = vsel %vm7125, %v7120, %v7027
    %v7130 = vsel %vm7125, %v7121, %v7029
    %v7131 = vsel %vm7125, %v7122, %v7031
    %v7132 = vsel %vm7125, %v7123, %v7033
    %v7133 = vsel %vm7125, %v7124, %v7035
    %vm7134 = vcmask 506880
    %v7135 = vsel %vm7134, %v7126, %v7053
    %v7136 = vsel %vm7134, %v7127, %v7055
    %v7137 = vsel %vm7134, %v7128, %v7057
    %v7138 = vsel %vm7134, %v7129, %v7059
    %v7139 = vsel %vm7134, %v7130, %v7061
    %v7140 = vsel %vm7134, %v7131, %v7063
    %v7141 = vsel %vm7134, %v7132, %v7065
    %v7142 = vsel %vm7134, %v7133, %v7067
    %vm7143 = vcmask 769024
    %v7144 = vsel %vm7143, %v7135, %v7085
    %v7145 = vsel %vm7143, %v7136, %v7087
    %v7146 = vsel %vm7143, %v7137, %v7089
    %v7147 = vsel %vm7143, %v7138, %v7091
    %v7148 = vsel %vm7143, %v7139, %v7093
    %v7149 = vsel %vm7143, %v7140, %v7095
    %v7150 = vsel %vm7143, %v7141, %v7097
    %v7151 = vsel %vm7143, %v7142, %v7099
    %vm7152 = vcmask 1031168
    %v7153 = vsel %vm7152, %v7144, 0.0
    %v7154 = vsel %vm7152, %v7145, 0.0
    %v7155 = vsel %vm7152, %v7146, 0.0
    %v7156 = vsel %vm7152, %v7147, 0.0
    %v7157 = vsel %vm7152, %v7148, 0.0
    %v7158 = vsel %vm7152, %v7149, 0.0
    %v7159 = vsel %vm7152, %v7150, 0.0
    %v7160 = vsel %vm7152, %v7151, 0.0
    %7161 = vst [vmem:[#allocation29] sm:$0xff] %v7153
    %7162 = vst [vmem:[#allocation29 + $0x8] sm:$0xff] %v7154
    %7163 = vst [vmem:[#allocation29 + $0x10] sm:$0xff] %v7155
    %7164 = vst [vmem:[#allocation29 + $0x18] sm:$0xff] %v7156
    %7165 = vst [vmem:[#allocation29 + $0x20] sm:$0xff] %v7157
    %7166 = vst [vmem:[#allocation29 + $0x28] sm:$0xff] %v7158
    %7167 = vst [vmem:[#allocation29 + $0x30] sm:$0xff] %v7159
    %7168 = vst [vmem:[#allocation29 + $0x38] sm:$0xff] %v7160
    // Predicated region
    $region134: #{tpu_custom_call.1} parent=1 // pred_check
      _
    $region135: #{tpu_custom_call.1} parent=1 // pred_check_branch
      %7170 = sbr.rel (0) target = $region137
    $region136: #{tpu_custom_call.1} parent=1 // pred_region
      %s7172 = ssub.s32 1024, 1024
      %7173 = vsyncadd [#allocation7], %s7172
      %s7174 = sshll.u32 [#allocation28], 4
      %s7175 = int_to_ptr.vmem [resolvable:$true] %s7174
      %7180 = dma.vmem_to_hbm [thread:$0]  %s7175, 1024, %s19, [#allocation7], 128, 128, 8
    $region137: #{tpu_custom_call.1} parent=1 // pred_fallthru
      _
    // Predicated region
    $region138: #{tpu_custom_call.1} parent=1 // pred_check
      _
    $region139: #{tpu_custom_call.1} parent=1 // pred_check_branch
      %7182 = sbr.rel (0) target = $region141
    $region140: #{tpu_custom_call.1} parent=1 // pred_region
      %s7184 = ssub.s32 1024, 1024
      %7185 = vsyncadd [#allocation30], %s7184
      %s7186 = sshll.u32 [#allocation29], 4
      %s7187 = int_to_ptr.vmem [resolvable:$true] %s7186
      %7192 = dma.vmem_to_hbm [thread:$0]  %s7187, 1024, %s20, [#allocation30], 128, 128, 8
    $region141: #{tpu_custom_call.1} parent=1 // pred_fallthru
      _
    // Predicated region
    $region142: #{tpu_custom_call.1} parent=1 // pred_check
      _
    $region143: #{tpu_custom_call.1} parent=1 // pred_check_branch
      %7194 = sbr.rel (0) target = $region145
    $region144: #{tpu_custom_call.1} parent=1 // pred_region
      %7195 = dma.done [#allocation7], 1024
    $region145: #{tpu_custom_call.1} parent=1 // pred_fallthru
      _
    // Predicated region
    $region146: #{tpu_custom_call.1} parent=1 // pred_check
      _
    $region147: #{tpu_custom_call.1} parent=1 // pred_check_branch
      %7197 = sbr.rel (0) target = $region149
    $region148: #{tpu_custom_call.1} parent=1 // pred_region
      %7198 = dma.done [#allocation30], 1024
    $region149: #{tpu_custom_call.1} parent=1 // pred_fallthru
      _
    %7199 = vsyncpa [#allocation6], 1
    %7200 = vsyncpa [#allocation9], 1
    %7201 = vsyncpa [#allocation12], 1
    %7202 = vsyncpa [#allocation15], 1
    %7203 = vsyncpa [#allocation18], 1
    %7204 = vsyncpa [#allocation21], 1
    %7205 = vsyncpa [#allocation24], 1
    %7206 = vsyncpa [#allocation27], 1
    %7207 = vsyncpa [#allocation7], 1
    %7208 = vsyncpa [#allocation30], 1
  %7209 = vsyncmov [#allocation4]
  %s7210 = vpop.sfrf %7209
  %p7211 = scmp.eq.s32.totalorder %s7210, 0
  %p7212 = pneg %p7211
  %7214 = shalt.err (%p7212)

</llo_original>
